<compile_context>
chip_gen: v7x
topology: tpu7x:2x2x1
jax: 0.10.0
libtpu: 0.0.40
codegen_flags: <defaults>
</compile_context>

<pallas_src>
import functools

import numpy as np

import jax
import jax.numpy as jnp
from jax.experimental import pallas as pl
from jax.experimental.pallas import tpu as pltpu


CFG = dict(n_fft=64, hop=32, win=64, sr=16000, n_mels=16,
           first_channels=8, logits_size=16, emb_width_wav=32)
FPAD = 64       # 33 rFFT bins padded to 64 so [re | im] per frame is lane-dense
LEAKY = 0.01


# ----------------------------------------------------------------------------
# The single fused kernel
# ----------------------------------------------------------------------------
def _joined_kernel(x_ref, xw_ref, dft_ref, opm_ref, b1_ref, op2_ref, b2_ref,
                   ww1_ref, wb1_ref, ww2_ref, wb2_ref,
                   fcm_w_ref, fcm_b_ref, fcw_w_ref, fcw_b_ref,
                   o_ref, *, n_spec, batch, wav_rows, wav_valid, leaky):
    # ---------------- mel / FFT branch ----------------
    # framing + Hann window + rDFT as ONE block-sparse operator:
    # (Bp, T) @ (T, 2*n_spec) -> [re | im] per (frame, freq), lane-dense.
    spec = jnp.dot(x_ref[...].astype(jnp.bfloat16), dft_ref[...],
                   preferred_element_type=jnp.float32)            # (Bp, 2*n_spec)
    power = spec[:, :n_spec] ** 2 + spec[:, n_spec:] ** 2          # (Bp, n_spec) f32

    # mel filterbank folded into the conv1 (3x3, s2) operator; kept f32.
    h1 = jnp.dot(power, opm_ref[...],
                 preferred_element_type=jnp.float32) + b1_ref[...]  # (Bp, C1*OH1*OW1)
    h1 = jnp.where(h1 > 0, h1, leaky * h1)

    # conv2 (3x3, s2): all output time columns in ONE matmul (N = 4*emb_mel),
    # max-over-time pooling as 3 lane-slice maximums.
    z = jnp.dot(h1.astype(jnp.bfloat16), op2_ref[...],
                preferred_element_type=jnp.float32) + b2_ref[...]   # (Bp, 4*emb_mel)
    z = jnp.where(z > 0, z, leaky * z)
    e = z.shape[1] // 4
    pooled_mel = jnp.maximum(jnp.maximum(z[:, :e], z[:, e:2 * e]),
                             jnp.maximum(z[:, 2 * e:3 * e], z[:, 3 * e:]))

    # ---------------- wav branch ----------------
    # conv1 (k=s=4) as a block-diagonal grouped matmul over 16-sample rows,
    # conv2 (k=s=4) as a plain matmul; both fused, nothing leaves VMEM.
    g1 = jnp.dot(xw_ref[...].astype(jnp.bfloat16), ww1_ref[...],
                 preferred_element_type=jnp.float32) + wb1_ref[...]
    g1 = jnp.maximum(g1, 0.0)
    g2 = jnp.dot(g1.astype(jnp.bfloat16), ww2_ref[...],
                 preferred_element_type=jnp.float32) + wb2_ref[...]
    g2 = jnp.maximum(g2, 0.0)                                      # (Bp*rows, emb_wav)

    # max over time: rows are batch-major and padded to a multiple of 8, so the
    # reshape is a pure tile regrouping; padded rows are masked with -inf.
    g3 = g2.reshape(batch, wav_rows, g2.shape[1])
    valid = jax.lax.broadcasted_iota(jnp.int32, g3.shape, 1) < wav_valid
    pooled_wav = jnp.max(jnp.where(valid, g3, -jnp.inf), axis=1)   # (Bp, emb_wav)

    # ---------------- both fc heads + log_softmax + (mel + wav)/2 ----------------
    # N=2 heads stay off the MXU: VPU broadcast-multiply + lane reduction.
    def log_probs(pooled, wt_ref, b_ref):
        l0 = jnp.sum(pooled * wt_ref[0:1, :], axis=-1, keepdims=True)
        l1 = jnp.sum(pooled * wt_ref[1:2, :], axis=-1, keepdims=True)
        logits = jnp.concatenate([l0, l1], axis=-1) + b_ref[...]
        m = jnp.max(logits, axis=-1, keepdims=True)
        lse = jnp.log(jnp.sum(jnp.exp(logits - m), axis=-1, keepdims=True)) + m
        return logits - lse

    o_ref[...] = 0.5 * (log_probs(pooled_mel, fcm_w_ref, fcm_b_ref) +
                        log_probs(pooled_wav, fcw_w_ref, fcw_b_ref))


# ----------------------------------------------------------------------------
# Wrapper (grid=(1,), whole-array blocks — everything fits in VMEM)
# ----------------------------------------------------------------------------
def _full_spec(shape):
    nd = len(shape)
    return pl.BlockSpec(tuple(shape), lambda i, _nd=nd: (0,) * _nd)


def joined_discriminator_forward(x, params):
    cfg = CFG
    B, T = x.shape
    assert T % 16 == 0 and T >= cfg['n_fft']
    Bp = ((B + 7) // 8) * 8                      # pad batch to f32 sublane count
    nf = (T - cfg['n_fft']) // cfg['hop'] + 1
    n_spec = nf * FPAD
    t_pad = ((T + 127) // 128) * 128             # wav rows/batch -> multiple of 8
    wav_rows = t_pad // 16
    wav_valid = T // 16

    x_p = jnp.pad(x, ((0, Bp - B), (0, 0)))
    xw = jnp.pad(x_p, ((0, 0), (0, t_pad - T))).reshape(Bp * wav_rows, 16)

    args = (x_p, xw, params['dft_big'], params['op_mel'], params['b1f'],
            params['op2cat'], params['b2cat'],
            params['wav_w1g'], params['wav_b1g'],
            params['wav_w2m'], params['wav_b2'],
            params['fc_mel_wt'], params['fc_mel_b'],
            params['fc_wav_wt'], params['fc_wav_b'])

    out = pl.pallas_call(
        functools.partial(_joined_kernel, n_spec=n_spec, batch=Bp,
                          wav_rows=wav_rows, wav_valid=wav_valid, leaky=LEAKY),
        out_shape=jax.ShapeDtypeStruct((Bp, 2), jnp.float32),
        grid=(1,),
        in_specs=[_full_spec(a.shape) for a in args],
        out_specs=_full_spec((Bp, 2)),
        compiler_params=pltpu.CompilerParams(
            dimension_semantics=("arbitrary",),
            vmem_limit_bytes=32 * 1024 * 1024),
    )(*args)
    return out[:B]


# ----------------------------------------------------------------------------
# Parameter / operator construction (init-time numpy — constant folding)
# ----------------------------------------------------------------------------
def mel_filterbank_np(n_mels, n_fft, sr):
    n_freqs = n_fft // 2 + 1

    def hz_to_mel(f):
        return 2595.0 * np.log10(1.0 + f / 700.0)

    def mel_to_hz(m):
        return 700.0 * (10.0 ** (m / 2595.0) - 1.0)

    mels = np.linspace(hz_to_mel(0.0), hz_to_mel(sr / 2.0), n_mels + 2)
    hz = mel_to_hz(mels)
    freqs = np.linspace(0.0, sr / 2.0, n_freqs)
    lower = (freqs[None, :] - hz[:-2, None]) / (hz[1:-1, None] - hz[:-2, None])
    upper = (hz[2:, None] - freqs[None, :]) / (hz[2:, None] - hz[1:-1, None])
    fb = np.maximum(0.0, np.minimum(lower, upper))
    return fb.astype(np.float32)                                  # (n_mels, n_freqs)


def windowed_dft_np(n_fft, fpad):
    """Hann window folded into the real DFT; freq bins zero-padded to fpad."""
    n_freqs = n_fft // 2 + 1
    win = 0.5 * (1.0 - np.cos(2.0 * np.pi * np.arange(n_fft) / n_fft))
    k = np.arange(n_fft, dtype=np.float64)[:, None]
    f = np.arange(n_freqs, dtype=np.float64)[None, :]
    ang = 2.0 * np.pi * k * f / n_fft
    re = np.zeros((n_fft, fpad), np.float32)
    im = np.zeros((n_fft, fpad), np.float32)
    re[:, :n_freqs] = (np.cos(ang) * win[:, None]).astype(np.float32)
    im[:, :n_freqs] = (-np.sin(ang) * win[:, None]).astype(np.float32)
    return re, im


def framed_dft_operator_np(T, n_fft, hop, nf, fpad):
    """Block-sparse (T, 2*nf*fpad) operator: framing + Hann + rDFT in one matmul.
    Output columns are ordered [re(frame, freq) | im(frame, freq)]."""
    re, im = windowed_dft_np(n_fft, fpad)
    n_spec = nf * fpad
    op = np.zeros((T, 2 * n_spec), np.float32)
    for t in range(nf):
        s = t * hop
        op[s:s + n_fft, t * fpad:(t + 1) * fpad] += re
        op[s:s + n_fft, n_spec + t * fpad:n_spec + (t + 1) * fpad] += im
    return op


def conv2d_dense_operator(w, H, W, stride, pad):
    """Dense operator of a 2D conv: (Ci,H,W) flat -> (Co,OH,OW) flat."""
    Co, Ci, kh, kw = w.shape
    OH = (H + 2 * pad - kh) // stride + 1
    OW = (W + 2 * pad - kw) // stride + 1
    op = np.zeros((Ci, H, W, Co, OH, OW), np.float32)
    for co in range(Co):
        for ci in range(Ci):
            for dh in range(kh):
                for dw in range(kw):
                    for oh in range(OH):
                        h = oh * stride + dh - pad
                        if not (0 <= h < H):
                            continue
                        for ow in range(OW):
                            ww = ow * stride + dw - pad
                            if not (0 <= ww < W):
                                continue
                            op[ci, h, ww, co, oh, ow] += w[co, ci, dh, dw]
    return op, OH, OW


def init_params(key, T):
    cfg = CFG
    n_fft, hop, n_mels = cfg['n_fft'], cfg['hop'], cfg['n_mels']
    n_freqs = n_fft // 2 + 1
    nf = (T - n_fft) // hop + 1
    ks = jax.random.split(key, 6)

    def conv_init(k, shape):
        fan_in = int(np.prod(shape[1:]))
        return np.asarray(jax.random.normal(k, shape, jnp.float32)) / np.sqrt(fan_in)

    def fc_init(k, shape):
        return np.asarray(jax.random.normal(k, shape, jnp.float32)) / np.sqrt(shape[0])

    # --- mel (FFT) branch ----------------------------------------------------
    w1 = conv_init(ks[0], (cfg['first_channels'], 1, 3, 3))
    b1 = np.zeros((cfg['first_channels'],), np.float32)
    w2 = conv_init(ks[1], (cfg['logits_size'], cfg['first_channels'], 3, 3))
    b2 = np.zeros((cfg['logits_size'],), np.float32)

    dft_big = framed_dft_operator_np(T, n_fft, hop, nf, FPAD)      # (T, 2*nf*64)

    fb = mel_filterbank_np(n_mels, n_fft, cfg['sr'])               # (n_mels, n_freqs)
    fbT = np.zeros((FPAD, n_mels), np.float32)
    fbT[:n_freqs, :] = fb.T

    op1_full, oh1, ow1 = conv2d_dense_operator(w1, H=n_mels, W=nf, stride=2, pad=1)
    op1_t = op1_full[0].transpose(1, 0, 2, 3, 4).reshape(nf, n_mels, -1)
    # fold mel filterbank into conv1: power spectrum -> conv1, K = nf*FPAD.
    op_mel = np.einsum('km,tmn->tkn', fbT, op1_t).reshape(nf * FPAD, -1)

    op2_full, oh2, ow2 = conv2d_dense_operator(w2, H=oh1, W=ow1, stride=2, pad=1)
    k2 = cfg['first_channels'] * oh1 * ow1
    op2_resh = op2_full.reshape(k2, cfg['logits_size'], oh2, ow2)
    # concat all output time columns along N: (k2, ow2 * logits_size * oh2)
    op2cat = op2_resh.transpose(0, 3, 1, 2).reshape(k2, ow2 * cfg['logits_size'] * oh2)
    emb_mel = cfg['logits_size'] * oh2           # == logits_size * (n_mels // 4)

    # --- wav branch (stride == kernel == 4 twice) ----------------------------
    wv1 = conv_init(ks[2], (16, 1, 4))
    bv1 = np.zeros((16,), np.float32)
    wv2 = conv_init(ks[3], (cfg['emb_width_wav'], 16, 4))
    bv2 = np.zeros((cfg['emb_width_wav'],), np.float32)

    w1g = np.zeros((16, 4 * 16), np.float32)     # block-diagonal grouped conv1
    for d in range(4):
        w1g[d * 4:(d + 1) * 4, d * 16:(d + 1) * 16] = wv1[:, 0, :].T
    b1g = np.tile(bv1, 4)
    w2m = wv2.transpose(2, 1, 0).reshape(4 * 16, cfg['emb_width_wav'])

    return {
        # mel branch
        'dft_big': jnp.asarray(dft_big, jnp.bfloat16),
        'op_mel': jnp.asarray(op_mel, jnp.float32),   # f32: power-spectrum contraction stays full precision
        'b1f': jnp.asarray(np.repeat(b1, oh1 * ow1)[None, :], jnp.float32),
        'op2cat': jnp.asarray(op2cat, jnp.bfloat16),
        'b2cat': jnp.asarray(np.tile(np.repeat(b2, oh2), ow2)[None, :], jnp.float32),
        'fc_mel_wt': jnp.asarray(fc_init(ks[4], (emb_mel, 2)).T, jnp.float32),
        'fc_mel_b': jnp.zeros((1, 2), jnp.float32),
        # wav branch
        'wav_w1g': jnp.asarray(w1g, jnp.bfloat16),
        'wav_b1g': jnp.asarray(b1g[None, :], jnp.float32),
        'wav_w2m': jnp.asarray(w2m, jnp.bfloat16),
        'wav_b2': jnp.asarray(bv2[None, :], jnp.float32),
        'fc_wav_wt': jnp.asarray(fc_init(ks[5], (cfg['emb_width_wav'], 2)).T, jnp.float32),
        'fc_wav_b': jnp.zeros((1, 2), jnp.float32),
    }


# ----------------------------------------------------------------------------
# JoinedDiscriminator forward:  (meldiscriminator(x) + wavdiscriminator(x)) / 2
# ----------------------------------------------------------------------------
if __name__ == "__main__":
    key = jax.random.PRNGKey(0)
    kx, kp = jax.random.split(key)
    B, T = 2, 544                    # 16 STFT frames (n_fft=64, hop=32); T % 16 == 0
    x = jax.random.normal(kx, (B, T), dtype=jnp.float32)
    params = init_params(kp, T)

    fwd = jax.jit(joined_discriminator_forward)
    out = jax.block_until_ready(fwd(x, params))

    assert out.shape == (B, 2), out.shape
    assert bool(jnp.all(jnp.isfinite(out)))
    print("KERNEL_OK")
</pallas_src>

<mosaic_0001>
module attributes {stable_mosaic.version = 11 : i64} {
  func.func @_joined_kernel(%arg0: i32, %arg1: memref<8x544xf32, #tpu.memory_space<vmem>>, %arg2: memref<320x16xf32, #tpu.memory_space<vmem>>, %arg3: memref<544x2048xbf16, #tpu.memory_space<vmem>>, %arg4: memref<1024x512xf32, #tpu.memory_space<vmem>>, %arg5: memref<1x512xf32, #tpu.memory_space<vmem>>, %arg6: memref<512x256xbf16, #tpu.memory_space<vmem>>, %arg7: memref<1x256xf32, #tpu.memory_space<vmem>>, %arg8: memref<16x64xbf16, #tpu.memory_space<vmem>>, %arg9: memref<1x64xf32, #tpu.memory_space<vmem>>, %arg10: memref<64x32xbf16, #tpu.memory_space<vmem>>, %arg11: memref<1x32xf32, #tpu.memory_space<vmem>>, %arg12: memref<2x64xf32, #tpu.memory_space<vmem>>, %arg13: memref<1x2xf32, #tpu.memory_space<vmem>>, %arg14: memref<2x32xf32, #tpu.memory_space<vmem>>, %arg15: memref<1x2xf32, #tpu.memory_space<vmem>>, %arg16: memref<8x2xf32, #tpu.memory_space<vmem>>) attributes {dimension_semantics = [#tpu.dimension_semantics<arbitrary>], iteration_bounds = array<i64: 1>, scalar_prefetch = 0 : i64, scratch_operands = 0 : i64, tpu.core_type = #tpu.core_type<tc>, window_params = [{pipeline_mode = #tpu.pipeline_mode<synchronous>, transform_indices = @transform_0, window_bounds = array<i64: 8, 544>}, {pipeline_mode = #tpu.pipeline_mode<synchronous>, transform_indices = @transform_1, window_bounds = array<i64: 320, 16>}, {pipeline_mode = #tpu.pipeline_mode<synchronous>, transform_indices = @transform_2, window_bounds = array<i64: 544, 2048>}, {pipeline_mode = #tpu.pipeline_mode<synchronous>, transform_indices = @transform_3, window_bounds = array<i64: 1024, 512>}, {pipeline_mode = #tpu.pipeline_mode<synchronous>, transform_indices = @transform_4, window_bounds = array<i64: 1, 512>}, {pipeline_mode = #tpu.pipeline_mode<synchronous>, transform_indices = @transform_5, window_bounds = array<i64: 512, 256>}, {pipeline_mode = #tpu.pipeline_mode<synchronous>, transform_indices = @transform_6, window_bounds = array<i64: 1, 256>}, {pipeline_mode = #tpu.pipeline_mode<synchronous>, transform_indices = @transform_7, window_bounds = array<i64: 16, 64>}, {pipeline_mode = #tpu.pipeline_mode<synchronous>, transform_indices = @transform_8, window_bounds = array<i64: 1, 64>}, {pipeline_mode = #tpu.pipeline_mode<synchronous>, transform_indices = @transform_9, window_bounds = array<i64: 64, 32>}, {pipeline_mode = #tpu.pipeline_mode<synchronous>, transform_indices = @transform_10, window_bounds = array<i64: 1, 32>}, {pipeline_mode = #tpu.pipeline_mode<synchronous>, transform_indices = @transform_11, window_bounds = array<i64: 2, 64>}, {pipeline_mode = #tpu.pipeline_mode<synchronous>, transform_indices = @transform_12, window_bounds = array<i64: 1, 2>}, {pipeline_mode = #tpu.pipeline_mode<synchronous>, transform_indices = @transform_13, window_bounds = array<i64: 2, 32>}, {pipeline_mode = #tpu.pipeline_mode<synchronous>, transform_indices = @transform_14, window_bounds = array<i64: 1, 2>}, {pipeline_mode = #tpu.pipeline_mode<synchronous>, transform_indices = @transform_15, window_bounds = array<i64: 8, 2>}]} {
    %c0 = arith.constant 0 : index
    %c0_0 = arith.constant 0 : index
    %0 = vector.load %arg1[%c0, %c0_0] : memref<8x544xf32, #tpu.memory_space<vmem>>, vector<8x544xf32>
    %1 = arith.truncf %0 : vector<8x544xf32> to vector<8x544xbf16>
    %c0_1 = arith.constant 0 : index
    %c0_2 = arith.constant 0 : index
    %2 = vector.load %arg3[%c0_1, %c0_2] : memref<544x2048xbf16, #tpu.memory_space<vmem>>, vector<544x2048xbf16>
    %cst = arith.constant dense<0.000000e+00> : vector<8x2048xf32>
    %3 = tpu.matmul %1, %2, %cst {dimension_numbers = #tpu.dot_dimension_numbers<[1], [0], [0], [1], [0, 0, 1, 1], [], []>} : vector<8x544xbf16>, vector<544x2048xbf16>, vector<8x2048xf32> -> vector<8x2048xf32>
    %4 = vector.extract_strided_slice %3 {offsets = [0, 0], sizes = [8, 1024], strides = [1, 1]} : vector<8x2048xf32> to vector<8x1024xf32>
    %5 = arith.mulf %4, %4 : vector<8x1024xf32>
    %6 = vector.extract_strided_slice %3 {offsets = [0, 1024], sizes = [8, 1024], strides = [1, 1]} : vector<8x2048xf32> to vector<8x1024xf32>
    %7 = arith.mulf %6, %6 : vector<8x1024xf32>
    %8 = arith.addf %5, %7 : vector<8x1024xf32>
    %c0_3 = arith.constant 0 : index
    %c0_4 = arith.constant 0 : index
    %9 = vector.load %arg4[%c0_3, %c0_4] : memref<1024x512xf32, #tpu.memory_space<vmem>>, vector<1024x512xf32>
    %cst_5 = arith.constant dense<0.000000e+00> : vector<8x512xf32>
    %10 = tpu.matmul %8, %9, %cst_5 {dimension_numbers = #tpu.dot_dimension_numbers<[1], [0], [0], [1], [0, 0, 1, 1], [], []>} : vector<8x1024xf32>, vector<1024x512xf32>, vector<8x512xf32> -> vector<8x512xf32>
    %c0_6 = arith.constant 0 : index
    %c0_7 = arith.constant 0 : index
    %11 = vector.load %arg5[%c0_6, %c0_7] : memref<1x512xf32, #tpu.memory_space<vmem>>, vector<1x512xf32>
    %12 = vector.broadcast %11 : vector<1x512xf32> to vector<8x512xf32>
    %13 = arith.addf %10, %12 : vector<8x512xf32>
    %cst_8 = arith.constant 0.000000e+00 : f32
    %14 = vector.broadcast %cst_8 : f32 to vector<8x512xf32>
    %15 = arith.cmpf ogt, %13, %14 : vector<8x512xf32>
    %cst_9 = arith.constant 0.00999999977 : f32
    %16 = vector.broadcast %cst_9 : f32 to vector<8x512xf32>
    %17 = arith.mulf %16, %13 : vector<8x512xf32>
    %18 = arith.select %15, %13, %17 : vector<8x512xi1>, vector<8x512xf32>
    %19 = arith.truncf %18 : vector<8x512xf32> to vector<8x512xbf16>
    %c0_10 = arith.constant 0 : index
    %c0_11 = arith.constant 0 : index
    %20 = vector.load %arg6[%c0_10, %c0_11] : memref<512x256xbf16, #tpu.memory_space<vmem>>, vector<512x256xbf16>
    %cst_12 = arith.constant dense<0.000000e+00> : vector<8x256xf32>
    %21 = tpu.matmul %19, %20, %cst_12 {dimension_numbers = #tpu.dot_dimension_numbers<[1], [0], [0], [1], [0, 0, 1, 1], [], []>} : vector<8x512xbf16>, vector<512x256xbf16>, vector<8x256xf32> -> vector<8x256xf32>
    %c0_13 = arith.constant 0 : index
    %c0_14 = arith.constant 0 : index
    %22 = vector.load %arg7[%c0_13, %c0_14] : memref<1x256xf32, #tpu.memory_space<vmem>>, vector<1x256xf32>
    %23 = vector.broadcast %22 : vector<1x256xf32> to vector<8x256xf32>
    %24 = arith.addf %21, %23 : vector<8x256xf32>
    %cst_15 = arith.constant 0.000000e+00 : f32
    %25 = vector.broadcast %cst_15 : f32 to vector<8x256xf32>
    %26 = arith.cmpf ogt, %24, %25 : vector<8x256xf32>
    %cst_16 = arith.constant 0.00999999977 : f32
    %27 = vector.broadcast %cst_16 : f32 to vector<8x256xf32>
    %28 = arith.mulf %27, %24 : vector<8x256xf32>
    %29 = arith.select %26, %24, %28 : vector<8x256xi1>, vector<8x256xf32>
    %30 = vector.extract_strided_slice %29 {offsets = [0, 0], sizes = [8, 64], strides = [1, 1]} : vector<8x256xf32> to vector<8x64xf32>
    %31 = vector.extract_strided_slice %29 {offsets = [0, 64], sizes = [8, 64], strides = [1, 1]} : vector<8x256xf32> to vector<8x64xf32>
    %32 = arith.maximumf %30, %31 : vector<8x64xf32>
    %33 = vector.extract_strided_slice %29 {offsets = [0, 128], sizes = [8, 64], strides = [1, 1]} : vector<8x256xf32> to vector<8x64xf32>
    %34 = vector.extract_strided_slice %29 {offsets = [0, 192], sizes = [8, 64], strides = [1, 1]} : vector<8x256xf32> to vector<8x64xf32>
    %35 = arith.maximumf %33, %34 : vector<8x64xf32>
    %36 = arith.maximumf %32, %35 : vector<8x64xf32>
    %c0_17 = arith.constant 0 : index
    %c0_18 = arith.constant 0 : index
    %37 = vector.load %arg2[%c0_17, %c0_18] : memref<320x16xf32, #tpu.memory_space<vmem>>, vector<320x16xf32>
    %38 = arith.truncf %37 : vector<320x16xf32> to vector<320x16xbf16>
    %c0_19 = arith.constant 0 : index
    %c0_20 = arith.constant 0 : index
    %39 = vector.load %arg8[%c0_19, %c0_20] : memref<16x64xbf16, #tpu.memory_space<vmem>>, vector<16x64xbf16>
    %cst_21 = arith.constant dense<0.000000e+00> : vector<320x64xf32>
    %40 = tpu.matmul %38, %39, %cst_21 {dimension_numbers = #tpu.dot_dimension_numbers<[1], [0], [0], [1], [0, 0, 1, 1], [], []>} : vector<320x16xbf16>, vector<16x64xbf16>, vector<320x64xf32> -> vector<320x64xf32>
    %c0_22 = arith.constant 0 : index
    %c0_23 = arith.constant 0 : index
    %41 = vector.load %arg9[%c0_22, %c0_23] : memref<1x64xf32, #tpu.memory_space<vmem>>, vector<1x64xf32>
    %42 = vector.broadcast %41 : vector<1x64xf32> to vector<320x64xf32>
    %43 = arith.addf %40, %42 : vector<320x64xf32>
    %cst_24 = arith.constant 0.000000e+00 : f32
    %44 = vector.broadcast %cst_24 : f32 to vector<320x64xf32>
    %45 = arith.maximumf %43, %44 : vector<320x64xf32>
    %46 = arith.truncf %45 : vector<320x64xf32> to vector<320x64xbf16>
    %c0_25 = arith.constant 0 : index
    %c0_26 = arith.constant 0 : index
    %47 = vector.load %arg10[%c0_25, %c0_26] : memref<64x32xbf16, #tpu.memory_space<vmem>>, vector<64x32xbf16>
    %cst_27 = arith.constant dense<0.000000e+00> : vector<320x32xf32>
    %48 = tpu.matmul %46, %47, %cst_27 {dimension_numbers = #tpu.dot_dimension_numbers<[1], [0], [0], [1], [0, 0, 1, 1], [], []>} : vector<320x64xbf16>, vector<64x32xbf16>, vector<320x32xf32> -> vector<320x32xf32>
    %c0_28 = arith.constant 0 : index
    %c0_29 = arith.constant 0 : index
    %49 = vector.load %arg11[%c0_28, %c0_29] : memref<1x32xf32, #tpu.memory_space<vmem>>, vector<1x32xf32>
    %50 = vector.broadcast %49 : vector<1x32xf32> to vector<320x32xf32>
    %51 = arith.addf %48, %50 : vector<320x32xf32>
    %cst_30 = arith.constant 0.000000e+00 : f32
    %52 = vector.broadcast %cst_30 : f32 to vector<320x32xf32>
    %53 = arith.maximumf %51, %52 : vector<320x32xf32>
    %54 = vector.shape_cast %53 : vector<320x32xf32> to vector<8x40x32xf32>
    %55 = tpu.iota {dimensions = array<i32: 1>} : vector<8x40x32xi32>
    %c34_i32 = arith.constant 34 : i32
    %56 = vector.broadcast %c34_i32 : i32 to vector<8x40x32xi32>
    %57 = arith.cmpi slt, %55, %56 : vector<8x40x32xi32>
    %cst_31 = arith.constant 0xFF800000 : f32
    %58 = vector.broadcast %cst_31 : f32 to vector<8x40x32xf32>
    %59 = arith.select %57, %54, %58 : vector<8x40x32xi1>, vector<8x40x32xf32>
    %cst_32 = arith.constant dense<0xFF800000> : vector<8x32xf32>
    %60 = vector.multi_reduction <maximumf>, %59, %cst_32 [1] : vector<8x40x32xf32> to vector<8x32xf32>
    %c0_33 = arith.constant 0 : index
    %c0_34 = arith.constant 0 : index
    %61 = vector.load %arg12[%c0_33, %c0_34] : memref<2x64xf32, #tpu.memory_space<vmem>>, vector<1x64xf32>
    %62 = vector.broadcast %61 : vector<1x64xf32> to vector<8x64xf32>
    %63 = arith.mulf %36, %62 : vector<8x64xf32>
    %cst_35 = arith.constant dense<0.000000e+00> : vector<8xf32>
    %64 = vector.multi_reduction <add>, %63, %cst_35 [1] : vector<8x64xf32> to vector<8xf32>
    %65 = vector.shape_cast %64 : vector<8xf32> to vector<8x1xf32>
    %c1 = arith.constant 1 : index
    %c0_36 = arith.constant 0 : index
    %66 = vector.load %arg12[%c1, %c0_36] : memref<2x64xf32, #tpu.memory_space<vmem>>, vector<1x64xf32>
    %67 = vector.broadcast %66 : vector<1x64xf32> to vector<8x64xf32>
    %68 = arith.mulf %36, %67 : vector<8x64xf32>
    %cst_37 = arith.constant dense<0.000000e+00> : vector<8xf32>
    %69 = vector.multi_reduction <add>, %68, %cst_37 [1] : vector<8x64xf32> to vector<8xf32>
    %70 = vector.shape_cast %69 : vector<8xf32> to vector<8x1xf32>
    %71 = tpu.concatenate %65, %70 in 1 : vector<8x1xf32>, vector<8x1xf32> -> vector<8x2xf32>
    %c0_38 = arith.constant 0 : index
    %c0_39 = arith.constant 0 : index
    %72 = vector.load %arg13[%c0_38, %c0_39] : memref<1x2xf32, #tpu.memory_space<vmem>>, vector<1x2xf32>
    %73 = vector.broadcast %72 : vector<1x2xf32> to vector<8x2xf32>
    %74 = arith.addf %71, %73 : vector<8x2xf32>
    %cst_40 = arith.constant dense<0xFF800000> : vector<8xf32>
    %75 = vector.multi_reduction <maximumf>, %74, %cst_40 [1] : vector<8x2xf32> to vector<8xf32>
    %76 = vector.shape_cast %75 : vector<8xf32> to vector<8x1xf32>
    %77 = vector.broadcast %76 : vector<8x1xf32> to vector<8x2xf32>
    %78 = arith.subf %74, %77 : vector<8x2xf32>
    %79 = math.exp %78 : vector<8x2xf32>
    %cst_41 = arith.constant dense<0.000000e+00> : vector<8xf32>
    %80 = vector.multi_reduction <add>, %79, %cst_41 [1] : vector<8x2xf32> to vector<8xf32>
    %81 = vector.shape_cast %80 : vector<8xf32> to vector<8x1xf32>
    %82 = math.log %81 : vector<8x1xf32>
    %83 = arith.addf %82, %76 : vector<8x1xf32>
    %84 = vector.broadcast %83 : vector<8x1xf32> to vector<8x2xf32>
    %85 = arith.subf %74, %84 : vector<8x2xf32>
    %c0_42 = arith.constant 0 : index
    %c0_43 = arith.constant 0 : index
    %86 = vector.load %arg14[%c0_42, %c0_43] : memref<2x32xf32, #tpu.memory_space<vmem>>, vector<1x32xf32>
    %87 = vector.broadcast %86 : vector<1x32xf32> to vector<8x32xf32>
    %88 = arith.mulf %60, %87 : vector<8x32xf32>
    %cst_44 = arith.constant dense<0.000000e+00> : vector<8xf32>
    %89 = vector.multi_reduction <add>, %88, %cst_44 [1] : vector<8x32xf32> to vector<8xf32>
    %90 = vector.shape_cast %89 : vector<8xf32> to vector<8x1xf32>
    %c1_45 = arith.constant 1 : index
    %c0_46 = arith.constant 0 : index
    %91 = vector.load %arg14[%c1_45, %c0_46] : memref<2x32xf32, #tpu.memory_space<vmem>>, vector<1x32xf32>
    %92 = vector.broadcast %91 : vector<1x32xf32> to vector<8x32xf32>
    %93 = arith.mulf %60, %92 : vector<8x32xf32>
    %cst_47 = arith.constant dense<0.000000e+00> : vector<8xf32>
    %94 = vector.multi_reduction <add>, %93, %cst_47 [1] : vector<8x32xf32> to vector<8xf32>
    %95 = vector.shape_cast %94 : vector<8xf32> to vector<8x1xf32>
    %96 = tpu.concatenate %90, %95 in 1 : vector<8x1xf32>, vector<8x1xf32> -> vector<8x2xf32>
    %c0_48 = arith.constant 0 : index
    %c0_49 = arith.constant 0 : index
    %97 = vector.load %arg15[%c0_48, %c0_49] : memref<1x2xf32, #tpu.memory_space<vmem>>, vector<1x2xf32>
    %98 = vector.broadcast %97 : vector<1x2xf32> to vector<8x2xf32>
    %99 = arith.addf %96, %98 : vector<8x2xf32>
    %cst_50 = arith.constant dense<0xFF800000> : vector<8xf32>
    %100 = vector.multi_reduction <maximumf>, %99, %cst_50 [1] : vector<8x2xf32> to vector<8xf32>
    %101 = vector.shape_cast %100 : vector<8xf32> to vector<8x1xf32>
    %102 = vector.broadcast %101 : vector<8x1xf32> to vector<8x2xf32>
    %103 = arith.subf %99, %102 : vector<8x2xf32>
    %104 = math.exp %103 : vector<8x2xf32>
    %cst_51 = arith.constant dense<0.000000e+00> : vector<8xf32>
    %105 = vector.multi_reduction <add>, %104, %cst_51 [1] : vector<8x2xf32> to vector<8xf32>
    %106 = vector.shape_cast %105 : vector<8xf32> to vector<8x1xf32>
    %107 = math.log %106 : vector<8x1xf32>
    %108 = arith.addf %107, %101 : vector<8x1xf32>
    %109 = vector.broadcast %108 : vector<8x1xf32> to vector<8x2xf32>
    %110 = arith.subf %99, %109 : vector<8x2xf32>
    %111 = arith.addf %85, %110 : vector<8x2xf32>
    %cst_52 = arith.constant 5.000000e-01 : f32
    %112 = vector.broadcast %cst_52 : f32 to vector<8x2xf32>
    %113 = arith.mulf %112, %111 : vector<8x2xf32>
    %c0_53 = arith.constant 0 : index
    %c0_54 = arith.constant 0 : index
    %114 = vector.load %arg16[%c0_53, %c0_54] : memref<8x2xf32, #tpu.memory_space<vmem>>, vector<8x2xf32>
    tpu.vector_store %arg16[%c0_53, %c0_54], %113 {strides = array<i32>} : memref<8x2xf32, #tpu.memory_space<vmem>>, vector<8x2xf32>,
    return
  }
  func.func @transform_0(%arg0: i32) -> (i32, i32) {
    %c0_i32 = arith.constant 0 : i32
    %c0_i32_0 = arith.constant 0 : i32
    %c0_i32_1 = arith.constant 0 : i32
    return %c0_i32, %c0_i32_0 : i32, i32
  }
  func.func @transform_1(%arg0: i32) -> (i32, i32) {
    %c0_i32 = arith.constant 0 : i32
    %c0_i32_0 = arith.constant 0 : i32
    %c0_i32_1 = arith.constant 0 : i32
    return %c0_i32, %c0_i32_0 : i32, i32
  }
  func.func @transform_2(%arg0: i32) -> (i32, i32) {
    %c0_i32 = arith.constant 0 : i32
    %c0_i32_0 = arith.constant 0 : i32
    %c0_i32_1 = arith.constant 0 : i32
    return %c0_i32, %c0_i32_0 : i32, i32
  }
  func.func @transform_3(%arg0: i32) -> (i32, i32) {
    %c0_i32 = arith.constant 0 : i32
    %c0_i32_0 = arith.constant 0 : i32
    %c0_i32_1 = arith.constant 0 : i32
    return %c0_i32, %c0_i32_0 : i32, i32
  }
  func.func @transform_4(%arg0: i32) -> (i32, i32) {
    %c0_i32 = arith.constant 0 : i32
    %c0_i32_0 = arith.constant 0 : i32
    %c0_i32_1 = arith.constant 0 : i32
    return %c0_i32, %c0_i32_0 : i32, i32
  }
  func.func @transform_5(%arg0: i32) -> (i32, i32) {
    %c0_i32 = arith.constant 0 : i32
    %c0_i32_0 = arith.constant 0 : i32
    %c0_i32_1 = arith.constant 0 : i32
    return %c0_i32, %c0_i32_0 : i32, i32
  }
  func.func @transform_6(%arg0: i32) -> (i32, i32) {
    %c0_i32 = arith.constant 0 : i32
    %c0_i32_0 = arith.constant 0 : i32
    %c0_i32_1 = arith.constant 0 : i32
    return %c0_i32, %c0_i32_0 : i32, i32
  }
  func.func @transform_7(%arg0: i32) -> (i32, i32) {
    %c0_i32 = arith.constant 0 : i32
    %c0_i32_0 = arith.constant 0 : i32
    %c0_i32_1 = arith.constant 0 : i32
    return %c0_i32, %c0_i32_0 : i32, i32
  }
  func.func @transform_8(%arg0: i32) -> (i32, i32) {
    %c0_i32 = arith.constant 0 : i32
    %c0_i32_0 = arith.constant 0 : i32
    %c0_i32_1 = arith.constant 0 : i32
    return %c0_i32, %c0_i32_0 : i32, i32
  }
  func.func @transform_9(%arg0: i32) -> (i32, i32) {
    %c0_i32 = arith.constant 0 : i32
    %c0_i32_0 = arith.constant 0 : i32
    %c0_i32_1 = arith.constant 0 : i32
    return %c0_i32, %c0_i32_0 : i32, i32
  }
  func.func @transform_10(%arg0: i32) -> (i32, i32) {
    %c0_i32 = arith.constant 0 : i32
    %c0_i32_0 = arith.constant 0 : i32
    %c0_i32_1 = arith.constant 0 : i32
    return %c0_i32, %c0_i32_0 : i32, i32
  }
  func.func @transform_11(%arg0: i32) -> (i32, i32) {
    %c0_i32 = arith.constant 0 : i32
    %c0_i32_0 = arith.constant 0 : i32
    %c0_i32_1 = arith.constant 0 : i32
    return %c0_i32, %c0_i32_0 : i32, i32
  }
  func.func @transform_12(%arg0: i32) -> (i32, i32) {
    %c0_i32 = arith.constant 0 : i32
    %c0_i32_0 = arith.constant 0 : i32
    %c0_i32_1 = arith.constant 0 : i32
    return %c0_i32, %c0_i32_0 : i32, i32
  }
  func.func @transform_13(%arg0: i32) -> (i32, i32) {
    %c0_i32 = arith.constant 0 : i32
    %c0_i32_0 = arith.constant 0 : i32
    %c0_i32_1 = arith.constant 0 : i32
    return %c0_i32, %c0_i32_0 : i32, i32
  }
  func.func @transform_14(%arg0: i32) -> (i32, i32) {
    %c0_i32 = arith.constant 0 : i32
    %c0_i32_0 = arith.constant 0 : i32
    %c0_i32_1 = arith.constant 0 : i32
    return %c0_i32, %c0_i32_0 : i32, i32
  }
  func.func @transform_15(%arg0: i32) -> (i32, i32) {
    %c0_i32 = arith.constant 0 : i32
    %c0_i32_0 = arith.constant 0 : i32
    %c0_i32_1 = arith.constant 0 : i32
    return %c0_i32, %c0_i32_0 : i32, i32
  }
}

</mosaic_0001>

<llo_original>
// kernel: joined_discriminator_forward.1
$region0: #{joined_discriminator_forward.1}
  #allocation0 [shape = 'u32[]', space=smem, size = 0x4, offset = 0x4, fixed_abs, tag = 'smem constant byte address 0x4 - core index']
  #allocation1 [shape = 'u32[144,128]{1,0:T(1,128)}', space=vmem, size = 0x12000, scoped, tag = 'internal scratch']
  %s0 = inlined_call_operand.vmem [shape: f32[8,544], index: 0, kind: input, shape index: {}]
  %s1 = inlined_call_operand.vmem [shape: f32[320,16], index: 1, kind: input, shape index: {}]
  %s2 = inlined_call_operand.hbm [shape: bf16[544,2048], index: 2, kind: input, shape index: {}]
  %s3 = inlined_call_operand.hbm [shape: f32[1024,512], index: 3, kind: input, shape index: {}]
  %s4 = inlined_call_operand.hbm [shape: f32[1,512], index: 4, kind: input, shape index: {}]
  %s5 = inlined_call_operand.hbm [shape: bf16[512,256], index: 5, kind: input, shape index: {}]
  %s6 = inlined_call_operand.hbm [shape: f32[1,256], index: 6, kind: input, shape index: {}]
  %s7 = inlined_call_operand.hbm [shape: bf16[16,64], index: 7, kind: input, shape index: {}]
  %s8 = inlined_call_operand.hbm [shape: f32[1,64], index: 8, kind: input, shape index: {}]
  %s9 = inlined_call_operand.vmem [shape: bf16[64,32], index: 9, kind: input, shape index: {}]
  %s10 = inlined_call_operand.hbm [shape: f32[1,32], index: 10, kind: input, shape index: {}]
  %s11 = inlined_call_operand.hbm [shape: f32[2,64], index: 11, kind: input, shape index: {}]
  %s12 = inlined_call_operand.hbm [shape: f32[1,2], index: 12, kind: input, shape index: {}]
  %s13 = inlined_call_operand.hbm [shape: f32[2,32], index: 13, kind: input, shape index: {}]
  %s14 = inlined_call_operand.hbm [shape: f32[1,2], index: 14, kind: input, shape index: {}]
  %s15 = inlined_call_operand.vmem [shape: f32[8,2], index: 15, kind: output, shape index: {}]
  %s16 = sld [smem:[#allocation0]]
  $region118: #{joined_discriminator_forward.1} parent=0
    _
  %s18 = ssub.s32 1, %s16
  %s19 = scalar_select 0, %s18, %s16
  $region1: #{joined_discriminator_forward.1} parent=0
    #allocation2 [shape = 'u8[2228224]{0}', space=vmem, size = 0x220000, scoped, tag = 'input window, operand 2, single buffered']
    #allocation3 [shape = 's32[1]{0}', space=sflag, size = 0x4, scoped, tag = 'scoped memory for joined_discriminator_forward.1']
    #allocation4 [shape = 'u8[2097152]{0}', space=vmem, size = 0x200000, scoped, tag = 'input window, operand 3, single buffered']
    #allocation5 [shape = 's32[1]{0}', space=sflag, size = 0x4, scoped, tag = 'scoped memory for joined_discriminator_forward.1']
    #allocation6 [shape = 'u8[2048]{0}', space=vmem, size = 0x800, scoped, tag = 'input window, operand 4, single buffered']
    #allocation7 [shape = 'u8[262144]{0}', space=vmem, size = 0x40000, scoped, tag = 'input window, operand 5, single buffered']
    #allocation8 [shape = 's32[1]{0}', space=sflag, size = 0x4, scoped, tag = 'scoped memory for joined_discriminator_forward.1']
    #allocation9 [shape = 'u8[1024]{0}', space=vmem, size = 0x400, scoped, tag = 'input window, operand 6, single buffered']
    #allocation10 [shape = 'u8[4096]{0}', space=vmem, size = 0x1000, scoped, tag = 'input window, operand 7, single buffered']
    #allocation11 [shape = 's32[1]{0}', space=sflag, size = 0x4, scoped, tag = 'scoped memory for joined_discriminator_forward.1']
    #allocation12 [shape = 'u8[512]{0}', space=vmem, size = 0x400, scoped, tag = 'input window, operand 8, single buffered']
    #allocation13 [shape = 'u8[512]{0}', space=vmem, size = 0x400, scoped, tag = 'input window, operand 10, single buffered']
    #allocation14 [shape = 's32[1]{0}', space=sflag, size = 0x4, scoped, tag = 'scoped memory for joined_discriminator_forward.1']
    #allocation15 [shape = 'u8[1024]{0}', space=vmem, size = 0x400, scoped, tag = 'input window, operand 11, single buffered']
    #allocation16 [shape = 'u8[512]{0}', space=vmem, size = 0x400, scoped, tag = 'input window, operand 12, single buffered']
    #allocation17 [shape = 's32[1]{0}', space=sflag, size = 0x4, scoped, tag = 'scoped memory for joined_discriminator_forward.1']
    #allocation18 [shape = 'u8[1024]{0}', space=vmem, size = 0x400, scoped, tag = 'input window, operand 13, single buffered']
    #allocation19 [shape = 'u8[512]{0}', space=vmem, size = 0x400, scoped, tag = 'input window, operand 14, single buffered']
    #allocation20 [shape = 's32[1]{0}', space=sflag, size = 0x4, scoped, tag = 'scoped memory for joined_discriminator_forward.1']
    %20 = vsyncpa [#allocation3], 0
    %21 = vsyncpa [#allocation5], 0
    %22 = vsyncpa [#allocation8], 0
    %23 = vsyncpa [#allocation11], 0
    %24 = vsyncpa [#allocation14], 0
    %25 = vsyncpa [#allocation17], 0
    %26 = vsyncpa [#allocation20], 0
    // Predicated region
    $region2: #{joined_discriminator_forward.1} parent=1 // pred_check
      _
    $region3: #{joined_discriminator_forward.1} parent=1 // pred_check_branch
      %28 = sbr.rel (0) target = $region5
    $region4: #{joined_discriminator_forward.1} parent=1 // pred_region
      _
    $region5: #{joined_discriminator_forward.1} parent=1 // pred_fallthru
      _
    // Predicated region
    $region6: #{joined_discriminator_forward.1} parent=1 // pred_check
      _
    $region7: #{joined_discriminator_forward.1} parent=1 // pred_check_branch
      %30 = sbr.rel (0) target = $region9
    $region8: #{joined_discriminator_forward.1} parent=1 // pred_region
      _
    $region9: #{joined_discriminator_forward.1} parent=1 // pred_fallthru
      _
    // Predicated region
    $region10: #{joined_discriminator_forward.1} parent=1 // pred_check
      _
    $region11: #{joined_discriminator_forward.1} parent=1 // pred_check_branch
      %32 = sbr.rel (0) target = $region13
    $region12: #{joined_discriminator_forward.1} parent=1 // pred_region
      %s34 = ssub.s32 69632, 69632
      %35 = vsyncadd [#allocation3], %s34
      %s36 = sshll.u32 [#allocation2], 4
      %s37 = int_to_ptr.vmem [resolvable:$true] %s36
      %42 = dma.hbm_to_vmem [thread:$0]  %s2, 69632, %s37, [#allocation3], 1024, 1024, 64
    $region13: #{joined_discriminator_forward.1} parent=1 // pred_fallthru
      _
    // Predicated region
    $region14: #{joined_discriminator_forward.1} parent=1 // pred_check
      _
    $region15: #{joined_discriminator_forward.1} parent=1 // pred_check_branch
      %44 = sbr.rel (0) target = $region17
    $region16: #{joined_discriminator_forward.1} parent=1 // pred_region
      %s46 = ssub.s32 65536, 65536
      %47 = vsyncadd [#allocation5], %s46
      %s48 = sshll.u32 [#allocation4], 4
      %s49 = int_to_ptr.vmem [resolvable:$true] %s48
      %54 = dma.hbm_to_vmem [thread:$0]  %s3, 65536, %s49, [#allocation5], 512, 512, 32
    $region17: #{joined_discriminator_forward.1} parent=1 // pred_fallthru
      _
    // Predicated region
    $region18: #{joined_discriminator_forward.1} parent=1 // pred_check
      _
    $region19: #{joined_discriminator_forward.1} parent=1 // pred_check_branch
      %56 = sbr.rel (0) target = $region21
    $region20: #{joined_discriminator_forward.1} parent=1 // pred_region
      %s58 = ssub.s32 64, 64
      %59 = vsyncadd [#allocation5], %s58
      %s61 = sshll.u32 [#allocation6], 4
      %s62 = int_to_ptr.vmem [resolvable:$true] %s61
      %64 = dma.hbm_to_vmem [thread:$0]  %s4, 64, %s62, [#allocation5]
    $region21: #{joined_discriminator_forward.1} parent=1 // pred_fallthru
      _
    // Predicated region
    $region22: #{joined_discriminator_forward.1} parent=1 // pred_check
      _
    $region23: #{joined_discriminator_forward.1} parent=1 // pred_check_branch
      %66 = sbr.rel (0) target = $region25
    $region24: #{joined_discriminator_forward.1} parent=1 // pred_region
      %s68 = ssub.s32 8192, 8192
      %69 = vsyncadd [#allocation8], %s68
      %s70 = sshll.u32 [#allocation7], 4
      %s71 = int_to_ptr.vmem [resolvable:$true] %s70
      %76 = dma.hbm_to_vmem [thread:$0]  %s5, 8192, %s71, [#allocation8], 128, 128, 8
    $region25: #{joined_discriminator_forward.1} parent=1 // pred_fallthru
      _
    // Predicated region
    $region26: #{joined_discriminator_forward.1} parent=1 // pred_check
      _
    $region27: #{joined_discriminator_forward.1} parent=1 // pred_check_branch
      %78 = sbr.rel (0) target = $region29
    $region28: #{joined_discriminator_forward.1} parent=1 // pred_region
      %s80 = ssub.s32 32, 32
      %81 = vsyncadd [#allocation8], %s80
      %s83 = sshll.u32 [#allocation9], 4
      %s84 = int_to_ptr.vmem [resolvable:$true] %s83
      %86 = dma.hbm_to_vmem [thread:$0]  %s6, 32, %s84, [#allocation8]
    $region29: #{joined_discriminator_forward.1} parent=1 // pred_fallthru
      _
    // Predicated region
    $region30: #{joined_discriminator_forward.1} parent=1 // pred_check
      _
    $region31: #{joined_discriminator_forward.1} parent=1 // pred_check_branch
      %88 = sbr.rel (0) target = $region33
    $region32: #{joined_discriminator_forward.1} parent=1 // pred_region
      %s90 = ssub.s32 128, 128
      %91 = vsyncadd [#allocation11], %s90
      %s92 = sshll.u32 [#allocation10], 4
      %s93 = int_to_ptr.vmem [resolvable:$true] %s92
      %98 = dma.hbm_to_vmem [thread:$0]  %s7, 128, %s93, [#allocation11], 64, 64, 4
    $region33: #{joined_discriminator_forward.1} parent=1 // pred_fallthru
      _
    // Predicated region
    $region34: #{joined_discriminator_forward.1} parent=1 // pred_check
      _
    $region35: #{joined_discriminator_forward.1} parent=1 // pred_check_branch
      %100 = sbr.rel (0) target = $region37
    $region36: #{joined_discriminator_forward.1} parent=1 // pred_region
      %s102 = ssub.s32 16, 16
      %103 = vsyncadd [#allocation11], %s102
      %s105 = sshll.u32 [#allocation12], 4
      %s106 = int_to_ptr.vmem [resolvable:$true] %s105
      %108 = dma.hbm_to_vmem [thread:$0]  %s8, 16, %s106, [#allocation11]
    $region37: #{joined_discriminator_forward.1} parent=1 // pred_fallthru
      _
    // Predicated region
    $region38: #{joined_discriminator_forward.1} parent=1 // pred_check
      _
    $region39: #{joined_discriminator_forward.1} parent=1 // pred_check_branch
      %110 = sbr.rel (0) target = $region41
    $region40: #{joined_discriminator_forward.1} parent=1 // pred_region
      _
    $region41: #{joined_discriminator_forward.1} parent=1 // pred_fallthru
      _
    // Predicated region
    $region42: #{joined_discriminator_forward.1} parent=1 // pred_check
      _
    $region43: #{joined_discriminator_forward.1} parent=1 // pred_check_branch
      %112 = sbr.rel (0) target = $region45
    $region44: #{joined_discriminator_forward.1} parent=1 // pred_region
      %s114 = ssub.s32 16, 16
      %115 = vsyncadd [#allocation14], %s114
      %s117 = sshll.u32 [#allocation13], 4
      %s118 = int_to_ptr.vmem [resolvable:$true] %s117
      %120 = dma.hbm_to_vmem [thread:$0]  %s10, 16, %s118, [#allocation14]
    $region45: #{joined_discriminator_forward.1} parent=1 // pred_fallthru
      _
    // Predicated region
    $region46: #{joined_discriminator_forward.1} parent=1 // pred_check
      _
    $region47: #{joined_discriminator_forward.1} parent=1 // pred_check_branch
      %122 = sbr.rel (0) target = $region49
    $region48: #{joined_discriminator_forward.1} parent=1 // pred_region
      %s124 = ssub.s32 32, 32
      %125 = vsyncadd [#allocation14], %s124
      %s127 = sshll.u32 [#allocation15], 4
      %s128 = int_to_ptr.vmem [resolvable:$true] %s127
      %130 = dma.hbm_to_vmem [thread:$0]  %s11, 32, %s128, [#allocation14]
    $region49: #{joined_discriminator_forward.1} parent=1 // pred_fallthru
      _
    // Predicated region
    $region50: #{joined_discriminator_forward.1} parent=1 // pred_check
      _
    $region51: #{joined_discriminator_forward.1} parent=1 // pred_check_branch
      %132 = sbr.rel (0) target = $region53
    $region52: #{joined_discriminator_forward.1} parent=1 // pred_region
      %s134 = ssub.s32 16, 16
      %135 = vsyncadd [#allocation17], %s134
      %s137 = sshll.u32 [#allocation16], 4
      %s138 = int_to_ptr.vmem [resolvable:$true] %s137
      %140 = dma.hbm_to_vmem [thread:$0]  %s12, 16, %s138, [#allocation17]
    $region53: #{joined_discriminator_forward.1} parent=1 // pred_fallthru
      _
    // Predicated region
    $region54: #{joined_discriminator_forward.1} parent=1 // pred_check
      _
    $region55: #{joined_discriminator_forward.1} parent=1 // pred_check_branch
      %142 = sbr.rel (0) target = $region57
    $region56: #{joined_discriminator_forward.1} parent=1 // pred_region
      %s144 = ssub.s32 32, 32
      %145 = vsyncadd [#allocation17], %s144
      %s147 = sshll.u32 [#allocation18], 4
      %s148 = int_to_ptr.vmem [resolvable:$true] %s147
      %150 = dma.hbm_to_vmem [thread:$0]  %s13, 32, %s148, [#allocation17]
    $region57: #{joined_discriminator_forward.1} parent=1 // pred_fallthru
      _
    // Predicated region
    $region58: #{joined_discriminator_forward.1} parent=1 // pred_check
      _
    $region59: #{joined_discriminator_forward.1} parent=1 // pred_check_branch
      %152 = sbr.rel (0) target = $region61
    $region60: #{joined_discriminator_forward.1} parent=1 // pred_region
      %s154 = ssub.s32 16, 16
      %155 = vsyncadd [#allocation20], %s154
      %s157 = sshll.u32 [#allocation19], 4
      %s158 = int_to_ptr.vmem [resolvable:$true] %s157
      %160 = dma.hbm_to_vmem [thread:$0]  %s14, 16, %s158, [#allocation20]
    $region61: #{joined_discriminator_forward.1} parent=1 // pred_fallthru
      _
    // Predicated region
    $region62: #{joined_discriminator_forward.1} parent=1 // pred_check
      _
    $region63: #{joined_discriminator_forward.1} parent=1 // pred_check_branch
      %162 = sbr.rel (0) target = $region65
    $region64: #{joined_discriminator_forward.1} parent=1 // pred_region
      %163 = dma.done [#allocation3], 69632
    $region65: #{joined_discriminator_forward.1} parent=1 // pred_fallthru
      _
    // Predicated region
    $region66: #{joined_discriminator_forward.1} parent=1 // pred_check
      _
    $region67: #{joined_discriminator_forward.1} parent=1 // pred_check_branch
      %165 = sbr.rel (0) target = $region69
    $region68: #{joined_discriminator_forward.1} parent=1 // pred_region
      %166 = dma.done [#allocation5], 65536
    $region69: #{joined_discriminator_forward.1} parent=1 // pred_fallthru
      _
    // Predicated region
    $region70: #{joined_discriminator_forward.1} parent=1 // pred_check
      _
    $region71: #{joined_discriminator_forward.1} parent=1 // pred_check_branch
      %168 = sbr.rel (0) target = $region73
    $region72: #{joined_discriminator_forward.1} parent=1 // pred_region
      %169 = dma.done [#allocation5], 64
    $region73: #{joined_discriminator_forward.1} parent=1 // pred_fallthru
      _
    // Predicated region
    $region74: #{joined_discriminator_forward.1} parent=1 // pred_check
      _
    $region75: #{joined_discriminator_forward.1} parent=1 // pred_check_branch
      %171 = sbr.rel (0) target = $region77
    $region76: #{joined_discriminator_forward.1} parent=1 // pred_region
      %172 = dma.done [#allocation8], 8192
    $region77: #{joined_discriminator_forward.1} parent=1 // pred_fallthru
      _
    // Predicated region
    $region78: #{joined_discriminator_forward.1} parent=1 // pred_check
      _
    $region79: #{joined_discriminator_forward.1} parent=1 // pred_check_branch
      %174 = sbr.rel (0) target = $region81
    $region80: #{joined_discriminator_forward.1} parent=1 // pred_region
      %175 = dma.done [#allocation8], 32
    $region81: #{joined_discriminator_forward.1} parent=1 // pred_fallthru
      _
    // Predicated region
    $region82: #{joined_discriminator_forward.1} parent=1 // pred_check
      _
    $region83: #{joined_discriminator_forward.1} parent=1 // pred_check_branch
      %177 = sbr.rel (0) target = $region85
    $region84: #{joined_discriminator_forward.1} parent=1 // pred_region
      %178 = dma.done [#allocation11], 128
    $region85: #{joined_discriminator_forward.1} parent=1 // pred_fallthru
      _
    // Predicated region
    $region86: #{joined_discriminator_forward.1} parent=1 // pred_check
      _
    $region87: #{joined_discriminator_forward.1} parent=1 // pred_check_branch
      %180 = sbr.rel (0) target = $region89
    $region88: #{joined_discriminator_forward.1} parent=1 // pred_region
      %181 = dma.done [#allocation11], 16
    $region89: #{joined_discriminator_forward.1} parent=1 // pred_fallthru
      _
    // Predicated region
    $region90: #{joined_discriminator_forward.1} parent=1 // pred_check
      _
    $region91: #{joined_discriminator_forward.1} parent=1 // pred_check_branch
      %183 = sbr.rel (0) target = $region93
    $region92: #{joined_discriminator_forward.1} parent=1 // pred_region
      %184 = dma.done [#allocation14], 16
    $region93: #{joined_discriminator_forward.1} parent=1 // pred_fallthru
      _
    // Predicated region
    $region94: #{joined_discriminator_forward.1} parent=1 // pred_check
      _
    $region95: #{joined_discriminator_forward.1} parent=1 // pred_check_branch
      %186 = sbr.rel (0) target = $region97
    $region96: #{joined_discriminator_forward.1} parent=1 // pred_region
      %187 = dma.done [#allocation14], 32
    $region97: #{joined_discriminator_forward.1} parent=1 // pred_fallthru
      _
    // Predicated region
    $region98: #{joined_discriminator_forward.1} parent=1 // pred_check
      _
    $region99: #{joined_discriminator_forward.1} parent=1 // pred_check_branch
      %189 = sbr.rel (0) target = $region101
    $region100: #{joined_discriminator_forward.1} parent=1 // pred_region
      %190 = dma.done [#allocation17], 16
    $region101: #{joined_discriminator_forward.1} parent=1 // pred_fallthru
      _
    // Predicated region
    $region102: #{joined_discriminator_forward.1} parent=1 // pred_check
      _
    $region103: #{joined_discriminator_forward.1} parent=1 // pred_check_branch
      %192 = sbr.rel (0) target = $region105
    $region104: #{joined_discriminator_forward.1} parent=1 // pred_region
      %193 = dma.done [#allocation17], 32
    $region105: #{joined_discriminator_forward.1} parent=1 // pred_fallthru
      _
    // Predicated region
    $region106: #{joined_discriminator_forward.1} parent=1 // pred_check
      _
    $region107: #{joined_discriminator_forward.1} parent=1 // pred_check_branch
      %195 = sbr.rel (0) target = $region109
    $region108: #{joined_discriminator_forward.1} parent=1 // pred_region
      %196 = dma.done [#allocation20], 16
    $region109: #{joined_discriminator_forward.1} parent=1 // pred_fallthru
      _
    %v198 = vld [vmem:[%s0] sm:$0xff]
    %v199 = vld [vmem:[%s0 + $0x8] sm:$0xff]
    %v200 = vld [vmem:[%s0 + $0x10] sm:$0xff]
    %v201 = vld [vmem:[%s0 + $0x18] sm:$0xff]
    %v202 = vld [vmem:[%s0 + $0x20] sm:$0xff]
    %v203 = vpack.c.bf16 %v198, %v198
    %v204 = vpack.c.bf16 %v199, %v199
    %v205 = vpack.c.bf16 %v200, %v200
    %v206 = vpack.c.bf16 %v201, %v201
    %v207 = vpack.c.bf16 %v202, %v202
    %v208 = vld [vmem:[#allocation2] sm:$0xff]
    %v209 = vld [vmem:[#allocation2 + $0x8] sm:$0xff]
    %v210 = vld [vmem:[#allocation2 + $0x10] sm:$0xff]
    %v211 = vld [vmem:[#allocation2 + $0x18] sm:$0xff]
    %v212 = vld [vmem:[#allocation2 + $0x20] sm:$0xff]
    %v213 = vld [vmem:[#allocation2 + $0x28] sm:$0xff]
    %v214 = vld [vmem:[#allocation2 + $0x30] sm:$0xff]
    %v215 = vld [vmem:[#allocation2 + $0x38] sm:$0xff]
    %v216 = vld [vmem:[#allocation2 + $0x40] sm:$0xff]
    %v217 = vld [vmem:[#allocation2 + $0x48] sm:$0xff]
    %v218 = vld [vmem:[#allocation2 + $0x50] sm:$0xff]
    %v219 = vld [vmem:[#allocation2 + $0x58] sm:$0xff]
    %v220 = vld [vmem:[#allocation2 + $0x60] sm:$0xff]
    %v221 = vld [vmem:[#allocation2 + $0x68] sm:$0xff]
    %v222 = vld [vmem:[#allocation2 + $0x70] sm:$0xff]
    %v223 = vld [vmem:[#allocation2 + $0x78] sm:$0xff]
    %v224 = vld [vmem:[#allocation2 + $0x80] sm:$0xff]
    %v225 = vld [vmem:[#allocation2 + $0x88] sm:$0xff]
    %v226 = vld [vmem:[#allocation2 + $0x90] sm:$0xff]
    %v227 = vld [vmem:[#allocation2 + $0x98] sm:$0xff]
    %v228 = vld [vmem:[#allocation2 + $0xa0] sm:$0xff]
    %v229 = vld [vmem:[#allocation2 + $0xa8] sm:$0xff]
    %v230 = vld [vmem:[#allocation2 + $0xb0] sm:$0xff]
    %v231 = vld [vmem:[#allocation2 + $0xb8] sm:$0xff]
    %v232 = vld [vmem:[#allocation2 + $0xc0] sm:$0xff]
    %v233 = vld [vmem:[#allocation2 + $0xc8] sm:$0xff]
    %v234 = vld [vmem:[#allocation2 + $0xd0] sm:$0xff]
    %v235 = vld [vmem:[#allocation2 + $0xd8] sm:$0xff]
    %v236 = vld [vmem:[#allocation2 + $0xe0] sm:$0xff]
    %v237 = vld [vmem:[#allocation2 + $0xe8] sm:$0xff]
    %v238 = vld [vmem:[#allocation2 + $0xf0] sm:$0xff]
    %v239 = vld [vmem:[#allocation2 + $0xf8] sm:$0xff]
    %v240 = vld [vmem:[#allocation2 + $0x100] sm:$0xff]
    %v241 = vld [vmem:[#allocation2 + $0x108] sm:$0xff]
    %v242 = vld [vmem:[#allocation2 + $0x110] sm:$0xff]
    %v243 = vld [vmem:[#allocation2 + $0x118] sm:$0xff]
    %v244 = vld [vmem:[#allocation2 + $0x120] sm:$0xff]
    %v245 = vld [vmem:[#allocation2 + $0x128] sm:$0xff]
    %v246 = vld [vmem:[#allocation2 + $0x130] sm:$0xff]
    %v247 = vld [vmem:[#allocation2 + $0x138] sm:$0xff]
    %v248 = vld [vmem:[#allocation2 + $0x140] sm:$0xff]
    %v249 = vld [vmem:[#allocation2 + $0x148] sm:$0xff]
    %v250 = vld [vmem:[#allocation2 + $0x150] sm:$0xff]
    %v251 = vld [vmem:[#allocation2 + $0x158] sm:$0xff]
    %v252 = vld [vmem:[#allocation2 + $0x160] sm:$0xff]
    %v253 = vld [vmem:[#allocation2 + $0x168] sm:$0xff]
    %v254 = vld [vmem:[#allocation2 + $0x170] sm:$0xff]
    %v255 = vld [vmem:[#allocation2 + $0x178] sm:$0xff]
    %v256 = vld [vmem:[#allocation2 + $0x180] sm:$0xff]
    %v257 = vld [vmem:[#allocation2 + $0x188] sm:$0xff]
    %v258 = vld [vmem:[#allocation2 + $0x190] sm:$0xff]
    %v259 = vld [vmem:[#allocation2 + $0x198] sm:$0xff]
    %v260 = vld [vmem:[#allocation2 + $0x1a0] sm:$0xff]
    %v261 = vld [vmem:[#allocation2 + $0x1a8] sm:$0xff]
    %v262 = vld [vmem:[#allocation2 + $0x1b0] sm:$0xff]
    %v263 = vld [vmem:[#allocation2 + $0x1b8] sm:$0xff]
    %v264 = vld [vmem:[#allocation2 + $0x1c0] sm:$0xff]
    %v265 = vld [vmem:[#allocation2 + $0x1c8] sm:$0xff]
    %v266 = vld [vmem:[#allocation2 + $0x1d0] sm:$0xff]
    %v267 = vld [vmem:[#allocation2 + $0x1d8] sm:$0xff]
    %v268 = vld [vmem:[#allocation2 + $0x1e0] sm:$0xff]
    %v269 = vld [vmem:[#allocation2 + $0x1e8] sm:$0xff]
    %v270 = vld [vmem:[#allocation2 + $0x1f0] sm:$0xff]
    %v271 = vld [vmem:[#allocation2 + $0x1f8] sm:$0xff]
    %v272 = vld [vmem:[#allocation2 + $0x200] sm:$0xff]
    %v273 = vld [vmem:[#allocation2 + $0x208] sm:$0xff]
    %v274 = vld [vmem:[#allocation2 + $0x210] sm:$0xff]
    %v275 = vld [vmem:[#allocation2 + $0x218] sm:$0xff]
    %v276 = vld [vmem:[#allocation2 + $0x220] sm:$0xff]
    %v277 = vld [vmem:[#allocation2 + $0x228] sm:$0xff]
    %v278 = vld [vmem:[#allocation2 + $0x230] sm:$0xff]
    %v279 = vld [vmem:[#allocation2 + $0x238] sm:$0xff]
    %v280 = vld [vmem:[#allocation2 + $0x240] sm:$0xff]
    %v281 = vld [vmem:[#allocation2 + $0x248] sm:$0xff]
    %v282 = vld [vmem:[#allocation2 + $0x250] sm:$0xff]
    %v283 = vld [vmem:[#allocation2 + $0x258] sm:$0xff]
    %v284 = vld [vmem:[#allocation2 + $0x260] sm:$0xff]
    %v285 = vld [vmem:[#allocation2 + $0x268] sm:$0xff]
    %v286 = vld [vmem:[#allocation2 + $0x270] sm:$0xff]
    %v287 = vld [vmem:[#allocation2 + $0x278] sm:$0xff]
    %v288 = vld [vmem:[#allocation2 + $0x280] sm:$0xff]
    %v289 = vld [vmem:[#allocation2 + $0x288] sm:$0xff]
    %v290 = vld [vmem:[#allocation2 + $0x290] sm:$0xff]
    %v291 = vld [vmem:[#allocation2 + $0x298] sm:$0xff]
    %v292 = vld [vmem:[#allocation2 + $0x2a0] sm:$0xff]
    %v293 = vld [vmem:[#allocation2 + $0x2a8] sm:$0xff]
    %v294 = vld [vmem:[#allocation2 + $0x2b0] sm:$0xff]
    %v295 = vld [vmem:[#allocation2 + $0x2b8] sm:$0xff]
    %v296 = vld [vmem:[#allocation2 + $0x2c0] sm:$0xff]
    %v297 = vld [vmem:[#allocation2 + $0x2c8] sm:$0xff]
    %v298 = vld [vmem:[#allocation2 + $0x2d0] sm:$0xff]
    %v299 = vld [vmem:[#allocation2 + $0x2d8] sm:$0xff]
    %v300 = vld [vmem:[#allocation2 + $0x2e0] sm:$0xff]
    %v301 = vld [vmem:[#allocation2 + $0x2e8] sm:$0xff]
    %v302 = vld [vmem:[#allocation2 + $0x2f0] sm:$0xff]
    %v303 = vld [vmem:[#allocation2 + $0x2f8] sm:$0xff]
    %v304 = vld [vmem:[#allocation2 + $0x300] sm:$0xff]
    %v305 = vld [vmem:[#allocation2 + $0x308] sm:$0xff]
    %v306 = vld [vmem:[#allocation2 + $0x310] sm:$0xff]
    %v307 = vld [vmem:[#allocation2 + $0x318] sm:$0xff]
    %v308 = vld [vmem:[#allocation2 + $0x320] sm:$0xff]
    %v309 = vld [vmem:[#allocation2 + $0x328] sm:$0xff]
    %v310 = vld [vmem:[#allocation2 + $0x330] sm:$0xff]
    %v311 = vld [vmem:[#allocation2 + $0x338] sm:$0xff]
    %v312 = vld [vmem:[#allocation2 + $0x340] sm:$0xff]
    %v313 = vld [vmem:[#allocation2 + $0x348] sm:$0xff]
    %v314 = vld [vmem:[#allocation2 + $0x350] sm:$0xff]
    %v315 = vld [vmem:[#allocation2 + $0x358] sm:$0xff]
    %v316 = vld [vmem:[#allocation2 + $0x360] sm:$0xff]
    %v317 = vld [vmem:[#allocation2 + $0x368] sm:$0xff]
    %v318 = vld [vmem:[#allocation2 + $0x370] sm:$0xff]
    %v319 = vld [vmem:[#allocation2 + $0x378] sm:$0xff]
    %v320 = vld [vmem:[#allocation2 + $0x380] sm:$0xff]
    %v321 = vld [vmem:[#allocation2 + $0x388] sm:$0xff]
    %v322 = vld [vmem:[#allocation2 + $0x390] sm:$0xff]
    %v323 = vld [vmem:[#allocation2 + $0x398] sm:$0xff]
    %v324 = vld [vmem:[#allocation2 + $0x3a0] sm:$0xff]
    %v325 = vld [vmem:[#allocation2 + $0x3a8] sm:$0xff]
    %v326 = vld [vmem:[#allocation2 + $0x3b0] sm:$0xff]
    %v327 = vld [vmem:[#allocation2 + $0x3b8] sm:$0xff]
    %v328 = vld [vmem:[#allocation2 + $0x3c0] sm:$0xff]
    %v329 = vld [vmem:[#allocation2 + $0x3c8] sm:$0xff]
    %v330 = vld [vmem:[#allocation2 + $0x3d0] sm:$0xff]
    %v331 = vld [vmem:[#allocation2 + $0x3d8] sm:$0xff]
    %v332 = vld [vmem:[#allocation2 + $0x3e0] sm:$0xff]
    %v333 = vld [vmem:[#allocation2 + $0x3e8] sm:$0xff]
    %v334 = vld [vmem:[#allocation2 + $0x3f0] sm:$0xff]
    %v335 = vld [vmem:[#allocation2 + $0x3f8] sm:$0xff]
    %v336 = vld [vmem:[#allocation2 + $0x400] sm:$0xff]
    %v337 = vld [vmem:[#allocation2 + $0x408] sm:$0xff]
    %v338 = vld [vmem:[#allocation2 + $0x410] sm:$0xff]
    %v339 = vld [vmem:[#allocation2 + $0x418] sm:$0xff]
    %v340 = vld [vmem:[#allocation2 + $0x420] sm:$0xff]
    %v341 = vld [vmem:[#allocation2 + $0x428] sm:$0xff]
    %v342 = vld [vmem:[#allocation2 + $0x430] sm:$0xff]
    %v343 = vld [vmem:[#allocation2 + $0x438] sm:$0xff]
    %v344 = vld [vmem:[#allocation2 + $0x440] sm:$0xff]
    %v345 = vld [vmem:[#allocation2 + $0x448] sm:$0xff]
    %v346 = vld [vmem:[#allocation2 + $0x450] sm:$0xff]
    %v347 = vld [vmem:[#allocation2 + $0x458] sm:$0xff]
    %v348 = vld [vmem:[#allocation2 + $0x460] sm:$0xff]
    %v349 = vld [vmem:[#allocation2 + $0x468] sm:$0xff]
    %v350 = vld [vmem:[#allocation2 + $0x470] sm:$0xff]
    %v351 = vld [vmem:[#allocation2 + $0x478] sm:$0xff]
    %v352 = vld [vmem:[#allocation2 + $0x480] sm:$0xff]
    %v353 = vld [vmem:[#allocation2 + $0x488] sm:$0xff]
    %v354 = vld [vmem:[#allocation2 + $0x490] sm:$0xff]
    %v355 = vld [vmem:[#allocation2 + $0x498] sm:$0xff]
    %v356 = vld [vmem:[#allocation2 + $0x4a0] sm:$0xff]
    %v357 = vld [vmem:[#allocation2 + $0x4a8] sm:$0xff]
    %v358 = vld [vmem:[#allocation2 + $0x4b0] sm:$0xff]
    %v359 = vld [vmem:[#allocation2 + $0x4b8] sm:$0xff]
    %v360 = vld [vmem:[#allocation2 + $0x4c0] sm:$0xff]
    %v361 = vld [vmem:[#allocation2 + $0x4c8] sm:$0xff]
    %v362 = vld [vmem:[#allocation2 + $0x4d0] sm:$0xff]
    %v363 = vld [vmem:[#allocation2 + $0x4d8] sm:$0xff]
    %v364 = vld [vmem:[#allocation2 + $0x4e0] sm:$0xff]
    %v365 = vld [vmem:[#allocation2 + $0x4e8] sm:$0xff]
    %v366 = vld [vmem:[#allocation2 + $0x4f0] sm:$0xff]
    %v367 = vld [vmem:[#allocation2 + $0x4f8] sm:$0xff]
    %v368 = vld [vmem:[#allocation2 + $0x500] sm:$0xff]
    %v369 = vld [vmem:[#allocation2 + $0x508] sm:$0xff]
    %v370 = vld [vmem:[#allocation2 + $0x510] sm:$0xff]
    %v371 = vld [vmem:[#allocation2 + $0x518] sm:$0xff]
    %v372 = vld [vmem:[#allocation2 + $0x520] sm:$0xff]
    %v373 = vld [vmem:[#allocation2 + $0x528] sm:$0xff]
    %v374 = vld [vmem:[#allocation2 + $0x530] sm:$0xff]
    %v375 = vld [vmem:[#allocation2 + $0x538] sm:$0xff]
    %v376 = vld [vmem:[#allocation2 + $0x540] sm:$0xff]
    %v377 = vld [vmem:[#allocation2 + $0x548] sm:$0xff]
    %v378 = vld [vmem:[#allocation2 + $0x550] sm:$0xff]
    %v379 = vld [vmem:[#allocation2 + $0x558] sm:$0xff]
    %v380 = vld [vmem:[#allocation2 + $0x560] sm:$0xff]
    %v381 = vld [vmem:[#allocation2 + $0x568] sm:$0xff]
    %v382 = vld [vmem:[#allocation2 + $0x570] sm:$0xff]
    %v383 = vld [vmem:[#allocation2 + $0x578] sm:$0xff]
    %v384 = vld [vmem:[#allocation2 + $0x580] sm:$0xff]
    %v385 = vld [vmem:[#allocation2 + $0x588] sm:$0xff]
    %v386 = vld [vmem:[#allocation2 + $0x590] sm:$0xff]
    %v387 = vld [vmem:[#allocation2 + $0x598] sm:$0xff]
    %v388 = vld [vmem:[#allocation2 + $0x5a0] sm:$0xff]
    %v389 = vld [vmem:[#allocation2 + $0x5a8] sm:$0xff]
    %v390 = vld [vmem:[#allocation2 + $0x5b0] sm:$0xff]
    %v391 = vld [vmem:[#allocation2 + $0x5b8] sm:$0xff]
    %v392 = vld [vmem:[#allocation2 + $0x5c0] sm:$0xff]
    %v393 = vld [vmem:[#allocation2 + $0x5c8] sm:$0xff]
    %v394 = vld [vmem:[#allocation2 + $0x5d0] sm:$0xff]
    %v395 = vld [vmem:[#allocation2 + $0x5d8] sm:$0xff]
    %v396 = vld [vmem:[#allocation2 + $0x5e0] sm:$0xff]
    %v397 = vld [vmem:[#allocation2 + $0x5e8] sm:$0xff]
    %v398 = vld [vmem:[#allocation2 + $0x5f0] sm:$0xff]
    %v399 = vld [vmem:[#allocation2 + $0x5f8] sm:$0xff]
    %v400 = vld [vmem:[#allocation2 + $0x600] sm:$0xff]
    %v401 = vld [vmem:[#allocation2 + $0x608] sm:$0xff]
    %v402 = vld [vmem:[#allocation2 + $0x610] sm:$0xff]
    %v403 = vld [vmem:[#allocation2 + $0x618] sm:$0xff]
    %v404 = vld [vmem:[#allocation2 + $0x620] sm:$0xff]
    %v405 = vld [vmem:[#allocation2 + $0x628] sm:$0xff]
    %v406 = vld [vmem:[#allocation2 + $0x630] sm:$0xff]
    %v407 = vld [vmem:[#allocation2 + $0x638] sm:$0xff]
    %v408 = vld [vmem:[#allocation2 + $0x640] sm:$0xff]
    %v409 = vld [vmem:[#allocation2 + $0x648] sm:$0xff]
    %v410 = vld [vmem:[#allocation2 + $0x650] sm:$0xff]
    %v411 = vld [vmem:[#allocation2 + $0x658] sm:$0xff]
    %v412 = vld [vmem:[#allocation2 + $0x660] sm:$0xff]
    %v413 = vld [vmem:[#allocation2 + $0x668] sm:$0xff]
    %v414 = vld [vmem:[#allocation2 + $0x670] sm:$0xff]
    %v415 = vld [vmem:[#allocation2 + $0x678] sm:$0xff]
    %v416 = vld [vmem:[#allocation2 + $0x680] sm:$0xff]
    %v417 = vld [vmem:[#allocation2 + $0x688] sm:$0xff]
    %v418 = vld [vmem:[#allocation2 + $0x690] sm:$0xff]
    %v419 = vld [vmem:[#allocation2 + $0x698] sm:$0xff]
    %v420 = vld [vmem:[#allocation2 + $0x6a0] sm:$0xff]
    %v421 = vld [vmem:[#allocation2 + $0x6a8] sm:$0xff]
    %v422 = vld [vmem:[#allocation2 + $0x6b0] sm:$0xff]
    %v423 = vld [vmem:[#allocation2 + $0x6b8] sm:$0xff]
    %v424 = vld [vmem:[#allocation2 + $0x6c0] sm:$0xff]
    %v425 = vld [vmem:[#allocation2 + $0x6c8] sm:$0xff]
    %v426 = vld [vmem:[#allocation2 + $0x6d0] sm:$0xff]
    %v427 = vld [vmem:[#allocation2 + $0x6d8] sm:$0xff]
    %v428 = vld [vmem:[#allocation2 + $0x6e0] sm:$0xff]
    %v429 = vld [vmem:[#allocation2 + $0x6e8] sm:$0xff]
    %v430 = vld [vmem:[#allocation2 + $0x6f0] sm:$0xff]
    %v431 = vld [vmem:[#allocation2 + $0x6f8] sm:$0xff]
    %v432 = vld [vmem:[#allocation2 + $0x700] sm:$0xff]
    %v433 = vld [vmem:[#allocation2 + $0x708] sm:$0xff]
    %v434 = vld [vmem:[#allocation2 + $0x710] sm:$0xff]
    %v435 = vld [vmem:[#allocation2 + $0x718] sm:$0xff]
    %v436 = vld [vmem:[#allocation2 + $0x720] sm:$0xff]
    %v437 = vld [vmem:[#allocation2 + $0x728] sm:$0xff]
    %v438 = vld [vmem:[#allocation2 + $0x730] sm:$0xff]
    %v439 = vld [vmem:[#allocation2 + $0x738] sm:$0xff]
    %v440 = vld [vmem:[#allocation2 + $0x740] sm:$0xff]
    %v441 = vld [vmem:[#allocation2 + $0x748] sm:$0xff]
    %v442 = vld [vmem:[#allocation2 + $0x750] sm:$0xff]
    %v443 = vld [vmem:[#allocation2 + $0x758] sm:$0xff]
    %v444 = vld [vmem:[#allocation2 + $0x760] sm:$0xff]
    %v445 = vld [vmem:[#allocation2 + $0x768] sm:$0xff]
    %v446 = vld [vmem:[#allocation2 + $0x770] sm:$0xff]
    %v447 = vld [vmem:[#allocation2 + $0x778] sm:$0xff]
    %v448 = vld [vmem:[#allocation2 + $0x780] sm:$0xff]
    %v449 = vld [vmem:[#allocation2 + $0x788] sm:$0xff]
    %v450 = vld [vmem:[#allocation2 + $0x790] sm:$0xff]
    %v451 = vld [vmem:[#allocation2 + $0x798] sm:$0xff]
    %v452 = vld [vmem:[#allocation2 + $0x7a0] sm:$0xff]
    %v453 = vld [vmem:[#allocation2 + $0x7a8] sm:$0xff]
    %v454 = vld [vmem:[#allocation2 + $0x7b0] sm:$0xff]
    %v455 = vld [vmem:[#allocation2 + $0x7b8] sm:$0xff]
    %v456 = vld [vmem:[#allocation2 + $0x7c0] sm:$0xff]
    %v457 = vld [vmem:[#allocation2 + $0x7c8] sm:$0xff]
    %v458 = vld [vmem:[#allocation2 + $0x7d0] sm:$0xff]
    %v459 = vld [vmem:[#allocation2 + $0x7d8] sm:$0xff]
    %v460 = vld [vmem:[#allocation2 + $0x7e0] sm:$0xff]
    %v461 = vld [vmem:[#allocation2 + $0x7e8] sm:$0xff]
    %v462 = vld [vmem:[#allocation2 + $0x7f0] sm:$0xff]
    %v463 = vld [vmem:[#allocation2 + $0x7f8] sm:$0xff]
    %v464 = vld [vmem:[#allocation2 + $0x800] sm:$0xff]
    %v465 = vld [vmem:[#allocation2 + $0x808] sm:$0xff]
    %v466 = vld [vmem:[#allocation2 + $0x810] sm:$0xff]
    %v467 = vld [vmem:[#allocation2 + $0x818] sm:$0xff]
    %v468 = vld [vmem:[#allocation2 + $0x820] sm:$0xff]
    %v469 = vld [vmem:[#allocation2 + $0x828] sm:$0xff]
    %v470 = vld [vmem:[#allocation2 + $0x830] sm:$0xff]
    %v471 = vld [vmem:[#allocation2 + $0x838] sm:$0xff]
    %v472 = vld [vmem:[#allocation2 + $0x840] sm:$0xff]
    %v473 = vld [vmem:[#allocation2 + $0x848] sm:$0xff]
    %v474 = vld [vmem:[#allocation2 + $0x850] sm:$0xff]
    %v475 = vld [vmem:[#allocation2 + $0x858] sm:$0xff]
    %v476 = vld [vmem:[#allocation2 + $0x860] sm:$0xff]
    %v477 = vld [vmem:[#allocation2 + $0x868] sm:$0xff]
    %v478 = vld [vmem:[#allocation2 + $0x870] sm:$0xff]
    %v479 = vld [vmem:[#allocation2 + $0x878] sm:$0xff]
    %v480 = vld [vmem:[#allocation2 + $0x880] sm:$0xff]
    %v481 = vld [vmem:[#allocation2 + $0x888] sm:$0xff]
    %v482 = vld [vmem:[#allocation2 + $0x890] sm:$0xff]
    %v483 = vld [vmem:[#allocation2 + $0x898] sm:$0xff]
    %v484 = vld [vmem:[#allocation2 + $0x8a0] sm:$0xff]
    %v485 = vld [vmem:[#allocation2 + $0x8a8] sm:$0xff]
    %v486 = vld [vmem:[#allocation2 + $0x8b0] sm:$0xff]
    %v487 = vld [vmem:[#allocation2 + $0x8b8] sm:$0xff]
    %v488 = vld [vmem:[#allocation2 + $0x8c0] sm:$0xff]
    %v489 = vld [vmem:[#allocation2 + $0x8c8] sm:$0xff]
    %v490 = vld [vmem:[#allocation2 + $0x8d0] sm:$0xff]
    %v491 = vld [vmem:[#allocation2 + $0x8d8] sm:$0xff]
    %v492 = vld [vmem:[#allocation2 + $0x8e0] sm:$0xff]
    %v493 = vld [vmem:[#allocation2 + $0x8e8] sm:$0xff]
    %v494 = vld [vmem:[#allocation2 + $0x8f0] sm:$0xff]
    %v495 = vld [vmem:[#allocation2 + $0x8f8] sm:$0xff]
    %v496 = vld [vmem:[#allocation2 + $0x900] sm:$0xff]
    %v497 = vld [vmem:[#allocation2 + $0x908] sm:$0xff]
    %v498 = vld [vmem:[#allocation2 + $0x910] sm:$0xff]
    %v499 = vld [vmem:[#allocation2 + $0x918] sm:$0xff]
    %v500 = vld [vmem:[#allocation2 + $0x920] sm:$0xff]
    %v501 = vld [vmem:[#allocation2 + $0x928] sm:$0xff]
    %v502 = vld [vmem:[#allocation2 + $0x930] sm:$0xff]
    %v503 = vld [vmem:[#allocation2 + $0x938] sm:$0xff]
    %v504 = vld [vmem:[#allocation2 + $0x940] sm:$0xff]
    %v505 = vld [vmem:[#allocation2 + $0x948] sm:$0xff]
    %v506 = vld [vmem:[#allocation2 + $0x950] sm:$0xff]
    %v507 = vld [vmem:[#allocation2 + $0x958] sm:$0xff]
    %v508 = vld [vmem:[#allocation2 + $0x960] sm:$0xff]
    %v509 = vld [vmem:[#allocation2 + $0x968] sm:$0xff]
    %v510 = vld [vmem:[#allocation2 + $0x970] sm:$0xff]
    %v511 = vld [vmem:[#allocation2 + $0x978] sm:$0xff]
    %v512 = vld [vmem:[#allocation2 + $0x980] sm:$0xff]
    %v513 = vld [vmem:[#allocation2 + $0x988] sm:$0xff]
    %v514 = vld [vmem:[#allocation2 + $0x990] sm:$0xff]
    %v515 = vld [vmem:[#allocation2 + $0x998] sm:$0xff]
    %v516 = vld [vmem:[#allocation2 + $0x9a0] sm:$0xff]
    %v517 = vld [vmem:[#allocation2 + $0x9a8] sm:$0xff]
    %v518 = vld [vmem:[#allocation2 + $0x9b0] sm:$0xff]
    %v519 = vld [vmem:[#allocation2 + $0x9b8] sm:$0xff]
    %v520 = vld [vmem:[#allocation2 + $0x9c0] sm:$0xff]
    %v521 = vld [vmem:[#allocation2 + $0x9c8] sm:$0xff]
    %v522 = vld [vmem:[#allocation2 + $0x9d0] sm:$0xff]
    %v523 = vld [vmem:[#allocation2 + $0x9d8] sm:$0xff]
    %v524 = vld [vmem:[#allocation2 + $0x9e0] sm:$0xff]
    %v525 = vld [vmem:[#allocation2 + $0x9e8] sm:$0xff]
    %v526 = vld [vmem:[#allocation2 + $0x9f0] sm:$0xff]
    %v527 = vld [vmem:[#allocation2 + $0x9f8] sm:$0xff]
    %v528 = vld [vmem:[#allocation2 + $0xa00] sm:$0xff]
    %v529 = vld [vmem:[#allocation2 + $0xa08] sm:$0xff]
    %v530 = vld [vmem:[#allocation2 + $0xa10] sm:$0xff]
    %v531 = vld [vmem:[#allocation2 + $0xa18] sm:$0xff]
    %v532 = vld [vmem:[#allocation2 + $0xa20] sm:$0xff]
    %v533 = vld [vmem:[#allocation2 + $0xa28] sm:$0xff]
    %v534 = vld [vmem:[#allocation2 + $0xa30] sm:$0xff]
    %v535 = vld [vmem:[#allocation2 + $0xa38] sm:$0xff]
    %v536 = vld [vmem:[#allocation2 + $0xa40] sm:$0xff]
    %v537 = vld [vmem:[#allocation2 + $0xa48] sm:$0xff]
    %v538 = vld [vmem:[#allocation2 + $0xa50] sm:$0xff]
    %v539 = vld [vmem:[#allocation2 + $0xa58] sm:$0xff]
    %v540 = vld [vmem:[#allocation2 + $0xa60] sm:$0xff]
    %v541 = vld [vmem:[#allocation2 + $0xa68] sm:$0xff]
    %v542 = vld [vmem:[#allocation2 + $0xa70] sm:$0xff]
    %v543 = vld [vmem:[#allocation2 + $0xa78] sm:$0xff]
    %v544 = vld [vmem:[#allocation2 + $0xa80] sm:$0xff]
    %v545 = vld [vmem:[#allocation2 + $0xa88] sm:$0xff]
    %v546 = vld [vmem:[#allocation2 + $0xa90] sm:$0xff]
    %v547 = vld [vmem:[#allocation2 + $0xa98] sm:$0xff]
    %v548 = vld [vmem:[#allocation2 + $0xaa0] sm:$0xff]
    %v549 = vld [vmem:[#allocation2 + $0xaa8] sm:$0xff]
    %v550 = vld [vmem:[#allocation2 + $0xab0] sm:$0xff]
    %v551 = vld [vmem:[#allocation2 + $0xab8] sm:$0xff]
    %v552 = vld [vmem:[#allocation2 + $0xac0] sm:$0xff]
    %v553 = vld [vmem:[#allocation2 + $0xac8] sm:$0xff]
    %v554 = vld [vmem:[#allocation2 + $0xad0] sm:$0xff]
    %v555 = vld [vmem:[#allocation2 + $0xad8] sm:$0xff]
    %v556 = vld [vmem:[#allocation2 + $0xae0] sm:$0xff]
    %v557 = vld [vmem:[#allocation2 + $0xae8] sm:$0xff]
    %v558 = vld [vmem:[#allocation2 + $0xaf0] sm:$0xff]
    %v559 = vld [vmem:[#allocation2 + $0xaf8] sm:$0xff]
    %v560 = vld [vmem:[#allocation2 + $0xb00] sm:$0xff]
    %v561 = vld [vmem:[#allocation2 + $0xb08] sm:$0xff]
    %v562 = vld [vmem:[#allocation2 + $0xb10] sm:$0xff]
    %v563 = vld [vmem:[#allocation2 + $0xb18] sm:$0xff]
    %v564 = vld [vmem:[#allocation2 + $0xb20] sm:$0xff]
    %v565 = vld [vmem:[#allocation2 + $0xb28] sm:$0xff]
    %v566 = vld [vmem:[#allocation2 + $0xb30] sm:$0xff]
    %v567 = vld [vmem:[#allocation2 + $0xb38] sm:$0xff]
    %v568 = vld [vmem:[#allocation2 + $0xb40] sm:$0xff]
    %v569 = vld [vmem:[#allocation2 + $0xb48] sm:$0xff]
    %v570 = vld [vmem:[#allocation2 + $0xb50] sm:$0xff]
    %v571 = vld [vmem:[#allocation2 + $0xb58] sm:$0xff]
    %v572 = vld [vmem:[#allocation2 + $0xb60] sm:$0xff]
    %v573 = vld [vmem:[#allocation2 + $0xb68] sm:$0xff]
    %v574 = vld [vmem:[#allocation2 + $0xb70] sm:$0xff]
    %v575 = vld [vmem:[#allocation2 + $0xb78] sm:$0xff]
    %v576 = vld [vmem:[#allocation2 + $0xb80] sm:$0xff]
    %v577 = vld [vmem:[#allocation2 + $0xb88] sm:$0xff]
    %v578 = vld [vmem:[#allocation2 + $0xb90] sm:$0xff]
    %v579 = vld [vmem:[#allocation2 + $0xb98] sm:$0xff]
    %v580 = vld [vmem:[#allocation2 + $0xba0] sm:$0xff]
    %v581 = vld [vmem:[#allocation2 + $0xba8] sm:$0xff]
    %v582 = vld [vmem:[#allocation2 + $0xbb0] sm:$0xff]
    %v583 = vld [vmem:[#allocation2 + $0xbb8] sm:$0xff]
    %v584 = vld [vmem:[#allocation2 + $0xbc0] sm:$0xff]
    %v585 = vld [vmem:[#allocation2 + $0xbc8] sm:$0xff]
    %v586 = vld [vmem:[#allocation2 + $0xbd0] sm:$0xff]
    %v587 = vld [vmem:[#allocation2 + $0xbd8] sm:$0xff]
    %v588 = vld [vmem:[#allocation2 + $0xbe0] sm:$0xff]
    %v589 = vld [vmem:[#allocation2 + $0xbe8] sm:$0xff]
    %v590 = vld [vmem:[#allocation2 + $0xbf0] sm:$0xff]
    %v591 = vld [vmem:[#allocation2 + $0xbf8] sm:$0xff]
    %v592 = vld [vmem:[#allocation2 + $0xc00] sm:$0xff]
    %v593 = vld [vmem:[#allocation2 + $0xc08] sm:$0xff]
    %v594 = vld [vmem:[#allocation2 + $0xc10] sm:$0xff]
    %v595 = vld [vmem:[#allocation2 + $0xc18] sm:$0xff]
    %v596 = vld [vmem:[#allocation2 + $0xc20] sm:$0xff]
    %v597 = vld [vmem:[#allocation2 + $0xc28] sm:$0xff]
    %v598 = vld [vmem:[#allocation2 + $0xc30] sm:$0xff]
    %v599 = vld [vmem:[#allocation2 + $0xc38] sm:$0xff]
    %v600 = vld [vmem:[#allocation2 + $0xc40] sm:$0xff]
    %v601 = vld [vmem:[#allocation2 + $0xc48] sm:$0xff]
    %v602 = vld [vmem:[#allocation2 + $0xc50] sm:$0xff]
    %v603 = vld [vmem:[#allocation2 + $0xc58] sm:$0xff]
    %v604 = vld [vmem:[#allocation2 + $0xc60] sm:$0xff]
    %v605 = vld [vmem:[#allocation2 + $0xc68] sm:$0xff]
    %v606 = vld [vmem:[#allocation2 + $0xc70] sm:$0xff]
    %v607 = vld [vmem:[#allocation2 + $0xc78] sm:$0xff]
    %v608 = vld [vmem:[#allocation2 + $0xc80] sm:$0xff]
    %v609 = vld [vmem:[#allocation2 + $0xc88] sm:$0xff]
    %v610 = vld [vmem:[#allocation2 + $0xc90] sm:$0xff]
    %v611 = vld [vmem:[#allocation2 + $0xc98] sm:$0xff]
    %v612 = vld [vmem:[#allocation2 + $0xca0] sm:$0xff]
    %v613 = vld [vmem:[#allocation2 + $0xca8] sm:$0xff]
    %v614 = vld [vmem:[#allocation2 + $0xcb0] sm:$0xff]
    %v615 = vld [vmem:[#allocation2 + $0xcb8] sm:$0xff]
    %v616 = vld [vmem:[#allocation2 + $0xcc0] sm:$0xff]
    %v617 = vld [vmem:[#allocation2 + $0xcc8] sm:$0xff]
    %v618 = vld [vmem:[#allocation2 + $0xcd0] sm:$0xff]
    %v619 = vld [vmem:[#allocation2 + $0xcd8] sm:$0xff]
    %v620 = vld [vmem:[#allocation2 + $0xce0] sm:$0xff]
    %v621 = vld [vmem:[#allocation2 + $0xce8] sm:$0xff]
    %v622 = vld [vmem:[#allocation2 + $0xcf0] sm:$0xff]
    %v623 = vld [vmem:[#allocation2 + $0xcf8] sm:$0xff]
    %v624 = vld [vmem:[#allocation2 + $0xd00] sm:$0xff]
    %v625 = vld [vmem:[#allocation2 + $0xd08] sm:$0xff]
    %v626 = vld [vmem:[#allocation2 + $0xd10] sm:$0xff]
    %v627 = vld [vmem:[#allocation2 + $0xd18] sm:$0xff]
    %v628 = vld [vmem:[#allocation2 + $0xd20] sm:$0xff]
    %v629 = vld [vmem:[#allocation2 + $0xd28] sm:$0xff]
    %v630 = vld [vmem:[#allocation2 + $0xd30] sm:$0xff]
    %v631 = vld [vmem:[#allocation2 + $0xd38] sm:$0xff]
    %v632 = vld [vmem:[#allocation2 + $0xd40] sm:$0xff]
    %v633 = vld [vmem:[#allocation2 + $0xd48] sm:$0xff]
    %v634 = vld [vmem:[#allocation2 + $0xd50] sm:$0xff]
    %v635 = vld [vmem:[#allocation2 + $0xd58] sm:$0xff]
    %v636 = vld [vmem:[#allocation2 + $0xd60] sm:$0xff]
    %v637 = vld [vmem:[#allocation2 + $0xd68] sm:$0xff]
    %v638 = vld [vmem:[#allocation2 + $0xd70] sm:$0xff]
    %v639 = vld [vmem:[#allocation2 + $0xd78] sm:$0xff]
    %v640 = vld [vmem:[#allocation2 + $0xd80] sm:$0xff]
    %v641 = vld [vmem:[#allocation2 + $0xd88] sm:$0xff]
    %v642 = vld [vmem:[#allocation2 + $0xd90] sm:$0xff]
    %v643 = vld [vmem:[#allocation2 + $0xd98] sm:$0xff]
    %v644 = vld [vmem:[#allocation2 + $0xda0] sm:$0xff]
    %v645 = vld [vmem:[#allocation2 + $0xda8] sm:$0xff]
    %v646 = vld [vmem:[#allocation2 + $0xdb0] sm:$0xff]
    %v647 = vld [vmem:[#allocation2 + $0xdb8] sm:$0xff]
    %v648 = vld [vmem:[#allocation2 + $0xdc0] sm:$0xff]
    %v649 = vld [vmem:[#allocation2 + $0xdc8] sm:$0xff]
    %v650 = vld [vmem:[#allocation2 + $0xdd0] sm:$0xff]
    %v651 = vld [vmem:[#allocation2 + $0xdd8] sm:$0xff]
    %v652 = vld [vmem:[#allocation2 + $0xde0] sm:$0xff]
    %v653 = vld [vmem:[#allocation2 + $0xde8] sm:$0xff]
    %v654 = vld [vmem:[#allocation2 + $0xdf0] sm:$0xff]
    %v655 = vld [vmem:[#allocation2 + $0xdf8] sm:$0xff]
    %v656 = vld [vmem:[#allocation2 + $0xe00] sm:$0xff]
    %v657 = vld [vmem:[#allocation2 + $0xe08] sm:$0xff]
    %v658 = vld [vmem:[#allocation2 + $0xe10] sm:$0xff]
    %v659 = vld [vmem:[#allocation2 + $0xe18] sm:$0xff]
    %v660 = vld [vmem:[#allocation2 + $0xe20] sm:$0xff]
    %v661 = vld [vmem:[#allocation2 + $0xe28] sm:$0xff]
    %v662 = vld [vmem:[#allocation2 + $0xe30] sm:$0xff]
    %v663 = vld [vmem:[#allocation2 + $0xe38] sm:$0xff]
    %v664 = vld [vmem:[#allocation2 + $0xe40] sm:$0xff]
    %v665 = vld [vmem:[#allocation2 + $0xe48] sm:$0xff]
    %v666 = vld [vmem:[#allocation2 + $0xe50] sm:$0xff]
    %v667 = vld [vmem:[#allocation2 + $0xe58] sm:$0xff]
    %v668 = vld [vmem:[#allocation2 + $0xe60] sm:$0xff]
    %v669 = vld [vmem:[#allocation2 + $0xe68] sm:$0xff]
    %v670 = vld [vmem:[#allocation2 + $0xe70] sm:$0xff]
    %v671 = vld [vmem:[#allocation2 + $0xe78] sm:$0xff]
    %v672 = vld [vmem:[#allocation2 + $0xe80] sm:$0xff]
    %v673 = vld [vmem:[#allocation2 + $0xe88] sm:$0xff]
    %v674 = vld [vmem:[#allocation2 + $0xe90] sm:$0xff]
    %v675 = vld [vmem:[#allocation2 + $0xe98] sm:$0xff]
    %v676 = vld [vmem:[#allocation2 + $0xea0] sm:$0xff]
    %v677 = vld [vmem:[#allocation2 + $0xea8] sm:$0xff]
    %v678 = vld [vmem:[#allocation2 + $0xeb0] sm:$0xff]
    %v679 = vld [vmem:[#allocation2 + $0xeb8] sm:$0xff]
    %v680 = vld [vmem:[#allocation2 + $0xec0] sm:$0xff]
    %v681 = vld [vmem:[#allocation2 + $0xec8] sm:$0xff]
    %v682 = vld [vmem:[#allocation2 + $0xed0] sm:$0xff]
    %v683 = vld [vmem:[#allocation2 + $0xed8] sm:$0xff]
    %v684 = vld [vmem:[#allocation2 + $0xee0] sm:$0xff]
    %v685 = vld [vmem:[#allocation2 + $0xee8] sm:$0xff]
    %v686 = vld [vmem:[#allocation2 + $0xef0] sm:$0xff]
    %v687 = vld [vmem:[#allocation2 + $0xef8] sm:$0xff]
    %v688 = vld [vmem:[#allocation2 + $0xf00] sm:$0xff]
    %v689 = vld [vmem:[#allocation2 + $0xf08] sm:$0xff]
    %v690 = vld [vmem:[#allocation2 + $0xf10] sm:$0xff]
    %v691 = vld [vmem:[#allocation2 + $0xf18] sm:$0xff]
    %v692 = vld [vmem:[#allocation2 + $0xf20] sm:$0xff]
    %v693 = vld [vmem:[#allocation2 + $0xf28] sm:$0xff]
    %v694 = vld [vmem:[#allocation2 + $0xf30] sm:$0xff]
    %v695 = vld [vmem:[#allocation2 + $0xf38] sm:$0xff]
    %v696 = vld [vmem:[#allocation2 + $0xf40] sm:$0xff]
    %v697 = vld [vmem:[#allocation2 + $0xf48] sm:$0xff]
    %v698 = vld [vmem:[#allocation2 + $0xf50] sm:$0xff]
    %v699 = vld [vmem:[#allocation2 + $0xf58] sm:$0xff]
    %v700 = vld [vmem:[#allocation2 + $0xf60] sm:$0xff]
    %v701 = vld [vmem:[#allocation2 + $0xf68] sm:$0xff]
    %v702 = vld [vmem:[#allocation2 + $0xf70] sm:$0xff]
    %v703 = vld [vmem:[#allocation2 + $0xf78] sm:$0xff]
    %v704 = vld [vmem:[#allocation2 + $0xf80] sm:$0xff]
    %v705 = vld [vmem:[#allocation2 + $0xf88] sm:$0xff]
    %v706 = vld [vmem:[#allocation2 + $0xf90] sm:$0xff]
    %v707 = vld [vmem:[#allocation2 + $0xf98] sm:$0xff]
    %v708 = vld [vmem:[#allocation2 + $0xfa0] sm:$0xff]
    %v709 = vld [vmem:[#allocation2 + $0xfa8] sm:$0xff]
    %v710 = vld [vmem:[#allocation2 + $0xfb0] sm:$0xff]
    %v711 = vld [vmem:[#allocation2 + $0xfb8] sm:$0xff]
    %v712 = vld [vmem:[#allocation2 + $0xfc0] sm:$0xff]
    %v713 = vld [vmem:[#allocation2 + $0xfc8] sm:$0xff]
    %v714 = vld [vmem:[#allocation2 + $0xfd0] sm:$0xff]
    %v715 = vld [vmem:[#allocation2 + $0xfd8] sm:$0xff]
    %v716 = vld [vmem:[#allocation2 + $0xfe0] sm:$0xff]
    %v717 = vld [vmem:[#allocation2 + $0xfe8] sm:$0xff]
    %v718 = vld [vmem:[#allocation2 + $0xff0] sm:$0xff]
    %v719 = vld [vmem:[#allocation2 + $0xff8] sm:$0xff]
    %v720 = vld [vmem:[#allocation2 + $0x1000] sm:$0xff]
    %v721 = vld [vmem:[#allocation2 + $0x1008] sm:$0xff]
    %v722 = vld [vmem:[#allocation2 + $0x1010] sm:$0xff]
    %v723 = vld [vmem:[#allocation2 + $0x1018] sm:$0xff]
    %v724 = vld [vmem:[#allocation2 + $0x1020] sm:$0xff]
    %v725 = vld [vmem:[#allocation2 + $0x1028] sm:$0xff]
    %v726 = vld [vmem:[#allocation2 + $0x1030] sm:$0xff]
    %v727 = vld [vmem:[#allocation2 + $0x1038] sm:$0xff]
    %v728 = vld [vmem:[#allocation2 + $0x1040] sm:$0xff]
    %v729 = vld [vmem:[#allocation2 + $0x1048] sm:$0xff]
    %v730 = vld [vmem:[#allocation2 + $0x1050] sm:$0xff]
    %v731 = vld [vmem:[#allocation2 + $0x1058] sm:$0xff]
    %v732 = vld [vmem:[#allocation2 + $0x1060] sm:$0xff]
    %v733 = vld [vmem:[#allocation2 + $0x1068] sm:$0xff]
    %v734 = vld [vmem:[#allocation2 + $0x1070] sm:$0xff]
    %v735 = vld [vmem:[#allocation2 + $0x1078] sm:$0xff]
    %v736 = vld [vmem:[#allocation2 + $0x1080] sm:$0xff]
    %v737 = vld [vmem:[#allocation2 + $0x1088] sm:$0xff]
    %v738 = vld [vmem:[#allocation2 + $0x1090] sm:$0xff]
    %v739 = vld [vmem:[#allocation2 + $0x1098] sm:$0xff]
    %v740 = vld [vmem:[#allocation2 + $0x10a0] sm:$0xff]
    %v741 = vld [vmem:[#allocation2 + $0x10a8] sm:$0xff]
    %v742 = vld [vmem:[#allocation2 + $0x10b0] sm:$0xff]
    %v743 = vld [vmem:[#allocation2 + $0x10b8] sm:$0xff]
    %v744 = vld [vmem:[#allocation2 + $0x10c0] sm:$0xff]
    %v745 = vld [vmem:[#allocation2 + $0x10c8] sm:$0xff]
    %v746 = vld [vmem:[#allocation2 + $0x10d0] sm:$0xff]
    %v747 = vld [vmem:[#allocation2 + $0x10d8] sm:$0xff]
    %v748 = vld [vmem:[#allocation2 + $0x10e0] sm:$0xff]
    %v749 = vld [vmem:[#allocation2 + $0x10e8] sm:$0xff]
    %v750 = vld [vmem:[#allocation2 + $0x10f0] sm:$0xff]
    %v751 = vld [vmem:[#allocation2 + $0x10f8] sm:$0xff]
    %v1296 = vunpack.c.l.b16 %v208
    %v1297 = vunpack.c.h.b16 %v208
    %v1298 = vunpack.c.l.b16 %v209
    %v1299 = vunpack.c.h.b16 %v209
    %v1300 = vunpack.c.l.b16 %v210
    %v1301 = vunpack.c.h.b16 %v210
    %v1302 = vunpack.c.l.b16 %v211
    %v1303 = vunpack.c.h.b16 %v211
    %v1304 = vunpack.c.l.b16 %v212
    %v1305 = vunpack.c.h.b16 %v212
    %v1306 = vunpack.c.l.b16 %v213
    %v1307 = vunpack.c.h.b16 %v213
    %v1308 = vunpack.c.l.b16 %v214
    %v1309 = vunpack.c.h.b16 %v214
    %v1310 = vunpack.c.l.b16 %v215
    %v1311 = vunpack.c.h.b16 %v215
    %v1312 = vunpack.c.l.b16 %v216
    %v1313 = vunpack.c.h.b16 %v216
    %v1314 = vunpack.c.l.b16 %v217
    %v1315 = vunpack.c.h.b16 %v217
    %v1316 = vunpack.c.l.b16 %v218
    %v1317 = vunpack.c.h.b16 %v218
    %v1318 = vunpack.c.l.b16 %v219
    %v1319 = vunpack.c.h.b16 %v219
    %v1320 = vunpack.c.l.b16 %v220
    %v1321 = vunpack.c.h.b16 %v220
    %v1322 = vunpack.c.l.b16 %v221
    %v1323 = vunpack.c.h.b16 %v221
    %v1324 = vunpack.c.l.b16 %v222
    %v1325 = vunpack.c.h.b16 %v222
    %v1326 = vunpack.c.l.b16 %v223
    %v1327 = vunpack.c.h.b16 %v223
    %v1328 = vunpack.c.l.b16 %v224
    %v1329 = vunpack.c.h.b16 %v224
    %v1330 = vunpack.c.l.b16 %v225
    %v1331 = vunpack.c.h.b16 %v225
    %v1332 = vunpack.c.l.b16 %v226
    %v1333 = vunpack.c.h.b16 %v226
    %v1334 = vunpack.c.l.b16 %v227
    %v1335 = vunpack.c.h.b16 %v227
    %v1336 = vunpack.c.l.b16 %v228
    %v1337 = vunpack.c.h.b16 %v228
    %v1338 = vunpack.c.l.b16 %v229
    %v1339 = vunpack.c.h.b16 %v229
    %v1340 = vunpack.c.l.b16 %v230
    %v1341 = vunpack.c.h.b16 %v230
    %v1342 = vunpack.c.l.b16 %v231
    %v1343 = vunpack.c.h.b16 %v231
    %v1344 = vunpack.c.l.b16 %v232
    %v1345 = vunpack.c.h.b16 %v232
    %v1346 = vunpack.c.l.b16 %v233
    %v1347 = vunpack.c.h.b16 %v233
    %v1348 = vunpack.c.l.b16 %v234
    %v1349 = vunpack.c.h.b16 %v234
    %v1350 = vunpack.c.l.b16 %v235
    %v1351 = vunpack.c.h.b16 %v235
    %v1352 = vunpack.c.l.b16 %v236
    %v1353 = vunpack.c.h.b16 %v236
    %v1354 = vunpack.c.l.b16 %v237
    %v1355 = vunpack.c.h.b16 %v237
    %v1356 = vunpack.c.l.b16 %v238
    %v1357 = vunpack.c.h.b16 %v238
    %v1358 = vunpack.c.l.b16 %v239
    %v1359 = vunpack.c.h.b16 %v239
    %v1360 = vunpack.c.l.b16 %v240
    %v1361 = vunpack.c.h.b16 %v240
    %v1362 = vunpack.c.l.b16 %v241
    %v1363 = vunpack.c.h.b16 %v241
    %v1364 = vunpack.c.l.b16 %v242
    %v1365 = vunpack.c.h.b16 %v242
    %v1366 = vunpack.c.l.b16 %v243
    %v1367 = vunpack.c.h.b16 %v243
    %v1368 = vunpack.c.l.b16 %v244
    %v1369 = vunpack.c.h.b16 %v244
    %v1370 = vunpack.c.l.b16 %v245
    %v1371 = vunpack.c.h.b16 %v245
    %v1372 = vunpack.c.l.b16 %v246
    %v1373 = vunpack.c.h.b16 %v246
    %v1374 = vunpack.c.l.b16 %v247
    %v1375 = vunpack.c.h.b16 %v247
    %v1376 = vunpack.c.l.b16 %v248
    %v1377 = vunpack.c.h.b16 %v248
    %v1378 = vunpack.c.l.b16 %v249
    %v1379 = vunpack.c.h.b16 %v249
    %v1380 = vunpack.c.l.b16 %v250
    %v1381 = vunpack.c.h.b16 %v250
    %v1382 = vunpack.c.l.b16 %v251
    %v1383 = vunpack.c.h.b16 %v251
    %v1384 = vunpack.c.l.b16 %v252
    %v1385 = vunpack.c.h.b16 %v252
    %v1386 = vunpack.c.l.b16 %v253
    %v1387 = vunpack.c.h.b16 %v253
    %v1388 = vunpack.c.l.b16 %v254
    %v1389 = vunpack.c.h.b16 %v254
    %v1390 = vunpack.c.l.b16 %v255
    %v1391 = vunpack.c.h.b16 %v255
    %v1392 = vunpack.c.l.b16 %v256
    %v1393 = vunpack.c.h.b16 %v256
    %v1394 = vunpack.c.l.b16 %v257
    %v1395 = vunpack.c.h.b16 %v257
    %v1396 = vunpack.c.l.b16 %v258
    %v1397 = vunpack.c.h.b16 %v258
    %v1398 = vunpack.c.l.b16 %v259
    %v1399 = vunpack.c.h.b16 %v259
    %v1400 = vunpack.c.l.b16 %v260
    %v1401 = vunpack.c.h.b16 %v260
    %v1402 = vunpack.c.l.b16 %v261
    %v1403 = vunpack.c.h.b16 %v261
    %v1404 = vunpack.c.l.b16 %v262
    %v1405 = vunpack.c.h.b16 %v262
    %v1406 = vunpack.c.l.b16 %v263
    %v1407 = vunpack.c.h.b16 %v263
    %v1408 = vunpack.c.l.b16 %v264
    %v1409 = vunpack.c.h.b16 %v264
    %v1410 = vunpack.c.l.b16 %v265
    %v1411 = vunpack.c.h.b16 %v265
    %v1412 = vunpack.c.l.b16 %v266
    %v1413 = vunpack.c.h.b16 %v266
    %v1414 = vunpack.c.l.b16 %v267
    %v1415 = vunpack.c.h.b16 %v267
    %v1416 = vunpack.c.l.b16 %v268
    %v1417 = vunpack.c.h.b16 %v268
    %v1418 = vunpack.c.l.b16 %v269
    %v1419 = vunpack.c.h.b16 %v269
    %v1420 = vunpack.c.l.b16 %v270
    %v1421 = vunpack.c.h.b16 %v270
    %v1422 = vunpack.c.l.b16 %v271
    %v1423 = vunpack.c.h.b16 %v271
    %v1424 = vunpack.c.l.b16 %v272
    %v1425 = vunpack.c.h.b16 %v272
    %v1426 = vunpack.c.l.b16 %v273
    %v1427 = vunpack.c.h.b16 %v273
    %v1428 = vunpack.c.l.b16 %v274
    %v1429 = vunpack.c.h.b16 %v274
    %v1430 = vunpack.c.l.b16 %v275
    %v1431 = vunpack.c.h.b16 %v275
    %v1432 = vunpack.c.l.b16 %v276
    %v1433 = vunpack.c.h.b16 %v276
    %v1434 = vunpack.c.l.b16 %v277
    %v1435 = vunpack.c.h.b16 %v277
    %v1436 = vunpack.c.l.b16 %v278
    %v1437 = vunpack.c.h.b16 %v278
    %v1438 = vunpack.c.l.b16 %v279
    %v1439 = vunpack.c.h.b16 %v279
    %v1440 = vunpack.c.l.b16 %v280
    %v1441 = vunpack.c.h.b16 %v280
    %v1442 = vunpack.c.l.b16 %v281
    %v1443 = vunpack.c.h.b16 %v281
    %v1444 = vunpack.c.l.b16 %v282
    %v1445 = vunpack.c.h.b16 %v282
    %v1446 = vunpack.c.l.b16 %v283
    %v1447 = vunpack.c.h.b16 %v283
    %v1448 = vunpack.c.l.b16 %v284
    %v1449 = vunpack.c.h.b16 %v284
    %v1450 = vunpack.c.l.b16 %v285
    %v1451 = vunpack.c.h.b16 %v285
    %v1452 = vunpack.c.l.b16 %v286
    %v1453 = vunpack.c.h.b16 %v286
    %v1454 = vunpack.c.l.b16 %v287
    %v1455 = vunpack.c.h.b16 %v287
    %v1456 = vunpack.c.l.b16 %v288
    %v1457 = vunpack.c.h.b16 %v288
    %v1458 = vunpack.c.l.b16 %v289
    %v1459 = vunpack.c.h.b16 %v289
    %v1460 = vunpack.c.l.b16 %v290
    %v1461 = vunpack.c.h.b16 %v290
    %v1462 = vunpack.c.l.b16 %v291
    %v1463 = vunpack.c.h.b16 %v291
    %v1464 = vunpack.c.l.b16 %v292
    %v1465 = vunpack.c.h.b16 %v292
    %v1466 = vunpack.c.l.b16 %v293
    %v1467 = vunpack.c.h.b16 %v293
    %v1468 = vunpack.c.l.b16 %v294
    %v1469 = vunpack.c.h.b16 %v294
    %v1470 = vunpack.c.l.b16 %v295
    %v1471 = vunpack.c.h.b16 %v295
    %v1472 = vunpack.c.l.b16 %v296
    %v1473 = vunpack.c.h.b16 %v296
    %v1474 = vunpack.c.l.b16 %v297
    %v1475 = vunpack.c.h.b16 %v297
    %v1476 = vunpack.c.l.b16 %v298
    %v1477 = vunpack.c.h.b16 %v298
    %v1478 = vunpack.c.l.b16 %v299
    %v1479 = vunpack.c.h.b16 %v299
    %v1480 = vunpack.c.l.b16 %v300
    %v1481 = vunpack.c.h.b16 %v300
    %v1482 = vunpack.c.l.b16 %v301
    %v1483 = vunpack.c.h.b16 %v301
    %v1484 = vunpack.c.l.b16 %v302
    %v1485 = vunpack.c.h.b16 %v302
    %v1486 = vunpack.c.l.b16 %v303
    %v1487 = vunpack.c.h.b16 %v303
    %v1488 = vunpack.c.l.b16 %v304
    %v1489 = vunpack.c.h.b16 %v304
    %v1490 = vunpack.c.l.b16 %v305
    %v1491 = vunpack.c.h.b16 %v305
    %v1492 = vunpack.c.l.b16 %v306
    %v1493 = vunpack.c.h.b16 %v306
    %v1494 = vunpack.c.l.b16 %v307
    %v1495 = vunpack.c.h.b16 %v307
    %v1496 = vunpack.c.l.b16 %v308
    %v1497 = vunpack.c.h.b16 %v308
    %v1498 = vunpack.c.l.b16 %v309
    %v1499 = vunpack.c.h.b16 %v309
    %v1500 = vunpack.c.l.b16 %v310
    %v1501 = vunpack.c.h.b16 %v310
    %v1502 = vunpack.c.l.b16 %v311
    %v1503 = vunpack.c.h.b16 %v311
    %v1504 = vunpack.c.l.b16 %v312
    %v1505 = vunpack.c.h.b16 %v312
    %v1506 = vunpack.c.l.b16 %v313
    %v1507 = vunpack.c.h.b16 %v313
    %v1508 = vunpack.c.l.b16 %v314
    %v1509 = vunpack.c.h.b16 %v314
    %v1510 = vunpack.c.l.b16 %v315
    %v1511 = vunpack.c.h.b16 %v315
    %v1512 = vunpack.c.l.b16 %v316
    %v1513 = vunpack.c.h.b16 %v316
    %v1514 = vunpack.c.l.b16 %v317
    %v1515 = vunpack.c.h.b16 %v317
    %v1516 = vunpack.c.l.b16 %v318
    %v1517 = vunpack.c.h.b16 %v318
    %v1518 = vunpack.c.l.b16 %v319
    %v1519 = vunpack.c.h.b16 %v319
    %v1520 = vunpack.c.l.b16 %v320
    %v1521 = vunpack.c.h.b16 %v320
    %v1522 = vunpack.c.l.b16 %v321
    %v1523 = vunpack.c.h.b16 %v321
    %v1524 = vunpack.c.l.b16 %v322
    %v1525 = vunpack.c.h.b16 %v322
    %v1526 = vunpack.c.l.b16 %v323
    %v1527 = vunpack.c.h.b16 %v323
    %v1528 = vunpack.c.l.b16 %v324
    %v1529 = vunpack.c.h.b16 %v324
    %v1530 = vunpack.c.l.b16 %v325
    %v1531 = vunpack.c.h.b16 %v325
    %v1532 = vunpack.c.l.b16 %v326
    %v1533 = vunpack.c.h.b16 %v326
    %v1534 = vunpack.c.l.b16 %v327
    %v1535 = vunpack.c.h.b16 %v327
    %v1536 = vunpack.c.l.b16 %v328
    %v1537 = vunpack.c.h.b16 %v328
    %v1538 = vunpack.c.l.b16 %v329
    %v1539 = vunpack.c.h.b16 %v329
    %v1540 = vunpack.c.l.b16 %v330
    %v1541 = vunpack.c.h.b16 %v330
    %v1542 = vunpack.c.l.b16 %v331
    %v1543 = vunpack.c.h.b16 %v331
    %v1544 = vunpack.c.l.b16 %v332
    %v1545 = vunpack.c.h.b16 %v332
    %v1546 = vunpack.c.l.b16 %v333
    %v1547 = vunpack.c.h.b16 %v333
    %v1548 = vunpack.c.l.b16 %v334
    %v1549 = vunpack.c.h.b16 %v334
    %v1550 = vunpack.c.l.b16 %v335
    %v1551 = vunpack.c.h.b16 %v335
    %v1552 = vunpack.c.l.b16 %v336
    %v1553 = vunpack.c.h.b16 %v336
    %v1554 = vunpack.c.l.b16 %v337
    %v1555 = vunpack.c.h.b16 %v337
    %v1556 = vunpack.c.l.b16 %v338
    %v1557 = vunpack.c.h.b16 %v338
    %v1558 = vunpack.c.l.b16 %v339
    %v1559 = vunpack.c.h.b16 %v339
    %v1560 = vunpack.c.l.b16 %v340
    %v1561 = vunpack.c.h.b16 %v340
    %v1562 = vunpack.c.l.b16 %v341
    %v1563 = vunpack.c.h.b16 %v341
    %v1564 = vunpack.c.l.b16 %v342
    %v1565 = vunpack.c.h.b16 %v342
    %v1566 = vunpack.c.l.b16 %v343
    %v1567 = vunpack.c.h.b16 %v343
    %v1568 = vunpack.c.l.b16 %v344
    %v1569 = vunpack.c.h.b16 %v344
    %v1570 = vunpack.c.l.b16 %v345
    %v1571 = vunpack.c.h.b16 %v345
    %v1572 = vunpack.c.l.b16 %v346
    %v1573 = vunpack.c.h.b16 %v346
    %v1574 = vunpack.c.l.b16 %v347
    %v1575 = vunpack.c.h.b16 %v347
    %v1576 = vunpack.c.l.b16 %v348
    %v1577 = vunpack.c.h.b16 %v348
    %v1578 = vunpack.c.l.b16 %v349
    %v1579 = vunpack.c.h.b16 %v349
    %v1580 = vunpack.c.l.b16 %v350
    %v1581 = vunpack.c.h.b16 %v350
    %v1582 = vunpack.c.l.b16 %v351
    %v1583 = vunpack.c.h.b16 %v351
    %v1584 = vunpack.c.l.b16 %v352
    %v1585 = vunpack.c.h.b16 %v352
    %v1586 = vunpack.c.l.b16 %v353
    %v1587 = vunpack.c.h.b16 %v353
    %v1588 = vunpack.c.l.b16 %v354
    %v1589 = vunpack.c.h.b16 %v354
    %v1590 = vunpack.c.l.b16 %v355
    %v1591 = vunpack.c.h.b16 %v355
    %v1592 = vunpack.c.l.b16 %v356
    %v1593 = vunpack.c.h.b16 %v356
    %v1594 = vunpack.c.l.b16 %v357
    %v1595 = vunpack.c.h.b16 %v357
    %v1596 = vunpack.c.l.b16 %v358
    %v1597 = vunpack.c.h.b16 %v358
    %v1598 = vunpack.c.l.b16 %v359
    %v1599 = vunpack.c.h.b16 %v359
    %v1600 = vunpack.c.l.b16 %v360
    %v1601 = vunpack.c.h.b16 %v360
    %v1602 = vunpack.c.l.b16 %v361
    %v1603 = vunpack.c.h.b16 %v361
    %v1604 = vunpack.c.l.b16 %v362
    %v1605 = vunpack.c.h.b16 %v362
    %v1606 = vunpack.c.l.b16 %v363
    %v1607 = vunpack.c.h.b16 %v363
    %v1608 = vunpack.c.l.b16 %v364
    %v1609 = vunpack.c.h.b16 %v364
    %v1610 = vunpack.c.l.b16 %v365
    %v1611 = vunpack.c.h.b16 %v365
    %v1612 = vunpack.c.l.b16 %v366
    %v1613 = vunpack.c.h.b16 %v366
    %v1614 = vunpack.c.l.b16 %v367
    %v1615 = vunpack.c.h.b16 %v367
    %v1616 = vunpack.c.l.b16 %v368
    %v1617 = vunpack.c.h.b16 %v368
    %v1618 = vunpack.c.l.b16 %v369
    %v1619 = vunpack.c.h.b16 %v369
    %v1620 = vunpack.c.l.b16 %v370
    %v1621 = vunpack.c.h.b16 %v370
    %v1622 = vunpack.c.l.b16 %v371
    %v1623 = vunpack.c.h.b16 %v371
    %v1624 = vunpack.c.l.b16 %v372
    %v1625 = vunpack.c.h.b16 %v372
    %v1626 = vunpack.c.l.b16 %v373
    %v1627 = vunpack.c.h.b16 %v373
    %v1628 = vunpack.c.l.b16 %v374
    %v1629 = vunpack.c.h.b16 %v374
    %v1630 = vunpack.c.l.b16 %v375
    %v1631 = vunpack.c.h.b16 %v375
    %v1632 = vunpack.c.l.b16 %v376
    %v1633 = vunpack.c.h.b16 %v376
    %v1634 = vunpack.c.l.b16 %v377
    %v1635 = vunpack.c.h.b16 %v377
    %v1636 = vunpack.c.l.b16 %v378
    %v1637 = vunpack.c.h.b16 %v378
    %v1638 = vunpack.c.l.b16 %v379
    %v1639 = vunpack.c.h.b16 %v379
    %v1640 = vunpack.c.l.b16 %v380
    %v1641 = vunpack.c.h.b16 %v380
    %v1642 = vunpack.c.l.b16 %v381
    %v1643 = vunpack.c.h.b16 %v381
    %v1644 = vunpack.c.l.b16 %v382
    %v1645 = vunpack.c.h.b16 %v382
    %v1646 = vunpack.c.l.b16 %v383
    %v1647 = vunpack.c.h.b16 %v383
    %v1648 = vunpack.c.l.b16 %v384
    %v1649 = vunpack.c.h.b16 %v384
    %v1650 = vunpack.c.l.b16 %v385
    %v1651 = vunpack.c.h.b16 %v385
    %v1652 = vunpack.c.l.b16 %v386
    %v1653 = vunpack.c.h.b16 %v386
    %v1654 = vunpack.c.l.b16 %v387
    %v1655 = vunpack.c.h.b16 %v387
    %v1656 = vunpack.c.l.b16 %v388
    %v1657 = vunpack.c.h.b16 %v388
    %v1658 = vunpack.c.l.b16 %v389
    %v1659 = vunpack.c.h.b16 %v389
    %v1660 = vunpack.c.l.b16 %v390
    %v1661 = vunpack.c.h.b16 %v390
    %v1662 = vunpack.c.l.b16 %v391
    %v1663 = vunpack.c.h.b16 %v391
    %v1664 = vunpack.c.l.b16 %v392
    %v1665 = vunpack.c.h.b16 %v392
    %v1666 = vunpack.c.l.b16 %v393
    %v1667 = vunpack.c.h.b16 %v393
    %v1668 = vunpack.c.l.b16 %v394
    %v1669 = vunpack.c.h.b16 %v394
    %v1670 = vunpack.c.l.b16 %v395
    %v1671 = vunpack.c.h.b16 %v395
    %v1672 = vunpack.c.l.b16 %v396
    %v1673 = vunpack.c.h.b16 %v396
    %v1674 = vunpack.c.l.b16 %v397
    %v1675 = vunpack.c.h.b16 %v397
    %v1676 = vunpack.c.l.b16 %v398
    %v1677 = vunpack.c.h.b16 %v398
    %v1678 = vunpack.c.l.b16 %v399
    %v1679 = vunpack.c.h.b16 %v399
    %v1680 = vunpack.c.l.b16 %v400
    %v1681 = vunpack.c.h.b16 %v400
    %v1682 = vunpack.c.l.b16 %v401
    %v1683 = vunpack.c.h.b16 %v401
    %v1684 = vunpack.c.l.b16 %v402
    %v1685 = vunpack.c.h.b16 %v402
    %v1686 = vunpack.c.l.b16 %v403
    %v1687 = vunpack.c.h.b16 %v403
    %v1688 = vunpack.c.l.b16 %v404
    %v1689 = vunpack.c.h.b16 %v404
    %v1690 = vunpack.c.l.b16 %v405
    %v1691 = vunpack.c.h.b16 %v405
    %v1692 = vunpack.c.l.b16 %v406
    %v1693 = vunpack.c.h.b16 %v406
    %v1694 = vunpack.c.l.b16 %v407
    %v1695 = vunpack.c.h.b16 %v407
    %v1696 = vunpack.c.l.b16 %v408
    %v1697 = vunpack.c.h.b16 %v408
    %v1698 = vunpack.c.l.b16 %v409
    %v1699 = vunpack.c.h.b16 %v409
    %v1700 = vunpack.c.l.b16 %v410
    %v1701 = vunpack.c.h.b16 %v410
    %v1702 = vunpack.c.l.b16 %v411
    %v1703 = vunpack.c.h.b16 %v411
    %v1704 = vunpack.c.l.b16 %v412
    %v1705 = vunpack.c.h.b16 %v412
    %v1706 = vunpack.c.l.b16 %v413
    %v1707 = vunpack.c.h.b16 %v413
    %v1708 = vunpack.c.l.b16 %v414
    %v1709 = vunpack.c.h.b16 %v414
    %v1710 = vunpack.c.l.b16 %v415
    %v1711 = vunpack.c.h.b16 %v415
    %v1712 = vunpack.c.l.b16 %v416
    %v1713 = vunpack.c.h.b16 %v416
    %v1714 = vunpack.c.l.b16 %v417
    %v1715 = vunpack.c.h.b16 %v417
    %v1716 = vunpack.c.l.b16 %v418
    %v1717 = vunpack.c.h.b16 %v418
    %v1718 = vunpack.c.l.b16 %v419
    %v1719 = vunpack.c.h.b16 %v419
    %v1720 = vunpack.c.l.b16 %v420
    %v1721 = vunpack.c.h.b16 %v420
    %v1722 = vunpack.c.l.b16 %v421
    %v1723 = vunpack.c.h.b16 %v421
    %v1724 = vunpack.c.l.b16 %v422
    %v1725 = vunpack.c.h.b16 %v422
    %v1726 = vunpack.c.l.b16 %v423
    %v1727 = vunpack.c.h.b16 %v423
    %v1728 = vunpack.c.l.b16 %v424
    %v1729 = vunpack.c.h.b16 %v424
    %v1730 = vunpack.c.l.b16 %v425
    %v1731 = vunpack.c.h.b16 %v425
    %v1732 = vunpack.c.l.b16 %v426
    %v1733 = vunpack.c.h.b16 %v426
    %v1734 = vunpack.c.l.b16 %v427
    %v1735 = vunpack.c.h.b16 %v427
    %v1736 = vunpack.c.l.b16 %v428
    %v1737 = vunpack.c.h.b16 %v428
    %v1738 = vunpack.c.l.b16 %v429
    %v1739 = vunpack.c.h.b16 %v429
    %v1740 = vunpack.c.l.b16 %v430
    %v1741 = vunpack.c.h.b16 %v430
    %v1742 = vunpack.c.l.b16 %v431
    %v1743 = vunpack.c.h.b16 %v431
    %v1744 = vunpack.c.l.b16 %v432
    %v1745 = vunpack.c.h.b16 %v432
    %v1746 = vunpack.c.l.b16 %v433
    %v1747 = vunpack.c.h.b16 %v433
    %v1748 = vunpack.c.l.b16 %v434
    %v1749 = vunpack.c.h.b16 %v434
    %v1750 = vunpack.c.l.b16 %v435
    %v1751 = vunpack.c.h.b16 %v435
    %v1752 = vunpack.c.l.b16 %v436
    %v1753 = vunpack.c.h.b16 %v436
    %v1754 = vunpack.c.l.b16 %v437
    %v1755 = vunpack.c.h.b16 %v437
    %v1756 = vunpack.c.l.b16 %v438
    %v1757 = vunpack.c.h.b16 %v438
    %v1758 = vunpack.c.l.b16 %v439
    %v1759 = vunpack.c.h.b16 %v439
    %v1760 = vunpack.c.l.b16 %v440
    %v1761 = vunpack.c.h.b16 %v440
    %v1762 = vunpack.c.l.b16 %v441
    %v1763 = vunpack.c.h.b16 %v441
    %v1764 = vunpack.c.l.b16 %v442
    %v1765 = vunpack.c.h.b16 %v442
    %v1766 = vunpack.c.l.b16 %v443
    %v1767 = vunpack.c.h.b16 %v443
    %v1768 = vunpack.c.l.b16 %v444
    %v1769 = vunpack.c.h.b16 %v444
    %v1770 = vunpack.c.l.b16 %v445
    %v1771 = vunpack.c.h.b16 %v445
    %v1772 = vunpack.c.l.b16 %v446
    %v1773 = vunpack.c.h.b16 %v446
    %v1774 = vunpack.c.l.b16 %v447
    %v1775 = vunpack.c.h.b16 %v447
    %v1776 = vunpack.c.l.b16 %v448
    %v1777 = vunpack.c.h.b16 %v448
    %v1778 = vunpack.c.l.b16 %v449
    %v1779 = vunpack.c.h.b16 %v449
    %v1780 = vunpack.c.l.b16 %v450
    %v1781 = vunpack.c.h.b16 %v450
    %v1782 = vunpack.c.l.b16 %v451
    %v1783 = vunpack.c.h.b16 %v451
    %v1784 = vunpack.c.l.b16 %v452
    %v1785 = vunpack.c.h.b16 %v452
    %v1786 = vunpack.c.l.b16 %v453
    %v1787 = vunpack.c.h.b16 %v453
    %v1788 = vunpack.c.l.b16 %v454
    %v1789 = vunpack.c.h.b16 %v454
    %v1790 = vunpack.c.l.b16 %v455
    %v1791 = vunpack.c.h.b16 %v455
    %v1792 = vunpack.c.l.b16 %v456
    %v1793 = vunpack.c.h.b16 %v456
    %v1794 = vunpack.c.l.b16 %v457
    %v1795 = vunpack.c.h.b16 %v457
    %v1796 = vunpack.c.l.b16 %v458
    %v1797 = vunpack.c.h.b16 %v458
    %v1798 = vunpack.c.l.b16 %v459
    %v1799 = vunpack.c.h.b16 %v459
    %v1800 = vunpack.c.l.b16 %v460
    %v1801 = vunpack.c.h.b16 %v460
    %v1802 = vunpack.c.l.b16 %v461
    %v1803 = vunpack.c.h.b16 %v461
    %v1804 = vunpack.c.l.b16 %v462
    %v1805 = vunpack.c.h.b16 %v462
    %v1806 = vunpack.c.l.b16 %v463
    %v1807 = vunpack.c.h.b16 %v463
    %v1808 = vunpack.c.l.b16 %v464
    %v1809 = vunpack.c.h.b16 %v464
    %v1810 = vunpack.c.l.b16 %v465
    %v1811 = vunpack.c.h.b16 %v465
    %v1812 = vunpack.c.l.b16 %v466
    %v1813 = vunpack.c.h.b16 %v466
    %v1814 = vunpack.c.l.b16 %v467
    %v1815 = vunpack.c.h.b16 %v467
    %v1816 = vunpack.c.l.b16 %v468
    %v1817 = vunpack.c.h.b16 %v468
    %v1818 = vunpack.c.l.b16 %v469
    %v1819 = vunpack.c.h.b16 %v469
    %v1820 = vunpack.c.l.b16 %v470
    %v1821 = vunpack.c.h.b16 %v470
    %v1822 = vunpack.c.l.b16 %v471
    %v1823 = vunpack.c.h.b16 %v471
    %v1824 = vunpack.c.l.b16 %v472
    %v1825 = vunpack.c.h.b16 %v472
    %v1826 = vunpack.c.l.b16 %v473
    %v1827 = vunpack.c.h.b16 %v473
    %v1828 = vunpack.c.l.b16 %v474
    %v1829 = vunpack.c.h.b16 %v474
    %v1830 = vunpack.c.l.b16 %v475
    %v1831 = vunpack.c.h.b16 %v475
    %v1832 = vunpack.c.l.b16 %v476
    %v1833 = vunpack.c.h.b16 %v476
    %v1834 = vunpack.c.l.b16 %v477
    %v1835 = vunpack.c.h.b16 %v477
    %v1836 = vunpack.c.l.b16 %v478
    %v1837 = vunpack.c.h.b16 %v478
    %v1838 = vunpack.c.l.b16 %v479
    %v1839 = vunpack.c.h.b16 %v479
    %v1840 = vunpack.c.l.b16 %v480
    %v1841 = vunpack.c.h.b16 %v480
    %v1842 = vunpack.c.l.b16 %v481
    %v1843 = vunpack.c.h.b16 %v481
    %v1844 = vunpack.c.l.b16 %v482
    %v1845 = vunpack.c.h.b16 %v482
    %v1846 = vunpack.c.l.b16 %v483
    %v1847 = vunpack.c.h.b16 %v483
    %v1848 = vunpack.c.l.b16 %v484
    %v1849 = vunpack.c.h.b16 %v484
    %v1850 = vunpack.c.l.b16 %v485
    %v1851 = vunpack.c.h.b16 %v485
    %v1852 = vunpack.c.l.b16 %v486
    %v1853 = vunpack.c.h.b16 %v486
    %v1854 = vunpack.c.l.b16 %v487
    %v1855 = vunpack.c.h.b16 %v487
    %v1856 = vunpack.c.l.b16 %v488
    %v1857 = vunpack.c.h.b16 %v488
    %v1858 = vunpack.c.l.b16 %v489
    %v1859 = vunpack.c.h.b16 %v489
    %v1860 = vunpack.c.l.b16 %v490
    %v1861 = vunpack.c.h.b16 %v490
    %v1862 = vunpack.c.l.b16 %v491
    %v1863 = vunpack.c.h.b16 %v491
    %v1864 = vunpack.c.l.b16 %v492
    %v1865 = vunpack.c.h.b16 %v492
    %v1866 = vunpack.c.l.b16 %v493
    %v1867 = vunpack.c.h.b16 %v493
    %v1868 = vunpack.c.l.b16 %v494
    %v1869 = vunpack.c.h.b16 %v494
    %v1870 = vunpack.c.l.b16 %v495
    %v1871 = vunpack.c.h.b16 %v495
    %v1872 = vunpack.c.l.b16 %v496
    %v1873 = vunpack.c.h.b16 %v496
    %v1874 = vunpack.c.l.b16 %v497
    %v1875 = vunpack.c.h.b16 %v497
    %v1876 = vunpack.c.l.b16 %v498
    %v1877 = vunpack.c.h.b16 %v498
    %v1878 = vunpack.c.l.b16 %v499
    %v1879 = vunpack.c.h.b16 %v499
    %v1880 = vunpack.c.l.b16 %v500
    %v1881 = vunpack.c.h.b16 %v500
    %v1882 = vunpack.c.l.b16 %v501
    %v1883 = vunpack.c.h.b16 %v501
    %v1884 = vunpack.c.l.b16 %v502
    %v1885 = vunpack.c.h.b16 %v502
    %v1886 = vunpack.c.l.b16 %v503
    %v1887 = vunpack.c.h.b16 %v503
    %v1888 = vunpack.c.l.b16 %v504
    %v1889 = vunpack.c.h.b16 %v504
    %v1890 = vunpack.c.l.b16 %v505
    %v1891 = vunpack.c.h.b16 %v505
    %v1892 = vunpack.c.l.b16 %v506
    %v1893 = vunpack.c.h.b16 %v506
    %v1894 = vunpack.c.l.b16 %v507
    %v1895 = vunpack.c.h.b16 %v507
    %v1896 = vunpack.c.l.b16 %v508
    %v1897 = vunpack.c.h.b16 %v508
    %v1898 = vunpack.c.l.b16 %v509
    %v1899 = vunpack.c.h.b16 %v509
    %v1900 = vunpack.c.l.b16 %v510
    %v1901 = vunpack.c.h.b16 %v510
    %v1902 = vunpack.c.l.b16 %v511
    %v1903 = vunpack.c.h.b16 %v511
    %v1904 = vunpack.c.l.b16 %v512
    %v1905 = vunpack.c.h.b16 %v512
    %v1906 = vunpack.c.l.b16 %v513
    %v1907 = vunpack.c.h.b16 %v513
    %v1908 = vunpack.c.l.b16 %v514
    %v1909 = vunpack.c.h.b16 %v514
    %v1910 = vunpack.c.l.b16 %v515
    %v1911 = vunpack.c.h.b16 %v515
    %v1912 = vunpack.c.l.b16 %v516
    %v1913 = vunpack.c.h.b16 %v516
    %v1914 = vunpack.c.l.b16 %v517
    %v1915 = vunpack.c.h.b16 %v517
    %v1916 = vunpack.c.l.b16 %v518
    %v1917 = vunpack.c.h.b16 %v518
    %v1918 = vunpack.c.l.b16 %v519
    %v1919 = vunpack.c.h.b16 %v519
    %v1920 = vunpack.c.l.b16 %v520
    %v1921 = vunpack.c.h.b16 %v520
    %v1922 = vunpack.c.l.b16 %v521
    %v1923 = vunpack.c.h.b16 %v521
    %v1924 = vunpack.c.l.b16 %v522
    %v1925 = vunpack.c.h.b16 %v522
    %v1926 = vunpack.c.l.b16 %v523
    %v1927 = vunpack.c.h.b16 %v523
    %v1928 = vunpack.c.l.b16 %v524
    %v1929 = vunpack.c.h.b16 %v524
    %v1930 = vunpack.c.l.b16 %v525
    %v1931 = vunpack.c.h.b16 %v525
    %v1932 = vunpack.c.l.b16 %v526
    %v1933 = vunpack.c.h.b16 %v526
    %v1934 = vunpack.c.l.b16 %v527
    %v1935 = vunpack.c.h.b16 %v527
    %v1936 = vunpack.c.l.b16 %v528
    %v1937 = vunpack.c.h.b16 %v528
    %v1938 = vunpack.c.l.b16 %v529
    %v1939 = vunpack.c.h.b16 %v529
    %v1940 = vunpack.c.l.b16 %v530
    %v1941 = vunpack.c.h.b16 %v530
    %v1942 = vunpack.c.l.b16 %v531
    %v1943 = vunpack.c.h.b16 %v531
    %v1944 = vunpack.c.l.b16 %v532
    %v1945 = vunpack.c.h.b16 %v532
    %v1946 = vunpack.c.l.b16 %v533
    %v1947 = vunpack.c.h.b16 %v533
    %v1948 = vunpack.c.l.b16 %v534
    %v1949 = vunpack.c.h.b16 %v534
    %v1950 = vunpack.c.l.b16 %v535
    %v1951 = vunpack.c.h.b16 %v535
    %v1952 = vunpack.c.l.b16 %v536
    %v1953 = vunpack.c.h.b16 %v536
    %v1954 = vunpack.c.l.b16 %v537
    %v1955 = vunpack.c.h.b16 %v537
    %v1956 = vunpack.c.l.b16 %v538
    %v1957 = vunpack.c.h.b16 %v538
    %v1958 = vunpack.c.l.b16 %v539
    %v1959 = vunpack.c.h.b16 %v539
    %v1960 = vunpack.c.l.b16 %v540
    %v1961 = vunpack.c.h.b16 %v540
    %v1962 = vunpack.c.l.b16 %v541
    %v1963 = vunpack.c.h.b16 %v541
    %v1964 = vunpack.c.l.b16 %v542
    %v1965 = vunpack.c.h.b16 %v542
    %v1966 = vunpack.c.l.b16 %v543
    %v1967 = vunpack.c.h.b16 %v543
    %v1968 = vunpack.c.l.b16 %v544
    %v1969 = vunpack.c.h.b16 %v544
    %v1970 = vunpack.c.l.b16 %v545
    %v1971 = vunpack.c.h.b16 %v545
    %v1972 = vunpack.c.l.b16 %v546
    %v1973 = vunpack.c.h.b16 %v546
    %v1974 = vunpack.c.l.b16 %v547
    %v1975 = vunpack.c.h.b16 %v547
    %v1976 = vunpack.c.l.b16 %v548
    %v1977 = vunpack.c.h.b16 %v548
    %v1978 = vunpack.c.l.b16 %v549
    %v1979 = vunpack.c.h.b16 %v549
    %v1980 = vunpack.c.l.b16 %v550
    %v1981 = vunpack.c.h.b16 %v550
    %v1982 = vunpack.c.l.b16 %v551
    %v1983 = vunpack.c.h.b16 %v551
    %v1984 = vunpack.c.l.b16 %v552
    %v1985 = vunpack.c.h.b16 %v552
    %v1986 = vunpack.c.l.b16 %v553
    %v1987 = vunpack.c.h.b16 %v553
    %v1988 = vunpack.c.l.b16 %v554
    %v1989 = vunpack.c.h.b16 %v554
    %v1990 = vunpack.c.l.b16 %v555
    %v1991 = vunpack.c.h.b16 %v555
    %v1992 = vunpack.c.l.b16 %v556
    %v1993 = vunpack.c.h.b16 %v556
    %v1994 = vunpack.c.l.b16 %v557
    %v1995 = vunpack.c.h.b16 %v557
    %v1996 = vunpack.c.l.b16 %v558
    %v1997 = vunpack.c.h.b16 %v558
    %v1998 = vunpack.c.l.b16 %v559
    %v1999 = vunpack.c.h.b16 %v559
    %v2000 = vunpack.c.l.b16 %v560
    %v2001 = vunpack.c.h.b16 %v560
    %v2002 = vunpack.c.l.b16 %v561
    %v2003 = vunpack.c.h.b16 %v561
    %v2004 = vunpack.c.l.b16 %v562
    %v2005 = vunpack.c.h.b16 %v562
    %v2006 = vunpack.c.l.b16 %v563
    %v2007 = vunpack.c.h.b16 %v563
    %v2008 = vunpack.c.l.b16 %v564
    %v2009 = vunpack.c.h.b16 %v564
    %v2010 = vunpack.c.l.b16 %v565
    %v2011 = vunpack.c.h.b16 %v565
    %v2012 = vunpack.c.l.b16 %v566
    %v2013 = vunpack.c.h.b16 %v566
    %v2014 = vunpack.c.l.b16 %v567
    %v2015 = vunpack.c.h.b16 %v567
    %v2016 = vunpack.c.l.b16 %v568
    %v2017 = vunpack.c.h.b16 %v568
    %v2018 = vunpack.c.l.b16 %v569
    %v2019 = vunpack.c.h.b16 %v569
    %v2020 = vunpack.c.l.b16 %v570
    %v2021 = vunpack.c.h.b16 %v570
    %v2022 = vunpack.c.l.b16 %v571
    %v2023 = vunpack.c.h.b16 %v571
    %v2024 = vunpack.c.l.b16 %v572
    %v2025 = vunpack.c.h.b16 %v572
    %v2026 = vunpack.c.l.b16 %v573
    %v2027 = vunpack.c.h.b16 %v573
    %v2028 = vunpack.c.l.b16 %v574
    %v2029 = vunpack.c.h.b16 %v574
    %v2030 = vunpack.c.l.b16 %v575
    %v2031 = vunpack.c.h.b16 %v575
    %v2032 = vunpack.c.l.b16 %v576
    %v2033 = vunpack.c.h.b16 %v576
    %v2034 = vunpack.c.l.b16 %v577
    %v2035 = vunpack.c.h.b16 %v577
    %v2036 = vunpack.c.l.b16 %v578
    %v2037 = vunpack.c.h.b16 %v578
    %v2038 = vunpack.c.l.b16 %v579
    %v2039 = vunpack.c.h.b16 %v579
    %v2040 = vunpack.c.l.b16 %v580
    %v2041 = vunpack.c.h.b16 %v580
    %v2042 = vunpack.c.l.b16 %v581
    %v2043 = vunpack.c.h.b16 %v581
    %v2044 = vunpack.c.l.b16 %v582
    %v2045 = vunpack.c.h.b16 %v582
    %v2046 = vunpack.c.l.b16 %v583
    %v2047 = vunpack.c.h.b16 %v583
    %v2048 = vunpack.c.l.b16 %v584
    %v2049 = vunpack.c.h.b16 %v584
    %v2050 = vunpack.c.l.b16 %v585
    %v2051 = vunpack.c.h.b16 %v585
    %v2052 = vunpack.c.l.b16 %v586
    %v2053 = vunpack.c.h.b16 %v586
    %v2054 = vunpack.c.l.b16 %v587
    %v2055 = vunpack.c.h.b16 %v587
    %v2056 = vunpack.c.l.b16 %v588
    %v2057 = vunpack.c.h.b16 %v588
    %v2058 = vunpack.c.l.b16 %v589
    %v2059 = vunpack.c.h.b16 %v589
    %v2060 = vunpack.c.l.b16 %v590
    %v2061 = vunpack.c.h.b16 %v590
    %v2062 = vunpack.c.l.b16 %v591
    %v2063 = vunpack.c.h.b16 %v591
    %v2064 = vunpack.c.l.b16 %v592
    %v2065 = vunpack.c.h.b16 %v592
    %v2066 = vunpack.c.l.b16 %v593
    %v2067 = vunpack.c.h.b16 %v593
    %v2068 = vunpack.c.l.b16 %v594
    %v2069 = vunpack.c.h.b16 %v594
    %v2070 = vunpack.c.l.b16 %v595
    %v2071 = vunpack.c.h.b16 %v595
    %v2072 = vunpack.c.l.b16 %v596
    %v2073 = vunpack.c.h.b16 %v596
    %v2074 = vunpack.c.l.b16 %v597
    %v2075 = vunpack.c.h.b16 %v597
    %v2076 = vunpack.c.l.b16 %v598
    %v2077 = vunpack.c.h.b16 %v598
    %v2078 = vunpack.c.l.b16 %v599
    %v2079 = vunpack.c.h.b16 %v599
    %v2080 = vunpack.c.l.b16 %v600
    %v2081 = vunpack.c.h.b16 %v600
    %v2082 = vunpack.c.l.b16 %v601
    %v2083 = vunpack.c.h.b16 %v601
    %v2084 = vunpack.c.l.b16 %v602
    %v2085 = vunpack.c.h.b16 %v602
    %v2086 = vunpack.c.l.b16 %v603
    %v2087 = vunpack.c.h.b16 %v603
    %v2088 = vunpack.c.l.b16 %v604
    %v2089 = vunpack.c.h.b16 %v604
    %v2090 = vunpack.c.l.b16 %v605
    %v2091 = vunpack.c.h.b16 %v605
    %v2092 = vunpack.c.l.b16 %v606
    %v2093 = vunpack.c.h.b16 %v606
    %v2094 = vunpack.c.l.b16 %v607
    %v2095 = vunpack.c.h.b16 %v607
    %v2096 = vunpack.c.l.b16 %v608
    %v2097 = vunpack.c.h.b16 %v608
    %v2098 = vunpack.c.l.b16 %v609
    %v2099 = vunpack.c.h.b16 %v609
    %v2100 = vunpack.c.l.b16 %v610
    %v2101 = vunpack.c.h.b16 %v610
    %v2102 = vunpack.c.l.b16 %v611
    %v2103 = vunpack.c.h.b16 %v611
    %v2104 = vunpack.c.l.b16 %v612
    %v2105 = vunpack.c.h.b16 %v612
    %v2106 = vunpack.c.l.b16 %v613
    %v2107 = vunpack.c.h.b16 %v613
    %v2108 = vunpack.c.l.b16 %v614
    %v2109 = vunpack.c.h.b16 %v614
    %v2110 = vunpack.c.l.b16 %v615
    %v2111 = vunpack.c.h.b16 %v615
    %v2112 = vunpack.c.l.b16 %v616
    %v2113 = vunpack.c.h.b16 %v616
    %v2114 = vunpack.c.l.b16 %v617
    %v2115 = vunpack.c.h.b16 %v617
    %v2116 = vunpack.c.l.b16 %v618
    %v2117 = vunpack.c.h.b16 %v618
    %v2118 = vunpack.c.l.b16 %v619
    %v2119 = vunpack.c.h.b16 %v619
    %v2120 = vunpack.c.l.b16 %v620
    %v2121 = vunpack.c.h.b16 %v620
    %v2122 = vunpack.c.l.b16 %v621
    %v2123 = vunpack.c.h.b16 %v621
    %v2124 = vunpack.c.l.b16 %v622
    %v2125 = vunpack.c.h.b16 %v622
    %v2126 = vunpack.c.l.b16 %v623
    %v2127 = vunpack.c.h.b16 %v623
    %v2128 = vunpack.c.l.b16 %v624
    %v2129 = vunpack.c.h.b16 %v624
    %v2130 = vunpack.c.l.b16 %v625
    %v2131 = vunpack.c.h.b16 %v625
    %v2132 = vunpack.c.l.b16 %v626
    %v2133 = vunpack.c.h.b16 %v626
    %v2134 = vunpack.c.l.b16 %v627
    %v2135 = vunpack.c.h.b16 %v627
    %v2136 = vunpack.c.l.b16 %v628
    %v2137 = vunpack.c.h.b16 %v628
    %v2138 = vunpack.c.l.b16 %v629
    %v2139 = vunpack.c.h.b16 %v629
    %v2140 = vunpack.c.l.b16 %v630
    %v2141 = vunpack.c.h.b16 %v630
    %v2142 = vunpack.c.l.b16 %v631
    %v2143 = vunpack.c.h.b16 %v631
    %v2144 = vunpack.c.l.b16 %v632
    %v2145 = vunpack.c.h.b16 %v632
    %v2146 = vunpack.c.l.b16 %v633
    %v2147 = vunpack.c.h.b16 %v633
    %v2148 = vunpack.c.l.b16 %v634
    %v2149 = vunpack.c.h.b16 %v634
    %v2150 = vunpack.c.l.b16 %v635
    %v2151 = vunpack.c.h.b16 %v635
    %v2152 = vunpack.c.l.b16 %v636
    %v2153 = vunpack.c.h.b16 %v636
    %v2154 = vunpack.c.l.b16 %v637
    %v2155 = vunpack.c.h.b16 %v637
    %v2156 = vunpack.c.l.b16 %v638
    %v2157 = vunpack.c.h.b16 %v638
    %v2158 = vunpack.c.l.b16 %v639
    %v2159 = vunpack.c.h.b16 %v639
    %v2160 = vunpack.c.l.b16 %v640
    %v2161 = vunpack.c.h.b16 %v640
    %v2162 = vunpack.c.l.b16 %v641
    %v2163 = vunpack.c.h.b16 %v641
    %v2164 = vunpack.c.l.b16 %v642
    %v2165 = vunpack.c.h.b16 %v642
    %v2166 = vunpack.c.l.b16 %v643
    %v2167 = vunpack.c.h.b16 %v643
    %v2168 = vunpack.c.l.b16 %v644
    %v2169 = vunpack.c.h.b16 %v644
    %v2170 = vunpack.c.l.b16 %v645
    %v2171 = vunpack.c.h.b16 %v645
    %v2172 = vunpack.c.l.b16 %v646
    %v2173 = vunpack.c.h.b16 %v646
    %v2174 = vunpack.c.l.b16 %v647
    %v2175 = vunpack.c.h.b16 %v647
    %v2176 = vunpack.c.l.b16 %v648
    %v2177 = vunpack.c.h.b16 %v648
    %v2178 = vunpack.c.l.b16 %v649
    %v2179 = vunpack.c.h.b16 %v649
    %v2180 = vunpack.c.l.b16 %v650
    %v2181 = vunpack.c.h.b16 %v650
    %v2182 = vunpack.c.l.b16 %v651
    %v2183 = vunpack.c.h.b16 %v651
    %v2184 = vunpack.c.l.b16 %v652
    %v2185 = vunpack.c.h.b16 %v652
    %v2186 = vunpack.c.l.b16 %v653
    %v2187 = vunpack.c.h.b16 %v653
    %v2188 = vunpack.c.l.b16 %v654
    %v2189 = vunpack.c.h.b16 %v654
    %v2190 = vunpack.c.l.b16 %v655
    %v2191 = vunpack.c.h.b16 %v655
    %v2192 = vunpack.c.l.b16 %v656
    %v2193 = vunpack.c.h.b16 %v656
    %v2194 = vunpack.c.l.b16 %v657
    %v2195 = vunpack.c.h.b16 %v657
    %v2196 = vunpack.c.l.b16 %v658
    %v2197 = vunpack.c.h.b16 %v658
    %v2198 = vunpack.c.l.b16 %v659
    %v2199 = vunpack.c.h.b16 %v659
    %v2200 = vunpack.c.l.b16 %v660
    %v2201 = vunpack.c.h.b16 %v660
    %v2202 = vunpack.c.l.b16 %v661
    %v2203 = vunpack.c.h.b16 %v661
    %v2204 = vunpack.c.l.b16 %v662
    %v2205 = vunpack.c.h.b16 %v662
    %v2206 = vunpack.c.l.b16 %v663
    %v2207 = vunpack.c.h.b16 %v663
    %v2208 = vunpack.c.l.b16 %v664
    %v2209 = vunpack.c.h.b16 %v664
    %v2210 = vunpack.c.l.b16 %v665
    %v2211 = vunpack.c.h.b16 %v665
    %v2212 = vunpack.c.l.b16 %v666
    %v2213 = vunpack.c.h.b16 %v666
    %v2214 = vunpack.c.l.b16 %v667
    %v2215 = vunpack.c.h.b16 %v667
    %v2216 = vunpack.c.l.b16 %v668
    %v2217 = vunpack.c.h.b16 %v668
    %v2218 = vunpack.c.l.b16 %v669
    %v2219 = vunpack.c.h.b16 %v669
    %v2220 = vunpack.c.l.b16 %v670
    %v2221 = vunpack.c.h.b16 %v670
    %v2222 = vunpack.c.l.b16 %v671
    %v2223 = vunpack.c.h.b16 %v671
    %v2224 = vunpack.c.l.b16 %v672
    %v2225 = vunpack.c.h.b16 %v672
    %v2226 = vunpack.c.l.b16 %v673
    %v2227 = vunpack.c.h.b16 %v673
    %v2228 = vunpack.c.l.b16 %v674
    %v2229 = vunpack.c.h.b16 %v674
    %v2230 = vunpack.c.l.b16 %v675
    %v2231 = vunpack.c.h.b16 %v675
    %v2232 = vunpack.c.l.b16 %v676
    %v2233 = vunpack.c.h.b16 %v676
    %v2234 = vunpack.c.l.b16 %v677
    %v2235 = vunpack.c.h.b16 %v677
    %v2236 = vunpack.c.l.b16 %v678
    %v2237 = vunpack.c.h.b16 %v678
    %v2238 = vunpack.c.l.b16 %v679
    %v2239 = vunpack.c.h.b16 %v679
    %v2240 = vunpack.c.l.b16 %v680
    %v2241 = vunpack.c.h.b16 %v680
    %v2242 = vunpack.c.l.b16 %v681
    %v2243 = vunpack.c.h.b16 %v681
    %v2244 = vunpack.c.l.b16 %v682
    %v2245 = vunpack.c.h.b16 %v682
    %v2246 = vunpack.c.l.b16 %v683
    %v2247 = vunpack.c.h.b16 %v683
    %v2248 = vunpack.c.l.b16 %v684
    %v2249 = vunpack.c.h.b16 %v684
    %v2250 = vunpack.c.l.b16 %v685
    %v2251 = vunpack.c.h.b16 %v685
    %v2252 = vunpack.c.l.b16 %v686
    %v2253 = vunpack.c.h.b16 %v686
    %v2254 = vunpack.c.l.b16 %v687
    %v2255 = vunpack.c.h.b16 %v687
    %v2256 = vunpack.c.l.b16 %v688
    %v2257 = vunpack.c.h.b16 %v688
    %v2258 = vunpack.c.l.b16 %v689
    %v2259 = vunpack.c.h.b16 %v689
    %v2260 = vunpack.c.l.b16 %v690
    %v2261 = vunpack.c.h.b16 %v690
    %v2262 = vunpack.c.l.b16 %v691
    %v2263 = vunpack.c.h.b16 %v691
    %v2264 = vunpack.c.l.b16 %v692
    %v2265 = vunpack.c.h.b16 %v692
    %v2266 = vunpack.c.l.b16 %v693
    %v2267 = vunpack.c.h.b16 %v693
    %v2268 = vunpack.c.l.b16 %v694
    %v2269 = vunpack.c.h.b16 %v694
    %v2270 = vunpack.c.l.b16 %v695
    %v2271 = vunpack.c.h.b16 %v695
    %v2272 = vunpack.c.l.b16 %v696
    %v2273 = vunpack.c.h.b16 %v696
    %v2274 = vunpack.c.l.b16 %v697
    %v2275 = vunpack.c.h.b16 %v697
    %v2276 = vunpack.c.l.b16 %v698
    %v2277 = vunpack.c.h.b16 %v698
    %v2278 = vunpack.c.l.b16 %v699
    %v2279 = vunpack.c.h.b16 %v699
    %v2280 = vunpack.c.l.b16 %v700
    %v2281 = vunpack.c.h.b16 %v700
    %v2282 = vunpack.c.l.b16 %v701
    %v2283 = vunpack.c.h.b16 %v701
    %v2284 = vunpack.c.l.b16 %v702
    %v2285 = vunpack.c.h.b16 %v702
    %v2286 = vunpack.c.l.b16 %v703
    %v2287 = vunpack.c.h.b16 %v703
    %v2288 = vunpack.c.l.b16 %v704
    %v2289 = vunpack.c.h.b16 %v704
    %v2290 = vunpack.c.l.b16 %v705
    %v2291 = vunpack.c.h.b16 %v705
    %v2292 = vunpack.c.l.b16 %v706
    %v2293 = vunpack.c.h.b16 %v706
    %v2294 = vunpack.c.l.b16 %v707
    %v2295 = vunpack.c.h.b16 %v707
    %v2296 = vunpack.c.l.b16 %v708
    %v2297 = vunpack.c.h.b16 %v708
    %v2298 = vunpack.c.l.b16 %v709
    %v2299 = vunpack.c.h.b16 %v709
    %v2300 = vunpack.c.l.b16 %v710
    %v2301 = vunpack.c.h.b16 %v710
    %v2302 = vunpack.c.l.b16 %v711
    %v2303 = vunpack.c.h.b16 %v711
    %v2304 = vunpack.c.l.b16 %v712
    %v2305 = vunpack.c.h.b16 %v712
    %v2306 = vunpack.c.l.b16 %v713
    %v2307 = vunpack.c.h.b16 %v713
    %v2308 = vunpack.c.l.b16 %v714
    %v2309 = vunpack.c.h.b16 %v714
    %v2310 = vunpack.c.l.b16 %v715
    %v2311 = vunpack.c.h.b16 %v715
    %v2312 = vunpack.c.l.b16 %v716
    %v2313 = vunpack.c.h.b16 %v716
    %v2314 = vunpack.c.l.b16 %v717
    %v2315 = vunpack.c.h.b16 %v717
    %v2316 = vunpack.c.l.b16 %v718
    %v2317 = vunpack.c.h.b16 %v718
    %v2318 = vunpack.c.l.b16 %v719
    %v2319 = vunpack.c.h.b16 %v719
    %v2320 = vunpack.c.l.b16 %v720
    %v2321 = vunpack.c.h.b16 %v720
    %v2322 = vunpack.c.l.b16 %v721
    %v2323 = vunpack.c.h.b16 %v721
    %v2324 = vunpack.c.l.b16 %v722
    %v2325 = vunpack.c.h.b16 %v722
    %v2326 = vunpack.c.l.b16 %v723
    %v2327 = vunpack.c.h.b16 %v723
    %v2328 = vunpack.c.l.b16 %v724
    %v2329 = vunpack.c.h.b16 %v724
    %v2330 = vunpack.c.l.b16 %v725
    %v2331 = vunpack.c.h.b16 %v725
    %v2332 = vunpack.c.l.b16 %v726
    %v2333 = vunpack.c.h.b16 %v726
    %v2334 = vunpack.c.l.b16 %v727
    %v2335 = vunpack.c.h.b16 %v727
    %v2336 = vunpack.c.l.b16 %v728
    %v2337 = vunpack.c.h.b16 %v728
    %v2338 = vunpack.c.l.b16 %v729
    %v2339 = vunpack.c.h.b16 %v729
    %v2340 = vunpack.c.l.b16 %v730
    %v2341 = vunpack.c.h.b16 %v730
    %v2342 = vunpack.c.l.b16 %v731
    %v2343 = vunpack.c.h.b16 %v731
    %v2344 = vunpack.c.l.b16 %v732
    %v2345 = vunpack.c.h.b16 %v732
    %v2346 = vunpack.c.l.b16 %v733
    %v2347 = vunpack.c.h.b16 %v733
    %v2348 = vunpack.c.l.b16 %v734
    %v2349 = vunpack.c.h.b16 %v734
    %v2350 = vunpack.c.l.b16 %v735
    %v2351 = vunpack.c.h.b16 %v735
    %v2352 = vunpack.c.l.b16 %v736
    %v2353 = vunpack.c.h.b16 %v736
    %v2354 = vunpack.c.l.b16 %v737
    %v2355 = vunpack.c.h.b16 %v737
    %v2356 = vunpack.c.l.b16 %v738
    %v2357 = vunpack.c.h.b16 %v738
    %v2358 = vunpack.c.l.b16 %v739
    %v2359 = vunpack.c.h.b16 %v739
    %v2360 = vunpack.c.l.b16 %v740
    %v2361 = vunpack.c.h.b16 %v740
    %v2362 = vunpack.c.l.b16 %v741
    %v2363 = vunpack.c.h.b16 %v741
    %v2364 = vunpack.c.l.b16 %v742
    %v2365 = vunpack.c.h.b16 %v742
    %v2366 = vunpack.c.l.b16 %v743
    %v2367 = vunpack.c.h.b16 %v743
    %v2368 = vunpack.c.l.b16 %v744
    %v2369 = vunpack.c.h.b16 %v744
    %v2370 = vunpack.c.l.b16 %v745
    %v2371 = vunpack.c.h.b16 %v745
    %v2372 = vunpack.c.l.b16 %v746
    %v2373 = vunpack.c.h.b16 %v746
    %v2374 = vunpack.c.l.b16 %v747
    %v2375 = vunpack.c.h.b16 %v747
    %v2376 = vunpack.c.l.b16 %v748
    %v2377 = vunpack.c.h.b16 %v748
    %v2378 = vunpack.c.l.b16 %v749
    %v2379 = vunpack.c.h.b16 %v749
    %v2380 = vunpack.c.l.b16 %v750
    %v2381 = vunpack.c.h.b16 %v750
    %v2382 = vunpack.c.l.b16 %v751
    %v2383 = vunpack.c.h.b16 %v751
    %v2384 = vpack.c.b16 %v1312, %v1296
    %v2385 = vpack.c.b16 %v1313, %v1297
    %v2386 = vpack.c.b16 %v1314, %v1298
    %v2387 = vpack.c.b16 %v1315, %v1299
    %v2388 = vpack.c.b16 %v1316, %v1300
    %v2389 = vpack.c.b16 %v1317, %v1301
    %v2390 = vpack.c.b16 %v1318, %v1302
    %v2391 = vpack.c.b16 %v1319, %v1303
    %v2392 = vpack.c.b16 %v1320, %v1304
    %v2393 = vpack.c.b16 %v1321, %v1305
    %v2394 = vpack.c.b16 %v1322, %v1306
    %v2395 = vpack.c.b16 %v1323, %v1307
    %v2396 = vpack.c.b16 %v1324, %v1308
    %v2397 = vpack.c.b16 %v1325, %v1309
    %v2398 = vpack.c.b16 %v1326, %v1310
    %v2399 = vpack.c.b16 %v1327, %v1311
    %v2400 = vpack.c.b16 %v1344, %v1328
    %v2401 = vpack.c.b16 %v1345, %v1329
    %v2402 = vpack.c.b16 %v1346, %v1330
    %v2403 = vpack.c.b16 %v1347, %v1331
    %v2404 = vpack.c.b16 %v1348, %v1332
    %v2405 = vpack.c.b16 %v1349, %v1333
    %v2406 = vpack.c.b16 %v1350, %v1334
    %v2407 = vpack.c.b16 %v1351, %v1335
    %v2408 = vpack.c.b16 %v1352, %v1336
    %v2409 = vpack.c.b16 %v1353, %v1337
    %v2410 = vpack.c.b16 %v1354, %v1338
    %v2411 = vpack.c.b16 %v1355, %v1339
    %v2412 = vpack.c.b16 %v1356, %v1340
    %v2413 = vpack.c.b16 %v1357, %v1341
    %v2414 = vpack.c.b16 %v1358, %v1342
    %v2415 = vpack.c.b16 %v1359, %v1343
    %v2416 = vpack.c.b16 %v1376, %v1360
    %v2417 = vpack.c.b16 %v1377, %v1361
    %v2418 = vpack.c.b16 %v1378, %v1362
    %v2419 = vpack.c.b16 %v1379, %v1363
    %v2420 = vpack.c.b16 %v1380, %v1364
    %v2421 = vpack.c.b16 %v1381, %v1365
    %v2422 = vpack.c.b16 %v1382, %v1366
    %v2423 = vpack.c.b16 %v1383, %v1367
    %v2424 = vpack.c.b16 %v1384, %v1368
    %v2425 = vpack.c.b16 %v1385, %v1369
    %v2426 = vpack.c.b16 %v1386, %v1370
    %v2427 = vpack.c.b16 %v1387, %v1371
    %v2428 = vpack.c.b16 %v1388, %v1372
    %v2429 = vpack.c.b16 %v1389, %v1373
    %v2430 = vpack.c.b16 %v1390, %v1374
    %v2431 = vpack.c.b16 %v1391, %v1375
    %v2432 = vpack.c.b16 %v1408, %v1392
    %v2433 = vpack.c.b16 %v1409, %v1393
    %v2434 = vpack.c.b16 %v1410, %v1394
    %v2435 = vpack.c.b16 %v1411, %v1395
    %v2436 = vpack.c.b16 %v1412, %v1396
    %v2437 = vpack.c.b16 %v1413, %v1397
    %v2438 = vpack.c.b16 %v1414, %v1398
    %v2439 = vpack.c.b16 %v1415, %v1399
    %v2440 = vpack.c.b16 %v1416, %v1400
    %v2441 = vpack.c.b16 %v1417, %v1401
    %v2442 = vpack.c.b16 %v1418, %v1402
    %v2443 = vpack.c.b16 %v1419, %v1403
    %v2444 = vpack.c.b16 %v1420, %v1404
    %v2445 = vpack.c.b16 %v1421, %v1405
    %v2446 = vpack.c.b16 %v1422, %v1406
    %v2447 = vpack.c.b16 %v1423, %v1407
    %v2448 = vpack.c.b16 %v1440, %v1424
    %v2449 = vpack.c.b16 %v1441, %v1425
    %v2450 = vpack.c.b16 %v1442, %v1426
    %v2451 = vpack.c.b16 %v1443, %v1427
    %v2452 = vpack.c.b16 %v1444, %v1428
    %v2453 = vpack.c.b16 %v1445, %v1429
    %v2454 = vpack.c.b16 %v1446, %v1430
    %v2455 = vpack.c.b16 %v1447, %v1431
    %v2456 = vpack.c.b16 %v1448, %v1432
    %v2457 = vpack.c.b16 %v1449, %v1433
    %v2458 = vpack.c.b16 %v1450, %v1434
    %v2459 = vpack.c.b16 %v1451, %v1435
    %v2460 = vpack.c.b16 %v1452, %v1436
    %v2461 = vpack.c.b16 %v1453, %v1437
    %v2462 = vpack.c.b16 %v1454, %v1438
    %v2463 = vpack.c.b16 %v1455, %v1439
    %v2464 = vpack.c.b16 %v1472, %v1456
    %v2465 = vpack.c.b16 %v1473, %v1457
    %v2466 = vpack.c.b16 %v1474, %v1458
    %v2467 = vpack.c.b16 %v1475, %v1459
    %v2468 = vpack.c.b16 %v1476, %v1460
    %v2469 = vpack.c.b16 %v1477, %v1461
    %v2470 = vpack.c.b16 %v1478, %v1462
    %v2471 = vpack.c.b16 %v1479, %v1463
    %v2472 = vpack.c.b16 %v1480, %v1464
    %v2473 = vpack.c.b16 %v1481, %v1465
    %v2474 = vpack.c.b16 %v1482, %v1466
    %v2475 = vpack.c.b16 %v1483, %v1467
    %v2476 = vpack.c.b16 %v1484, %v1468
    %v2477 = vpack.c.b16 %v1485, %v1469
    %v2478 = vpack.c.b16 %v1486, %v1470
    %v2479 = vpack.c.b16 %v1487, %v1471
    %v2480 = vpack.c.b16 %v1504, %v1488
    %v2481 = vpack.c.b16 %v1505, %v1489
    %v2482 = vpack.c.b16 %v1506, %v1490
    %v2483 = vpack.c.b16 %v1507, %v1491
    %v2484 = vpack.c.b16 %v1508, %v1492
    %v2485 = vpack.c.b16 %v1509, %v1493
    %v2486 = vpack.c.b16 %v1510, %v1494
    %v2487 = vpack.c.b16 %v1511, %v1495
    %v2488 = vpack.c.b16 %v1512, %v1496
    %v2489 = vpack.c.b16 %v1513, %v1497
    %v2490 = vpack.c.b16 %v1514, %v1498
    %v2491 = vpack.c.b16 %v1515, %v1499
    %v2492 = vpack.c.b16 %v1516, %v1500
    %v2493 = vpack.c.b16 %v1517, %v1501
    %v2494 = vpack.c.b16 %v1518, %v1502
    %v2495 = vpack.c.b16 %v1519, %v1503
    %v2496 = vpack.c.b16 %v1536, %v1520
    %v2497 = vpack.c.b16 %v1537, %v1521
    %v2498 = vpack.c.b16 %v1538, %v1522
    %v2499 = vpack.c.b16 %v1539, %v1523
    %v2500 = vpack.c.b16 %v1540, %v1524
    %v2501 = vpack.c.b16 %v1541, %v1525
    %v2502 = vpack.c.b16 %v1542, %v1526
    %v2503 = vpack.c.b16 %v1543, %v1527
    %v2504 = vpack.c.b16 %v1544, %v1528
    %v2505 = vpack.c.b16 %v1545, %v1529
    %v2506 = vpack.c.b16 %v1546, %v1530
    %v2507 = vpack.c.b16 %v1547, %v1531
    %v2508 = vpack.c.b16 %v1548, %v1532
    %v2509 = vpack.c.b16 %v1549, %v1533
    %v2510 = vpack.c.b16 %v1550, %v1534
    %v2511 = vpack.c.b16 %v1551, %v1535
    %v2512 = vpack.c.b16 %v1568, %v1552
    %v2513 = vpack.c.b16 %v1569, %v1553
    %v2514 = vpack.c.b16 %v1570, %v1554
    %v2515 = vpack.c.b16 %v1571, %v1555
    %v2516 = vpack.c.b16 %v1572, %v1556
    %v2517 = vpack.c.b16 %v1573, %v1557
    %v2518 = vpack.c.b16 %v1574, %v1558
    %v2519 = vpack.c.b16 %v1575, %v1559
    %v2520 = vpack.c.b16 %v1576, %v1560
    %v2521 = vpack.c.b16 %v1577, %v1561
    %v2522 = vpack.c.b16 %v1578, %v1562
    %v2523 = vpack.c.b16 %v1579, %v1563
    %v2524 = vpack.c.b16 %v1580, %v1564
    %v2525 = vpack.c.b16 %v1581, %v1565
    %v2526 = vpack.c.b16 %v1582, %v1566
    %v2527 = vpack.c.b16 %v1583, %v1567
    %v2528 = vpack.c.b16 %v1600, %v1584
    %v2529 = vpack.c.b16 %v1601, %v1585
    %v2530 = vpack.c.b16 %v1602, %v1586
    %v2531 = vpack.c.b16 %v1603, %v1587
    %v2532 = vpack.c.b16 %v1604, %v1588
    %v2533 = vpack.c.b16 %v1605, %v1589
    %v2534 = vpack.c.b16 %v1606, %v1590
    %v2535 = vpack.c.b16 %v1607, %v1591
    %v2536 = vpack.c.b16 %v1608, %v1592
    %v2537 = vpack.c.b16 %v1609, %v1593
    %v2538 = vpack.c.b16 %v1610, %v1594
    %v2539 = vpack.c.b16 %v1611, %v1595
    %v2540 = vpack.c.b16 %v1612, %v1596
    %v2541 = vpack.c.b16 %v1613, %v1597
    %v2542 = vpack.c.b16 %v1614, %v1598
    %v2543 = vpack.c.b16 %v1615, %v1599
    %v2544 = vpack.c.b16 %v1632, %v1616
    %v2545 = vpack.c.b16 %v1633, %v1617
    %v2546 = vpack.c.b16 %v1634, %v1618
    %v2547 = vpack.c.b16 %v1635, %v1619
    %v2548 = vpack.c.b16 %v1636, %v1620
    %v2549 = vpack.c.b16 %v1637, %v1621
    %v2550 = vpack.c.b16 %v1638, %v1622
    %v2551 = vpack.c.b16 %v1639, %v1623
    %v2552 = vpack.c.b16 %v1640, %v1624
    %v2553 = vpack.c.b16 %v1641, %v1625
    %v2554 = vpack.c.b16 %v1642, %v1626
    %v2555 = vpack.c.b16 %v1643, %v1627
    %v2556 = vpack.c.b16 %v1644, %v1628
    %v2557 = vpack.c.b16 %v1645, %v1629
    %v2558 = vpack.c.b16 %v1646, %v1630
    %v2559 = vpack.c.b16 %v1647, %v1631
    %v2560 = vpack.c.b16 %v1664, %v1648
    %v2561 = vpack.c.b16 %v1665, %v1649
    %v2562 = vpack.c.b16 %v1666, %v1650
    %v2563 = vpack.c.b16 %v1667, %v1651
    %v2564 = vpack.c.b16 %v1668, %v1652
    %v2565 = vpack.c.b16 %v1669, %v1653
    %v2566 = vpack.c.b16 %v1670, %v1654
    %v2567 = vpack.c.b16 %v1671, %v1655
    %v2568 = vpack.c.b16 %v1672, %v1656
    %v2569 = vpack.c.b16 %v1673, %v1657
    %v2570 = vpack.c.b16 %v1674, %v1658
    %v2571 = vpack.c.b16 %v1675, %v1659
    %v2572 = vpack.c.b16 %v1676, %v1660
    %v2573 = vpack.c.b16 %v1677, %v1661
    %v2574 = vpack.c.b16 %v1678, %v1662
    %v2575 = vpack.c.b16 %v1679, %v1663
    %v2576 = vpack.c.b16 %v1696, %v1680
    %v2577 = vpack.c.b16 %v1697, %v1681
    %v2578 = vpack.c.b16 %v1698, %v1682
    %v2579 = vpack.c.b16 %v1699, %v1683
    %v2580 = vpack.c.b16 %v1700, %v1684
    %v2581 = vpack.c.b16 %v1701, %v1685
    %v2582 = vpack.c.b16 %v1702, %v1686
    %v2583 = vpack.c.b16 %v1703, %v1687
    %v2584 = vpack.c.b16 %v1704, %v1688
    %v2585 = vpack.c.b16 %v1705, %v1689
    %v2586 = vpack.c.b16 %v1706, %v1690
    %v2587 = vpack.c.b16 %v1707, %v1691
    %v2588 = vpack.c.b16 %v1708, %v1692
    %v2589 = vpack.c.b16 %v1709, %v1693
    %v2590 = vpack.c.b16 %v1710, %v1694
    %v2591 = vpack.c.b16 %v1711, %v1695
    %v2592 = vpack.c.b16 %v1728, %v1712
    %v2593 = vpack.c.b16 %v1729, %v1713
    %v2594 = vpack.c.b16 %v1730, %v1714
    %v2595 = vpack.c.b16 %v1731, %v1715
    %v2596 = vpack.c.b16 %v1732, %v1716
    %v2597 = vpack.c.b16 %v1733, %v1717
    %v2598 = vpack.c.b16 %v1734, %v1718
    %v2599 = vpack.c.b16 %v1735, %v1719
    %v2600 = vpack.c.b16 %v1736, %v1720
    %v2601 = vpack.c.b16 %v1737, %v1721
    %v2602 = vpack.c.b16 %v1738, %v1722
    %v2603 = vpack.c.b16 %v1739, %v1723
    %v2604 = vpack.c.b16 %v1740, %v1724
    %v2605 = vpack.c.b16 %v1741, %v1725
    %v2606 = vpack.c.b16 %v1742, %v1726
    %v2607 = vpack.c.b16 %v1743, %v1727
    %v2608 = vpack.c.b16 %v1760, %v1744
    %v2609 = vpack.c.b16 %v1761, %v1745
    %v2610 = vpack.c.b16 %v1762, %v1746
    %v2611 = vpack.c.b16 %v1763, %v1747
    %v2612 = vpack.c.b16 %v1764, %v1748
    %v2613 = vpack.c.b16 %v1765, %v1749
    %v2614 = vpack.c.b16 %v1766, %v1750
    %v2615 = vpack.c.b16 %v1767, %v1751
    %v2616 = vpack.c.b16 %v1768, %v1752
    %v2617 = vpack.c.b16 %v1769, %v1753
    %v2618 = vpack.c.b16 %v1770, %v1754
    %v2619 = vpack.c.b16 %v1771, %v1755
    %v2620 = vpack.c.b16 %v1772, %v1756
    %v2621 = vpack.c.b16 %v1773, %v1757
    %v2622 = vpack.c.b16 %v1774, %v1758
    %v2623 = vpack.c.b16 %v1775, %v1759
    %v2624 = vpack.c.b16 %v1792, %v1776
    %v2625 = vpack.c.b16 %v1793, %v1777
    %v2626 = vpack.c.b16 %v1794, %v1778
    %v2627 = vpack.c.b16 %v1795, %v1779
    %v2628 = vpack.c.b16 %v1796, %v1780
    %v2629 = vpack.c.b16 %v1797, %v1781
    %v2630 = vpack.c.b16 %v1798, %v1782
    %v2631 = vpack.c.b16 %v1799, %v1783
    %v2632 = vpack.c.b16 %v1800, %v1784
    %v2633 = vpack.c.b16 %v1801, %v1785
    %v2634 = vpack.c.b16 %v1802, %v1786
    %v2635 = vpack.c.b16 %v1803, %v1787
    %v2636 = vpack.c.b16 %v1804, %v1788
    %v2637 = vpack.c.b16 %v1805, %v1789
    %v2638 = vpack.c.b16 %v1806, %v1790
    %v2639 = vpack.c.b16 %v1807, %v1791
    %v2640 = vpack.c.b16 %v1824, %v1808
    %v2641 = vpack.c.b16 %v1825, %v1809
    %v2642 = vpack.c.b16 %v1826, %v1810
    %v2643 = vpack.c.b16 %v1827, %v1811
    %v2644 = vpack.c.b16 %v1828, %v1812
    %v2645 = vpack.c.b16 %v1829, %v1813
    %v2646 = vpack.c.b16 %v1830, %v1814
    %v2647 = vpack.c.b16 %v1831, %v1815
    %v2648 = vpack.c.b16 %v1832, %v1816
    %v2649 = vpack.c.b16 %v1833, %v1817
    %v2650 = vpack.c.b16 %v1834, %v1818
    %v2651 = vpack.c.b16 %v1835, %v1819
    %v2652 = vpack.c.b16 %v1836, %v1820
    %v2653 = vpack.c.b16 %v1837, %v1821
    %v2654 = vpack.c.b16 %v1838, %v1822
    %v2655 = vpack.c.b16 %v1839, %v1823
    %v2656 = vpack.c.b16 %v1856, %v1840
    %v2657 = vpack.c.b16 %v1857, %v1841
    %v2658 = vpack.c.b16 %v1858, %v1842
    %v2659 = vpack.c.b16 %v1859, %v1843
    %v2660 = vpack.c.b16 %v1860, %v1844
    %v2661 = vpack.c.b16 %v1861, %v1845
    %v2662 = vpack.c.b16 %v1862, %v1846
    %v2663 = vpack.c.b16 %v1863, %v1847
    %v2664 = vpack.c.b16 %v1864, %v1848
    %v2665 = vpack.c.b16 %v1865, %v1849
    %v2666 = vpack.c.b16 %v1866, %v1850
    %v2667 = vpack.c.b16 %v1867, %v1851
    %v2668 = vpack.c.b16 %v1868, %v1852
    %v2669 = vpack.c.b16 %v1869, %v1853
    %v2670 = vpack.c.b16 %v1870, %v1854
    %v2671 = vpack.c.b16 %v1871, %v1855
    %v2672 = vpack.c.b16 %v1888, %v1872
    %v2673 = vpack.c.b16 %v1889, %v1873
    %v2674 = vpack.c.b16 %v1890, %v1874
    %v2675 = vpack.c.b16 %v1891, %v1875
    %v2676 = vpack.c.b16 %v1892, %v1876
    %v2677 = vpack.c.b16 %v1893, %v1877
    %v2678 = vpack.c.b16 %v1894, %v1878
    %v2679 = vpack.c.b16 %v1895, %v1879
    %v2680 = vpack.c.b16 %v1896, %v1880
    %v2681 = vpack.c.b16 %v1897, %v1881
    %v2682 = vpack.c.b16 %v1898, %v1882
    %v2683 = vpack.c.b16 %v1899, %v1883
    %v2684 = vpack.c.b16 %v1900, %v1884
    %v2685 = vpack.c.b16 %v1901, %v1885
    %v2686 = vpack.c.b16 %v1902, %v1886
    %v2687 = vpack.c.b16 %v1903, %v1887
    %v2688 = vpack.c.b16 %v1920, %v1904
    %v2689 = vpack.c.b16 %v1921, %v1905
    %v2690 = vpack.c.b16 %v1922, %v1906
    %v2691 = vpack.c.b16 %v1923, %v1907
    %v2692 = vpack.c.b16 %v1924, %v1908
    %v2693 = vpack.c.b16 %v1925, %v1909
    %v2694 = vpack.c.b16 %v1926, %v1910
    %v2695 = vpack.c.b16 %v1927, %v1911
    %v2696 = vpack.c.b16 %v1928, %v1912
    %v2697 = vpack.c.b16 %v1929, %v1913
    %v2698 = vpack.c.b16 %v1930, %v1914
    %v2699 = vpack.c.b16 %v1931, %v1915
    %v2700 = vpack.c.b16 %v1932, %v1916
    %v2701 = vpack.c.b16 %v1933, %v1917
    %v2702 = vpack.c.b16 %v1934, %v1918
    %v2703 = vpack.c.b16 %v1935, %v1919
    %v2704 = vpack.c.b16 %v1952, %v1936
    %v2705 = vpack.c.b16 %v1953, %v1937
    %v2706 = vpack.c.b16 %v1954, %v1938
    %v2707 = vpack.c.b16 %v1955, %v1939
    %v2708 = vpack.c.b16 %v1956, %v1940
    %v2709 = vpack.c.b16 %v1957, %v1941
    %v2710 = vpack.c.b16 %v1958, %v1942
    %v2711 = vpack.c.b16 %v1959, %v1943
    %v2712 = vpack.c.b16 %v1960, %v1944
    %v2713 = vpack.c.b16 %v1961, %v1945
    %v2714 = vpack.c.b16 %v1962, %v1946
    %v2715 = vpack.c.b16 %v1963, %v1947
    %v2716 = vpack.c.b16 %v1964, %v1948
    %v2717 = vpack.c.b16 %v1965, %v1949
    %v2718 = vpack.c.b16 %v1966, %v1950
    %v2719 = vpack.c.b16 %v1967, %v1951
    %v2720 = vpack.c.b16 %v1984, %v1968
    %v2721 = vpack.c.b16 %v1985, %v1969
    %v2722 = vpack.c.b16 %v1986, %v1970
    %v2723 = vpack.c.b16 %v1987, %v1971
    %v2724 = vpack.c.b16 %v1988, %v1972
    %v2725 = vpack.c.b16 %v1989, %v1973
    %v2726 = vpack.c.b16 %v1990, %v1974
    %v2727 = vpack.c.b16 %v1991, %v1975
    %v2728 = vpack.c.b16 %v1992, %v1976
    %v2729 = vpack.c.b16 %v1993, %v1977
    %v2730 = vpack.c.b16 %v1994, %v1978
    %v2731 = vpack.c.b16 %v1995, %v1979
    %v2732 = vpack.c.b16 %v1996, %v1980
    %v2733 = vpack.c.b16 %v1997, %v1981
    %v2734 = vpack.c.b16 %v1998, %v1982
    %v2735 = vpack.c.b16 %v1999, %v1983
    %v2736 = vpack.c.b16 %v2016, %v2000
    %v2737 = vpack.c.b16 %v2017, %v2001
    %v2738 = vpack.c.b16 %v2018, %v2002
    %v2739 = vpack.c.b16 %v2019, %v2003
    %v2740 = vpack.c.b16 %v2020, %v2004
    %v2741 = vpack.c.b16 %v2021, %v2005
    %v2742 = vpack.c.b16 %v2022, %v2006
    %v2743 = vpack.c.b16 %v2023, %v2007
    %v2744 = vpack.c.b16 %v2024, %v2008
    %v2745 = vpack.c.b16 %v2025, %v2009
    %v2746 = vpack.c.b16 %v2026, %v2010
    %v2747 = vpack.c.b16 %v2027, %v2011
    %v2748 = vpack.c.b16 %v2028, %v2012
    %v2749 = vpack.c.b16 %v2029, %v2013
    %v2750 = vpack.c.b16 %v2030, %v2014
    %v2751 = vpack.c.b16 %v2031, %v2015
    %v2752 = vpack.c.b16 %v2048, %v2032
    %v2753 = vpack.c.b16 %v2049, %v2033
    %v2754 = vpack.c.b16 %v2050, %v2034
    %v2755 = vpack.c.b16 %v2051, %v2035
    %v2756 = vpack.c.b16 %v2052, %v2036
    %v2757 = vpack.c.b16 %v2053, %v2037
    %v2758 = vpack.c.b16 %v2054, %v2038
    %v2759 = vpack.c.b16 %v2055, %v2039
    %v2760 = vpack.c.b16 %v2056, %v2040
    %v2761 = vpack.c.b16 %v2057, %v2041
    %v2762 = vpack.c.b16 %v2058, %v2042
    %v2763 = vpack.c.b16 %v2059, %v2043
    %v2764 = vpack.c.b16 %v2060, %v2044
    %v2765 = vpack.c.b16 %v2061, %v2045
    %v2766 = vpack.c.b16 %v2062, %v2046
    %v2767 = vpack.c.b16 %v2063, %v2047
    %v2768 = vpack.c.b16 %v2080, %v2064
    %v2769 = vpack.c.b16 %v2081, %v2065
    %v2770 = vpack.c.b16 %v2082, %v2066
    %v2771 = vpack.c.b16 %v2083, %v2067
    %v2772 = vpack.c.b16 %v2084, %v2068
    %v2773 = vpack.c.b16 %v2085, %v2069
    %v2774 = vpack.c.b16 %v2086, %v2070
    %v2775 = vpack.c.b16 %v2087, %v2071
    %v2776 = vpack.c.b16 %v2088, %v2072
    %v2777 = vpack.c.b16 %v2089, %v2073
    %v2778 = vpack.c.b16 %v2090, %v2074
    %v2779 = vpack.c.b16 %v2091, %v2075
    %v2780 = vpack.c.b16 %v2092, %v2076
    %v2781 = vpack.c.b16 %v2093, %v2077
    %v2782 = vpack.c.b16 %v2094, %v2078
    %v2783 = vpack.c.b16 %v2095, %v2079
    %v2784 = vpack.c.b16 %v2112, %v2096
    %v2785 = vpack.c.b16 %v2113, %v2097
    %v2786 = vpack.c.b16 %v2114, %v2098
    %v2787 = vpack.c.b16 %v2115, %v2099
    %v2788 = vpack.c.b16 %v2116, %v2100
    %v2789 = vpack.c.b16 %v2117, %v2101
    %v2790 = vpack.c.b16 %v2118, %v2102
    %v2791 = vpack.c.b16 %v2119, %v2103
    %v2792 = vpack.c.b16 %v2120, %v2104
    %v2793 = vpack.c.b16 %v2121, %v2105
    %v2794 = vpack.c.b16 %v2122, %v2106
    %v2795 = vpack.c.b16 %v2123, %v2107
    %v2796 = vpack.c.b16 %v2124, %v2108
    %v2797 = vpack.c.b16 %v2125, %v2109
    %v2798 = vpack.c.b16 %v2126, %v2110
    %v2799 = vpack.c.b16 %v2127, %v2111
    %v2800 = vpack.c.b16 %v2144, %v2128
    %v2801 = vpack.c.b16 %v2145, %v2129
    %v2802 = vpack.c.b16 %v2146, %v2130
    %v2803 = vpack.c.b16 %v2147, %v2131
    %v2804 = vpack.c.b16 %v2148, %v2132
    %v2805 = vpack.c.b16 %v2149, %v2133
    %v2806 = vpack.c.b16 %v2150, %v2134
    %v2807 = vpack.c.b16 %v2151, %v2135
    %v2808 = vpack.c.b16 %v2152, %v2136
    %v2809 = vpack.c.b16 %v2153, %v2137
    %v2810 = vpack.c.b16 %v2154, %v2138
    %v2811 = vpack.c.b16 %v2155, %v2139
    %v2812 = vpack.c.b16 %v2156, %v2140
    %v2813 = vpack.c.b16 %v2157, %v2141
    %v2814 = vpack.c.b16 %v2158, %v2142
    %v2815 = vpack.c.b16 %v2159, %v2143
    %v2816 = vpack.c.b16 %v2176, %v2160
    %v2817 = vpack.c.b16 %v2177, %v2161
    %v2818 = vpack.c.b16 %v2178, %v2162
    %v2819 = vpack.c.b16 %v2179, %v2163
    %v2820 = vpack.c.b16 %v2180, %v2164
    %v2821 = vpack.c.b16 %v2181, %v2165
    %v2822 = vpack.c.b16 %v2182, %v2166
    %v2823 = vpack.c.b16 %v2183, %v2167
    %v2824 = vpack.c.b16 %v2184, %v2168
    %v2825 = vpack.c.b16 %v2185, %v2169
    %v2826 = vpack.c.b16 %v2186, %v2170
    %v2827 = vpack.c.b16 %v2187, %v2171
    %v2828 = vpack.c.b16 %v2188, %v2172
    %v2829 = vpack.c.b16 %v2189, %v2173
    %v2830 = vpack.c.b16 %v2190, %v2174
    %v2831 = vpack.c.b16 %v2191, %v2175
    %v2832 = vpack.c.b16 %v2208, %v2192
    %v2833 = vpack.c.b16 %v2209, %v2193
    %v2834 = vpack.c.b16 %v2210, %v2194
    %v2835 = vpack.c.b16 %v2211, %v2195
    %v2836 = vpack.c.b16 %v2212, %v2196
    %v2837 = vpack.c.b16 %v2213, %v2197
    %v2838 = vpack.c.b16 %v2214, %v2198
    %v2839 = vpack.c.b16 %v2215, %v2199
    %v2840 = vpack.c.b16 %v2216, %v2200
    %v2841 = vpack.c.b16 %v2217, %v2201
    %v2842 = vpack.c.b16 %v2218, %v2202
    %v2843 = vpack.c.b16 %v2219, %v2203
    %v2844 = vpack.c.b16 %v2220, %v2204
    %v2845 = vpack.c.b16 %v2221, %v2205
    %v2846 = vpack.c.b16 %v2222, %v2206
    %v2847 = vpack.c.b16 %v2223, %v2207
    %v2848 = vpack.c.b16 %v2240, %v2224
    %v2849 = vpack.c.b16 %v2241, %v2225
    %v2850 = vpack.c.b16 %v2242, %v2226
    %v2851 = vpack.c.b16 %v2243, %v2227
    %v2852 = vpack.c.b16 %v2244, %v2228
    %v2853 = vpack.c.b16 %v2245, %v2229
    %v2854 = vpack.c.b16 %v2246, %v2230
    %v2855 = vpack.c.b16 %v2247, %v2231
    %v2856 = vpack.c.b16 %v2248, %v2232
    %v2857 = vpack.c.b16 %v2249, %v2233
    %v2858 = vpack.c.b16 %v2250, %v2234
    %v2859 = vpack.c.b16 %v2251, %v2235
    %v2860 = vpack.c.b16 %v2252, %v2236
    %v2861 = vpack.c.b16 %v2253, %v2237
    %v2862 = vpack.c.b16 %v2254, %v2238
    %v2863 = vpack.c.b16 %v2255, %v2239
    %v2864 = vpack.c.b16 %v2272, %v2256
    %v2865 = vpack.c.b16 %v2273, %v2257
    %v2866 = vpack.c.b16 %v2274, %v2258
    %v2867 = vpack.c.b16 %v2275, %v2259
    %v2868 = vpack.c.b16 %v2276, %v2260
    %v2869 = vpack.c.b16 %v2277, %v2261
    %v2870 = vpack.c.b16 %v2278, %v2262
    %v2871 = vpack.c.b16 %v2279, %v2263
    %v2872 = vpack.c.b16 %v2280, %v2264
    %v2873 = vpack.c.b16 %v2281, %v2265
    %v2874 = vpack.c.b16 %v2282, %v2266
    %v2875 = vpack.c.b16 %v2283, %v2267
    %v2876 = vpack.c.b16 %v2284, %v2268
    %v2877 = vpack.c.b16 %v2285, %v2269
    %v2878 = vpack.c.b16 %v2286, %v2270
    %v2879 = vpack.c.b16 %v2287, %v2271
    %v2880 = vpack.c.b16 %v2304, %v2288
    %v2881 = vpack.c.b16 %v2305, %v2289
    %v2882 = vpack.c.b16 %v2306, %v2290
    %v2883 = vpack.c.b16 %v2307, %v2291
    %v2884 = vpack.c.b16 %v2308, %v2292
    %v2885 = vpack.c.b16 %v2309, %v2293
    %v2886 = vpack.c.b16 %v2310, %v2294
    %v2887 = vpack.c.b16 %v2311, %v2295
    %v2888 = vpack.c.b16 %v2312, %v2296
    %v2889 = vpack.c.b16 %v2313, %v2297
    %v2890 = vpack.c.b16 %v2314, %v2298
    %v2891 = vpack.c.b16 %v2315, %v2299
    %v2892 = vpack.c.b16 %v2316, %v2300
    %v2893 = vpack.c.b16 %v2317, %v2301
    %v2894 = vpack.c.b16 %v2318, %v2302
    %v2895 = vpack.c.b16 %v2319, %v2303
    %v2896 = vpack.c.b16 %v2336, %v2320
    %v2897 = vpack.c.b16 %v2337, %v2321
    %v2898 = vpack.c.b16 %v2338, %v2322
    %v2899 = vpack.c.b16 %v2339, %v2323
    %v2900 = vpack.c.b16 %v2340, %v2324
    %v2901 = vpack.c.b16 %v2341, %v2325
    %v2902 = vpack.c.b16 %v2342, %v2326
    %v2903 = vpack.c.b16 %v2343, %v2327
    %v2904 = vpack.c.b16 %v2344, %v2328
    %v2905 = vpack.c.b16 %v2345, %v2329
    %v2906 = vpack.c.b16 %v2346, %v2330
    %v2907 = vpack.c.b16 %v2347, %v2331
    %v2908 = vpack.c.b16 %v2348, %v2332
    %v2909 = vpack.c.b16 %v2349, %v2333
    %v2910 = vpack.c.b16 %v2350, %v2334
    %v2911 = vpack.c.b16 %v2351, %v2335
    %v2912 = vpack.c.b16 %v2368, %v2352
    %v2913 = vpack.c.b16 %v2369, %v2353
    %v2914 = vpack.c.b16 %v2370, %v2354
    %v2915 = vpack.c.b16 %v2371, %v2355
    %v2916 = vpack.c.b16 %v2372, %v2356
    %v2917 = vpack.c.b16 %v2373, %v2357
    %v2918 = vpack.c.b16 %v2374, %v2358
    %v2919 = vpack.c.b16 %v2375, %v2359
    %v2920 = vpack.c.b16 %v2376, %v2360
    %v2921 = vpack.c.b16 %v2377, %v2361
    %v2922 = vpack.c.b16 %v2378, %v2362
    %v2923 = vpack.c.b16 %v2379, %v2363
    %v2924 = vpack.c.b16 %v2380, %v2364
    %v2925 = vpack.c.b16 %v2381, %v2365
    %v2926 = vpack.c.b16 %v2382, %v2366
    %v2927 = vpack.c.b16 %v2383, %v2367
    %vm3472 = vcmask 261120
    %v3474 = vsel %vm3472, %v207, 0
    %3476 = vmatprep.subr.bf16.mxu0 %v2385
    %3477 = vmatpush1.bf16.msra.mxu0 %v2384
    %3478 = vmatprep.subr.bf16.mxu0 %v2401
    %3479 = vmatpush1.bf16.msra.mxu0 %v2400
    %3480 = vmatprep.subr.bf16.mxu0 %v2417
    %3481 = vmatpush1.bf16.msra.mxu0 %v2416
    %3482 = vmatprep.subr.bf16.mxu0 %v2433
    %3483 = vmatpush1.bf16.msra.mxu0 %v2432
    %3484 = vmatprep.subr.bf16.mxu0 %v2449
    %3485 = vmatpush1.bf16.msra.mxu0 %v2448
    %3486 = vmatprep.subr.bf16.mxu0 %v2465
    %3487 = vmatpush1.bf16.msra.mxu0 %v2464
    %3488 = vmatprep.subr.bf16.mxu0 %v2481
    %3489 = vmatpush1.bf16.msra.mxu0 %v2480
    %3490 = vmatprep.subr.bf16.mxu0 %v2497
    %3491 = vmatpush1.bf16.msra.mxu0 %v2496
    %3492 = vmatprep.subr.bf16.mxu0 %v2513
    %3493 = vmatpush1.bf16.msra.mxu0 %v2512
    %3494 = vmatprep.subr.bf16.mxu0 %v2529
    %3495 = vmatpush1.bf16.msra.mxu0 %v2528
    %3496 = vmatprep.subr.bf16.mxu0 %v2545
    %3497 = vmatpush1.bf16.msra.mxu0 %v2544
    %3498 = vmatprep.subr.bf16.mxu0 %v2561
    %3499 = vmatpush1.bf16.msra.mxu0 %v2560
    %3500 = vmatprep.subr.bf16.mxu0 %v2577
    %3501 = vmatpush1.bf16.msra.mxu0 %v2576
    %3502 = vmatprep.subr.bf16.mxu0 %v2593
    %3503 = vmatpush1.bf16.msra.mxu0 %v2592
    %3504 = vmatprep.subr.bf16.mxu0 %v2609
    %3505 = vmatpush1.bf16.msra.mxu0 %v2608
    %3506 = vmatprep.subr.bf16.mxu0 %v2625
    %3507 = vmatpush1.bf16.msra.mxu0 %v2624
    %3508 = vmatprep.mubr.bf16.mxu0 %v204
    %3509 = vmatmul.mubr.bf16.gmra.mrb[0].mxu0 %v203
    %v3510 = vpop.f32.mrb[0].mxu0
    %v3511 = vadd.f32 0.0, %v3510
    %v3512 = vpop.f32.mrb[0].mxu0
    %v3513 = vadd.f32 0.0, %v3512
    %v3514 = vpop.f32.mrb[0].mxu0
    %v3515 = vpop.f32.mrb[0].mxu0
    %3516 = vdwg.mxu0
    %3517 = vmatprep.subr.bf16.mxu0 %v2641
    %3518 = vmatpush1.bf16.msra.mxu0 %v2640
    %3519 = vmatprep.subr.bf16.mxu0 %v2657
    %3520 = vmatpush1.bf16.msra.mxu0 %v2656
    %3521 = vmatprep.subr.bf16.mxu0 %v2673
    %3522 = vmatpush1.bf16.msra.mxu0 %v2672
    %3523 = vmatprep.subr.bf16.mxu0 %v2689
    %3524 = vmatpush1.bf16.msra.mxu0 %v2688
    %3525 = vmatprep.subr.bf16.mxu0 %v2705
    %3526 = vmatpush1.bf16.msra.mxu0 %v2704
    %3527 = vmatprep.subr.bf16.mxu0 %v2721
    %3528 = vmatpush1.bf16.msra.mxu0 %v2720
    %3529 = vmatprep.subr.bf16.mxu0 %v2737
    %3530 = vmatpush1.bf16.msra.mxu0 %v2736
    %3531 = vmatprep.subr.bf16.mxu0 %v2753
    %3532 = vmatpush1.bf16.msra.mxu0 %v2752
    %3533 = vmatprep.subr.bf16.mxu0 %v2769
    %3534 = vmatpush1.bf16.msra.mxu0 %v2768
    %3535 = vmatprep.subr.bf16.mxu0 %v2785
    %3536 = vmatpush1.bf16.msra.mxu0 %v2784
    %3537 = vmatprep.subr.bf16.mxu0 %v2801
    %3538 = vmatpush1.bf16.msra.mxu0 %v2800
    %3539 = vmatprep.subr.bf16.mxu0 %v2817
    %3540 = vmatpush1.bf16.msra.mxu0 %v2816
    %3541 = vmatprep.subr.bf16.mxu0 %v2833
    %3542 = vmatpush1.bf16.msra.mxu0 %v2832
    %3543 = vmatprep.subr.bf16.mxu0 %v2849
    %3544 = vmatpush1.bf16.msra.mxu0 %v2848
    %3545 = vmatprep.subr.bf16.mxu0 %v2865
    %3546 = vmatpush1.bf16.msra.mxu0 %v2864
    %3547 = vmatprep.subr.bf16.mxu0 %v2881
    %3548 = vmatpush1.bf16.msra.mxu0 %v2880
    %3549 = vmatprep.mubr.bf16.mxu0 %v206
    %3550 = vmatmul.mubr.bf16.gmra.mrb[0].mxu0 %v205
    %v3551 = vpop.f32.mrb[0].mxu0
    %v3552 = vadd.f32 %v3511, %v3551
    %v3553 = vpop.f32.mrb[0].mxu0
    %v3554 = vadd.f32 %v3513, %v3553
    %v3555 = vpop.f32.mrb[0].mxu0
    %v3556 = vpop.f32.mrb[0].mxu0
    %3557 = vdwg.mxu0
    %3558 = vmatprep.subr.bf16.mxu0 %v2897
    %3559 = vmatpush1.bf16.msra.mxu0 %v2896
    %3560 = vmatprep.subr.bf16.mxu0 %v2913
    %3561 = vmatpush1.bf16.msra.mxu0 %v2912
    %3562 = vmatprep.subr.bf16.mxu0 0
    %3563 = vmatpush1.bf16.msra.mxu0 0
    %3564 = vmatprep.subr.bf16.mxu0 0
    %3565 = vmatpush1.bf16.msra.mxu0 0
    %3566 = vmatprep.subr.bf16.mxu0 0
    %3567 = vmatpush1.bf16.msra.mxu0 0
    %3568 = vmatprep.subr.bf16.mxu0 0
    %3569 = vmatpush1.bf16.msra.mxu0 0
    %3570 = vmatprep.subr.bf16.mxu0 0
    %3571 = vmatpush1.bf16.msra.mxu0 0
    %3572 = vmatprep.subr.bf16.mxu0 0
    %3573 = vmatpush1.bf16.msra.mxu0 0
    %3574 = vmatprep.subr.bf16.mxu0 0
    %3575 = vmatpush1.bf16.msra.mxu0 0
    %3576 = vmatprep.subr.bf16.mxu0 0
    %3577 = vmatpush1.bf16.msra.mxu0 0
    %3578 = vmatprep.subr.bf16.mxu0 0
    %3579 = vmatpush1.bf16.msra.mxu0 0
    %3580 = vmatprep.subr.bf16.mxu0 0
    %3581 = vmatpush1.bf16.msra.mxu0 0
    %3582 = vmatprep.subr.bf16.mxu0 0
    %3583 = vmatpush1.bf16.msra.mxu0 0
    %3584 = vmatprep.subr.bf16.mxu0 0
    %3585 = vmatpush1.bf16.msra.mxu0 0
    %3586 = vmatprep.subr.bf16.mxu0 0
    %3587 = vmatpush1.bf16.msra.mxu0 0
    %3588 = vmatprep.subr.bf16.mxu0 0
    %3589 = vmatpush1.bf16.msra.mxu0 0
    %3590 = vmatprep.mubr.bf16.mxu0 0
    %3591 = vmatmul.mubr.bf16.gmra.mrb[0].mxu0 %v3474
    %v3592 = vpop.f32.mrb[0].mxu0
    %v3593 = vadd.f32 %v3552, %v3592
    %v3594 = vpop.f32.mrb[0].mxu0
    %v3595 = vadd.f32 %v3554, %v3594
    %v3596 = vpop.f32.mrb[0].mxu0
    %v3597 = vpop.f32.mrb[0].mxu0
    %3598 = vdwg.mxu0
    %3599 = vmatprep.subr.bf16.mxu0 %v2387
    %3600 = vmatpush1.bf16.msra.mxu0 %v2386
    %3601 = vmatprep.subr.bf16.mxu0 %v2403
    %3602 = vmatpush1.bf16.msra.mxu0 %v2402
    %3603 = vmatprep.subr.bf16.mxu0 %v2419
    %3604 = vmatpush1.bf16.msra.mxu0 %v2418
    %3605 = vmatprep.subr.bf16.mxu0 %v2435
    %3606 = vmatpush1.bf16.msra.mxu0 %v2434
    %3607 = vmatprep.subr.bf16.mxu0 %v2451
    %3608 = vmatpush1.bf16.msra.mxu0 %v2450
    %3609 = vmatprep.subr.bf16.mxu0 %v2467
    %3610 = vmatpush1.bf16.msra.mxu0 %v2466
    %3611 = vmatprep.subr.bf16.mxu0 %v2483
    %3612 = vmatpush1.bf16.msra.mxu0 %v2482
    %3613 = vmatprep.subr.bf16.mxu0 %v2499
    %3614 = vmatpush1.bf16.msra.mxu0 %v2498
    %3615 = vmatprep.subr.bf16.mxu0 %v2515
    %3616 = vmatpush1.bf16.msra.mxu0 %v2514
    %3617 = vmatprep.subr.bf16.mxu0 %v2531
    %3618 = vmatpush1.bf16.msra.mxu0 %v2530
    %3619 = vmatprep.subr.bf16.mxu0 %v2547
    %3620 = vmatpush1.bf16.msra.mxu0 %v2546
    %3621 = vmatprep.subr.bf16.mxu0 %v2563
    %3622 = vmatpush1.bf16.msra.mxu0 %v2562
    %3623 = vmatprep.subr.bf16.mxu0 %v2579
    %3624 = vmatpush1.bf16.msra.mxu0 %v2578
    %3625 = vmatprep.subr.bf16.mxu0 %v2595
    %3626 = vmatpush1.bf16.msra.mxu0 %v2594
    %3627 = vmatprep.subr.bf16.mxu0 %v2611
    %3628 = vmatpush1.bf16.msra.mxu0 %v2610
    %3629 = vmatprep.subr.bf16.mxu0 %v2627
    %3630 = vmatpush1.bf16.msra.mxu0 %v2626
    %3631 = vmatprep.mubr.bf16.mxu0 %v204
    %3632 = vmatmul.mubr.bf16.gmra.mrb[0].mxu0 %v203
    %v3633 = vpop.f32.mrb[0].mxu0
    %v3634 = vadd.f32 0.0, %v3633
    %v3635 = vpop.f32.mrb[0].mxu0
    %v3636 = vadd.f32 0.0, %v3635
    %v3637 = vpop.f32.mrb[0].mxu0
    %v3638 = vpop.f32.mrb[0].mxu0
    %3639 = vdwg.mxu0
    %3640 = vmatprep.subr.bf16.mxu0 %v2643
    %3641 = vmatpush1.bf16.msra.mxu0 %v2642
    %3642 = vmatprep.subr.bf16.mxu0 %v2659
    %3643 = vmatpush1.bf16.msra.mxu0 %v2658
    %3644 = vmatprep.subr.bf16.mxu0 %v2675
    %3645 = vmatpush1.bf16.msra.mxu0 %v2674
    %3646 = vmatprep.subr.bf16.mxu0 %v2691
    %3647 = vmatpush1.bf16.msra.mxu0 %v2690
    %3648 = vmatprep.subr.bf16.mxu0 %v2707
    %3649 = vmatpush1.bf16.msra.mxu0 %v2706
    %3650 = vmatprep.subr.bf16.mxu0 %v2723
    %3651 = vmatpush1.bf16.msra.mxu0 %v2722
    %3652 = vmatprep.subr.bf16.mxu0 %v2739
    %3653 = vmatpush1.bf16.msra.mxu0 %v2738
    %3654 = vmatprep.subr.bf16.mxu0 %v2755
    %3655 = vmatpush1.bf16.msra.mxu0 %v2754
    %3656 = vmatprep.subr.bf16.mxu0 %v2771
    %3657 = vmatpush1.bf16.msra.mxu0 %v2770
    %3658 = vmatprep.subr.bf16.mxu0 %v2787
    %3659 = vmatpush1.bf16.msra.mxu0 %v2786
    %3660 = vmatprep.subr.bf16.mxu0 %v2803
    %3661 = vmatpush1.bf16.msra.mxu0 %v2802
    %3662 = vmatprep.subr.bf16.mxu0 %v2819
    %3663 = vmatpush1.bf16.msra.mxu0 %v2818
    %3664 = vmatprep.subr.bf16.mxu0 %v2835
    %3665 = vmatpush1.bf16.msra.mxu0 %v2834
    %3666 = vmatprep.subr.bf16.mxu0 %v2851
    %3667 = vmatpush1.bf16.msra.mxu0 %v2850
    %3668 = vmatprep.subr.bf16.mxu0 %v2867
    %3669 = vmatpush1.bf16.msra.mxu0 %v2866
    %3670 = vmatprep.subr.bf16.mxu0 %v2883
    %3671 = vmatpush1.bf16.msra.mxu0 %v2882
    %3672 = vmatprep.mubr.bf16.mxu0 %v206
    %3673 = vmatmul.mubr.bf16.gmra.mrb[0].mxu0 %v205
    %v3674 = vpop.f32.mrb[0].mxu0
    %v3675 = vadd.f32 %v3634, %v3674
    %v3676 = vpop.f32.mrb[0].mxu0
    %v3677 = vadd.f32 %v3636, %v3676
    %v3678 = vpop.f32.mrb[0].mxu0
    %v3679 = vpop.f32.mrb[0].mxu0
    %3680 = vdwg.mxu0
    %3681 = vmatprep.subr.bf16.mxu0 %v2899
    %3682 = vmatpush1.bf16.msra.mxu0 %v2898
    %3683 = vmatprep.subr.bf16.mxu0 %v2915
    %3684 = vmatpush1.bf16.msra.mxu0 %v2914
    %3685 = vmatprep.subr.bf16.mxu0 0
    %3686 = vmatpush1.bf16.msra.mxu0 0
    %3687 = vmatprep.subr.bf16.mxu0 0
    %3688 = vmatpush1.bf16.msra.mxu0 0
    %3689 = vmatprep.subr.bf16.mxu0 0
    %3690 = vmatpush1.bf16.msra.mxu0 0
    %3691 = vmatprep.subr.bf16.mxu0 0
    %3692 = vmatpush1.bf16.msra.mxu0 0
    %3693 = vmatprep.subr.bf16.mxu0 0
    %3694 = vmatpush1.bf16.msra.mxu0 0
    %3695 = vmatprep.subr.bf16.mxu0 0
    %3696 = vmatpush1.bf16.msra.mxu0 0
    %3697 = vmatprep.subr.bf16.mxu0 0
    %3698 = vmatpush1.bf16.msra.mxu0 0
    %3699 = vmatprep.subr.bf16.mxu0 0
    %3700 = vmatpush1.bf16.msra.mxu0 0
    %3701 = vmatprep.subr.bf16.mxu0 0
    %3702 = vmatpush1.bf16.msra.mxu0 0
    %3703 = vmatprep.subr.bf16.mxu0 0
    %3704 = vmatpush1.bf16.msra.mxu0 0
    %3705 = vmatprep.subr.bf16.mxu0 0
    %3706 = vmatpush1.bf16.msra.mxu0 0
    %3707 = vmatprep.subr.bf16.mxu0 0
    %3708 = vmatpush1.bf16.msra.mxu0 0
    %3709 = vmatprep.subr.bf16.mxu0 0
    %3710 = vmatpush1.bf16.msra.mxu0 0
    %3711 = vmatprep.subr.bf16.mxu0 0
    %3712 = vmatpush1.bf16.msra.mxu0 0
    %3713 = vmatprep.mubr.bf16.mxu0 0
    %3714 = vmatmul.mubr.bf16.gmra.mrb[0].mxu0 %v3474
    %v3715 = vpop.f32.mrb[0].mxu0
    %v3716 = vadd.f32 %v3675, %v3715
    %v3717 = vpop.f32.mrb[0].mxu0
    %v3718 = vadd.f32 %v3677, %v3717
    %v3719 = vpop.f32.mrb[0].mxu0
    %v3720 = vpop.f32.mrb[0].mxu0
    %3721 = vdwg.mxu0
    %3722 = vmatprep.subr.bf16.mxu0 %v2389
    %3723 = vmatpush1.bf16.msra.mxu0 %v2388
    %3724 = vmatprep.subr.bf16.mxu0 %v2405
    %3725 = vmatpush1.bf16.msra.mxu0 %v2404
    %3726 = vmatprep.subr.bf16.mxu0 %v2421
    %3727 = vmatpush1.bf16.msra.mxu0 %v2420
    %3728 = vmatprep.subr.bf16.mxu0 %v2437
    %3729 = vmatpush1.bf16.msra.mxu0 %v2436
    %3730 = vmatprep.subr.bf16.mxu0 %v2453
    %3731 = vmatpush1.bf16.msra.mxu0 %v2452
    %3732 = vmatprep.subr.bf16.mxu0 %v2469
    %3733 = vmatpush1.bf16.msra.mxu0 %v2468
    %3734 = vmatprep.subr.bf16.mxu0 %v2485
    %3735 = vmatpush1.bf16.msra.mxu0 %v2484
    %3736 = vmatprep.subr.bf16.mxu0 %v2501
    %3737 = vmatpush1.bf16.msra.mxu0 %v2500
    %3738 = vmatprep.subr.bf16.mxu0 %v2517
    %3739 = vmatpush1.bf16.msra.mxu0 %v2516
    %3740 = vmatprep.subr.bf16.mxu0 %v2533
    %3741 = vmatpush1.bf16.msra.mxu0 %v2532
    %3742 = vmatprep.subr.bf16.mxu0 %v2549
    %3743 = vmatpush1.bf16.msra.mxu0 %v2548
    %3744 = vmatprep.subr.bf16.mxu0 %v2565
    %3745 = vmatpush1.bf16.msra.mxu0 %v2564
    %3746 = vmatprep.subr.bf16.mxu0 %v2581
    %3747 = vmatpush1.bf16.msra.mxu0 %v2580
    %3748 = vmatprep.subr.bf16.mxu0 %v2597
    %3749 = vmatpush1.bf16.msra.mxu0 %v2596
    %3750 = vmatprep.subr.bf16.mxu0 %v2613
    %3751 = vmatpush1.bf16.msra.mxu0 %v2612
    %3752 = vmatprep.subr.bf16.mxu0 %v2629
    %3753 = vmatpush1.bf16.msra.mxu0 %v2628
    %3754 = vmatprep.mubr.bf16.mxu0 %v204
    %3755 = vmatmul.mubr.bf16.gmra.mrb[0].mxu0 %v203
    %v3756 = vpop.f32.mrb[0].mxu0
    %v3757 = vadd.f32 0.0, %v3756
    %v3758 = vpop.f32.mrb[0].mxu0
    %v3759 = vadd.f32 0.0, %v3758
    %v3760 = vpop.f32.mrb[0].mxu0
    %v3761 = vpop.f32.mrb[0].mxu0
    %3762 = vdwg.mxu0
    %3763 = vmatprep.subr.bf16.mxu0 %v2645
    %3764 = vmatpush1.bf16.msra.mxu0 %v2644
    %3765 = vmatprep.subr.bf16.mxu0 %v2661
    %3766 = vmatpush1.bf16.msra.mxu0 %v2660
    %3767 = vmatprep.subr.bf16.mxu0 %v2677
    %3768 = vmatpush1.bf16.msra.mxu0 %v2676
    %3769 = vmatprep.subr.bf16.mxu0 %v2693
    %3770 = vmatpush1.bf16.msra.mxu0 %v2692
    %3771 = vmatprep.subr.bf16.mxu0 %v2709
    %3772 = vmatpush1.bf16.msra.mxu0 %v2708
    %3773 = vmatprep.subr.bf16.mxu0 %v2725
    %3774 = vmatpush1.bf16.msra.mxu0 %v2724
    %3775 = vmatprep.subr.bf16.mxu0 %v2741
    %3776 = vmatpush1.bf16.msra.mxu0 %v2740
    %3777 = vmatprep.subr.bf16.mxu0 %v2757
    %3778 = vmatpush1.bf16.msra.mxu0 %v2756
    %3779 = vmatprep.subr.bf16.mxu0 %v2773
    %3780 = vmatpush1.bf16.msra.mxu0 %v2772
    %3781 = vmatprep.subr.bf16.mxu0 %v2789
    %3782 = vmatpush1.bf16.msra.mxu0 %v2788
    %3783 = vmatprep.subr.bf16.mxu0 %v2805
    %3784 = vmatpush1.bf16.msra.mxu0 %v2804
    %3785 = vmatprep.subr.bf16.mxu0 %v2821
    %3786 = vmatpush1.bf16.msra.mxu0 %v2820
    %3787 = vmatprep.subr.bf16.mxu0 %v2837
    %3788 = vmatpush1.bf16.msra.mxu0 %v2836
    %3789 = vmatprep.subr.bf16.mxu0 %v2853
    %3790 = vmatpush1.bf16.msra.mxu0 %v2852
    %3791 = vmatprep.subr.bf16.mxu0 %v2869
    %3792 = vmatpush1.bf16.msra.mxu0 %v2868
    %3793 = vmatprep.subr.bf16.mxu0 %v2885
    %3794 = vmatpush1.bf16.msra.mxu0 %v2884
    %3795 = vmatprep.mubr.bf16.mxu0 %v206
    %3796 = vmatmul.mubr.bf16.gmra.mrb[0].mxu0 %v205
    %v3797 = vpop.f32.mrb[0].mxu0
    %v3798 = vadd.f32 %v3757, %v3797
    %v3799 = vpop.f32.mrb[0].mxu0
    %v3800 = vadd.f32 %v3759, %v3799
    %v3801 = vpop.f32.mrb[0].mxu0
    %v3802 = vpop.f32.mrb[0].mxu0
    %3803 = vdwg.mxu0
    %3804 = vmatprep.subr.bf16.mxu0 %v2901
    %3805 = vmatpush1.bf16.msra.mxu0 %v2900
    %3806 = vmatprep.subr.bf16.mxu0 %v2917
    %3807 = vmatpush1.bf16.msra.mxu0 %v2916
    %3808 = vmatprep.subr.bf16.mxu0 0
    %3809 = vmatpush1.bf16.msra.mxu0 0
    %3810 = vmatprep.subr.bf16.mxu0 0
    %3811 = vmatpush1.bf16.msra.mxu0 0
    %3812 = vmatprep.subr.bf16.mxu0 0
    %3813 = vmatpush1.bf16.msra.mxu0 0
    %3814 = vmatprep.subr.bf16.mxu0 0
    %3815 = vmatpush1.bf16.msra.mxu0 0
    %3816 = vmatprep.subr.bf16.mxu0 0
    %3817 = vmatpush1.bf16.msra.mxu0 0
    %3818 = vmatprep.subr.bf16.mxu0 0
    %3819 = vmatpush1.bf16.msra.mxu0 0
    %3820 = vmatprep.subr.bf16.mxu0 0
    %3821 = vmatpush1.bf16.msra.mxu0 0
    %3822 = vmatprep.subr.bf16.mxu0 0
    %3823 = vmatpush1.bf16.msra.mxu0 0
    %3824 = vmatprep.subr.bf16.mxu0 0
    %3825 = vmatpush1.bf16.msra.mxu0 0
    %3826 = vmatprep.subr.bf16.mxu0 0
    %3827 = vmatpush1.bf16.msra.mxu0 0
    %3828 = vmatprep.subr.bf16.mxu0 0
    %3829 = vmatpush1.bf16.msra.mxu0 0
    %3830 = vmatprep.subr.bf16.mxu0 0
    %3831 = vmatpush1.bf16.msra.mxu0 0
    %3832 = vmatprep.subr.bf16.mxu0 0
    %3833 = vmatpush1.bf16.msra.mxu0 0
    %3834 = vmatprep.subr.bf16.mxu0 0
    %3835 = vmatpush1.bf16.msra.mxu0 0
    %3836 = vmatprep.mubr.bf16.mxu0 0
    %3837 = vmatmul.mubr.bf16.gmra.mrb[0].mxu0 %v3474
    %v3838 = vpop.f32.mrb[0].mxu0
    %v3839 = vadd.f32 %v3798, %v3838
    %v3840 = vpop.f32.mrb[0].mxu0
    %v3841 = vadd.f32 %v3800, %v3840
    %v3842 = vpop.f32.mrb[0].mxu0
    %v3843 = vpop.f32.mrb[0].mxu0
    %3844 = vdwg.mxu0
    %3845 = vmatprep.subr.bf16.mxu0 %v2391
    %3846 = vmatpush1.bf16.msra.mxu0 %v2390
    %3847 = vmatprep.subr.bf16.mxu0 %v2407
    %3848 = vmatpush1.bf16.msra.mxu0 %v2406
    %3849 = vmatprep.subr.bf16.mxu0 %v2423
    %3850 = vmatpush1.bf16.msra.mxu0 %v2422
    %3851 = vmatprep.subr.bf16.mxu0 %v2439
    %3852 = vmatpush1.bf16.msra.mxu0 %v2438
    %3853 = vmatprep.subr.bf16.mxu0 %v2455
    %3854 = vmatpush1.bf16.msra.mxu0 %v2454
    %3855 = vmatprep.subr.bf16.mxu0 %v2471
    %3856 = vmatpush1.bf16.msra.mxu0 %v2470
    %3857 = vmatprep.subr.bf16.mxu0 %v2487
    %3858 = vmatpush1.bf16.msra.mxu0 %v2486
    %3859 = vmatprep.subr.bf16.mxu0 %v2503
    %3860 = vmatpush1.bf16.msra.mxu0 %v2502
    %3861 = vmatprep.subr.bf16.mxu0 %v2519
    %3862 = vmatpush1.bf16.msra.mxu0 %v2518
    %3863 = vmatprep.subr.bf16.mxu0 %v2535
    %3864 = vmatpush1.bf16.msra.mxu0 %v2534
    %3865 = vmatprep.subr.bf16.mxu0 %v2551
    %3866 = vmatpush1.bf16.msra.mxu0 %v2550
    %3867 = vmatprep.subr.bf16.mxu0 %v2567
    %3868 = vmatpush1.bf16.msra.mxu0 %v2566
    %3869 = vmatprep.subr.bf16.mxu0 %v2583
    %3870 = vmatpush1.bf16.msra.mxu0 %v2582
    %3871 = vmatprep.subr.bf16.mxu0 %v2599
    %3872 = vmatpush1.bf16.msra.mxu0 %v2598
    %3873 = vmatprep.subr.bf16.mxu0 %v2615
    %3874 = vmatpush1.bf16.msra.mxu0 %v2614
    %3875 = vmatprep.subr.bf16.mxu0 %v2631
    %3876 = vmatpush1.bf16.msra.mxu0 %v2630
    %3877 = vmatprep.mubr.bf16.mxu0 %v204
    %3878 = vmatmul.mubr.bf16.gmra.mrb[0].mxu0 %v203
    %v3879 = vpop.f32.mrb[0].mxu0
    %v3880 = vadd.f32 0.0, %v3879
    %v3881 = vpop.f32.mrb[0].mxu0
    %v3882 = vadd.f32 0.0, %v3881
    %v3883 = vpop.f32.mrb[0].mxu0
    %v3884 = vpop.f32.mrb[0].mxu0
    %3885 = vdwg.mxu0
    %3886 = vmatprep.subr.bf16.mxu0 %v2647
    %3887 = vmatpush1.bf16.msra.mxu0 %v2646
    %3888 = vmatprep.subr.bf16.mxu0 %v2663
    %3889 = vmatpush1.bf16.msra.mxu0 %v2662
    %3890 = vmatprep.subr.bf16.mxu0 %v2679
    %3891 = vmatpush1.bf16.msra.mxu0 %v2678
    %3892 = vmatprep.subr.bf16.mxu0 %v2695
    %3893 = vmatpush1.bf16.msra.mxu0 %v2694
    %3894 = vmatprep.subr.bf16.mxu0 %v2711
    %3895 = vmatpush1.bf16.msra.mxu0 %v2710
    %3896 = vmatprep.subr.bf16.mxu0 %v2727
    %3897 = vmatpush1.bf16.msra.mxu0 %v2726
    %3898 = vmatprep.subr.bf16.mxu0 %v2743
    %3899 = vmatpush1.bf16.msra.mxu0 %v2742
    %3900 = vmatprep.subr.bf16.mxu0 %v2759
    %3901 = vmatpush1.bf16.msra.mxu0 %v2758
    %3902 = vmatprep.subr.bf16.mxu0 %v2775
    %3903 = vmatpush1.bf16.msra.mxu0 %v2774
    %3904 = vmatprep.subr.bf16.mxu0 %v2791
    %3905 = vmatpush1.bf16.msra.mxu0 %v2790
    %3906 = vmatprep.subr.bf16.mxu0 %v2807
    %3907 = vmatpush1.bf16.msra.mxu0 %v2806
    %3908 = vmatprep.subr.bf16.mxu0 %v2823
    %3909 = vmatpush1.bf16.msra.mxu0 %v2822
    %3910 = vmatprep.subr.bf16.mxu0 %v2839
    %3911 = vmatpush1.bf16.msra.mxu0 %v2838
    %3912 = vmatprep.subr.bf16.mxu0 %v2855
    %3913 = vmatpush1.bf16.msra.mxu0 %v2854
    %3914 = vmatprep.subr.bf16.mxu0 %v2871
    %3915 = vmatpush1.bf16.msra.mxu0 %v2870
    %3916 = vmatprep.subr.bf16.mxu0 %v2887
    %3917 = vmatpush1.bf16.msra.mxu0 %v2886
    %3918 = vmatprep.mubr.bf16.mxu0 %v206
    %3919 = vmatmul.mubr.bf16.gmra.mrb[0].mxu0 %v205
    %v3920 = vpop.f32.mrb[0].mxu0
    %v3921 = vadd.f32 %v3880, %v3920
    %v3922 = vpop.f32.mrb[0].mxu0
    %v3923 = vadd.f32 %v3882, %v3922
    %v3924 = vpop.f32.mrb[0].mxu0
    %v3925 = vpop.f32.mrb[0].mxu0
    %3926 = vdwg.mxu0
    %3927 = vmatprep.subr.bf16.mxu0 %v2903
    %3928 = vmatpush1.bf16.msra.mxu0 %v2902
    %3929 = vmatprep.subr.bf16.mxu0 %v2919
    %3930 = vmatpush1.bf16.msra.mxu0 %v2918
    %3931 = vmatprep.subr.bf16.mxu0 0
    %3932 = vmatpush1.bf16.msra.mxu0 0
    %3933 = vmatprep.subr.bf16.mxu0 0
    %3934 = vmatpush1.bf16.msra.mxu0 0
    %3935 = vmatprep.subr.bf16.mxu0 0
    %3936 = vmatpush1.bf16.msra.mxu0 0
    %3937 = vmatprep.subr.bf16.mxu0 0
    %3938 = vmatpush1.bf16.msra.mxu0 0
    %3939 = vmatprep.subr.bf16.mxu0 0
    %3940 = vmatpush1.bf16.msra.mxu0 0
    %3941 = vmatprep.subr.bf16.mxu0 0
    %3942 = vmatpush1.bf16.msra.mxu0 0
    %3943 = vmatprep.subr.bf16.mxu0 0
    %3944 = vmatpush1.bf16.msra.mxu0 0
    %3945 = vmatprep.subr.bf16.mxu0 0
    %3946 = vmatpush1.bf16.msra.mxu0 0
    %3947 = vmatprep.subr.bf16.mxu0 0
    %3948 = vmatpush1.bf16.msra.mxu0 0
    %3949 = vmatprep.subr.bf16.mxu0 0
    %3950 = vmatpush1.bf16.msra.mxu0 0
    %3951 = vmatprep.subr.bf16.mxu0 0
    %3952 = vmatpush1.bf16.msra.mxu0 0
    %3953 = vmatprep.subr.bf16.mxu0 0
    %3954 = vmatpush1.bf16.msra.mxu0 0
    %3955 = vmatprep.subr.bf16.mxu0 0
    %3956 = vmatpush1.bf16.msra.mxu0 0
    %3957 = vmatprep.subr.bf16.mxu0 0
    %3958 = vmatpush1.bf16.msra.mxu0 0
    %3959 = vmatprep.mubr.bf16.mxu0 0
    %3960 = vmatmul.mubr.bf16.gmra.mrb[0].mxu0 %v3474
    %v3961 = vpop.f32.mrb[0].mxu0
    %v3962 = vadd.f32 %v3921, %v3961
    %v3963 = vpop.f32.mrb[0].mxu0
    %v3964 = vadd.f32 %v3923, %v3963
    %v3965 = vpop.f32.mrb[0].mxu0
    %v3966 = vpop.f32.mrb[0].mxu0
    %3967 = vdwg.mxu0
    %3968 = vmatprep.subr.bf16.mxu0 %v2393
    %3969 = vmatpush1.bf16.msra.mxu0 %v2392
    %3970 = vmatprep.subr.bf16.mxu0 %v2409
    %3971 = vmatpush1.bf16.msra.mxu0 %v2408
    %3972 = vmatprep.subr.bf16.mxu0 %v2425
    %3973 = vmatpush1.bf16.msra.mxu0 %v2424
    %3974 = vmatprep.subr.bf16.mxu0 %v2441
    %3975 = vmatpush1.bf16.msra.mxu0 %v2440
    %3976 = vmatprep.subr.bf16.mxu0 %v2457
    %3977 = vmatpush1.bf16.msra.mxu0 %v2456
    %3978 = vmatprep.subr.bf16.mxu0 %v2473
    %3979 = vmatpush1.bf16.msra.mxu0 %v2472
    %3980 = vmatprep.subr.bf16.mxu0 %v2489
    %3981 = vmatpush1.bf16.msra.mxu0 %v2488
    %3982 = vmatprep.subr.bf16.mxu0 %v2505
    %3983 = vmatpush1.bf16.msra.mxu0 %v2504
    %3984 = vmatprep.subr.bf16.mxu0 %v2521
    %3985 = vmatpush1.bf16.msra.mxu0 %v2520
    %3986 = vmatprep.subr.bf16.mxu0 %v2537
    %3987 = vmatpush1.bf16.msra.mxu0 %v2536
    %3988 = vmatprep.subr.bf16.mxu0 %v2553
    %3989 = vmatpush1.bf16.msra.mxu0 %v2552
    %3990 = vmatprep.subr.bf16.mxu0 %v2569
    %3991 = vmatpush1.bf16.msra.mxu0 %v2568
    %3992 = vmatprep.subr.bf16.mxu0 %v2585
    %3993 = vmatpush1.bf16.msra.mxu0 %v2584
    %3994 = vmatprep.subr.bf16.mxu0 %v2601
    %3995 = vmatpush1.bf16.msra.mxu0 %v2600
    %3996 = vmatprep.subr.bf16.mxu0 %v2617
    %3997 = vmatpush1.bf16.msra.mxu0 %v2616
    %3998 = vmatprep.subr.bf16.mxu0 %v2633
    %3999 = vmatpush1.bf16.msra.mxu0 %v2632
    %4000 = vmatprep.mubr.bf16.mxu0 %v204
    %4001 = vmatmul.mubr.bf16.gmra.mrb[0].mxu0 %v203
    %v4002 = vpop.f32.mrb[0].mxu0
    %v4003 = vadd.f32 0.0, %v4002
    %v4004 = vpop.f32.mrb[0].mxu0
    %v4005 = vadd.f32 0.0, %v4004
    %v4006 = vpop.f32.mrb[0].mxu0
    %v4007 = vpop.f32.mrb[0].mxu0
    %4008 = vdwg.mxu0
    %4009 = vmatprep.subr.bf16.mxu0 %v2649
    %4010 = vmatpush1.bf16.msra.mxu0 %v2648
    %4011 = vmatprep.subr.bf16.mxu0 %v2665
    %4012 = vmatpush1.bf16.msra.mxu0 %v2664
    %4013 = vmatprep.subr.bf16.mxu0 %v2681
    %4014 = vmatpush1.bf16.msra.mxu0 %v2680
    %4015 = vmatprep.subr.bf16.mxu0 %v2697
    %4016 = vmatpush1.bf16.msra.mxu0 %v2696
    %4017 = vmatprep.subr.bf16.mxu0 %v2713
    %4018 = vmatpush1.bf16.msra.mxu0 %v2712
    %4019 = vmatprep.subr.bf16.mxu0 %v2729
    %4020 = vmatpush1.bf16.msra.mxu0 %v2728
    %4021 = vmatprep.subr.bf16.mxu0 %v2745
    %4022 = vmatpush1.bf16.msra.mxu0 %v2744
    %4023 = vmatprep.subr.bf16.mxu0 %v2761
    %4024 = vmatpush1.bf16.msra.mxu0 %v2760
    %4025 = vmatprep.subr.bf16.mxu0 %v2777
    %4026 = vmatpush1.bf16.msra.mxu0 %v2776
    %4027 = vmatprep.subr.bf16.mxu0 %v2793
    %4028 = vmatpush1.bf16.msra.mxu0 %v2792
    %4029 = vmatprep.subr.bf16.mxu0 %v2809
    %4030 = vmatpush1.bf16.msra.mxu0 %v2808
    %4031 = vmatprep.subr.bf16.mxu0 %v2825
    %4032 = vmatpush1.bf16.msra.mxu0 %v2824
    %4033 = vmatprep.subr.bf16.mxu0 %v2841
    %4034 = vmatpush1.bf16.msra.mxu0 %v2840
    %4035 = vmatprep.subr.bf16.mxu0 %v2857
    %4036 = vmatpush1.bf16.msra.mxu0 %v2856
    %4037 = vmatprep.subr.bf16.mxu0 %v2873
    %4038 = vmatpush1.bf16.msra.mxu0 %v2872
    %4039 = vmatprep.subr.bf16.mxu0 %v2889
    %4040 = vmatpush1.bf16.msra.mxu0 %v2888
    %4041 = vmatprep.mubr.bf16.mxu0 %v206
    %4042 = vmatmul.mubr.bf16.gmra.mrb[0].mxu0 %v205
    %v4043 = vpop.f32.mrb[0].mxu0
    %v4044 = vadd.f32 %v4003, %v4043
    %v4045 = vpop.f32.mrb[0].mxu0
    %v4046 = vadd.f32 %v4005, %v4045
    %v4047 = vpop.f32.mrb[0].mxu0
    %v4048 = vpop.f32.mrb[0].mxu0
    %4049 = vdwg.mxu0
    %4050 = vmatprep.subr.bf16.mxu0 %v2905
    %4051 = vmatpush1.bf16.msra.mxu0 %v2904
    %4052 = vmatprep.subr.bf16.mxu0 %v2921
    %4053 = vmatpush1.bf16.msra.mxu0 %v2920
    %4054 = vmatprep.subr.bf16.mxu0 0
    %4055 = vmatpush1.bf16.msra.mxu0 0
    %4056 = vmatprep.subr.bf16.mxu0 0
    %4057 = vmatpush1.bf16.msra.mxu0 0
    %4058 = vmatprep.subr.bf16.mxu0 0
    %4059 = vmatpush1.bf16.msra.mxu0 0
    %4060 = vmatprep.subr.bf16.mxu0 0
    %4061 = vmatpush1.bf16.msra.mxu0 0
    %4062 = vmatprep.subr.bf16.mxu0 0
    %4063 = vmatpush1.bf16.msra.mxu0 0
    %4064 = vmatprep.subr.bf16.mxu0 0
    %4065 = vmatpush1.bf16.msra.mxu0 0
    %4066 = vmatprep.subr.bf16.mxu0 0
    %4067 = vmatpush1.bf16.msra.mxu0 0
    %4068 = vmatprep.subr.bf16.mxu0 0
    %4069 = vmatpush1.bf16.msra.mxu0 0
    %4070 = vmatprep.subr.bf16.mxu0 0
    %4071 = vmatpush1.bf16.msra.mxu0 0
    %4072 = vmatprep.subr.bf16.mxu0 0
    %4073 = vmatpush1.bf16.msra.mxu0 0
    %4074 = vmatprep.subr.bf16.mxu0 0
    %4075 = vmatpush1.bf16.msra.mxu0 0
    %4076 = vmatprep.subr.bf16.mxu0 0
    %4077 = vmatpush1.bf16.msra.mxu0 0
    %4078 = vmatprep.subr.bf16.mxu0 0
    %4079 = vmatpush1.bf16.msra.mxu0 0
    %4080 = vmatprep.subr.bf16.mxu0 0
    %4081 = vmatpush1.bf16.msra.mxu0 0
    %4082 = vmatprep.mubr.bf16.mxu0 0
    %4083 = vmatmul.mubr.bf16.gmra.mrb[0].mxu0 %v3474
    %v4084 = vpop.f32.mrb[0].mxu0
    %v4085 = vadd.f32 %v4044, %v4084
    %v4086 = vpop.f32.mrb[0].mxu0
    %v4087 = vadd.f32 %v4046, %v4086
    %v4088 = vpop.f32.mrb[0].mxu0
    %v4089 = vpop.f32.mrb[0].mxu0
    %4090 = vdwg.mxu0
    %4091 = vmatprep.subr.bf16.mxu0 %v2395
    %4092 = vmatpush1.bf16.msra.mxu0 %v2394
    %4093 = vmatprep.subr.bf16.mxu0 %v2411
    %4094 = vmatpush1.bf16.msra.mxu0 %v2410
    %4095 = vmatprep.subr.bf16.mxu0 %v2427
    %4096 = vmatpush1.bf16.msra.mxu0 %v2426
    %4097 = vmatprep.subr.bf16.mxu0 %v2443
    %4098 = vmatpush1.bf16.msra.mxu0 %v2442
    %4099 = vmatprep.subr.bf16.mxu0 %v2459
    %4100 = vmatpush1.bf16.msra.mxu0 %v2458
    %4101 = vmatprep.subr.bf16.mxu0 %v2475
    %4102 = vmatpush1.bf16.msra.mxu0 %v2474
    %4103 = vmatprep.subr.bf16.mxu0 %v2491
    %4104 = vmatpush1.bf16.msra.mxu0 %v2490
    %4105 = vmatprep.subr.bf16.mxu0 %v2507
    %4106 = vmatpush1.bf16.msra.mxu0 %v2506
    %4107 = vmatprep.subr.bf16.mxu0 %v2523
    %4108 = vmatpush1.bf16.msra.mxu0 %v2522
    %4109 = vmatprep.subr.bf16.mxu0 %v2539
    %4110 = vmatpush1.bf16.msra.mxu0 %v2538
    %4111 = vmatprep.subr.bf16.mxu0 %v2555
    %4112 = vmatpush1.bf16.msra.mxu0 %v2554
    %4113 = vmatprep.subr.bf16.mxu0 %v2571
    %4114 = vmatpush1.bf16.msra.mxu0 %v2570
    %4115 = vmatprep.subr.bf16.mxu0 %v2587
    %4116 = vmatpush1.bf16.msra.mxu0 %v2586
    %4117 = vmatprep.subr.bf16.mxu0 %v2603
    %4118 = vmatpush1.bf16.msra.mxu0 %v2602
    %4119 = vmatprep.subr.bf16.mxu0 %v2619
    %4120 = vmatpush1.bf16.msra.mxu0 %v2618
    %4121 = vmatprep.subr.bf16.mxu0 %v2635
    %4122 = vmatpush1.bf16.msra.mxu0 %v2634
    %4123 = vmatprep.mubr.bf16.mxu0 %v204
    %4124 = vmatmul.mubr.bf16.gmra.mrb[0].mxu0 %v203
    %v4125 = vpop.f32.mrb[0].mxu0
    %v4126 = vadd.f32 0.0, %v4125
    %v4127 = vpop.f32.mrb[0].mxu0
    %v4128 = vadd.f32 0.0, %v4127
    %v4129 = vpop.f32.mrb[0].mxu0
    %v4130 = vpop.f32.mrb[0].mxu0
    %4131 = vdwg.mxu0
    %4132 = vmatprep.subr.bf16.mxu0 %v2651
    %4133 = vmatpush1.bf16.msra.mxu0 %v2650
    %4134 = vmatprep.subr.bf16.mxu0 %v2667
    %4135 = vmatpush1.bf16.msra.mxu0 %v2666
    %4136 = vmatprep.subr.bf16.mxu0 %v2683
    %4137 = vmatpush1.bf16.msra.mxu0 %v2682
    %4138 = vmatprep.subr.bf16.mxu0 %v2699
    %4139 = vmatpush1.bf16.msra.mxu0 %v2698
    %4140 = vmatprep.subr.bf16.mxu0 %v2715
    %4141 = vmatpush1.bf16.msra.mxu0 %v2714
    %4142 = vmatprep.subr.bf16.mxu0 %v2731
    %4143 = vmatpush1.bf16.msra.mxu0 %v2730
    %4144 = vmatprep.subr.bf16.mxu0 %v2747
    %4145 = vmatpush1.bf16.msra.mxu0 %v2746
    %4146 = vmatprep.subr.bf16.mxu0 %v2763
    %4147 = vmatpush1.bf16.msra.mxu0 %v2762
    %4148 = vmatprep.subr.bf16.mxu0 %v2779
    %4149 = vmatpush1.bf16.msra.mxu0 %v2778
    %4150 = vmatprep.subr.bf16.mxu0 %v2795
    %4151 = vmatpush1.bf16.msra.mxu0 %v2794
    %4152 = vmatprep.subr.bf16.mxu0 %v2811
    %4153 = vmatpush1.bf16.msra.mxu0 %v2810
    %4154 = vmatprep.subr.bf16.mxu0 %v2827
    %4155 = vmatpush1.bf16.msra.mxu0 %v2826
    %4156 = vmatprep.subr.bf16.mxu0 %v2843
    %4157 = vmatpush1.bf16.msra.mxu0 %v2842
    %4158 = vmatprep.subr.bf16.mxu0 %v2859
    %4159 = vmatpush1.bf16.msra.mxu0 %v2858
    %4160 = vmatprep.subr.bf16.mxu0 %v2875
    %4161 = vmatpush1.bf16.msra.mxu0 %v2874
    %4162 = vmatprep.subr.bf16.mxu0 %v2891
    %4163 = vmatpush1.bf16.msra.mxu0 %v2890
    %4164 = vmatprep.mubr.bf16.mxu0 %v206
    %4165 = vmatmul.mubr.bf16.gmra.mrb[0].mxu0 %v205
    %v4166 = vpop.f32.mrb[0].mxu0
    %v4167 = vadd.f32 %v4126, %v4166
    %v4168 = vpop.f32.mrb[0].mxu0
    %v4169 = vadd.f32 %v4128, %v4168
    %v4170 = vpop.f32.mrb[0].mxu0
    %v4171 = vpop.f32.mrb[0].mxu0
    %4172 = vdwg.mxu0
    %4173 = vmatprep.subr.bf16.mxu0 %v2907
    %4174 = vmatpush1.bf16.msra.mxu0 %v2906
    %4175 = vmatprep.subr.bf16.mxu0 %v2923
    %4176 = vmatpush1.bf16.msra.mxu0 %v2922
    %4177 = vmatprep.subr.bf16.mxu0 0
    %4178 = vmatpush1.bf16.msra.mxu0 0
    %4179 = vmatprep.subr.bf16.mxu0 0
    %4180 = vmatpush1.bf16.msra.mxu0 0
    %4181 = vmatprep.subr.bf16.mxu0 0
    %4182 = vmatpush1.bf16.msra.mxu0 0
    %4183 = vmatprep.subr.bf16.mxu0 0
    %4184 = vmatpush1.bf16.msra.mxu0 0
    %4185 = vmatprep.subr.bf16.mxu0 0
    %4186 = vmatpush1.bf16.msra.mxu0 0
    %4187 = vmatprep.subr.bf16.mxu0 0
    %4188 = vmatpush1.bf16.msra.mxu0 0
    %4189 = vmatprep.subr.bf16.mxu0 0
    %4190 = vmatpush1.bf16.msra.mxu0 0
    %4191 = vmatprep.subr.bf16.mxu0 0
    %4192 = vmatpush1.bf16.msra.mxu0 0
    %4193 = vmatprep.subr.bf16.mxu0 0
    %4194 = vmatpush1.bf16.msra.mxu0 0
    %4195 = vmatprep.subr.bf16.mxu0 0
    %4196 = vmatpush1.bf16.msra.mxu0 0
    %4197 = vmatprep.subr.bf16.mxu0 0
    %4198 = vmatpush1.bf16.msra.mxu0 0
    %4199 = vmatprep.subr.bf16.mxu0 0
    %4200 = vmatpush1.bf16.msra.mxu0 0
    %4201 = vmatprep.subr.bf16.mxu0 0
    %4202 = vmatpush1.bf16.msra.mxu0 0
    %4203 = vmatprep.subr.bf16.mxu0 0
    %4204 = vmatpush1.bf16.msra.mxu0 0
    %4205 = vmatprep.mubr.bf16.mxu0 0
    %4206 = vmatmul.mubr.bf16.gmra.mrb[0].mxu0 %v3474
    %v4207 = vpop.f32.mrb[0].mxu0
    %v4208 = vadd.f32 %v4167, %v4207
    %v4209 = vpop.f32.mrb[0].mxu0
    %v4210 = vadd.f32 %v4169, %v4209
    %v4211 = vpop.f32.mrb[0].mxu0
    %v4212 = vpop.f32.mrb[0].mxu0
    %4213 = vdwg.mxu0
    %4214 = vmatprep.subr.bf16.mxu0 %v2397
    %4215 = vmatpush1.bf16.msra.mxu0 %v2396
    %4216 = vmatprep.subr.bf16.mxu0 %v2413
    %4217 = vmatpush1.bf16.msra.mxu0 %v2412
    %4218 = vmatprep.subr.bf16.mxu0 %v2429
    %4219 = vmatpush1.bf16.msra.mxu0 %v2428
    %4220 = vmatprep.subr.bf16.mxu0 %v2445
    %4221 = vmatpush1.bf16.msra.mxu0 %v2444
    %4222 = vmatprep.subr.bf16.mxu0 %v2461
    %4223 = vmatpush1.bf16.msra.mxu0 %v2460
    %4224 = vmatprep.subr.bf16.mxu0 %v2477
    %4225 = vmatpush1.bf16.msra.mxu0 %v2476
    %4226 = vmatprep.subr.bf16.mxu0 %v2493
    %4227 = vmatpush1.bf16.msra.mxu0 %v2492
    %4228 = vmatprep.subr.bf16.mxu0 %v2509
    %4229 = vmatpush1.bf16.msra.mxu0 %v2508
    %4230 = vmatprep.subr.bf16.mxu0 %v2525
    %4231 = vmatpush1.bf16.msra.mxu0 %v2524
    %4232 = vmatprep.subr.bf16.mxu0 %v2541
    %4233 = vmatpush1.bf16.msra.mxu0 %v2540
    %4234 = vmatprep.subr.bf16.mxu0 %v2557
    %4235 = vmatpush1.bf16.msra.mxu0 %v2556
    %4236 = vmatprep.subr.bf16.mxu0 %v2573
    %4237 = vmatpush1.bf16.msra.mxu0 %v2572
    %4238 = vmatprep.subr.bf16.mxu0 %v2589
    %4239 = vmatpush1.bf16.msra.mxu0 %v2588
    %4240 = vmatprep.subr.bf16.mxu0 %v2605
    %4241 = vmatpush1.bf16.msra.mxu0 %v2604
    %4242 = vmatprep.subr.bf16.mxu0 %v2621
    %4243 = vmatpush1.bf16.msra.mxu0 %v2620
    %4244 = vmatprep.subr.bf16.mxu0 %v2637
    %4245 = vmatpush1.bf16.msra.mxu0 %v2636
    %4246 = vmatprep.mubr.bf16.mxu0 %v204
    %4247 = vmatmul.mubr.bf16.gmra.mrb[0].mxu0 %v203
    %v4248 = vpop.f32.mrb[0].mxu0
    %v4249 = vadd.f32 0.0, %v4248
    %v4250 = vpop.f32.mrb[0].mxu0
    %v4251 = vadd.f32 0.0, %v4250
    %v4252 = vpop.f32.mrb[0].mxu0
    %v4253 = vpop.f32.mrb[0].mxu0
    %4254 = vdwg.mxu0
    %4255 = vmatprep.subr.bf16.mxu0 %v2653
    %4256 = vmatpush1.bf16.msra.mxu0 %v2652
    %4257 = vmatprep.subr.bf16.mxu0 %v2669
    %4258 = vmatpush1.bf16.msra.mxu0 %v2668
    %4259 = vmatprep.subr.bf16.mxu0 %v2685
    %4260 = vmatpush1.bf16.msra.mxu0 %v2684
    %4261 = vmatprep.subr.bf16.mxu0 %v2701
    %4262 = vmatpush1.bf16.msra.mxu0 %v2700
    %4263 = vmatprep.subr.bf16.mxu0 %v2717
    %4264 = vmatpush1.bf16.msra.mxu0 %v2716
    %4265 = vmatprep.subr.bf16.mxu0 %v2733
    %4266 = vmatpush1.bf16.msra.mxu0 %v2732
    %4267 = vmatprep.subr.bf16.mxu0 %v2749
    %4268 = vmatpush1.bf16.msra.mxu0 %v2748
    %4269 = vmatprep.subr.bf16.mxu0 %v2765
    %4270 = vmatpush1.bf16.msra.mxu0 %v2764
    %4271 = vmatprep.subr.bf16.mxu0 %v2781
    %4272 = vmatpush1.bf16.msra.mxu0 %v2780
    %4273 = vmatprep.subr.bf16.mxu0 %v2797
    %4274 = vmatpush1.bf16.msra.mxu0 %v2796
    %4275 = vmatprep.subr.bf16.mxu0 %v2813
    %4276 = vmatpush1.bf16.msra.mxu0 %v2812
    %4277 = vmatprep.subr.bf16.mxu0 %v2829
    %4278 = vmatpush1.bf16.msra.mxu0 %v2828
    %4279 = vmatprep.subr.bf16.mxu0 %v2845
    %4280 = vmatpush1.bf16.msra.mxu0 %v2844
    %4281 = vmatprep.subr.bf16.mxu0 %v2861
    %4282 = vmatpush1.bf16.msra.mxu0 %v2860
    %4283 = vmatprep.subr.bf16.mxu0 %v2877
    %4284 = vmatpush1.bf16.msra.mxu0 %v2876
    %4285 = vmatprep.subr.bf16.mxu0 %v2893
    %4286 = vmatpush1.bf16.msra.mxu0 %v2892
    %4287 = vmatprep.mubr.bf16.mxu0 %v206
    %4288 = vmatmul.mubr.bf16.gmra.mrb[0].mxu0 %v205
    %v4289 = vpop.f32.mrb[0].mxu0
    %v4290 = vadd.f32 %v4249, %v4289
    %v4291 = vpop.f32.mrb[0].mxu0
    %v4292 = vadd.f32 %v4251, %v4291
    %v4293 = vpop.f32.mrb[0].mxu0
    %v4294 = vpop.f32.mrb[0].mxu0
    %4295 = vdwg.mxu0
    %4296 = vmatprep.subr.bf16.mxu0 %v2909
    %4297 = vmatpush1.bf16.msra.mxu0 %v2908
    %4298 = vmatprep.subr.bf16.mxu0 %v2925
    %4299 = vmatpush1.bf16.msra.mxu0 %v2924
    %4300 = vmatprep.subr.bf16.mxu0 0
    %4301 = vmatpush1.bf16.msra.mxu0 0
    %4302 = vmatprep.subr.bf16.mxu0 0
    %4303 = vmatpush1.bf16.msra.mxu0 0
    %4304 = vmatprep.subr.bf16.mxu0 0
    %4305 = vmatpush1.bf16.msra.mxu0 0
    %4306 = vmatprep.subr.bf16.mxu0 0
    %4307 = vmatpush1.bf16.msra.mxu0 0
    %4308 = vmatprep.subr.bf16.mxu0 0
    %4309 = vmatpush1.bf16.msra.mxu0 0
    %4310 = vmatprep.subr.bf16.mxu0 0
    %4311 = vmatpush1.bf16.msra.mxu0 0
    %4312 = vmatprep.subr.bf16.mxu0 0
    %4313 = vmatpush1.bf16.msra.mxu0 0
    %4314 = vmatprep.subr.bf16.mxu0 0
    %4315 = vmatpush1.bf16.msra.mxu0 0
    %4316 = vmatprep.subr.bf16.mxu0 0
    %4317 = vmatpush1.bf16.msra.mxu0 0
    %4318 = vmatprep.subr.bf16.mxu0 0
    %4319 = vmatpush1.bf16.msra.mxu0 0
    %4320 = vmatprep.subr.bf16.mxu0 0
    %4321 = vmatpush1.bf16.msra.mxu0 0
    %4322 = vmatprep.subr.bf16.mxu0 0
    %4323 = vmatpush1.bf16.msra.mxu0 0
    %4324 = vmatprep.subr.bf16.mxu0 0
    %4325 = vmatpush1.bf16.msra.mxu0 0
    %4326 = vmatprep.subr.bf16.mxu0 0
    %4327 = vmatpush1.bf16.msra.mxu0 0
    %4328 = vmatprep.mubr.bf16.mxu0 0
    %4329 = vmatmul.mubr.bf16.gmra.mrb[0].mxu0 %v3474
    %v4330 = vpop.f32.mrb[0].mxu0
    %v4331 = vadd.f32 %v4290, %v4330
    %v4332 = vpop.f32.mrb[0].mxu0
    %v4333 = vadd.f32 %v4292, %v4332
    %v4334 = vpop.f32.mrb[0].mxu0
    %v4335 = vpop.f32.mrb[0].mxu0
    %4336 = vdwg.mxu0
    %4337 = vmatprep.subr.bf16.mxu0 %v2399
    %4338 = vmatpush1.bf16.msra.mxu0 %v2398
    %4339 = vmatprep.subr.bf16.mxu0 %v2415
    %4340 = vmatpush1.bf16.msra.mxu0 %v2414
    %4341 = vmatprep.subr.bf16.mxu0 %v2431
    %4342 = vmatpush1.bf16.msra.mxu0 %v2430
    %4343 = vmatprep.subr.bf16.mxu0 %v2447
    %4344 = vmatpush1.bf16.msra.mxu0 %v2446
    %4345 = vmatprep.subr.bf16.mxu0 %v2463
    %4346 = vmatpush1.bf16.msra.mxu0 %v2462
    %4347 = vmatprep.subr.bf16.mxu0 %v2479
    %4348 = vmatpush1.bf16.msra.mxu0 %v2478
    %4349 = vmatprep.subr.bf16.mxu0 %v2495
    %4350 = vmatpush1.bf16.msra.mxu0 %v2494
    %4351 = vmatprep.subr.bf16.mxu0 %v2511
    %4352 = vmatpush1.bf16.msra.mxu0 %v2510
    %4353 = vmatprep.subr.bf16.mxu0 %v2527
    %4354 = vmatpush1.bf16.msra.mxu0 %v2526
    %4355 = vmatprep.subr.bf16.mxu0 %v2543
    %4356 = vmatpush1.bf16.msra.mxu0 %v2542
    %4357 = vmatprep.subr.bf16.mxu0 %v2559
    %4358 = vmatpush1.bf16.msra.mxu0 %v2558
    %4359 = vmatprep.subr.bf16.mxu0 %v2575
    %4360 = vmatpush1.bf16.msra.mxu0 %v2574
    %4361 = vmatprep.subr.bf16.mxu0 %v2591
    %4362 = vmatpush1.bf16.msra.mxu0 %v2590
    %4363 = vmatprep.subr.bf16.mxu0 %v2607
    %4364 = vmatpush1.bf16.msra.mxu0 %v2606
    %4365 = vmatprep.subr.bf16.mxu0 %v2623
    %4366 = vmatpush1.bf16.msra.mxu0 %v2622
    %4367 = vmatprep.subr.bf16.mxu0 %v2639
    %4368 = vmatpush1.bf16.msra.mxu0 %v2638
    %4369 = vmatprep.mubr.bf16.mxu0 %v204
    %4370 = vmatmul.mubr.bf16.gmra.mrb[0].mxu0 %v203
    %v4371 = vpop.f32.mrb[0].mxu0
    %v4372 = vadd.f32 0.0, %v4371
    %v4373 = vpop.f32.mrb[0].mxu0
    %v4374 = vadd.f32 0.0, %v4373
    %v4375 = vpop.f32.mrb[0].mxu0
    %v4376 = vpop.f32.mrb[0].mxu0
    %4377 = vdwg.mxu0
    %4378 = vmatprep.subr.bf16.mxu0 %v2655
    %4379 = vmatpush1.bf16.msra.mxu0 %v2654
    %4380 = vmatprep.subr.bf16.mxu0 %v2671
    %4381 = vmatpush1.bf16.msra.mxu0 %v2670
    %4382 = vmatprep.subr.bf16.mxu0 %v2687
    %4383 = vmatpush1.bf16.msra.mxu0 %v2686
    %4384 = vmatprep.subr.bf16.mxu0 %v2703
    %4385 = vmatpush1.bf16.msra.mxu0 %v2702
    %4386 = vmatprep.subr.bf16.mxu0 %v2719
    %4387 = vmatpush1.bf16.msra.mxu0 %v2718
    %4388 = vmatprep.subr.bf16.mxu0 %v2735
    %4389 = vmatpush1.bf16.msra.mxu0 %v2734
    %4390 = vmatprep.subr.bf16.mxu0 %v2751
    %4391 = vmatpush1.bf16.msra.mxu0 %v2750
    %4392 = vmatprep.subr.bf16.mxu0 %v2767
    %4393 = vmatpush1.bf16.msra.mxu0 %v2766
    %4394 = vmatprep.subr.bf16.mxu0 %v2783
    %4395 = vmatpush1.bf16.msra.mxu0 %v2782
    %4396 = vmatprep.subr.bf16.mxu0 %v2799
    %4397 = vmatpush1.bf16.msra.mxu0 %v2798
    %4398 = vmatprep.subr.bf16.mxu0 %v2815
    %4399 = vmatpush1.bf16.msra.mxu0 %v2814
    %4400 = vmatprep.subr.bf16.mxu0 %v2831
    %4401 = vmatpush1.bf16.msra.mxu0 %v2830
    %4402 = vmatprep.subr.bf16.mxu0 %v2847
    %4403 = vmatpush1.bf16.msra.mxu0 %v2846
    %4404 = vmatprep.subr.bf16.mxu0 %v2863
    %4405 = vmatpush1.bf16.msra.mxu0 %v2862
    %4406 = vmatprep.subr.bf16.mxu0 %v2879
    %4407 = vmatpush1.bf16.msra.mxu0 %v2878
    %4408 = vmatprep.subr.bf16.mxu0 %v2895
    %4409 = vmatpush1.bf16.msra.mxu0 %v2894
    %4410 = vmatprep.mubr.bf16.mxu0 %v206
    %4411 = vmatmul.mubr.bf16.gmra.mrb[0].mxu0 %v205
    %v4412 = vpop.f32.mrb[0].mxu0
    %v4413 = vadd.f32 %v4372, %v4412
    %v4414 = vpop.f32.mrb[0].mxu0
    %v4415 = vadd.f32 %v4374, %v4414
    %v4416 = vpop.f32.mrb[0].mxu0
    %v4417 = vpop.f32.mrb[0].mxu0
    %4418 = vdwg.mxu0
    %4419 = vmatprep.subr.bf16.mxu0 %v2911
    %4420 = vmatpush1.bf16.msra.mxu0 %v2910
    %4421 = vmatprep.subr.bf16.mxu0 %v2927
    %4422 = vmatpush1.bf16.msra.mxu0 %v2926
    %4423 = vmatprep.subr.bf16.mxu0 0
    %4424 = vmatpush1.bf16.msra.mxu0 0
    %4425 = vmatprep.subr.bf16.mxu0 0
    %4426 = vmatpush1.bf16.msra.mxu0 0
    %4427 = vmatprep.subr.bf16.mxu0 0
    %4428 = vmatpush1.bf16.msra.mxu0 0
    %4429 = vmatprep.subr.bf16.mxu0 0
    %4430 = vmatpush1.bf16.msra.mxu0 0
    %4431 = vmatprep.subr.bf16.mxu0 0
    %4432 = vmatpush1.bf16.msra.mxu0 0
    %4433 = vmatprep.subr.bf16.mxu0 0
    %4434 = vmatpush1.bf16.msra.mxu0 0
    %4435 = vmatprep.subr.bf16.mxu0 0
    %4436 = vmatpush1.bf16.msra.mxu0 0
    %4437 = vmatprep.subr.bf16.mxu0 0
    %4438 = vmatpush1.bf16.msra.mxu0 0
    %4439 = vmatprep.subr.bf16.mxu0 0
    %4440 = vmatpush1.bf16.msra.mxu0 0
    %4441 = vmatprep.subr.bf16.mxu0 0
    %4442 = vmatpush1.bf16.msra.mxu0 0
    %4443 = vmatprep.subr.bf16.mxu0 0
    %4444 = vmatpush1.bf16.msra.mxu0 0
    %4445 = vmatprep.subr.bf16.mxu0 0
    %4446 = vmatpush1.bf16.msra.mxu0 0
    %4447 = vmatprep.subr.bf16.mxu0 0
    %4448 = vmatpush1.bf16.msra.mxu0 0
    %4449 = vmatprep.subr.bf16.mxu0 0
    %4450 = vmatpush1.bf16.msra.mxu0 0
    %4451 = vmatprep.mubr.bf16.mxu0 0
    %4452 = vmatmul.mubr.bf16.gmra.mrb[0].mxu0 %v3474
    %v4453 = vpop.f32.mrb[0].mxu0
    %v4454 = vadd.f32 %v4413, %v4453
    %v4455 = vpop.f32.mrb[0].mxu0
    %v4456 = vadd.f32 %v4415, %v4455
    %v4457 = vpop.f32.mrb[0].mxu0
    %v4458 = vpop.f32.mrb[0].mxu0
    %4459 = vdwg.mxu0
    %v4460 = vmul.f32 %v3593, %v3593
    %v4461 = vmul.f32 %v3595, %v3595
    %v4462 = vmul.f32 %v3716, %v3716
    %v4463 = vmul.f32 %v3718, %v3718
    %v4464 = vmul.f32 %v3839, %v3839
    %v4465 = vmul.f32 %v3841, %v3841
    %v4466 = vmul.f32 %v3962, %v3962
    %v4467 = vmul.f32 %v3964, %v3964
    %v4468 = vmul.f32 %v4085, %v4085
    %v4469 = vmul.f32 %v4087, %v4087
    %v4470 = vmul.f32 %v4208, %v4208
    %v4471 = vmul.f32 %v4210, %v4210
    %v4472 = vmul.f32 %v4331, %v4331
    %v4473 = vmul.f32 %v4333, %v4333
    %v4474 = vmul.f32 %v4454, %v4454
    %v4475 = vmul.f32 %v4456, %v4456
    %v4476 = vadd.f32 %v4460, %v4468
    %v4477 = vadd.f32 %v4461, %v4469
    %v4478 = vadd.f32 %v4462, %v4470
    %v4479 = vadd.f32 %v4463, %v4471
    %v4480 = vadd.f32 %v4464, %v4472
    %v4481 = vadd.f32 %v4465, %v4473
    %v4482 = vadd.f32 %v4466, %v4474
    %v4483 = vadd.f32 %v4467, %v4475
    %v4484 = vld [vmem:[#allocation4] sm:$0xff]
    %v4485 = vld [vmem:[#allocation4 + $0x8] sm:$0xff]
    %v4486 = vld [vmem:[#allocation4 + $0x10] sm:$0xff]
    %v4487 = vld [vmem:[#allocation4 + $0x18] sm:$0xff]
    %v4488 = vld [vmem:[#allocation4 + $0x20] sm:$0xff]
    %v4489 = vld [vmem:[#allocation4 + $0x28] sm:$0xff]
    %v4490 = vld [vmem:[#allocation4 + $0x30] sm:$0xff]
    %v4491 = vld [vmem:[#allocation4 + $0x38] sm:$0xff]
    %v4492 = vld [vmem:[#allocation4 + $0x40] sm:$0xff]
    %v4493 = vld [vmem:[#allocation4 + $0x48] sm:$0xff]
    %v4494 = vld [vmem:[#allocation4 + $0x50] sm:$0xff]
    %v4495 = vld [vmem:[#allocation4 + $0x58] sm:$0xff]
    %v4496 = vld [vmem:[#allocation4 + $0x60] sm:$0xff]
    %v4497 = vld [vmem:[#allocation4 + $0x68] sm:$0xff]
    %v4498 = vld [vmem:[#allocation4 + $0x70] sm:$0xff]
    %v4499 = vld [vmem:[#allocation4 + $0x78] sm:$0xff]
    %v4500 = vld [vmem:[#allocation4 + $0x80] sm:$0xff]
    %v4501 = vld [vmem:[#allocation4 + $0x88] sm:$0xff]
    %v4502 = vld [vmem:[#allocation4 + $0x90] sm:$0xff]
    %v4503 = vld [vmem:[#allocation4 + $0x98] sm:$0xff]
    %v4504 = vld [vmem:[#allocation4 + $0xa0] sm:$0xff]
    %v4505 = vld [vmem:[#allocation4 + $0xa8] sm:$0xff]
    %v4506 = vld [vmem:[#allocation4 + $0xb0] sm:$0xff]
    %v4507 = vld [vmem:[#allocation4 + $0xb8] sm:$0xff]
    %v4508 = vld [vmem:[#allocation4 + $0xc0] sm:$0xff]
    %v4509 = vld [vmem:[#allocation4 + $0xc8] sm:$0xff]
    %v4510 = vld [vmem:[#allocation4 + $0xd0] sm:$0xff]
    %v4511 = vld [vmem:[#allocation4 + $0xd8] sm:$0xff]
    %v4512 = vld [vmem:[#allocation4 + $0xe0] sm:$0xff]
    %v4513 = vld [vmem:[#allocation4 + $0xe8] sm:$0xff]
    %v4514 = vld [vmem:[#allocation4 + $0xf0] sm:$0xff]
    %v4515 = vld [vmem:[#allocation4 + $0xf8] sm:$0xff]
    %v4516 = vld [vmem:[#allocation4 + $0x100] sm:$0xff]
    %v4517 = vld [vmem:[#allocation4 + $0x108] sm:$0xff]
    %v4518 = vld [vmem:[#allocation4 + $0x110] sm:$0xff]
    %v4519 = vld [vmem:[#allocation4 + $0x118] sm:$0xff]
    %v4520 = vld [vmem:[#allocation4 + $0x120] sm:$0xff]
    %v4521 = vld [vmem:[#allocation4 + $0x128] sm:$0xff]
    %v4522 = vld [vmem:[#allocation4 + $0x130] sm:$0xff]
    %v4523 = vld [vmem:[#allocation4 + $0x138] sm:$0xff]
    %v4524 = vld [vmem:[#allocation4 + $0x140] sm:$0xff]
    %v4525 = vld [vmem:[#allocation4 + $0x148] sm:$0xff]
    %v4526 = vld [vmem:[#allocation4 + $0x150] sm:$0xff]
    %v4527 = vld [vmem:[#allocation4 + $0x158] sm:$0xff]
    %v4528 = vld [vmem:[#allocation4 + $0x160] sm:$0xff]
    %v4529 = vld [vmem:[#allocation4 + $0x168] sm:$0xff]
    %v4530 = vld [vmem:[#allocation4 + $0x170] sm:$0xff]
    %v4531 = vld [vmem:[#allocation4 + $0x178] sm:$0xff]
    %v4532 = vld [vmem:[#allocation4 + $0x180] sm:$0xff]
    %v4533 = vld [vmem:[#allocation4 + $0x188] sm:$0xff]
    %v4534 = vld [vmem:[#allocation4 + $0x190] sm:$0xff]
    %v4535 = vld [vmem:[#allocation4 + $0x198] sm:$0xff]
    %v4536 = vld [vmem:[#allocation4 + $0x1a0] sm:$0xff]
    %v4537 = vld [vmem:[#allocation4 + $0x1a8] sm:$0xff]
    %v4538 = vld [vmem:[#allocation4 + $0x1b0] sm:$0xff]
    %v4539 = vld [vmem:[#allocation4 + $0x1b8] sm:$0xff]
    %v4540 = vld [vmem:[#allocation4 + $0x1c0] sm:$0xff]
    %v4541 = vld [vmem:[#allocation4 + $0x1c8] sm:$0xff]
    %v4542 = vld [vmem:[#allocation4 + $0x1d0] sm:$0xff]
    %v4543 = vld [vmem:[#allocation4 + $0x1d8] sm:$0xff]
    %v4544 = vld [vmem:[#allocation4 + $0x1e0] sm:$0xff]
    %v4545 = vld [vmem:[#allocation4 + $0x1e8] sm:$0xff]
    %v4546 = vld [vmem:[#allocation4 + $0x1f0] sm:$0xff]
    %v4547 = vld [vmem:[#allocation4 + $0x1f8] sm:$0xff]
    %v4548 = vld [vmem:[#allocation4 + $0x200] sm:$0xff]
    %v4549 = vld [vmem:[#allocation4 + $0x208] sm:$0xff]
    %v4550 = vld [vmem:[#allocation4 + $0x210] sm:$0xff]
    %v4551 = vld [vmem:[#allocation4 + $0x218] sm:$0xff]
    %v4552 = vld [vmem:[#allocation4 + $0x220] sm:$0xff]
    %v4553 = vld [vmem:[#allocation4 + $0x228] sm:$0xff]
    %v4554 = vld [vmem:[#allocation4 + $0x230] sm:$0xff]
    %v4555 = vld [vmem:[#allocation4 + $0x238] sm:$0xff]
    %v4556 = vld [vmem:[#allocation4 + $0x240] sm:$0xff]
    %v4557 = vld [vmem:[#allocation4 + $0x248] sm:$0xff]
    %v4558 = vld [vmem:[#allocation4 + $0x250] sm:$0xff]
    %v4559 = vld [vmem:[#allocation4 + $0x258] sm:$0xff]
    %v4560 = vld [vmem:[#allocation4 + $0x260] sm:$0xff]
    %v4561 = vld [vmem:[#allocation4 + $0x268] sm:$0xff]
    %v4562 = vld [vmem:[#allocation4 + $0x270] sm:$0xff]
    %v4563 = vld [vmem:[#allocation4 + $0x278] sm:$0xff]
    %v4564 = vld [vmem:[#allocation4 + $0x280] sm:$0xff]
    %v4565 = vld [vmem:[#allocation4 + $0x288] sm:$0xff]
    %v4566 = vld [vmem:[#allocation4 + $0x290] sm:$0xff]
    %v4567 = vld [vmem:[#allocation4 + $0x298] sm:$0xff]
    %v4568 = vld [vmem:[#allocation4 + $0x2a0] sm:$0xff]
    %v4569 = vld [vmem:[#allocation4 + $0x2a8] sm:$0xff]
    %v4570 = vld [vmem:[#allocation4 + $0x2b0] sm:$0xff]
    %v4571 = vld [vmem:[#allocation4 + $0x2b8] sm:$0xff]
    %v4572 = vld [vmem:[#allocation4 + $0x2c0] sm:$0xff]
    %v4573 = vld [vmem:[#allocation4 + $0x2c8] sm:$0xff]
    %v4574 = vld [vmem:[#allocation4 + $0x2d0] sm:$0xff]
    %v4575 = vld [vmem:[#allocation4 + $0x2d8] sm:$0xff]
    %v4576 = vld [vmem:[#allocation4 + $0x2e0] sm:$0xff]
    %v4577 = vld [vmem:[#allocation4 + $0x2e8] sm:$0xff]
    %v4578 = vld [vmem:[#allocation4 + $0x2f0] sm:$0xff]
    %v4579 = vld [vmem:[#allocation4 + $0x2f8] sm:$0xff]
    %v4580 = vld [vmem:[#allocation4 + $0x300] sm:$0xff]
    %v4581 = vld [vmem:[#allocation4 + $0x308] sm:$0xff]
    %v4582 = vld [vmem:[#allocation4 + $0x310] sm:$0xff]
    %v4583 = vld [vmem:[#allocation4 + $0x318] sm:$0xff]
    %v4584 = vld [vmem:[#allocation4 + $0x320] sm:$0xff]
    %v4585 = vld [vmem:[#allocation4 + $0x328] sm:$0xff]
    %v4586 = vld [vmem:[#allocation4 + $0x330] sm:$0xff]
    %v4587 = vld [vmem:[#allocation4 + $0x338] sm:$0xff]
    %v4588 = vld [vmem:[#allocation4 + $0x340] sm:$0xff]
    %v4589 = vld [vmem:[#allocation4 + $0x348] sm:$0xff]
    %v4590 = vld [vmem:[#allocation4 + $0x350] sm:$0xff]
    %v4591 = vld [vmem:[#allocation4 + $0x358] sm:$0xff]
    %v4592 = vld [vmem:[#allocation4 + $0x360] sm:$0xff]
    %v4593 = vld [vmem:[#allocation4 + $0x368] sm:$0xff]
    %v4594 = vld [vmem:[#allocation4 + $0x370] sm:$0xff]
    %v4595 = vld [vmem:[#allocation4 + $0x378] sm:$0xff]
    %v4596 = vld [vmem:[#allocation4 + $0x380] sm:$0xff]
    %v4597 = vld [vmem:[#allocation4 + $0x388] sm:$0xff]
    %v4598 = vld [vmem:[#allocation4 + $0x390] sm:$0xff]
    %v4599 = vld [vmem:[#allocation4 + $0x398] sm:$0xff]
    %v4600 = vld [vmem:[#allocation4 + $0x3a0] sm:$0xff]
    %v4601 = vld [vmem:[#allocation4 + $0x3a8] sm:$0xff]
    %v4602 = vld [vmem:[#allocation4 + $0x3b0] sm:$0xff]
    %v4603 = vld [vmem:[#allocation4 + $0x3b8] sm:$0xff]
    %v4604 = vld [vmem:[#allocation4 + $0x3c0] sm:$0xff]
    %v4605 = vld [vmem:[#allocation4 + $0x3c8] sm:$0xff]
    %v4606 = vld [vmem:[#allocation4 + $0x3d0] sm:$0xff]
    %v4607 = vld [vmem:[#allocation4 + $0x3d8] sm:$0xff]
    %v4608 = vld [vmem:[#allocation4 + $0x3e0] sm:$0xff]
    %v4609 = vld [vmem:[#allocation4 + $0x3e8] sm:$0xff]
    %v4610 = vld [vmem:[#allocation4 + $0x3f0] sm:$0xff]
    %v4611 = vld [vmem:[#allocation4 + $0x3f8] sm:$0xff]
    %v4612 = vld [vmem:[#allocation4 + $0x400] sm:$0xff]
    %v4613 = vld [vmem:[#allocation4 + $0x408] sm:$0xff]
    %v4614 = vld [vmem:[#allocation4 + $0x410] sm:$0xff]
    %v4615 = vld [vmem:[#allocation4 + $0x418] sm:$0xff]
    %v4616 = vld [vmem:[#allocation4 + $0x420] sm:$0xff]
    %v4617 = vld [vmem:[#allocation4 + $0x428] sm:$0xff]
    %v4618 = vld [vmem:[#allocation4 + $0x430] sm:$0xff]
    %v4619 = vld [vmem:[#allocation4 + $0x438] sm:$0xff]
    %v4620 = vld [vmem:[#allocation4 + $0x440] sm:$0xff]
    %v4621 = vld [vmem:[#allocation4 + $0x448] sm:$0xff]
    %v4622 = vld [vmem:[#allocation4 + $0x450] sm:$0xff]
    %v4623 = vld [vmem:[#allocation4 + $0x458] sm:$0xff]
    %v4624 = vld [vmem:[#allocation4 + $0x460] sm:$0xff]
    %v4625 = vld [vmem:[#allocation4 + $0x468] sm:$0xff]
    %v4626 = vld [vmem:[#allocation4 + $0x470] sm:$0xff]
    %v4627 = vld [vmem:[#allocation4 + $0x478] sm:$0xff]
    %v4628 = vld [vmem:[#allocation4 + $0x480] sm:$0xff]
    %v4629 = vld [vmem:[#allocation4 + $0x488] sm:$0xff]
    %v4630 = vld [vmem:[#allocation4 + $0x490] sm:$0xff]
    %v4631 = vld [vmem:[#allocation4 + $0x498] sm:$0xff]
    %v4632 = vld [vmem:[#allocation4 + $0x4a0] sm:$0xff]
    %v4633 = vld [vmem:[#allocation4 + $0x4a8] sm:$0xff]
    %v4634 = vld [vmem:[#allocation4 + $0x4b0] sm:$0xff]
    %v4635 = vld [vmem:[#allocation4 + $0x4b8] sm:$0xff]
    %v4636 = vld [vmem:[#allocation4 + $0x4c0] sm:$0xff]
    %v4637 = vld [vmem:[#allocation4 + $0x4c8] sm:$0xff]
    %v4638 = vld [vmem:[#allocation4 + $0x4d0] sm:$0xff]
    %v4639 = vld [vmem:[#allocation4 + $0x4d8] sm:$0xff]
    %v4640 = vld [vmem:[#allocation4 + $0x4e0] sm:$0xff]
    %v4641 = vld [vmem:[#allocation4 + $0x4e8] sm:$0xff]
    %v4642 = vld [vmem:[#allocation4 + $0x4f0] sm:$0xff]
    %v4643 = vld [vmem:[#allocation4 + $0x4f8] sm:$0xff]
    %v4644 = vld [vmem:[#allocation4 + $0x500] sm:$0xff]
    %v4645 = vld [vmem:[#allocation4 + $0x508] sm:$0xff]
    %v4646 = vld [vmem:[#allocation4 + $0x510] sm:$0xff]
    %v4647 = vld [vmem:[#allocation4 + $0x518] sm:$0xff]
    %v4648 = vld [vmem:[#allocation4 + $0x520] sm:$0xff]
    %v4649 = vld [vmem:[#allocation4 + $0x528] sm:$0xff]
    %v4650 = vld [vmem:[#allocation4 + $0x530] sm:$0xff]
    %v4651 = vld [vmem:[#allocation4 + $0x538] sm:$0xff]
    %v4652 = vld [vmem:[#allocation4 + $0x540] sm:$0xff]
    %v4653 = vld [vmem:[#allocation4 + $0x548] sm:$0xff]
    %v4654 = vld [vmem:[#allocation4 + $0x550] sm:$0xff]
    %v4655 = vld [vmem:[#allocation4 + $0x558] sm:$0xff]
    %v4656 = vld [vmem:[#allocation4 + $0x560] sm:$0xff]
    %v4657 = vld [vmem:[#allocation4 + $0x568] sm:$0xff]
    %v4658 = vld [vmem:[#allocation4 + $0x570] sm:$0xff]
    %v4659 = vld [vmem:[#allocation4 + $0x578] sm:$0xff]
    %v4660 = vld [vmem:[#allocation4 + $0x580] sm:$0xff]
    %v4661 = vld [vmem:[#allocation4 + $0x588] sm:$0xff]
    %v4662 = vld [vmem:[#allocation4 + $0x590] sm:$0xff]
    %v4663 = vld [vmem:[#allocation4 + $0x598] sm:$0xff]
    %v4664 = vld [vmem:[#allocation4 + $0x5a0] sm:$0xff]
    %v4665 = vld [vmem:[#allocation4 + $0x5a8] sm:$0xff]
    %v4666 = vld [vmem:[#allocation4 + $0x5b0] sm:$0xff]
    %v4667 = vld [vmem:[#allocation4 + $0x5b8] sm:$0xff]
    %v4668 = vld [vmem:[#allocation4 + $0x5c0] sm:$0xff]
    %v4669 = vld [vmem:[#allocation4 + $0x5c8] sm:$0xff]
    %v4670 = vld [vmem:[#allocation4 + $0x5d0] sm:$0xff]
    %v4671 = vld [vmem:[#allocation4 + $0x5d8] sm:$0xff]
    %v4672 = vld [vmem:[#allocation4 + $0x5e0] sm:$0xff]
    %v4673 = vld [vmem:[#allocation4 + $0x5e8] sm:$0xff]
    %v4674 = vld [vmem:[#allocation4 + $0x5f0] sm:$0xff]
    %v4675 = vld [vmem:[#allocation4 + $0x5f8] sm:$0xff]
    %v4676 = vld [vmem:[#allocation4 + $0x600] sm:$0xff]
    %v4677 = vld [vmem:[#allocation4 + $0x608] sm:$0xff]
    %v4678 = vld [vmem:[#allocation4 + $0x610] sm:$0xff]
    %v4679 = vld [vmem:[#allocation4 + $0x618] sm:$0xff]
    %v4680 = vld [vmem:[#allocation4 + $0x620] sm:$0xff]
    %v4681 = vld [vmem:[#allocation4 + $0x628] sm:$0xff]
    %v4682 = vld [vmem:[#allocation4 + $0x630] sm:$0xff]
    %v4683 = vld [vmem:[#allocation4 + $0x638] sm:$0xff]
    %v4684 = vld [vmem:[#allocation4 + $0x640] sm:$0xff]
    %v4685 = vld [vmem:[#allocation4 + $0x648] sm:$0xff]
    %v4686 = vld [vmem:[#allocation4 + $0x650] sm:$0xff]
    %v4687 = vld [vmem:[#allocation4 + $0x658] sm:$0xff]
    %v4688 = vld [vmem:[#allocation4 + $0x660] sm:$0xff]
    %v4689 = vld [vmem:[#allocation4 + $0x668] sm:$0xff]
    %v4690 = vld [vmem:[#allocation4 + $0x670] sm:$0xff]
    %v4691 = vld [vmem:[#allocation4 + $0x678] sm:$0xff]
    %v4692 = vld [vmem:[#allocation4 + $0x680] sm:$0xff]
    %v4693 = vld [vmem:[#allocation4 + $0x688] sm:$0xff]
    %v4694 = vld [vmem:[#allocation4 + $0x690] sm:$0xff]
    %v4695 = vld [vmem:[#allocation4 + $0x698] sm:$0xff]
    %v4696 = vld [vmem:[#allocation4 + $0x6a0] sm:$0xff]
    %v4697 = vld [vmem:[#allocation4 + $0x6a8] sm:$0xff]
    %v4698 = vld [vmem:[#allocation4 + $0x6b0] sm:$0xff]
    %v4699 = vld [vmem:[#allocation4 + $0x6b8] sm:$0xff]
    %v4700 = vld [vmem:[#allocation4 + $0x6c0] sm:$0xff]
    %v4701 = vld [vmem:[#allocation4 + $0x6c8] sm:$0xff]
    %v4702 = vld [vmem:[#allocation4 + $0x6d0] sm:$0xff]
    %v4703 = vld [vmem:[#allocation4 + $0x6d8] sm:$0xff]
    %v4704 = vld [vmem:[#allocation4 + $0x6e0] sm:$0xff]
    %v4705 = vld [vmem:[#allocation4 + $0x6e8] sm:$0xff]
    %v4706 = vld [vmem:[#allocation4 + $0x6f0] sm:$0xff]
    %v4707 = vld [vmem:[#allocation4 + $0x6f8] sm:$0xff]
    %v4708 = vld [vmem:[#allocation4 + $0x700] sm:$0xff]
    %v4709 = vld [vmem:[#allocation4 + $0x708] sm:$0xff]
    %v4710 = vld [vmem:[#allocation4 + $0x710] sm:$0xff]
    %v4711 = vld [vmem:[#allocation4 + $0x718] sm:$0xff]
    %v4712 = vld [vmem:[#allocation4 + $0x720] sm:$0xff]
    %v4713 = vld [vmem:[#allocation4 + $0x728] sm:$0xff]
    %v4714 = vld [vmem:[#allocation4 + $0x730] sm:$0xff]
    %v4715 = vld [vmem:[#allocation4 + $0x738] sm:$0xff]
    %v4716 = vld [vmem:[#allocation4 + $0x740] sm:$0xff]
    %v4717 = vld [vmem:[#allocation4 + $0x748] sm:$0xff]
    %v4718 = vld [vmem:[#allocation4 + $0x750] sm:$0xff]
    %v4719 = vld [vmem:[#allocation4 + $0x758] sm:$0xff]
    %v4720 = vld [vmem:[#allocation4 + $0x760] sm:$0xff]
    %v4721 = vld [vmem:[#allocation4 + $0x768] sm:$0xff]
    %v4722 = vld [vmem:[#allocation4 + $0x770] sm:$0xff]
    %v4723 = vld [vmem:[#allocation4 + $0x778] sm:$0xff]
    %v4724 = vld [vmem:[#allocation4 + $0x780] sm:$0xff]
    %v4725 = vld [vmem:[#allocation4 + $0x788] sm:$0xff]
    %v4726 = vld [vmem:[#allocation4 + $0x790] sm:$0xff]
    %v4727 = vld [vmem:[#allocation4 + $0x798] sm:$0xff]
    %v4728 = vld [vmem:[#allocation4 + $0x7a0] sm:$0xff]
    %v4729 = vld [vmem:[#allocation4 + $0x7a8] sm:$0xff]
    %v4730 = vld [vmem:[#allocation4 + $0x7b0] sm:$0xff]
    %v4731 = vld [vmem:[#allocation4 + $0x7b8] sm:$0xff]
    %v4732 = vld [vmem:[#allocation4 + $0x7c0] sm:$0xff]
    %v4733 = vld [vmem:[#allocation4 + $0x7c8] sm:$0xff]
    %v4734 = vld [vmem:[#allocation4 + $0x7d0] sm:$0xff]
    %v4735 = vld [vmem:[#allocation4 + $0x7d8] sm:$0xff]
    %v4736 = vld [vmem:[#allocation4 + $0x7e0] sm:$0xff]
    %v4737 = vld [vmem:[#allocation4 + $0x7e8] sm:$0xff]
    %v4738 = vld [vmem:[#allocation4 + $0x7f0] sm:$0xff]
    %v4739 = vld [vmem:[#allocation4 + $0x7f8] sm:$0xff]
    %v4740 = vld [vmem:[#allocation4 + $0x800] sm:$0xff]
    %v4741 = vld [vmem:[#allocation4 + $0x808] sm:$0xff]
    %v4742 = vld [vmem:[#allocation4 + $0x810] sm:$0xff]
    %v4743 = vld [vmem:[#allocation4 + $0x818] sm:$0xff]
    %v4744 = vld [vmem:[#allocation4 + $0x820] sm:$0xff]
    %v4745 = vld [vmem:[#allocation4 + $0x828] sm:$0xff]
    %v4746 = vld [vmem:[#allocation4 + $0x830] sm:$0xff]
    %v4747 = vld [vmem:[#allocation4 + $0x838] sm:$0xff]
    %v4748 = vld [vmem:[#allocation4 + $0x840] sm:$0xff]
    %v4749 = vld [vmem:[#allocation4 + $0x848] sm:$0xff]
    %v4750 = vld [vmem:[#allocation4 + $0x850] sm:$0xff]
    %v4751 = vld [vmem:[#allocation4 + $0x858] sm:$0xff]
    %v4752 = vld [vmem:[#allocation4 + $0x860] sm:$0xff]
    %v4753 = vld [vmem:[#allocation4 + $0x868] sm:$0xff]
    %v4754 = vld [vmem:[#allocation4 + $0x870] sm:$0xff]
    %v4755 = vld [vmem:[#allocation4 + $0x878] sm:$0xff]
    %v4756 = vld [vmem:[#allocation4 + $0x880] sm:$0xff]
    %v4757 = vld [vmem:[#allocation4 + $0x888] sm:$0xff]
    %v4758 = vld [vmem:[#allocation4 + $0x890] sm:$0xff]
    %v4759 = vld [vmem:[#allocation4 + $0x898] sm:$0xff]
    %v4760 = vld [vmem:[#allocation4 + $0x8a0] sm:$0xff]
    %v4761 = vld [vmem:[#allocation4 + $0x8a8] sm:$0xff]
    %v4762 = vld [vmem:[#allocation4 + $0x8b0] sm:$0xff]
    %v4763 = vld [vmem:[#allocation4 + $0x8b8] sm:$0xff]
    %v4764 = vld [vmem:[#allocation4 + $0x8c0] sm:$0xff]
    %v4765 = vld [vmem:[#allocation4 + $0x8c8] sm:$0xff]
    %v4766 = vld [vmem:[#allocation4 + $0x8d0] sm:$0xff]
    %v4767 = vld [vmem:[#allocation4 + $0x8d8] sm:$0xff]
    %v4768 = vld [vmem:[#allocation4 + $0x8e0] sm:$0xff]
    %v4769 = vld [vmem:[#allocation4 + $0x8e8] sm:$0xff]
    %v4770 = vld [vmem:[#allocation4 + $0x8f0] sm:$0xff]
    %v4771 = vld [vmem:[#allocation4 + $0x8f8] sm:$0xff]
    %v4772 = vld [vmem:[#allocation4 + $0x900] sm:$0xff]
    %v4773 = vld [vmem:[#allocation4 + $0x908] sm:$0xff]
    %v4774 = vld [vmem:[#allocation4 + $0x910] sm:$0xff]
    %v4775 = vld [vmem:[#allocation4 + $0x918] sm:$0xff]
    %v4776 = vld [vmem:[#allocation4 + $0x920] sm:$0xff]
    %v4777 = vld [vmem:[#allocation4 + $0x928] sm:$0xff]
    %v4778 = vld [vmem:[#allocation4 + $0x930] sm:$0xff]
    %v4779 = vld [vmem:[#allocation4 + $0x938] sm:$0xff]
    %v4780 = vld [vmem:[#allocation4 + $0x940] sm:$0xff]
    %v4781 = vld [vmem:[#allocation4 + $0x948] sm:$0xff]
    %v4782 = vld [vmem:[#allocation4 + $0x950] sm:$0xff]
    %v4783 = vld [vmem:[#allocation4 + $0x958] sm:$0xff]
    %v4784 = vld [vmem:[#allocation4 + $0x960] sm:$0xff]
    %v4785 = vld [vmem:[#allocation4 + $0x968] sm:$0xff]
    %v4786 = vld [vmem:[#allocation4 + $0x970] sm:$0xff]
    %v4787 = vld [vmem:[#allocation4 + $0x978] sm:$0xff]
    %v4788 = vld [vmem:[#allocation4 + $0x980] sm:$0xff]
    %v4789 = vld [vmem:[#allocation4 + $0x988] sm:$0xff]
    %v4790 = vld [vmem:[#allocation4 + $0x990] sm:$0xff]
    %v4791 = vld [vmem:[#allocation4 + $0x998] sm:$0xff]
    %v4792 = vld [vmem:[#allocation4 + $0x9a0] sm:$0xff]
    %v4793 = vld [vmem:[#allocation4 + $0x9a8] sm:$0xff]
    %v4794 = vld [vmem:[#allocation4 + $0x9b0] sm:$0xff]
    %v4795 = vld [vmem:[#allocation4 + $0x9b8] sm:$0xff]
    %v4796 = vld [vmem:[#allocation4 + $0x9c0] sm:$0xff]
    %v4797 = vld [vmem:[#allocation4 + $0x9c8] sm:$0xff]
    %v4798 = vld [vmem:[#allocation4 + $0x9d0] sm:$0xff]
    %v4799 = vld [vmem:[#allocation4 + $0x9d8] sm:$0xff]
    %v4800 = vld [vmem:[#allocation4 + $0x9e0] sm:$0xff]
    %v4801 = vld [vmem:[#allocation4 + $0x9e8] sm:$0xff]
    %v4802 = vld [vmem:[#allocation4 + $0x9f0] sm:$0xff]
    %v4803 = vld [vmem:[#allocation4 + $0x9f8] sm:$0xff]
    %v4804 = vld [vmem:[#allocation4 + $0xa00] sm:$0xff]
    %v4805 = vld [vmem:[#allocation4 + $0xa08] sm:$0xff]
    %v4806 = vld [vmem:[#allocation4 + $0xa10] sm:$0xff]
    %v4807 = vld [vmem:[#allocation4 + $0xa18] sm:$0xff]
    %v4808 = vld [vmem:[#allocation4 + $0xa20] sm:$0xff]
    %v4809 = vld [vmem:[#allocation4 + $0xa28] sm:$0xff]
    %v4810 = vld [vmem:[#allocation4 + $0xa30] sm:$0xff]
    %v4811 = vld [vmem:[#allocation4 + $0xa38] sm:$0xff]
    %v4812 = vld [vmem:[#allocation4 + $0xa40] sm:$0xff]
    %v4813 = vld [vmem:[#allocation4 + $0xa48] sm:$0xff]
    %v4814 = vld [vmem:[#allocation4 + $0xa50] sm:$0xff]
    %v4815 = vld [vmem:[#allocation4 + $0xa58] sm:$0xff]
    %v4816 = vld [vmem:[#allocation4 + $0xa60] sm:$0xff]
    %v4817 = vld [vmem:[#allocation4 + $0xa68] sm:$0xff]
    %v4818 = vld [vmem:[#allocation4 + $0xa70] sm:$0xff]
    %v4819 = vld [vmem:[#allocation4 + $0xa78] sm:$0xff]
    %v4820 = vld [vmem:[#allocation4 + $0xa80] sm:$0xff]
    %v4821 = vld [vmem:[#allocation4 + $0xa88] sm:$0xff]
    %v4822 = vld [vmem:[#allocation4 + $0xa90] sm:$0xff]
    %v4823 = vld [vmem:[#allocation4 + $0xa98] sm:$0xff]
    %v4824 = vld [vmem:[#allocation4 + $0xaa0] sm:$0xff]
    %v4825 = vld [vmem:[#allocation4 + $0xaa8] sm:$0xff]
    %v4826 = vld [vmem:[#allocation4 + $0xab0] sm:$0xff]
    %v4827 = vld [vmem:[#allocation4 + $0xab8] sm:$0xff]
    %v4828 = vld [vmem:[#allocation4 + $0xac0] sm:$0xff]
    %v4829 = vld [vmem:[#allocation4 + $0xac8] sm:$0xff]
    %v4830 = vld [vmem:[#allocation4 + $0xad0] sm:$0xff]
    %v4831 = vld [vmem:[#allocation4 + $0xad8] sm:$0xff]
    %v4832 = vld [vmem:[#allocation4 + $0xae0] sm:$0xff]
    %v4833 = vld [vmem:[#allocation4 + $0xae8] sm:$0xff]
    %v4834 = vld [vmem:[#allocation4 + $0xaf0] sm:$0xff]
    %v4835 = vld [vmem:[#allocation4 + $0xaf8] sm:$0xff]
    %v4836 = vld [vmem:[#allocation4 + $0xb00] sm:$0xff]
    %v4837 = vld [vmem:[#allocation4 + $0xb08] sm:$0xff]
    %v4838 = vld [vmem:[#allocation4 + $0xb10] sm:$0xff]
    %v4839 = vld [vmem:[#allocation4 + $0xb18] sm:$0xff]
    %v4840 = vld [vmem:[#allocation4 + $0xb20] sm:$0xff]
    %v4841 = vld [vmem:[#allocation4 + $0xb28] sm:$0xff]
    %v4842 = vld [vmem:[#allocation4 + $0xb30] sm:$0xff]
    %v4843 = vld [vmem:[#allocation4 + $0xb38] sm:$0xff]
    %v4844 = vld [vmem:[#allocation4 + $0xb40] sm:$0xff]
    %v4845 = vld [vmem:[#allocation4 + $0xb48] sm:$0xff]
    %v4846 = vld [vmem:[#allocation4 + $0xb50] sm:$0xff]
    %v4847 = vld [vmem:[#allocation4 + $0xb58] sm:$0xff]
    %v4848 = vld [vmem:[#allocation4 + $0xb60] sm:$0xff]
    %v4849 = vld [vmem:[#allocation4 + $0xb68] sm:$0xff]
    %v4850 = vld [vmem:[#allocation4 + $0xb70] sm:$0xff]
    %v4851 = vld [vmem:[#allocation4 + $0xb78] sm:$0xff]
    %v4852 = vld [vmem:[#allocation4 + $0xb80] sm:$0xff]
    %v4853 = vld [vmem:[#allocation4 + $0xb88] sm:$0xff]
    %v4854 = vld [vmem:[#allocation4 + $0xb90] sm:$0xff]
    %v4855 = vld [vmem:[#allocation4 + $0xb98] sm:$0xff]
    %v4856 = vld [vmem:[#allocation4 + $0xba0] sm:$0xff]
    %v4857 = vld [vmem:[#allocation4 + $0xba8] sm:$0xff]
    %v4858 = vld [vmem:[#allocation4 + $0xbb0] sm:$0xff]
    %v4859 = vld [vmem:[#allocation4 + $0xbb8] sm:$0xff]
    %v4860 = vld [vmem:[#allocation4 + $0xbc0] sm:$0xff]
    %v4861 = vld [vmem:[#allocation4 + $0xbc8] sm:$0xff]
    %v4862 = vld [vmem:[#allocation4 + $0xbd0] sm:$0xff]
    %v4863 = vld [vmem:[#allocation4 + $0xbd8] sm:$0xff]
    %v4864 = vld [vmem:[#allocation4 + $0xbe0] sm:$0xff]
    %v4865 = vld [vmem:[#allocation4 + $0xbe8] sm:$0xff]
    %v4866 = vld [vmem:[#allocation4 + $0xbf0] sm:$0xff]
    %v4867 = vld [vmem:[#allocation4 + $0xbf8] sm:$0xff]
    %v4868 = vld [vmem:[#allocation4 + $0xc00] sm:$0xff]
    %v4869 = vld [vmem:[#allocation4 + $0xc08] sm:$0xff]
    %v4870 = vld [vmem:[#allocation4 + $0xc10] sm:$0xff]
    %v4871 = vld [vmem:[#allocation4 + $0xc18] sm:$0xff]
    %v4872 = vld [vmem:[#allocation4 + $0xc20] sm:$0xff]
    %v4873 = vld [vmem:[#allocation4 + $0xc28] sm:$0xff]
    %v4874 = vld [vmem:[#allocation4 + $0xc30] sm:$0xff]
    %v4875 = vld [vmem:[#allocation4 + $0xc38] sm:$0xff]
    %v4876 = vld [vmem:[#allocation4 + $0xc40] sm:$0xff]
    %v4877 = vld [vmem:[#allocation4 + $0xc48] sm:$0xff]
    %v4878 = vld [vmem:[#allocation4 + $0xc50] sm:$0xff]
    %v4879 = vld [vmem:[#allocation4 + $0xc58] sm:$0xff]
    %v4880 = vld [vmem:[#allocation4 + $0xc60] sm:$0xff]
    %v4881 = vld [vmem:[#allocation4 + $0xc68] sm:$0xff]
    %v4882 = vld [vmem:[#allocation4 + $0xc70] sm:$0xff]
    %v4883 = vld [vmem:[#allocation4 + $0xc78] sm:$0xff]
    %v4884 = vld [vmem:[#allocation4 + $0xc80] sm:$0xff]
    %v4885 = vld [vmem:[#allocation4 + $0xc88] sm:$0xff]
    %v4886 = vld [vmem:[#allocation4 + $0xc90] sm:$0xff]
    %v4887 = vld [vmem:[#allocation4 + $0xc98] sm:$0xff]
    %v4888 = vld [vmem:[#allocation4 + $0xca0] sm:$0xff]
    %v4889 = vld [vmem:[#allocation4 + $0xca8] sm:$0xff]
    %v4890 = vld [vmem:[#allocation4 + $0xcb0] sm:$0xff]
    %v4891 = vld [vmem:[#allocation4 + $0xcb8] sm:$0xff]
    %v4892 = vld [vmem:[#allocation4 + $0xcc0] sm:$0xff]
    %v4893 = vld [vmem:[#allocation4 + $0xcc8] sm:$0xff]
    %v4894 = vld [vmem:[#allocation4 + $0xcd0] sm:$0xff]
    %v4895 = vld [vmem:[#allocation4 + $0xcd8] sm:$0xff]
    %v4896 = vld [vmem:[#allocation4 + $0xce0] sm:$0xff]
    %v4897 = vld [vmem:[#allocation4 + $0xce8] sm:$0xff]
    %v4898 = vld [vmem:[#allocation4 + $0xcf0] sm:$0xff]
    %v4899 = vld [vmem:[#allocation4 + $0xcf8] sm:$0xff]
    %v4900 = vld [vmem:[#allocation4 + $0xd00] sm:$0xff]
    %v4901 = vld [vmem:[#allocation4 + $0xd08] sm:$0xff]
    %v4902 = vld [vmem:[#allocation4 + $0xd10] sm:$0xff]
    %v4903 = vld [vmem:[#allocation4 + $0xd18] sm:$0xff]
    %v4904 = vld [vmem:[#allocation4 + $0xd20] sm:$0xff]
    %v4905 = vld [vmem:[#allocation4 + $0xd28] sm:$0xff]
    %v4906 = vld [vmem:[#allocation4 + $0xd30] sm:$0xff]
    %v4907 = vld [vmem:[#allocation4 + $0xd38] sm:$0xff]
    %v4908 = vld [vmem:[#allocation4 + $0xd40] sm:$0xff]
    %v4909 = vld [vmem:[#allocation4 + $0xd48] sm:$0xff]
    %v4910 = vld [vmem:[#allocation4 + $0xd50] sm:$0xff]
    %v4911 = vld [vmem:[#allocation4 + $0xd58] sm:$0xff]
    %v4912 = vld [vmem:[#allocation4 + $0xd60] sm:$0xff]
    %v4913 = vld [vmem:[#allocation4 + $0xd68] sm:$0xff]
    %v4914 = vld [vmem:[#allocation4 + $0xd70] sm:$0xff]
    %v4915 = vld [vmem:[#allocation4 + $0xd78] sm:$0xff]
    %v4916 = vld [vmem:[#allocation4 + $0xd80] sm:$0xff]
    %v4917 = vld [vmem:[#allocation4 + $0xd88] sm:$0xff]
    %v4918 = vld [vmem:[#allocation4 + $0xd90] sm:$0xff]
    %v4919 = vld [vmem:[#allocation4 + $0xd98] sm:$0xff]
    %v4920 = vld [vmem:[#allocation4 + $0xda0] sm:$0xff]
    %v4921 = vld [vmem:[#allocation4 + $0xda8] sm:$0xff]
    %v4922 = vld [vmem:[#allocation4 + $0xdb0] sm:$0xff]
    %v4923 = vld [vmem:[#allocation4 + $0xdb8] sm:$0xff]
    %v4924 = vld [vmem:[#allocation4 + $0xdc0] sm:$0xff]
    %v4925 = vld [vmem:[#allocation4 + $0xdc8] sm:$0xff]
    %v4926 = vld [vmem:[#allocation4 + $0xdd0] sm:$0xff]
    %v4927 = vld [vmem:[#allocation4 + $0xdd8] sm:$0xff]
    %v4928 = vld [vmem:[#allocation4 + $0xde0] sm:$0xff]
    %v4929 = vld [vmem:[#allocation4 + $0xde8] sm:$0xff]
    %v4930 = vld [vmem:[#allocation4 + $0xdf0] sm:$0xff]
    %v4931 = vld [vmem:[#allocation4 + $0xdf8] sm:$0xff]
    %v4932 = vld [vmem:[#allocation4 + $0xe00] sm:$0xff]
    %v4933 = vld [vmem:[#allocation4 + $0xe08] sm:$0xff]
    %v4934 = vld [vmem:[#allocation4 + $0xe10] sm:$0xff]
    %v4935 = vld [vmem:[#allocation4 + $0xe18] sm:$0xff]
    %v4936 = vld [vmem:[#allocation4 + $0xe20] sm:$0xff]
    %v4937 = vld [vmem:[#allocation4 + $0xe28] sm:$0xff]
    %v4938 = vld [vmem:[#allocation4 + $0xe30] sm:$0xff]
    %v4939 = vld [vmem:[#allocation4 + $0xe38] sm:$0xff]
    %v4940 = vld [vmem:[#allocation4 + $0xe40] sm:$0xff]
    %v4941 = vld [vmem:[#allocation4 + $0xe48] sm:$0xff]
    %v4942 = vld [vmem:[#allocation4 + $0xe50] sm:$0xff]
    %v4943 = vld [vmem:[#allocation4 + $0xe58] sm:$0xff]
    %v4944 = vld [vmem:[#allocation4 + $0xe60] sm:$0xff]
    %v4945 = vld [vmem:[#allocation4 + $0xe68] sm:$0xff]
    %v4946 = vld [vmem:[#allocation4 + $0xe70] sm:$0xff]
    %v4947 = vld [vmem:[#allocation4 + $0xe78] sm:$0xff]
    %v4948 = vld [vmem:[#allocation4 + $0xe80] sm:$0xff]
    %v4949 = vld [vmem:[#allocation4 + $0xe88] sm:$0xff]
    %v4950 = vld [vmem:[#allocation4 + $0xe90] sm:$0xff]
    %v4951 = vld [vmem:[#allocation4 + $0xe98] sm:$0xff]
    %v4952 = vld [vmem:[#allocation4 + $0xea0] sm:$0xff]
    %v4953 = vld [vmem:[#allocation4 + $0xea8] sm:$0xff]
    %v4954 = vld [vmem:[#allocation4 + $0xeb0] sm:$0xff]
    %v4955 = vld [vmem:[#allocation4 + $0xeb8] sm:$0xff]
    %v4956 = vld [vmem:[#allocation4 + $0xec0] sm:$0xff]
    %v4957 = vld [vmem:[#allocation4 + $0xec8] sm:$0xff]
    %v4958 = vld [vmem:[#allocation4 + $0xed0] sm:$0xff]
    %v4959 = vld [vmem:[#allocation4 + $0xed8] sm:$0xff]
    %v4960 = vld [vmem:[#allocation4 + $0xee0] sm:$0xff]
    %v4961 = vld [vmem:[#allocation4 + $0xee8] sm:$0xff]
    %v4962 = vld [vmem:[#allocation4 + $0xef0] sm:$0xff]
    %v4963 = vld [vmem:[#allocation4 + $0xef8] sm:$0xff]
    %v4964 = vld [vmem:[#allocation4 + $0xf00] sm:$0xff]
    %v4965 = vld [vmem:[#allocation4 + $0xf08] sm:$0xff]
    %v4966 = vld [vmem:[#allocation4 + $0xf10] sm:$0xff]
    %v4967 = vld [vmem:[#allocation4 + $0xf18] sm:$0xff]
    %v4968 = vld [vmem:[#allocation4 + $0xf20] sm:$0xff]
    %v4969 = vld [vmem:[#allocation4 + $0xf28] sm:$0xff]
    %v4970 = vld [vmem:[#allocation4 + $0xf30] sm:$0xff]
    %v4971 = vld [vmem:[#allocation4 + $0xf38] sm:$0xff]
    %v4972 = vld [vmem:[#allocation4 + $0xf40] sm:$0xff]
    %v4973 = vld [vmem:[#allocation4 + $0xf48] sm:$0xff]
    %v4974 = vld [vmem:[#allocation4 + $0xf50] sm:$0xff]
    %v4975 = vld [vmem:[#allocation4 + $0xf58] sm:$0xff]
    %v4976 = vld [vmem:[#allocation4 + $0xf60] sm:$0xff]
    %v4977 = vld [vmem:[#allocation4 + $0xf68] sm:$0xff]
    %v4978 = vld [vmem:[#allocation4 + $0xf70] sm:$0xff]
    %v4979 = vld [vmem:[#allocation4 + $0xf78] sm:$0xff]
    %v4980 = vld [vmem:[#allocation4 + $0xf80] sm:$0xff]
    %v4981 = vld [vmem:[#allocation4 + $0xf88] sm:$0xff]
    %v4982 = vld [vmem:[#allocation4 + $0xf90] sm:$0xff]
    %v4983 = vld [vmem:[#allocation4 + $0xf98] sm:$0xff]
    %v4984 = vld [vmem:[#allocation4 + $0xfa0] sm:$0xff]
    %v4985 = vld [vmem:[#allocation4 + $0xfa8] sm:$0xff]
    %v4986 = vld [vmem:[#allocation4 + $0xfb0] sm:$0xff]
    %v4987 = vld [vmem:[#allocation4 + $0xfb8] sm:$0xff]
    %v4988 = vld [vmem:[#allocation4 + $0xfc0] sm:$0xff]
    %v4989 = vld [vmem:[#allocation4 + $0xfc8] sm:$0xff]
    %v4990 = vld [vmem:[#allocation4 + $0xfd0] sm:$0xff]
    %v4991 = vld [vmem:[#allocation4 + $0xfd8] sm:$0xff]
    %v4992 = vld [vmem:[#allocation4 + $0xfe0] sm:$0xff]
    %v4993 = vld [vmem:[#allocation4 + $0xfe8] sm:$0xff]
    %v4994 = vld [vmem:[#allocation4 + $0xff0] sm:$0xff]
    %v4995 = vld [vmem:[#allocation4 + $0xff8] sm:$0xff]
    %v4996 = vld [vmem:[#allocation6] sm:$0xf]
    %v4998 = vlaneseq
    %v4999 = vshrl.u32 %v4998, 7
    %v5000 = vsub.s32 0, %v4999
    %v5001 = vrot.slane %v4996, %v5000
    %v5002 = vlaneseq
    %v5003 = vshrl.u32 %v5002, 7
    %v5004 = vsub.s32 1, %v5003
    %v5005 = vrot.slane %v4996, %v5004
    %v5006 = vlaneseq
    %v5007 = vshrl.u32 %v5006, 7
    %v5008 = vsub.s32 2, %v5007
    %v5009 = vrot.slane %v4996, %v5008
    %v5010 = vlaneseq
    %v5011 = vshrl.u32 %v5010, 7
    %v5012 = vsub.s32 3, %v5011
    %v5013 = vrot.slane %v4996, %v5012
    %5018 = vmatprep.subr.mxu0 %v4485
    %5019 = vmatpush1.msra.mxu0 %v4484
    %5020 = vmatprep.subr.mxu0 %v4489
    %5021 = vmatpush1.msra.mxu0 %v4488
    %5022 = vmatprep.subr.mxu0 %v4493
    %5023 = vmatpush1.msra.mxu0 %v4492
    %5024 = vmatprep.subr.mxu0 %v4497
    %5025 = vmatpush1.msra.mxu0 %v4496
    %5026 = vmatprep.subr.mxu0 %v4501
    %5027 = vmatpush1.msra.mxu0 %v4500
    %5028 = vmatprep.subr.mxu0 %v4505
    %5029 = vmatpush1.msra.mxu0 %v4504
    %5030 = vmatprep.subr.mxu0 %v4509
    %5031 = vmatpush1.msra.mxu0 %v4508
    %5032 = vmatprep.subr.mxu0 %v4513
    %5033 = vmatpush1.msra.mxu0 %v4512
    %5034 = vmatprep.subr.mxu0 %v4517
    %5035 = vmatpush1.msra.mxu0 %v4516
    %5036 = vmatprep.subr.mxu0 %v4521
    %5037 = vmatpush1.msra.mxu0 %v4520
    %5038 = vmatprep.subr.mxu0 %v4525
    %5039 = vmatpush1.msra.mxu0 %v4524
    %5040 = vmatprep.subr.mxu0 %v4529
    %5041 = vmatpush1.msra.mxu0 %v4528
    %5042 = vmatprep.subr.mxu0 %v4533
    %5043 = vmatpush1.msra.mxu0 %v4532
    %5044 = vmatprep.subr.mxu0 %v4537
    %5045 = vmatpush1.msra.mxu0 %v4536
    %5046 = vmatprep.subr.mxu0 %v4541
    %5047 = vmatpush1.msra.mxu0 %v4540
    %5048 = vmatprep.subr.mxu0 %v4545
    %5049 = vmatpush1.msra.mxu0 %v4544
    %5050 = vmatprep.subr.mxu0 %v4549
    %5051 = vmatpush1.msra.mxu0 %v4548
    %5052 = vmatprep.subr.mxu0 %v4553
    %5053 = vmatpush1.msra.mxu0 %v4552
    %5054 = vmatprep.subr.mxu0 %v4557
    %5055 = vmatpush1.msra.mxu0 %v4556
    %5056 = vmatprep.subr.mxu0 %v4561
    %5057 = vmatpush1.msra.mxu0 %v4560
    %5058 = vmatprep.subr.mxu0 %v4565
    %5059 = vmatpush1.msra.mxu0 %v4564
    %5060 = vmatprep.subr.mxu0 %v4569
    %5061 = vmatpush1.msra.mxu0 %v4568
    %5062 = vmatprep.subr.mxu0 %v4573
    %5063 = vmatpush1.msra.mxu0 %v4572
    %5064 = vmatprep.subr.mxu0 %v4577
    %5065 = vmatpush1.msra.mxu0 %v4576
    %5066 = vmatprep.subr.mxu0 %v4581
    %5067 = vmatpush1.msra.mxu0 %v4580
    %5068 = vmatprep.subr.mxu0 %v4585
    %5069 = vmatpush1.msra.mxu0 %v4584
    %5070 = vmatprep.subr.mxu0 %v4589
    %5071 = vmatpush1.msra.mxu0 %v4588
    %5072 = vmatprep.subr.mxu0 %v4593
    %5073 = vmatpush1.msra.mxu0 %v4592
    %5074 = vmatprep.subr.mxu0 %v4597
    %5075 = vmatpush1.msra.mxu0 %v4596
    %5076 = vmatprep.subr.mxu0 %v4601
    %5077 = vmatpush1.msra.mxu0 %v4600
    %5078 = vmatprep.subr.mxu0 %v4605
    %5079 = vmatpush1.msra.mxu0 %v4604
    %5080 = vmatprep.subr.mxu0 %v4609
    %5081 = vmatpush1.msra.mxu0 %v4608
    %5082 = vmatprep.mubr.f32.mxu0 %v4477
    %5083 = vmatmul.mubr.f32.gmra.mrb[0].mxu0 %v4476
    %v5084 = vpop.f32.mrb[0].mxu0
    %v5085 = vadd.f32 %v5001, %v5084
    %v5086 = vpop.f32.mrb[0].mxu0
    %v5087 = vadd.f32 %v5005, %v5086
    %5088 = vdwg.mxu0
    %5089 = vmatprep.subr.mxu0 %v4613
    %5090 = vmatpush1.msra.mxu0 %v4612
    %5091 = vmatprep.subr.mxu0 %v4617
    %5092 = vmatpush1.msra.mxu0 %v4616
    %5093 = vmatprep.subr.mxu0 %v4621
    %5094 = vmatpush1.msra.mxu0 %v4620
    %5095 = vmatprep.subr.mxu0 %v4625
    %5096 = vmatpush1.msra.mxu0 %v4624
    %5097 = vmatprep.subr.mxu0 %v4629
    %5098 = vmatpush1.msra.mxu0 %v4628
    %5099 = vmatprep.subr.mxu0 %v4633
    %5100 = vmatpush1.msra.mxu0 %v4632
    %5101 = vmatprep.subr.mxu0 %v4637
    %5102 = vmatpush1.msra.mxu0 %v4636
    %5103 = vmatprep.subr.mxu0 %v4641
    %5104 = vmatpush1.msra.mxu0 %v4640
    %5105 = vmatprep.subr.mxu0 %v4645
    %5106 = vmatpush1.msra.mxu0 %v4644
    %5107 = vmatprep.subr.mxu0 %v4649
    %5108 = vmatpush1.msra.mxu0 %v4648
    %5109 = vmatprep.subr.mxu0 %v4653
    %5110 = vmatpush1.msra.mxu0 %v4652
    %5111 = vmatprep.subr.mxu0 %v4657
    %5112 = vmatpush1.msra.mxu0 %v4656
    %5113 = vmatprep.subr.mxu0 %v4661
    %5114 = vmatpush1.msra.mxu0 %v4660
    %5115 = vmatprep.subr.mxu0 %v4665
    %5116 = vmatpush1.msra.mxu0 %v4664
    %5117 = vmatprep.subr.mxu0 %v4669
    %5118 = vmatpush1.msra.mxu0 %v4668
    %5119 = vmatprep.subr.mxu0 %v4673
    %5120 = vmatpush1.msra.mxu0 %v4672
    %5121 = vmatprep.subr.mxu0 %v4677
    %5122 = vmatpush1.msra.mxu0 %v4676
    %5123 = vmatprep.subr.mxu0 %v4681
    %5124 = vmatpush1.msra.mxu0 %v4680
    %5125 = vmatprep.subr.mxu0 %v4685
    %5126 = vmatpush1.msra.mxu0 %v4684
    %5127 = vmatprep.subr.mxu0 %v4689
    %5128 = vmatpush1.msra.mxu0 %v4688
    %5129 = vmatprep.subr.mxu0 %v4693
    %5130 = vmatpush1.msra.mxu0 %v4692
    %5131 = vmatprep.subr.mxu0 %v4697
    %5132 = vmatpush1.msra.mxu0 %v4696
    %5133 = vmatprep.subr.mxu0 %v4701
    %5134 = vmatpush1.msra.mxu0 %v4700
    %5135 = vmatprep.subr.mxu0 %v4705
    %5136 = vmatpush1.msra.mxu0 %v4704
    %5137 = vmatprep.subr.mxu0 %v4709
    %5138 = vmatpush1.msra.mxu0 %v4708
    %5139 = vmatprep.subr.mxu0 %v4713
    %5140 = vmatpush1.msra.mxu0 %v4712
    %5141 = vmatprep.subr.mxu0 %v4717
    %5142 = vmatpush1.msra.mxu0 %v4716
    %5143 = vmatprep.subr.mxu0 %v4721
    %5144 = vmatpush1.msra.mxu0 %v4720
    %5145 = vmatprep.subr.mxu0 %v4725
    %5146 = vmatpush1.msra.mxu0 %v4724
    %5147 = vmatprep.subr.mxu0 %v4729
    %5148 = vmatpush1.msra.mxu0 %v4728
    %5149 = vmatprep.subr.mxu0 %v4733
    %5150 = vmatpush1.msra.mxu0 %v4732
    %5151 = vmatprep.subr.mxu0 %v4737
    %5152 = vmatpush1.msra.mxu0 %v4736
    %5153 = vmatprep.mubr.f32.mxu0 %v4479
    %5154 = vmatmul.mubr.f32.gmra.mrb[0].mxu0 %v4478
    %v5155 = vpop.f32.mrb[0].mxu0
    %v5156 = vadd.f32 %v5085, %v5155
    %v5157 = vpop.f32.mrb[0].mxu0
    %v5158 = vadd.f32 %v5087, %v5157
    %5159 = vdwg.mxu0
    %5160 = vmatprep.subr.mxu0 %v4741
    %5161 = vmatpush1.msra.mxu0 %v4740
    %5162 = vmatprep.subr.mxu0 %v4745
    %5163 = vmatpush1.msra.mxu0 %v4744
    %5164 = vmatprep.subr.mxu0 %v4749
    %5165 = vmatpush1.msra.mxu0 %v4748
    %5166 = vmatprep.subr.mxu0 %v4753
    %5167 = vmatpush1.msra.mxu0 %v4752
    %5168 = vmatprep.subr.mxu0 %v4757
    %5169 = vmatpush1.msra.mxu0 %v4756
    %5170 = vmatprep.subr.mxu0 %v4761
    %5171 = vmatpush1.msra.mxu0 %v4760
    %5172 = vmatprep.subr.mxu0 %v4765
    %5173 = vmatpush1.msra.mxu0 %v4764
    %5174 = vmatprep.subr.mxu0 %v4769
    %5175 = vmatpush1.msra.mxu0 %v4768
    %5176 = vmatprep.subr.mxu0 %v4773
    %5177 = vmatpush1.msra.mxu0 %v4772
    %5178 = vmatprep.subr.mxu0 %v4777
    %5179 = vmatpush1.msra.mxu0 %v4776
    %5180 = vmatprep.subr.mxu0 %v4781
    %5181 = vmatpush1.msra.mxu0 %v4780
    %5182 = vmatprep.subr.mxu0 %v4785
    %5183 = vmatpush1.msra.mxu0 %v4784
    %5184 = vmatprep.subr.mxu0 %v4789
    %5185 = vmatpush1.msra.mxu0 %v4788
    %5186 = vmatprep.subr.mxu0 %v4793
    %5187 = vmatpush1.msra.mxu0 %v4792
    %5188 = vmatprep.subr.mxu0 %v4797
    %5189 = vmatpush1.msra.mxu0 %v4796
    %5190 = vmatprep.subr.mxu0 %v4801
    %5191 = vmatpush1.msra.mxu0 %v4800
    %5192 = vmatprep.subr.mxu0 %v4805
    %5193 = vmatpush1.msra.mxu0 %v4804
    %5194 = vmatprep.subr.mxu0 %v4809
    %5195 = vmatpush1.msra.mxu0 %v4808
    %5196 = vmatprep.subr.mxu0 %v4813
    %5197 = vmatpush1.msra.mxu0 %v4812
    %5198 = vmatprep.subr.mxu0 %v4817
    %5199 = vmatpush1.msra.mxu0 %v4816
    %5200 = vmatprep.subr.mxu0 %v4821
    %5201 = vmatpush1.msra.mxu0 %v4820
    %5202 = vmatprep.subr.mxu0 %v4825
    %5203 = vmatpush1.msra.mxu0 %v4824
    %5204 = vmatprep.subr.mxu0 %v4829
    %5205 = vmatpush1.msra.mxu0 %v4828
    %5206 = vmatprep.subr.mxu0 %v4833
    %5207 = vmatpush1.msra.mxu0 %v4832
    %5208 = vmatprep.subr.mxu0 %v4837
    %5209 = vmatpush1.msra.mxu0 %v4836
    %5210 = vmatprep.subr.mxu0 %v4841
    %5211 = vmatpush1.msra.mxu0 %v4840
    %5212 = vmatprep.subr.mxu0 %v4845
    %5213 = vmatpush1.msra.mxu0 %v4844
    %5214 = vmatprep.subr.mxu0 %v4849
    %5215 = vmatpush1.msra.mxu0 %v4848
    %5216 = vmatprep.subr.mxu0 %v4853
    %5217 = vmatpush1.msra.mxu0 %v4852
    %5218 = vmatprep.subr.mxu0 %v4857
    %5219 = vmatpush1.msra.mxu0 %v4856
    %5220 = vmatprep.subr.mxu0 %v4861
    %5221 = vmatpush1.msra.mxu0 %v4860
    %5222 = vmatprep.subr.mxu0 %v4865
    %5223 = vmatpush1.msra.mxu0 %v4864
    %5224 = vmatprep.mubr.f32.mxu0 %v4481
    %5225 = vmatmul.mubr.f32.gmra.mrb[0].mxu0 %v4480
    %v5226 = vpop.f32.mrb[0].mxu0
    %v5227 = vadd.f32 %v5156, %v5226
    %v5228 = vpop.f32.mrb[0].mxu0
    %v5229 = vadd.f32 %v5158, %v5228
    %5230 = vdwg.mxu0
    %5231 = vmatprep.subr.mxu0 %v4869
    %5232 = vmatpush1.msra.mxu0 %v4868
    %5233 = vmatprep.subr.mxu0 %v4873
    %5234 = vmatpush1.msra.mxu0 %v4872
    %5235 = vmatprep.subr.mxu0 %v4877
    %5236 = vmatpush1.msra.mxu0 %v4876
    %5237 = vmatprep.subr.mxu0 %v4881
    %5238 = vmatpush1.msra.mxu0 %v4880
    %5239 = vmatprep.subr.mxu0 %v4885
    %5240 = vmatpush1.msra.mxu0 %v4884
    %5241 = vmatprep.subr.mxu0 %v4889
    %5242 = vmatpush1.msra.mxu0 %v4888
    %5243 = vmatprep.subr.mxu0 %v4893
    %5244 = vmatpush1.msra.mxu0 %v4892
    %5245 = vmatprep.subr.mxu0 %v4897
    %5246 = vmatpush1.msra.mxu0 %v4896
    %5247 = vmatprep.subr.mxu0 %v4901
    %5248 = vmatpush1.msra.mxu0 %v4900
    %5249 = vmatprep.subr.mxu0 %v4905
    %5250 = vmatpush1.msra.mxu0 %v4904
    %5251 = vmatprep.subr.mxu0 %v4909
    %5252 = vmatpush1.msra.mxu0 %v4908
    %5253 = vmatprep.subr.mxu0 %v4913
    %5254 = vmatpush1.msra.mxu0 %v4912
    %5255 = vmatprep.subr.mxu0 %v4917
    %5256 = vmatpush1.msra.mxu0 %v4916
    %5257 = vmatprep.subr.mxu0 %v4921
    %5258 = vmatpush1.msra.mxu0 %v4920
    %5259 = vmatprep.subr.mxu0 %v4925
    %5260 = vmatpush1.msra.mxu0 %v4924
    %5261 = vmatprep.subr.mxu0 %v4929
    %5262 = vmatpush1.msra.mxu0 %v4928
    %5263 = vmatprep.subr.mxu0 %v4933
    %5264 = vmatpush1.msra.mxu0 %v4932
    %5265 = vmatprep.subr.mxu0 %v4937
    %5266 = vmatpush1.msra.mxu0 %v4936
    %5267 = vmatprep.subr.mxu0 %v4941
    %5268 = vmatpush1.msra.mxu0 %v4940
    %5269 = vmatprep.subr.mxu0 %v4945
    %5270 = vmatpush1.msra.mxu0 %v4944
    %5271 = vmatprep.subr.mxu0 %v4949
    %5272 = vmatpush1.msra.mxu0 %v4948
    %5273 = vmatprep.subr.mxu0 %v4953
    %5274 = vmatpush1.msra.mxu0 %v4952
    %5275 = vmatprep.subr.mxu0 %v4957
    %5276 = vmatpush1.msra.mxu0 %v4956
    %5277 = vmatprep.subr.mxu0 %v4961
    %5278 = vmatpush1.msra.mxu0 %v4960
    %5279 = vmatprep.subr.mxu0 %v4965
    %5280 = vmatpush1.msra.mxu0 %v4964
    %5281 = vmatprep.subr.mxu0 %v4969
    %5282 = vmatpush1.msra.mxu0 %v4968
    %5283 = vmatprep.subr.mxu0 %v4973
    %5284 = vmatpush1.msra.mxu0 %v4972
    %5285 = vmatprep.subr.mxu0 %v4977
    %5286 = vmatpush1.msra.mxu0 %v4976
    %5287 = vmatprep.subr.mxu0 %v4981
    %5288 = vmatpush1.msra.mxu0 %v4980
    %5289 = vmatprep.subr.mxu0 %v4985
    %5290 = vmatpush1.msra.mxu0 %v4984
    %5291 = vmatprep.subr.mxu0 %v4989
    %5292 = vmatpush1.msra.mxu0 %v4988
    %5293 = vmatprep.subr.mxu0 %v4993
    %5294 = vmatpush1.msra.mxu0 %v4992
    %5295 = vmatprep.mubr.f32.mxu0 %v4483
    %5296 = vmatmul.mubr.f32.gmra.mrb[0].mxu0 %v4482
    %v5297 = vpop.f32.mrb[0].mxu0
    %v5298 = vadd.f32 %v5227, %v5297
    %v5299 = vpop.f32.mrb[0].mxu0
    %v5300 = vadd.f32 %v5229, %v5299
    %5301 = vdwg.mxu0
    %5302 = vmatprep.subr.mxu0 %v4487
    %5303 = vmatpush1.msra.mxu0 %v4486
    %5304 = vmatprep.subr.mxu0 %v4491
    %5305 = vmatpush1.msra.mxu0 %v4490
    %5306 = vmatprep.subr.mxu0 %v4495
    %5307 = vmatpush1.msra.mxu0 %v4494
    %5308 = vmatprep.subr.mxu0 %v4499
    %5309 = vmatpush1.msra.mxu0 %v4498
    %5310 = vmatprep.subr.mxu0 %v4503
    %5311 = vmatpush1.msra.mxu0 %v4502
    %5312 = vmatprep.subr.mxu0 %v4507
    %5313 = vmatpush1.msra.mxu0 %v4506
    %5314 = vmatprep.subr.mxu0 %v4511
    %5315 = vmatpush1.msra.mxu0 %v4510
    %5316 = vmatprep.subr.mxu0 %v4515
    %5317 = vmatpush1.msra.mxu0 %v4514
    %5318 = vmatprep.subr.mxu0 %v4519
    %5319 = vmatpush1.msra.mxu0 %v4518
    %5320 = vmatprep.subr.mxu0 %v4523
    %5321 = vmatpush1.msra.mxu0 %v4522
    %5322 = vmatprep.subr.mxu0 %v4527
    %5323 = vmatpush1.msra.mxu0 %v4526
    %5324 = vmatprep.subr.mxu0 %v4531
    %5325 = vmatpush1.msra.mxu0 %v4530
    %5326 = vmatprep.subr.mxu0 %v4535
    %5327 = vmatpush1.msra.mxu0 %v4534
    %5328 = vmatprep.subr.mxu0 %v4539
    %5329 = vmatpush1.msra.mxu0 %v4538
    %5330 = vmatprep.subr.mxu0 %v4543
    %5331 = vmatpush1.msra.mxu0 %v4542
    %5332 = vmatprep.subr.mxu0 %v4547
    %5333 = vmatpush1.msra.mxu0 %v4546
    %5334 = vmatprep.subr.mxu0 %v4551
    %5335 = vmatpush1.msra.mxu0 %v4550
    %5336 = vmatprep.subr.mxu0 %v4555
    %5337 = vmatpush1.msra.mxu0 %v4554
    %5338 = vmatprep.subr.mxu0 %v4559
    %5339 = vmatpush1.msra.mxu0 %v4558
    %5340 = vmatprep.subr.mxu0 %v4563
    %5341 = vmatpush1.msra.mxu0 %v4562
    %5342 = vmatprep.subr.mxu0 %v4567
    %5343 = vmatpush1.msra.mxu0 %v4566
    %5344 = vmatprep.subr.mxu0 %v4571
    %5345 = vmatpush1.msra.mxu0 %v4570
    %5346 = vmatprep.subr.mxu0 %v4575
    %5347 = vmatpush1.msra.mxu0 %v4574
    %5348 = vmatprep.subr.mxu0 %v4579
    %5349 = vmatpush1.msra.mxu0 %v4578
    %5350 = vmatprep.subr.mxu0 %v4583
    %5351 = vmatpush1.msra.mxu0 %v4582
    %5352 = vmatprep.subr.mxu0 %v4587
    %5353 = vmatpush1.msra.mxu0 %v4586
    %5354 = vmatprep.subr.mxu0 %v4591
    %5355 = vmatpush1.msra.mxu0 %v4590
    %5356 = vmatprep.subr.mxu0 %v4595
    %5357 = vmatpush1.msra.mxu0 %v4594
    %5358 = vmatprep.subr.mxu0 %v4599
    %5359 = vmatpush1.msra.mxu0 %v4598
    %5360 = vmatprep.subr.mxu0 %v4603
    %5361 = vmatpush1.msra.mxu0 %v4602
    %5362 = vmatprep.subr.mxu0 %v4607
    %5363 = vmatpush1.msra.mxu0 %v4606
    %5364 = vmatprep.subr.mxu0 %v4611
    %5365 = vmatpush1.msra.mxu0 %v4610
    %5366 = vmatprep.mubr.f32.mxu0 %v4477
    %5367 = vmatmul.mubr.f32.gmra.mrb[0].mxu0 %v4476
    %v5368 = vpop.f32.mrb[0].mxu0
    %v5369 = vadd.f32 %v5009, %v5368
    %v5370 = vpop.f32.mrb[0].mxu0
    %v5371 = vadd.f32 %v5013, %v5370
    %5372 = vdwg.mxu0
    %5373 = vmatprep.subr.mxu0 %v4615
    %5374 = vmatpush1.msra.mxu0 %v4614
    %5375 = vmatprep.subr.mxu0 %v4619
    %5376 = vmatpush1.msra.mxu0 %v4618
    %5377 = vmatprep.subr.mxu0 %v4623
    %5378 = vmatpush1.msra.mxu0 %v4622
    %5379 = vmatprep.subr.mxu0 %v4627
    %5380 = vmatpush1.msra.mxu0 %v4626
    %5381 = vmatprep.subr.mxu0 %v4631
    %5382 = vmatpush1.msra.mxu0 %v4630
    %5383 = vmatprep.subr.mxu0 %v4635
    %5384 = vmatpush1.msra.mxu0 %v4634
    %5385 = vmatprep.subr.mxu0 %v4639
    %5386 = vmatpush1.msra.mxu0 %v4638
    %5387 = vmatprep.subr.mxu0 %v4643
    %5388 = vmatpush1.msra.mxu0 %v4642
    %5389 = vmatprep.subr.mxu0 %v4647
    %5390 = vmatpush1.msra.mxu0 %v4646
    %5391 = vmatprep.subr.mxu0 %v4651
    %5392 = vmatpush1.msra.mxu0 %v4650
    %5393 = vmatprep.subr.mxu0 %v4655
    %5394 = vmatpush1.msra.mxu0 %v4654
    %5395 = vmatprep.subr.mxu0 %v4659
    %5396 = vmatpush1.msra.mxu0 %v4658
    %5397 = vmatprep.subr.mxu0 %v4663
    %5398 = vmatpush1.msra.mxu0 %v4662
    %5399 = vmatprep.subr.mxu0 %v4667
    %5400 = vmatpush1.msra.mxu0 %v4666
    %5401 = vmatprep.subr.mxu0 %v4671
    %5402 = vmatpush1.msra.mxu0 %v4670
    %5403 = vmatprep.subr.mxu0 %v4675
    %5404 = vmatpush1.msra.mxu0 %v4674
    %5405 = vmatprep.subr.mxu0 %v4679
    %5406 = vmatpush1.msra.mxu0 %v4678
    %5407 = vmatprep.subr.mxu0 %v4683
    %5408 = vmatpush1.msra.mxu0 %v4682
    %5409 = vmatprep.subr.mxu0 %v4687
    %5410 = vmatpush1.msra.mxu0 %v4686
    %5411 = vmatprep.subr.mxu0 %v4691
    %5412 = vmatpush1.msra.mxu0 %v4690
    %5413 = vmatprep.subr.mxu0 %v4695
    %5414 = vmatpush1.msra.mxu0 %v4694
    %5415 = vmatprep.subr.mxu0 %v4699
    %5416 = vmatpush1.msra.mxu0 %v4698
    %5417 = vmatprep.subr.mxu0 %v4703
    %5418 = vmatpush1.msra.mxu0 %v4702
    %5419 = vmatprep.subr.mxu0 %v4707
    %5420 = vmatpush1.msra.mxu0 %v4706
    %5421 = vmatprep.subr.mxu0 %v4711
    %5422 = vmatpush1.msra.mxu0 %v4710
    %5423 = vmatprep.subr.mxu0 %v4715
    %5424 = vmatpush1.msra.mxu0 %v4714
    %5425 = vmatprep.subr.mxu0 %v4719
    %5426 = vmatpush1.msra.mxu0 %v4718
    %5427 = vmatprep.subr.mxu0 %v4723
    %5428 = vmatpush1.msra.mxu0 %v4722
    %5429 = vmatprep.subr.mxu0 %v4727
    %5430 = vmatpush1.msra.mxu0 %v4726
    %5431 = vmatprep.subr.mxu0 %v4731
    %5432 = vmatpush1.msra.mxu0 %v4730
    %5433 = vmatprep.subr.mxu0 %v4735
    %5434 = vmatpush1.msra.mxu0 %v4734
    %5435 = vmatprep.subr.mxu0 %v4739
    %5436 = vmatpush1.msra.mxu0 %v4738
    %5437 = vmatprep.mubr.f32.mxu0 %v4479
    %5438 = vmatmul.mubr.f32.gmra.mrb[0].mxu0 %v4478
    %v5439 = vpop.f32.mrb[0].mxu0
    %v5440 = vadd.f32 %v5369, %v5439
    %v5441 = vpop.f32.mrb[0].mxu0
    %v5442 = vadd.f32 %v5371, %v5441
    %5443 = vdwg.mxu0
    %5444 = vmatprep.subr.mxu0 %v4743
    %5445 = vmatpush1.msra.mxu0 %v4742
    %5446 = vmatprep.subr.mxu0 %v4747
    %5447 = vmatpush1.msra.mxu0 %v4746
    %5448 = vmatprep.subr.mxu0 %v4751
    %5449 = vmatpush1.msra.mxu0 %v4750
    %5450 = vmatprep.subr.mxu0 %v4755
    %5451 = vmatpush1.msra.mxu0 %v4754
    %5452 = vmatprep.subr.mxu0 %v4759
    %5453 = vmatpush1.msra.mxu0 %v4758
    %5454 = vmatprep.subr.mxu0 %v4763
    %5455 = vmatpush1.msra.mxu0 %v4762
    %5456 = vmatprep.subr.mxu0 %v4767
    %5457 = vmatpush1.msra.mxu0 %v4766
    %5458 = vmatprep.subr.mxu0 %v4771
    %5459 = vmatpush1.msra.mxu0 %v4770
    %5460 = vmatprep.subr.mxu0 %v4775
    %5461 = vmatpush1.msra.mxu0 %v4774
    %5462 = vmatprep.subr.mxu0 %v4779
    %5463 = vmatpush1.msra.mxu0 %v4778
    %5464 = vmatprep.subr.mxu0 %v4783
    %5465 = vmatpush1.msra.mxu0 %v4782
    %5466 = vmatprep.subr.mxu0 %v4787
    %5467 = vmatpush1.msra.mxu0 %v4786
    %5468 = vmatprep.subr.mxu0 %v4791
    %5469 = vmatpush1.msra.mxu0 %v4790
    %5470 = vmatprep.subr.mxu0 %v4795
    %5471 = vmatpush1.msra.mxu0 %v4794
    %5472 = vmatprep.subr.mxu0 %v4799
    %5473 = vmatpush1.msra.mxu0 %v4798
    %5474 = vmatprep.subr.mxu0 %v4803
    %5475 = vmatpush1.msra.mxu0 %v4802
    %5476 = vmatprep.subr.mxu0 %v4807
    %5477 = vmatpush1.msra.mxu0 %v4806
    %5478 = vmatprep.subr.mxu0 %v4811
    %5479 = vmatpush1.msra.mxu0 %v4810
    %5480 = vmatprep.subr.mxu0 %v4815
    %5481 = vmatpush1.msra.mxu0 %v4814
    %5482 = vmatprep.subr.mxu0 %v4819
    %5483 = vmatpush1.msra.mxu0 %v4818
    %5484 = vmatprep.subr.mxu0 %v4823
    %5485 = vmatpush1.msra.mxu0 %v4822
    %5486 = vmatprep.subr.mxu0 %v4827
    %5487 = vmatpush1.msra.mxu0 %v4826
    %5488 = vmatprep.subr.mxu0 %v4831
    %5489 = vmatpush1.msra.mxu0 %v4830
    %5490 = vmatprep.subr.mxu0 %v4835
    %5491 = vmatpush1.msra.mxu0 %v4834
    %5492 = vmatprep.subr.mxu0 %v4839
    %5493 = vmatpush1.msra.mxu0 %v4838
    %5494 = vmatprep.subr.mxu0 %v4843
    %5495 = vmatpush1.msra.mxu0 %v4842
    %5496 = vmatprep.subr.mxu0 %v4847
    %5497 = vmatpush1.msra.mxu0 %v4846
    %5498 = vmatprep.subr.mxu0 %v4851
    %5499 = vmatpush1.msra.mxu0 %v4850
    %5500 = vmatprep.subr.mxu0 %v4855
    %5501 = vmatpush1.msra.mxu0 %v4854
    %5502 = vmatprep.subr.mxu0 %v4859
    %5503 = vmatpush1.msra.mxu0 %v4858
    %5504 = vmatprep.subr.mxu0 %v4863
    %5505 = vmatpush1.msra.mxu0 %v4862
    %5506 = vmatprep.subr.mxu0 %v4867
    %5507 = vmatpush1.msra.mxu0 %v4866
    %5508 = vmatprep.mubr.f32.mxu0 %v4481
    %5509 = vmatmul.mubr.f32.gmra.mrb[0].mxu0 %v4480
    %v5510 = vpop.f32.mrb[0].mxu0
    %v5511 = vadd.f32 %v5440, %v5510
    %v5512 = vpop.f32.mrb[0].mxu0
    %v5513 = vadd.f32 %v5442, %v5512
    %5514 = vdwg.mxu0
    %5515 = vmatprep.subr.mxu0 %v4871
    %5516 = vmatpush1.msra.mxu0 %v4870
    %5517 = vmatprep.subr.mxu0 %v4875
    %5518 = vmatpush1.msra.mxu0 %v4874
    %5519 = vmatprep.subr.mxu0 %v4879
    %5520 = vmatpush1.msra.mxu0 %v4878
    %5521 = vmatprep.subr.mxu0 %v4883
    %5522 = vmatpush1.msra.mxu0 %v4882
    %5523 = vmatprep.subr.mxu0 %v4887
    %5524 = vmatpush1.msra.mxu0 %v4886
    %5525 = vmatprep.subr.mxu0 %v4891
    %5526 = vmatpush1.msra.mxu0 %v4890
    %5527 = vmatprep.subr.mxu0 %v4895
    %5528 = vmatpush1.msra.mxu0 %v4894
    %5529 = vmatprep.subr.mxu0 %v4899
    %5530 = vmatpush1.msra.mxu0 %v4898
    %5531 = vmatprep.subr.mxu0 %v4903
    %5532 = vmatpush1.msra.mxu0 %v4902
    %5533 = vmatprep.subr.mxu0 %v4907
    %5534 = vmatpush1.msra.mxu0 %v4906
    %5535 = vmatprep.subr.mxu0 %v4911
    %5536 = vmatpush1.msra.mxu0 %v4910
    %5537 = vmatprep.subr.mxu0 %v4915
    %5538 = vmatpush1.msra.mxu0 %v4914
    %5539 = vmatprep.subr.mxu0 %v4919
    %5540 = vmatpush1.msra.mxu0 %v4918
    %5541 = vmatprep.subr.mxu0 %v4923
    %5542 = vmatpush1.msra.mxu0 %v4922
    %5543 = vmatprep.subr.mxu0 %v4927
    %5544 = vmatpush1.msra.mxu0 %v4926
    %5545 = vmatprep.subr.mxu0 %v4931
    %5546 = vmatpush1.msra.mxu0 %v4930
    %5547 = vmatprep.subr.mxu0 %v4935
    %5548 = vmatpush1.msra.mxu0 %v4934
    %5549 = vmatprep.subr.mxu0 %v4939
    %5550 = vmatpush1.msra.mxu0 %v4938
    %5551 = vmatprep.subr.mxu0 %v4943
    %5552 = vmatpush1.msra.mxu0 %v4942
    %5553 = vmatprep.subr.mxu0 %v4947
    %5554 = vmatpush1.msra.mxu0 %v4946
    %5555 = vmatprep.subr.mxu0 %v4951
    %5556 = vmatpush1.msra.mxu0 %v4950
    %5557 = vmatprep.subr.mxu0 %v4955
    %5558 = vmatpush1.msra.mxu0 %v4954
    %5559 = vmatprep.subr.mxu0 %v4959
    %5560 = vmatpush1.msra.mxu0 %v4958
    %5561 = vmatprep.subr.mxu0 %v4963
    %5562 = vmatpush1.msra.mxu0 %v4962
    %5563 = vmatprep.subr.mxu0 %v4967
    %5564 = vmatpush1.msra.mxu0 %v4966
    %5565 = vmatprep.subr.mxu0 %v4971
    %5566 = vmatpush1.msra.mxu0 %v4970
    %5567 = vmatprep.subr.mxu0 %v4975
    %5568 = vmatpush1.msra.mxu0 %v4974
    %5569 = vmatprep.subr.mxu0 %v4979
    %5570 = vmatpush1.msra.mxu0 %v4978
    %5571 = vmatprep.subr.mxu0 %v4983
    %5572 = vmatpush1.msra.mxu0 %v4982
    %5573 = vmatprep.subr.mxu0 %v4987
    %5574 = vmatpush1.msra.mxu0 %v4986
    %5575 = vmatprep.subr.mxu0 %v4991
    %5576 = vmatpush1.msra.mxu0 %v4990
    %5577 = vmatprep.subr.mxu0 %v4995
    %5578 = vmatpush1.msra.mxu0 %v4994
    %5579 = vmatprep.mubr.f32.mxu0 %v4483
    %5580 = vmatmul.mubr.f32.gmra.mrb[0].mxu0 %v4482
    %v5581 = vpop.f32.mrb[0].mxu0
    %v5582 = vadd.f32 %v5511, %v5581
    %v5583 = vpop.f32.mrb[0].mxu0
    %v5584 = vadd.f32 %v5513, %v5583
    %5585 = vdwg.mxu0
    %vm5586 = vcmp.gt.f32.partialorder %v5298, 0.0
    %vm5587 = vcmp.gt.f32.partialorder %v5300, 0.0
    %vm5588 = vcmp.gt.f32.partialorder %v5582, 0.0
    %vm5589 = vcmp.gt.f32.partialorder %v5584, 0.0
    %v5590 = vmul.f32 %v5298, 0.01
    %v5591 = vmul.f32 %v5300, 0.01
    %v5592 = vmul.f32 %v5582, 0.01
    %v5593 = vmul.f32 %v5584, 0.01
    %v5594 = vsel %vm5586, %v5298, %v5590
    %v5595 = vsel %vm5587, %v5300, %v5591
    %v5596 = vsel %vm5588, %v5582, %v5592
    %v5597 = vsel %vm5589, %v5584, %v5593
    %v5598 = vpack.c.bf16 %v5594, %v5594
    %v5599 = vpack.c.bf16 %v5595, %v5595
    %v5600 = vpack.c.bf16 %v5596, %v5596
    %v5601 = vpack.c.bf16 %v5597, %v5597
    %v5602 = vld [vmem:[#allocation7] sm:$0xff]
    %v5603 = vld [vmem:[#allocation7 + $0x8] sm:$0xff]
    %v5604 = vld [vmem:[#allocation7 + $0x10] sm:$0xff]
    %v5605 = vld [vmem:[#allocation7 + $0x18] sm:$0xff]
    %v5606 = vld [vmem:[#allocation7 + $0x20] sm:$0xff]
    %v5607 = vld [vmem:[#allocation7 + $0x28] sm:$0xff]
    %v5608 = vld [vmem:[#allocation7 + $0x30] sm:$0xff]
    %v5609 = vld [vmem:[#allocation7 + $0x38] sm:$0xff]
    %v5610 = vld [vmem:[#allocation7 + $0x40] sm:$0xff]
    %v5611 = vld [vmem:[#allocation7 + $0x48] sm:$0xff]
    %v5612 = vld [vmem:[#allocation7 + $0x50] sm:$0xff]
    %v5613 = vld [vmem:[#allocation7 + $0x58] sm:$0xff]
    %v5614 = vld [vmem:[#allocation7 + $0x60] sm:$0xff]
    %v5615 = vld [vmem:[#allocation7 + $0x68] sm:$0xff]
    %v5616 = vld [vmem:[#allocation7 + $0x70] sm:$0xff]
    %v5617 = vld [vmem:[#allocation7 + $0x78] sm:$0xff]
    %v5618 = vld [vmem:[#allocation7 + $0x80] sm:$0xff]
    %v5619 = vld [vmem:[#allocation7 + $0x88] sm:$0xff]
    %v5620 = vld [vmem:[#allocation7 + $0x90] sm:$0xff]
    %v5621 = vld [vmem:[#allocation7 + $0x98] sm:$0xff]
    %v5622 = vld [vmem:[#allocation7 + $0xa0] sm:$0xff]
    %v5623 = vld [vmem:[#allocation7 + $0xa8] sm:$0xff]
    %v5624 = vld [vmem:[#allocation7 + $0xb0] sm:$0xff]
    %v5625 = vld [vmem:[#allocation7 + $0xb8] sm:$0xff]
    %v5626 = vld [vmem:[#allocation7 + $0xc0] sm:$0xff]
    %v5627 = vld [vmem:[#allocation7 + $0xc8] sm:$0xff]
    %v5628 = vld [vmem:[#allocation7 + $0xd0] sm:$0xff]
    %v5629 = vld [vmem:[#allocation7 + $0xd8] sm:$0xff]
    %v5630 = vld [vmem:[#allocation7 + $0xe0] sm:$0xff]
    %v5631 = vld [vmem:[#allocation7 + $0xe8] sm:$0xff]
    %v5632 = vld [vmem:[#allocation7 + $0xf0] sm:$0xff]
    %v5633 = vld [vmem:[#allocation7 + $0xf8] sm:$0xff]
    %v5634 = vld [vmem:[#allocation7 + $0x100] sm:$0xff]
    %v5635 = vld [vmem:[#allocation7 + $0x108] sm:$0xff]
    %v5636 = vld [vmem:[#allocation7 + $0x110] sm:$0xff]
    %v5637 = vld [vmem:[#allocation7 + $0x118] sm:$0xff]
    %v5638 = vld [vmem:[#allocation7 + $0x120] sm:$0xff]
    %v5639 = vld [vmem:[#allocation7 + $0x128] sm:$0xff]
    %v5640 = vld [vmem:[#allocation7 + $0x130] sm:$0xff]
    %v5641 = vld [vmem:[#allocation7 + $0x138] sm:$0xff]
    %v5642 = vld [vmem:[#allocation7 + $0x140] sm:$0xff]
    %v5643 = vld [vmem:[#allocation7 + $0x148] sm:$0xff]
    %v5644 = vld [vmem:[#allocation7 + $0x150] sm:$0xff]
    %v5645 = vld [vmem:[#allocation7 + $0x158] sm:$0xff]
    %v5646 = vld [vmem:[#allocation7 + $0x160] sm:$0xff]
    %v5647 = vld [vmem:[#allocation7 + $0x168] sm:$0xff]
    %v5648 = vld [vmem:[#allocation7 + $0x170] sm:$0xff]
    %v5649 = vld [vmem:[#allocation7 + $0x178] sm:$0xff]
    %v5650 = vld [vmem:[#allocation7 + $0x180] sm:$0xff]
    %v5651 = vld [vmem:[#allocation7 + $0x188] sm:$0xff]
    %v5652 = vld [vmem:[#allocation7 + $0x190] sm:$0xff]
    %v5653 = vld [vmem:[#allocation7 + $0x198] sm:$0xff]
    %v5654 = vld [vmem:[#allocation7 + $0x1a0] sm:$0xff]
    %v5655 = vld [vmem:[#allocation7 + $0x1a8] sm:$0xff]
    %v5656 = vld [vmem:[#allocation7 + $0x1b0] sm:$0xff]
    %v5657 = vld [vmem:[#allocation7 + $0x1b8] sm:$0xff]
    %v5658 = vld [vmem:[#allocation7 + $0x1c0] sm:$0xff]
    %v5659 = vld [vmem:[#allocation7 + $0x1c8] sm:$0xff]
    %v5660 = vld [vmem:[#allocation7 + $0x1d0] sm:$0xff]
    %v5661 = vld [vmem:[#allocation7 + $0x1d8] sm:$0xff]
    %v5662 = vld [vmem:[#allocation7 + $0x1e0] sm:$0xff]
    %v5663 = vld [vmem:[#allocation7 + $0x1e8] sm:$0xff]
    %v5664 = vld [vmem:[#allocation7 + $0x1f0] sm:$0xff]
    %v5665 = vld [vmem:[#allocation7 + $0x1f8] sm:$0xff]
    %v5666 = vld [vmem:[#allocation9] sm:$0x3]
    %v5668 = vlaneseq
    %v5669 = vshrl.u32 %v5668, 7
    %v5670 = vsub.s32 0, %v5669
    %v5671 = vrot.slane %v5666, %v5670
    %v5672 = vlaneseq
    %v5673 = vshrl.u32 %v5672, 7
    %v5674 = vsub.s32 1, %v5673
    %v5675 = vrot.slane %v5666, %v5674
    %v5742 = vunpack.c.l.b16 %v5602
    %v5743 = vunpack.c.h.b16 %v5602
    %v5744 = vunpack.c.l.b16 %v5603
    %v5745 = vunpack.c.h.b16 %v5603
    %v5746 = vunpack.c.l.b16 %v5604
    %v5747 = vunpack.c.h.b16 %v5604
    %v5748 = vunpack.c.l.b16 %v5605
    %v5749 = vunpack.c.h.b16 %v5605
    %v5750 = vunpack.c.l.b16 %v5606
    %v5751 = vunpack.c.h.b16 %v5606
    %v5752 = vunpack.c.l.b16 %v5607
    %v5753 = vunpack.c.h.b16 %v5607
    %v5754 = vunpack.c.l.b16 %v5608
    %v5755 = vunpack.c.h.b16 %v5608
    %v5756 = vunpack.c.l.b16 %v5609
    %v5757 = vunpack.c.h.b16 %v5609
    %v5758 = vunpack.c.l.b16 %v5610
    %v5759 = vunpack.c.h.b16 %v5610
    %v5760 = vunpack.c.l.b16 %v5611
    %v5761 = vunpack.c.h.b16 %v5611
    %v5762 = vunpack.c.l.b16 %v5612
    %v5763 = vunpack.c.h.b16 %v5612
    %v5764 = vunpack.c.l.b16 %v5613
    %v5765 = vunpack.c.h.b16 %v5613
    %v5766 = vunpack.c.l.b16 %v5614
    %v5767 = vunpack.c.h.b16 %v5614
    %v5768 = vunpack.c.l.b16 %v5615
    %v5769 = vunpack.c.h.b16 %v5615
    %v5770 = vunpack.c.l.b16 %v5616
    %v5771 = vunpack.c.h.b16 %v5616
    %v5772 = vunpack.c.l.b16 %v5617
    %v5773 = vunpack.c.h.b16 %v5617
    %v5774 = vunpack.c.l.b16 %v5618
    %v5775 = vunpack.c.h.b16 %v5618
    %v5776 = vunpack.c.l.b16 %v5619
    %v5777 = vunpack.c.h.b16 %v5619
    %v5778 = vunpack.c.l.b16 %v5620
    %v5779 = vunpack.c.h.b16 %v5620
    %v5780 = vunpack.c.l.b16 %v5621
    %v5781 = vunpack.c.h.b16 %v5621
    %v5782 = vunpack.c.l.b16 %v5622
    %v5783 = vunpack.c.h.b16 %v5622
    %v5784 = vunpack.c.l.b16 %v5623
    %v5785 = vunpack.c.h.b16 %v5623
    %v5786 = vunpack.c.l.b16 %v5624
    %v5787 = vunpack.c.h.b16 %v5624
    %v5788 = vunpack.c.l.b16 %v5625
    %v5789 = vunpack.c.h.b16 %v5625
    %v5790 = vunpack.c.l.b16 %v5626
    %v5791 = vunpack.c.h.b16 %v5626
    %v5792 = vunpack.c.l.b16 %v5627
    %v5793 = vunpack.c.h.b16 %v5627
    %v5794 = vunpack.c.l.b16 %v5628
    %v5795 = vunpack.c.h.b16 %v5628
    %v5796 = vunpack.c.l.b16 %v5629
    %v5797 = vunpack.c.h.b16 %v5629
    %v5798 = vunpack.c.l.b16 %v5630
    %v5799 = vunpack.c.h.b16 %v5630
    %v5800 = vunpack.c.l.b16 %v5631
    %v5801 = vunpack.c.h.b16 %v5631
    %v5802 = vunpack.c.l.b16 %v5632
    %v5803 = vunpack.c.h.b16 %v5632
    %v5804 = vunpack.c.l.b16 %v5633
    %v5805 = vunpack.c.h.b16 %v5633
    %v5806 = vunpack.c.l.b16 %v5634
    %v5807 = vunpack.c.h.b16 %v5634
    %v5808 = vunpack.c.l.b16 %v5635
    %v5809 = vunpack.c.h.b16 %v5635
    %v5810 = vunpack.c.l.b16 %v5636
    %v5811 = vunpack.c.h.b16 %v5636
    %v5812 = vunpack.c.l.b16 %v5637
    %v5813 = vunpack.c.h.b16 %v5637
    %v5814 = vunpack.c.l.b16 %v5638
    %v5815 = vunpack.c.h.b16 %v5638
    %v5816 = vunpack.c.l.b16 %v5639
    %v5817 = vunpack.c.h.b16 %v5639
    %v5818 = vunpack.c.l.b16 %v5640
    %v5819 = vunpack.c.h.b16 %v5640
    %v5820 = vunpack.c.l.b16 %v5641
    %v5821 = vunpack.c.h.b16 %v5641
    %v5822 = vunpack.c.l.b16 %v5642
    %v5823 = vunpack.c.h.b16 %v5642
    %v5824 = vunpack.c.l.b16 %v5643
    %v5825 = vunpack.c.h.b16 %v5643
    %v5826 = vunpack.c.l.b16 %v5644
    %v5827 = vunpack.c.h.b16 %v5644
    %v5828 = vunpack.c.l.b16 %v5645
    %v5829 = vunpack.c.h.b16 %v5645
    %v5830 = vunpack.c.l.b16 %v5646
    %v5831 = vunpack.c.h.b16 %v5646
    %v5832 = vunpack.c.l.b16 %v5647
    %v5833 = vunpack.c.h.b16 %v5647
    %v5834 = vunpack.c.l.b16 %v5648
    %v5835 = vunpack.c.h.b16 %v5648
    %v5836 = vunpack.c.l.b16 %v5649
    %v5837 = vunpack.c.h.b16 %v5649
    %v5838 = vunpack.c.l.b16 %v5650
    %v5839 = vunpack.c.h.b16 %v5650
    %v5840 = vunpack.c.l.b16 %v5651
    %v5841 = vunpack.c.h.b16 %v5651
    %v5842 = vunpack.c.l.b16 %v5652
    %v5843 = vunpack.c.h.b16 %v5652
    %v5844 = vunpack.c.l.b16 %v5653
    %v5845 = vunpack.c.h.b16 %v5653
    %v5846 = vunpack.c.l.b16 %v5654
    %v5847 = vunpack.c.h.b16 %v5654
    %v5848 = vunpack.c.l.b16 %v5655
    %v5849 = vunpack.c.h.b16 %v5655
    %v5850 = vunpack.c.l.b16 %v5656
    %v5851 = vunpack.c.h.b16 %v5656
    %v5852 = vunpack.c.l.b16 %v5657
    %v5853 = vunpack.c.h.b16 %v5657
    %v5854 = vunpack.c.l.b16 %v5658
    %v5855 = vunpack.c.h.b16 %v5658
    %v5856 = vunpack.c.l.b16 %v5659
    %v5857 = vunpack.c.h.b16 %v5659
    %v5858 = vunpack.c.l.b16 %v5660
    %v5859 = vunpack.c.h.b16 %v5660
    %v5860 = vunpack.c.l.b16 %v5661
    %v5861 = vunpack.c.h.b16 %v5661
    %v5862 = vunpack.c.l.b16 %v5662
    %v5863 = vunpack.c.h.b16 %v5662
    %v5864 = vunpack.c.l.b16 %v5663
    %v5865 = vunpack.c.h.b16 %v5663
    %v5866 = vunpack.c.l.b16 %v5664
    %v5867 = vunpack.c.h.b16 %v5664
    %v5868 = vunpack.c.l.b16 %v5665
    %v5869 = vunpack.c.h.b16 %v5665
    %v5870 = vpack.c.b16 %v5744, %v5742
    %v5871 = vpack.c.b16 %v5745, %v5743
    %v5872 = vpack.c.b16 %v5748, %v5746
    %v5873 = vpack.c.b16 %v5749, %v5747
    %v5874 = vpack.c.b16 %v5752, %v5750
    %v5875 = vpack.c.b16 %v5753, %v5751
    %v5876 = vpack.c.b16 %v5756, %v5754
    %v5877 = vpack.c.b16 %v5757, %v5755
    %v5878 = vpack.c.b16 %v5760, %v5758
    %v5879 = vpack.c.b16 %v5761, %v5759
    %v5880 = vpack.c.b16 %v5764, %v5762
    %v5881 = vpack.c.b16 %v5765, %v5763
    %v5882 = vpack.c.b16 %v5768, %v5766
    %v5883 = vpack.c.b16 %v5769, %v5767
    %v5884 = vpack.c.b16 %v5772, %v5770
    %v5885 = vpack.c.b16 %v5773, %v5771
    %v5886 = vpack.c.b16 %v5776, %v5774
    %v5887 = vpack.c.b16 %v5777, %v5775
    %v5888 = vpack.c.b16 %v5780, %v5778
    %v5889 = vpack.c.b16 %v5781, %v5779
    %v5890 = vpack.c.b16 %v5784, %v5782
    %v5891 = vpack.c.b16 %v5785, %v5783
    %v5892 = vpack.c.b16 %v5788, %v5786
    %v5893 = vpack.c.b16 %v5789, %v5787
    %v5894 = vpack.c.b16 %v5792, %v5790
    %v5895 = vpack.c.b16 %v5793, %v5791
    %v5896 = vpack.c.b16 %v5796, %v5794
    %v5897 = vpack.c.b16 %v5797, %v5795
    %v5898 = vpack.c.b16 %v5800, %v5798
    %v5899 = vpack.c.b16 %v5801, %v5799
    %v5900 = vpack.c.b16 %v5804, %v5802
    %v5901 = vpack.c.b16 %v5805, %v5803
    %v5902 = vpack.c.b16 %v5808, %v5806
    %v5903 = vpack.c.b16 %v5809, %v5807
    %v5904 = vpack.c.b16 %v5812, %v5810
    %v5905 = vpack.c.b16 %v5813, %v5811
    %v5906 = vpack.c.b16 %v5816, %v5814
    %v5907 = vpack.c.b16 %v5817, %v5815
    %v5908 = vpack.c.b16 %v5820, %v5818
    %v5909 = vpack.c.b16 %v5821, %v5819
    %v5910 = vpack.c.b16 %v5824, %v5822
    %v5911 = vpack.c.b16 %v5825, %v5823
    %v5912 = vpack.c.b16 %v5828, %v5826
    %v5913 = vpack.c.b16 %v5829, %v5827
    %v5914 = vpack.c.b16 %v5832, %v5830
    %v5915 = vpack.c.b16 %v5833, %v5831
    %v5916 = vpack.c.b16 %v5836, %v5834
    %v5917 = vpack.c.b16 %v5837, %v5835
    %v5918 = vpack.c.b16 %v5840, %v5838
    %v5919 = vpack.c.b16 %v5841, %v5839
    %v5920 = vpack.c.b16 %v5844, %v5842
    %v5921 = vpack.c.b16 %v5845, %v5843
    %v5922 = vpack.c.b16 %v5848, %v5846
    %v5923 = vpack.c.b16 %v5849, %v5847
    %v5924 = vpack.c.b16 %v5852, %v5850
    %v5925 = vpack.c.b16 %v5853, %v5851
    %v5926 = vpack.c.b16 %v5856, %v5854
    %v5927 = vpack.c.b16 %v5857, %v5855
    %v5928 = vpack.c.b16 %v5860, %v5858
    %v5929 = vpack.c.b16 %v5861, %v5859
    %v5930 = vpack.c.b16 %v5864, %v5862
    %v5931 = vpack.c.b16 %v5865, %v5863
    %v5932 = vpack.c.b16 %v5868, %v5866
    %v5933 = vpack.c.b16 %v5869, %v5867
    %5998 = vmatprep.subr.bf16.mxu0 %v5871
    %5999 = vmatpush1.bf16.msra.mxu0 %v5870
    %6000 = vmatprep.subr.bf16.mxu0 %v5873
    %6001 = vmatpush1.bf16.msra.mxu0 %v5872
    %6002 = vmatprep.subr.bf16.mxu0 %v5875
    %6003 = vmatpush1.bf16.msra.mxu0 %v5874
    %6004 = vmatprep.subr.bf16.mxu0 %v5877
    %6005 = vmatpush1.bf16.msra.mxu0 %v5876
    %6006 = vmatprep.subr.bf16.mxu0 %v5879
    %6007 = vmatpush1.bf16.msra.mxu0 %v5878
    %6008 = vmatprep.subr.bf16.mxu0 %v5881
    %6009 = vmatpush1.bf16.msra.mxu0 %v5880
    %6010 = vmatprep.subr.bf16.mxu0 %v5883
    %6011 = vmatpush1.bf16.msra.mxu0 %v5882
    %6012 = vmatprep.subr.bf16.mxu0 %v5885
    %6013 = vmatpush1.bf16.msra.mxu0 %v5884
    %6014 = vmatprep.subr.bf16.mxu0 %v5887
    %6015 = vmatpush1.bf16.msra.mxu0 %v5886
    %6016 = vmatprep.subr.bf16.mxu0 %v5889
    %6017 = vmatpush1.bf16.msra.mxu0 %v5888
    %6018 = vmatprep.subr.bf16.mxu0 %v5891
    %6019 = vmatpush1.bf16.msra.mxu0 %v5890
    %6020 = vmatprep.subr.bf16.mxu0 %v5893
    %6021 = vmatpush1.bf16.msra.mxu0 %v5892
    %6022 = vmatprep.subr.bf16.mxu0 %v5895
    %6023 = vmatpush1.bf16.msra.mxu0 %v5894
    %6024 = vmatprep.subr.bf16.mxu0 %v5897
    %6025 = vmatpush1.bf16.msra.mxu0 %v5896
    %6026 = vmatprep.subr.bf16.mxu0 %v5899
    %6027 = vmatpush1.bf16.msra.mxu0 %v5898
    %6028 = vmatprep.subr.bf16.mxu0 %v5901
    %6029 = vmatpush1.bf16.msra.mxu0 %v5900
    %6030 = vmatprep.mubr.bf16.mxu0 %v5599
    %6031 = vmatmul.mubr.bf16.gmra.mrb[0].mxu0 %v5598
    %v6032 = vpop.f32.mrb[0].mxu0
    %v6033 = vadd.f32 %v5671, %v6032
    %v6034 = vpop.f32.mrb[0].mxu0
    %v6035 = vadd.f32 %v5675, %v6034
    %v6036 = vpop.f32.mrb[0].mxu0
    %v6037 = vpop.f32.mrb[0].mxu0
    %6038 = vdwg.mxu0
    %6039 = vmatprep.subr.bf16.mxu0 %v5903
    %6040 = vmatpush1.bf16.msra.mxu0 %v5902
    %6041 = vmatprep.subr.bf16.mxu0 %v5905
    %6042 = vmatpush1.bf16.msra.mxu0 %v5904
    %6043 = vmatprep.subr.bf16.mxu0 %v5907
    %6044 = vmatpush1.bf16.msra.mxu0 %v5906
    %6045 = vmatprep.subr.bf16.mxu0 %v5909
    %6046 = vmatpush1.bf16.msra.mxu0 %v5908
    %6047 = vmatprep.subr.bf16.mxu0 %v5911
    %6048 = vmatpush1.bf16.msra.mxu0 %v5910
    %6049 = vmatprep.subr.bf16.mxu0 %v5913
    %6050 = vmatpush1.bf16.msra.mxu0 %v5912
    %6051 = vmatprep.subr.bf16.mxu0 %v5915
    %6052 = vmatpush1.bf16.msra.mxu0 %v5914
    %6053 = vmatprep.subr.bf16.mxu0 %v5917
    %6054 = vmatpush1.bf16.msra.mxu0 %v5916
    %6055 = vmatprep.subr.bf16.mxu0 %v5919
    %6056 = vmatpush1.bf16.msra.mxu0 %v5918
    %6057 = vmatprep.subr.bf16.mxu0 %v5921
    %6058 = vmatpush1.bf16.msra.mxu0 %v5920
    %6059 = vmatprep.subr.bf16.mxu0 %v5923
    %6060 = vmatpush1.bf16.msra.mxu0 %v5922
    %6061 = vmatprep.subr.bf16.mxu0 %v5925
    %6062 = vmatpush1.bf16.msra.mxu0 %v5924
    %6063 = vmatprep.subr.bf16.mxu0 %v5927
    %6064 = vmatpush1.bf16.msra.mxu0 %v5926
    %6065 = vmatprep.subr.bf16.mxu0 %v5929
    %6066 = vmatpush1.bf16.msra.mxu0 %v5928
    %6067 = vmatprep.subr.bf16.mxu0 %v5931
    %6068 = vmatpush1.bf16.msra.mxu0 %v5930
    %6069 = vmatprep.subr.bf16.mxu0 %v5933
    %6070 = vmatpush1.bf16.msra.mxu0 %v5932
    %6071 = vmatprep.mubr.bf16.mxu0 %v5601
    %6072 = vmatmul.mubr.bf16.gmra.mrb[0].mxu0 %v5600
    %v6073 = vpop.f32.mrb[0].mxu0
    %v6074 = vadd.f32 %v6033, %v6073
    %v6075 = vpop.f32.mrb[0].mxu0
    %v6076 = vadd.f32 %v6035, %v6075
    %v6077 = vpop.f32.mrb[0].mxu0
    %v6078 = vpop.f32.mrb[0].mxu0
    %6079 = vdwg.mxu0
    %vm6080 = vcmp.gt.f32.partialorder %v6074, 0.0
    %vm6081 = vcmp.gt.f32.partialorder %v6076, 0.0
    %v6082 = vmul.f32 %v6074, 0.01
    %v6083 = vmul.f32 %v6076, 0.01
    %v6084 = vsel %vm6080, %v6074, %v6082
    %v6085 = vsel %vm6081, %v6076, %v6083
    %6087 = vrot.lane.b32.xlu0 %v6084, 64
    %v6088 = vpop.permute.xlu0 %6087
    %v6090 = vmax.f32 %v6084, %v6088
    %6092 = vrot.lane.b32.xlu0 %v6085, 64
    %v6093 = vpop.permute.xlu0 %6092
    %v6095 = vmax.f32 %v6085, %v6093
    %v6096 = vmax.f32 %v6090, %v6095
    %v6097 = vld [vmem:[%s1] sm:$0xff]
    %v6098 = vld [vmem:[%s1 + $0x8] sm:$0xff]
    %v6099 = vld [vmem:[%s1 + $0x10] sm:$0xff]
    %v6100 = vld [vmem:[%s1 + $0x18] sm:$0xff]
    %v6101 = vld [vmem:[%s1 + $0x20] sm:$0xff]
    %v6102 = vld [vmem:[%s1 + $0x28] sm:$0xff]
    %v6103 = vld [vmem:[%s1 + $0x30] sm:$0xff]
    %v6104 = vld [vmem:[%s1 + $0x38] sm:$0xff]
    %v6105 = vld [vmem:[%s1 + $0x40] sm:$0xff]
    %v6106 = vld [vmem:[%s1 + $0x48] sm:$0xff]
    %v6107 = vld [vmem:[%s1 + $0x50] sm:$0xff]
    %v6108 = vld [vmem:[%s1 + $0x58] sm:$0xff]
    %v6109 = vld [vmem:[%s1 + $0x60] sm:$0xff]
    %v6110 = vld [vmem:[%s1 + $0x68] sm:$0xff]
    %v6111 = vld [vmem:[%s1 + $0x70] sm:$0xff]
    %v6112 = vld [vmem:[%s1 + $0x78] sm:$0xff]
    %v6113 = vld [vmem:[%s1 + $0x80] sm:$0xff]
    %v6114 = vld [vmem:[%s1 + $0x88] sm:$0xff]
    %v6115 = vld [vmem:[%s1 + $0x90] sm:$0xff]
    %v6116 = vld [vmem:[%s1 + $0x98] sm:$0xff]
    %v6117 = vld [vmem:[%s1 + $0xa0] sm:$0xff]
    %v6118 = vld [vmem:[%s1 + $0xa8] sm:$0xff]
    %v6119 = vld [vmem:[%s1 + $0xb0] sm:$0xff]
    %v6120 = vld [vmem:[%s1 + $0xb8] sm:$0xff]
    %v6121 = vld [vmem:[%s1 + $0xc0] sm:$0xff]
    %v6122 = vld [vmem:[%s1 + $0xc8] sm:$0xff]
    %v6123 = vld [vmem:[%s1 + $0xd0] sm:$0xff]
    %v6124 = vld [vmem:[%s1 + $0xd8] sm:$0xff]
    %v6125 = vld [vmem:[%s1 + $0xe0] sm:$0xff]
    %v6126 = vld [vmem:[%s1 + $0xe8] sm:$0xff]
    %v6127 = vld [vmem:[%s1 + $0xf0] sm:$0xff]
    %v6128 = vld [vmem:[%s1 + $0xf8] sm:$0xff]
    %v6129 = vld [vmem:[%s1 + $0x100] sm:$0xff]
    %v6130 = vld [vmem:[%s1 + $0x108] sm:$0xff]
    %v6131 = vld [vmem:[%s1 + $0x110] sm:$0xff]
    %v6132 = vld [vmem:[%s1 + $0x118] sm:$0xff]
    %v6133 = vld [vmem:[%s1 + $0x120] sm:$0xff]
    %v6134 = vld [vmem:[%s1 + $0x128] sm:$0xff]
    %v6135 = vld [vmem:[%s1 + $0x130] sm:$0xff]
    %v6136 = vld [vmem:[%s1 + $0x138] sm:$0xff]
    %v6137 = vpack.c.bf16 %v6098, %v6097
    %v6138 = vpack.c.bf16 %v6100, %v6099
    %v6139 = vpack.c.bf16 %v6102, %v6101
    %v6140 = vpack.c.bf16 %v6104, %v6103
    %v6141 = vpack.c.bf16 %v6106, %v6105
    %v6142 = vpack.c.bf16 %v6108, %v6107
    %v6143 = vpack.c.bf16 %v6110, %v6109
    %v6144 = vpack.c.bf16 %v6112, %v6111
    %v6145 = vpack.c.bf16 %v6114, %v6113
    %v6146 = vpack.c.bf16 %v6116, %v6115
    %v6147 = vpack.c.bf16 %v6118, %v6117
    %v6148 = vpack.c.bf16 %v6120, %v6119
    %v6149 = vpack.c.bf16 %v6122, %v6121
    %v6150 = vpack.c.bf16 %v6124, %v6123
    %v6151 = vpack.c.bf16 %v6126, %v6125
    %v6152 = vpack.c.bf16 %v6128, %v6127
    %v6153 = vpack.c.bf16 %v6130, %v6129
    %v6154 = vpack.c.bf16 %v6132, %v6131
    %v6155 = vpack.c.bf16 %v6134, %v6133
    %v6156 = vpack.c.bf16 %v6136, %v6135
    %v6157 = vld [vmem:[#allocation10] sm:$0xf]
    %v6158 = vld [vmem:[#allocation10 + $0x4] sm:$0xf]
    %v6159 = vld [vmem:[#allocation12] sm:$0x1]
    %v6161 = vlaneseq
    %v6162 = vshrl.u32 %v6161, 7
    %v6163 = vsub.s32 0, %v6162
    %v6164 = vrot.slane %v6159, %v6163
    %v6168 = vunpack.c.l.b16 %v6157
    %v6169 = vunpack.c.l.b16 %v6158
    %v6170 = vpack.c.b16 %v6169, %v6168
    %vm6172 = vcmask 130048
    %v6174 = vsel %vm6172, %v6137, 0
    %v6177 = vsel %vm6172, %v6138, 0
    %v6180 = vsel %vm6172, %v6139, 0
    %v6183 = vsel %vm6172, %v6140, 0
    %v6186 = vsel %vm6172, %v6141, 0
    %v6189 = vsel %vm6172, %v6142, 0
    %v6192 = vsel %vm6172, %v6143, 0
    %v6195 = vsel %vm6172, %v6144, 0
    %v6198 = vsel %vm6172, %v6145, 0
    %v6201 = vsel %vm6172, %v6146, 0
    %v6204 = vsel %vm6172, %v6147, 0
    %v6207 = vsel %vm6172, %v6148, 0
    %v6210 = vsel %vm6172, %v6149, 0
    %v6213 = vsel %vm6172, %v6150, 0
    %v6216 = vsel %vm6172, %v6151, 0
    %v6219 = vsel %vm6172, %v6152, 0
    %v6222 = vsel %vm6172, %v6153, 0
    %v6225 = vsel %vm6172, %v6154, 0
    %v6228 = vsel %vm6172, %v6155, 0
    %v6231 = vsel %vm6172, %v6156, 0
    %6233 = vmatprep.subr.bf16.mxu0 0
    %6234 = vmatpush1.bf16.msra.mxu0 %v6170
    %6235 = vmatprep.subr.bf16.mxu0 0
    %6236 = vmatpush1.bf16.msra.mxu0 0
    %6237 = vmatprep.subr.bf16.mxu0 0
    %6238 = vmatpush1.bf16.msra.mxu0 0
    %6239 = vmatprep.subr.bf16.mxu0 0
    %6240 = vmatpush1.bf16.msra.mxu0 0
    %6241 = vmatprep.subr.bf16.mxu0 0
    %6242 = vmatpush1.bf16.msra.mxu0 0
    %6243 = vmatprep.subr.bf16.mxu0 0
    %6244 = vmatpush1.bf16.msra.mxu0 0
    %6245 = vmatprep.subr.bf16.mxu0 0
    %6246 = vmatpush1.bf16.msra.mxu0 0
    %6247 = vmatprep.subr.bf16.mxu0 0
    %6248 = vmatpush1.bf16.msra.mxu0 0
    %6249 = vmatprep.subr.bf16.mxu0 0
    %6250 = vmatpush1.bf16.msra.mxu0 0
    %6251 = vmatprep.subr.bf16.mxu0 0
    %6252 = vmatpush1.bf16.msra.mxu0 0
    %6253 = vmatprep.subr.bf16.mxu0 0
    %6254 = vmatpush1.bf16.msra.mxu0 0
    %6255 = vmatprep.subr.bf16.mxu0 0
    %6256 = vmatpush1.bf16.msra.mxu0 0
    %6257 = vmatprep.subr.bf16.mxu0 0
    %6258 = vmatpush1.bf16.msra.mxu0 0
    %6259 = vmatprep.subr.bf16.mxu0 0
    %6260 = vmatpush1.bf16.msra.mxu0 0
    %6261 = vmatprep.subr.bf16.mxu0 0
    %6262 = vmatpush1.bf16.msra.mxu0 0
    %6263 = vmatprep.subr.bf16.mxu0 0
    %6264 = vmatpush1.bf16.msra.mxu0 0
    %6265 = vmatprep.mubr.bf16.mxu0 0
    %6266 = vmatmul.mubr.bf16.gmra.mrb[0].mxu0 %v6174
    %v6267 = vpop.f32.mrb[0].mxu0
    %v6268 = vadd.f32 %v6164, %v6267
    %v6269 = vpop.f32.mrb[0].mxu0
    %v6270 = vpop.f32.mrb[0].mxu0
    %v6271 = vadd.f32 %v6164, %v6270
    %v6272 = vpop.f32.mrb[0].mxu0
    %6273 = vmatprep.mubr.bf16.mxu0 0
    %6274 = vmatmul.mubr.bf16.gmra.mrb[0].mxu0 %v6177
    %v6275 = vpop.f32.mrb[0].mxu0
    %v6276 = vadd.f32 %v6164, %v6275
    %v6277 = vpop.f32.mrb[0].mxu0
    %v6278 = vpop.f32.mrb[0].mxu0
    %v6279 = vadd.f32 %v6164, %v6278
    %v6280 = vpop.f32.mrb[0].mxu0
    %6281 = vmatprep.mubr.bf16.mxu0 0
    %6282 = vmatmul.mubr.bf16.gmra.mrb[0].mxu0 %v6180
    %v6283 = vpop.f32.mrb[0].mxu0
    %v6284 = vadd.f32 %v6164, %v6283
    %v6285 = vpop.f32.mrb[0].mxu0
    %v6286 = vpop.f32.mrb[0].mxu0
    %v6287 = vadd.f32 %v6164, %v6286
    %v6288 = vpop.f32.mrb[0].mxu0
    %6289 = vmatprep.mubr.bf16.mxu0 0
    %6290 = vmatmul.mubr.bf16.gmra.mrb[0].mxu0 %v6183
    %v6291 = vpop.f32.mrb[0].mxu0
    %v6292 = vadd.f32 %v6164, %v6291
    %v6293 = vpop.f32.mrb[0].mxu0
    %v6294 = vpop.f32.mrb[0].mxu0
    %v6295 = vadd.f32 %v6164, %v6294
    %v6296 = vpop.f32.mrb[0].mxu0
    %6297 = vmatprep.mubr.bf16.mxu0 0
    %6298 = vmatmul.mubr.bf16.gmra.mrb[0].mxu0 %v6186
    %v6299 = vpop.f32.mrb[0].mxu0
    %v6300 = vadd.f32 %v6164, %v6299
    %v6301 = vpop.f32.mrb[0].mxu0
    %v6302 = vpop.f32.mrb[0].mxu0
    %v6303 = vadd.f32 %v6164, %v6302
    %v6304 = vpop.f32.mrb[0].mxu0
    %6305 = vmatprep.mubr.bf16.mxu0 0
    %6306 = vmatmul.mubr.bf16.gmra.mrb[0].mxu0 %v6189
    %v6307 = vpop.f32.mrb[0].mxu0
    %v6308 = vadd.f32 %v6164, %v6307
    %v6309 = vpop.f32.mrb[0].mxu0
    %v6310 = vpop.f32.mrb[0].mxu0
    %v6311 = vadd.f32 %v6164, %v6310
    %v6312 = vpop.f32.mrb[0].mxu0
    %6313 = vmatprep.mubr.bf16.mxu0 0
    %6314 = vmatmul.mubr.bf16.gmra.mrb[0].mxu0 %v6192
    %v6315 = vpop.f32.mrb[0].mxu0
    %v6316 = vadd.f32 %v6164, %v6315
    %v6317 = vpop.f32.mrb[0].mxu0
    %v6318 = vpop.f32.mrb[0].mxu0
    %v6319 = vadd.f32 %v6164, %v6318
    %v6320 = vpop.f32.mrb[0].mxu0
    %6321 = vmatprep.mubr.bf16.mxu0 0
    %6322 = vmatmul.mubr.bf16.gmra.mrb[0].mxu0 %v6195
    %v6323 = vpop.f32.mrb[0].mxu0
    %v6324 = vadd.f32 %v6164, %v6323
    %v6325 = vpop.f32.mrb[0].mxu0
    %v6326 = vpop.f32.mrb[0].mxu0
    %v6327 = vadd.f32 %v6164, %v6326
    %v6328 = vpop.f32.mrb[0].mxu0
    %6329 = vmatprep.mubr.bf16.mxu0 0
    %6330 = vmatmul.mubr.bf16.gmra.mrb[0].mxu0 %v6198
    %v6331 = vpop.f32.mrb[0].mxu0
    %v6332 = vadd.f32 %v6164, %v6331
    %v6333 = vpop.f32.mrb[0].mxu0
    %v6334 = vpop.f32.mrb[0].mxu0
    %v6335 = vadd.f32 %v6164, %v6334
    %v6336 = vpop.f32.mrb[0].mxu0
    %6337 = vmatprep.mubr.bf16.mxu0 0
    %6338 = vmatmul.mubr.bf16.gmra.mrb[0].mxu0 %v6201
    %v6339 = vpop.f32.mrb[0].mxu0
    %v6340 = vadd.f32 %v6164, %v6339
    %v6341 = vpop.f32.mrb[0].mxu0
    %v6342 = vpop.f32.mrb[0].mxu0
    %v6343 = vadd.f32 %v6164, %v6342
    %v6344 = vpop.f32.mrb[0].mxu0
    %6345 = vmatprep.mubr.bf16.mxu0 0
    %6346 = vmatmul.mubr.bf16.gmra.mrb[0].mxu0 %v6204
    %v6347 = vpop.f32.mrb[0].mxu0
    %v6348 = vadd.f32 %v6164, %v6347
    %v6349 = vpop.f32.mrb[0].mxu0
    %v6350 = vpop.f32.mrb[0].mxu0
    %v6351 = vadd.f32 %v6164, %v6350
    %v6352 = vpop.f32.mrb[0].mxu0
    %6353 = vmatprep.mubr.bf16.mxu0 0
    %6354 = vmatmul.mubr.bf16.gmra.mrb[0].mxu0 %v6207
    %v6355 = vpop.f32.mrb[0].mxu0
    %v6356 = vadd.f32 %v6164, %v6355
    %v6357 = vpop.f32.mrb[0].mxu0
    %v6358 = vpop.f32.mrb[0].mxu0
    %v6359 = vadd.f32 %v6164, %v6358
    %v6360 = vpop.f32.mrb[0].mxu0
    %6361 = vmatprep.mubr.bf16.mxu0 0
    %6362 = vmatmul.mubr.bf16.gmra.mrb[0].mxu0 %v6210
    %v6363 = vpop.f32.mrb[0].mxu0
    %v6364 = vadd.f32 %v6164, %v6363
    %v6365 = vpop.f32.mrb[0].mxu0
    %v6366 = vpop.f32.mrb[0].mxu0
    %v6367 = vadd.f32 %v6164, %v6366
    %v6368 = vpop.f32.mrb[0].mxu0
    %6369 = vmatprep.mubr.bf16.mxu0 0
    %6370 = vmatmul.mubr.bf16.gmra.mrb[0].mxu0 %v6213
    %v6371 = vpop.f32.mrb[0].mxu0
    %v6372 = vadd.f32 %v6164, %v6371
    %v6373 = vpop.f32.mrb[0].mxu0
    %v6374 = vpop.f32.mrb[0].mxu0
    %v6375 = vadd.f32 %v6164, %v6374
    %v6376 = vpop.f32.mrb[0].mxu0
    %6377 = vmatprep.mubr.bf16.mxu0 0
    %6378 = vmatmul.mubr.bf16.gmra.mrb[0].mxu0 %v6216
    %v6379 = vpop.f32.mrb[0].mxu0
    %v6380 = vadd.f32 %v6164, %v6379
    %v6381 = vpop.f32.mrb[0].mxu0
    %v6382 = vpop.f32.mrb[0].mxu0
    %v6383 = vadd.f32 %v6164, %v6382
    %v6384 = vpop.f32.mrb[0].mxu0
    %6385 = vmatprep.mubr.bf16.mxu0 0
    %6386 = vmatmul.mubr.bf16.gmra.mrb[0].mxu0 %v6219
    %v6387 = vpop.f32.mrb[0].mxu0
    %v6388 = vadd.f32 %v6164, %v6387
    %v6389 = vpop.f32.mrb[0].mxu0
    %v6390 = vpop.f32.mrb[0].mxu0
    %v6391 = vadd.f32 %v6164, %v6390
    %v6392 = vpop.f32.mrb[0].mxu0
    %6393 = vmatprep.mubr.bf16.mxu0 0
    %6394 = vmatmul.mubr.bf16.gmra.mrb[0].mxu0 %v6222
    %v6395 = vpop.f32.mrb[0].mxu0
    %v6396 = vadd.f32 %v6164, %v6395
    %v6397 = vpop.f32.mrb[0].mxu0
    %v6398 = vpop.f32.mrb[0].mxu0
    %v6399 = vadd.f32 %v6164, %v6398
    %v6400 = vpop.f32.mrb[0].mxu0
    %6401 = vmatprep.mubr.bf16.mxu0 0
    %6402 = vmatmul.mubr.bf16.gmra.mrb[0].mxu0 %v6225
    %v6403 = vpop.f32.mrb[0].mxu0
    %v6404 = vadd.f32 %v6164, %v6403
    %v6405 = vpop.f32.mrb[0].mxu0
    %v6406 = vpop.f32.mrb[0].mxu0
    %v6407 = vadd.f32 %v6164, %v6406
    %v6408 = vpop.f32.mrb[0].mxu0
    %6409 = vmatprep.mubr.bf16.mxu0 0
    %6410 = vmatmul.mubr.bf16.gmra.mrb[0].mxu0 %v6228
    %v6411 = vpop.f32.mrb[0].mxu0
    %v6412 = vadd.f32 %v6164, %v6411
    %v6413 = vpop.f32.mrb[0].mxu0
    %v6414 = vpop.f32.mrb[0].mxu0
    %v6415 = vadd.f32 %v6164, %v6414
    %v6416 = vpop.f32.mrb[0].mxu0
    %6417 = vmatprep.mubr.bf16.mxu0 0
    %6418 = vmatmul.mubr.bf16.gmra.mrb[0].mxu0 %v6231
    %v6419 = vpop.f32.mrb[0].mxu0
    %v6420 = vadd.f32 %v6164, %v6419
    %v6421 = vpop.f32.mrb[0].mxu0
    %v6422 = vpop.f32.mrb[0].mxu0
    %v6423 = vadd.f32 %v6164, %v6422
    %v6424 = vpop.f32.mrb[0].mxu0
    %6425 = vdwg.mxu0
    %v6426 = vmax.f32 %v6268, 0.0
    %v6427 = vmax.f32 %v6271, 0.0
    %v6428 = vmax.f32 %v6276, 0.0
    %v6429 = vmax.f32 %v6279, 0.0
    %v6430 = vmax.f32 %v6284, 0.0
    %v6431 = vmax.f32 %v6287, 0.0
    %v6432 = vmax.f32 %v6292, 0.0
    %v6433 = vmax.f32 %v6295, 0.0
    %v6434 = vmax.f32 %v6300, 0.0
    %v6435 = vmax.f32 %v6303, 0.0
    %v6436 = vmax.f32 %v6308, 0.0
    %v6437 = vmax.f32 %v6311, 0.0
    %v6438 = vmax.f32 %v6316, 0.0
    %v6439 = vmax.f32 %v6319, 0.0
    %v6440 = vmax.f32 %v6324, 0.0
    %v6441 = vmax.f32 %v6327, 0.0
    %v6442 = vmax.f32 %v6332, 0.0
    %v6443 = vmax.f32 %v6335, 0.0
    %v6444 = vmax.f32 %v6340, 0.0
    %v6445 = vmax.f32 %v6343, 0.0
    %v6446 = vmax.f32 %v6348, 0.0
    %v6447 = vmax.f32 %v6351, 0.0
    %v6448 = vmax.f32 %v6356, 0.0
    %v6449 = vmax.f32 %v6359, 0.0
    %v6450 = vmax.f32 %v6364, 0.0
    %v6451 = vmax.f32 %v6367, 0.0
    %v6452 = vmax.f32 %v6372, 0.0
    %v6453 = vmax.f32 %v6375, 0.0
    %v6454 = vmax.f32 %v6380, 0.0
    %v6455 = vmax.f32 %v6383, 0.0
    %v6456 = vmax.f32 %v6388, 0.0
    %v6457 = vmax.f32 %v6391, 0.0
    %v6458 = vmax.f32 %v6396, 0.0
    %v6459 = vmax.f32 %v6399, 0.0
    %v6460 = vmax.f32 %v6404, 0.0
    %v6461 = vmax.f32 %v6407, 0.0
    %v6462 = vmax.f32 %v6412, 0.0
    %v6463 = vmax.f32 %v6415, 0.0
    %v6464 = vmax.f32 %v6420, 0.0
    %v6465 = vmax.f32 %v6423, 0.0
    %v6466 = vpack.c.bf16 %v6427, %v6426
    %v6467 = vpack.c.bf16 %v6429, %v6428
    %v6468 = vpack.c.bf16 %v6431, %v6430
    %v6469 = vpack.c.bf16 %v6433, %v6432
    %v6470 = vpack.c.bf16 %v6435, %v6434
    %v6471 = vpack.c.bf16 %v6437, %v6436
    %v6472 = vpack.c.bf16 %v6439, %v6438
    %v6473 = vpack.c.bf16 %v6441, %v6440
    %v6474 = vpack.c.bf16 %v6443, %v6442
    %v6475 = vpack.c.bf16 %v6445, %v6444
    %v6476 = vpack.c.bf16 %v6447, %v6446
    %v6477 = vpack.c.bf16 %v6449, %v6448
    %v6478 = vpack.c.bf16 %v6451, %v6450
    %v6479 = vpack.c.bf16 %v6453, %v6452
    %v6480 = vpack.c.bf16 %v6455, %v6454
    %v6481 = vpack.c.bf16 %v6457, %v6456
    %v6482 = vpack.c.bf16 %v6459, %v6458
    %v6483 = vpack.c.bf16 %v6461, %v6460
    %v6484 = vpack.c.bf16 %v6463, %v6462
    %v6485 = vpack.c.bf16 %v6465, %v6464
    %v6486 = vld [vmem:[%s9] sm:$0xf]
    %v6487 = vld [vmem:[%s9 + $0x4] sm:$0xf]
    %v6488 = vld [vmem:[%s9 + $0x8] sm:$0xf]
    %v6489 = vld [vmem:[%s9 + $0xc] sm:$0xf]
    %v6490 = vld [vmem:[%s9 + $0x10] sm:$0xf]
    %v6491 = vld [vmem:[%s9 + $0x14] sm:$0xf]
    %v6492 = vld [vmem:[%s9 + $0x18] sm:$0xf]
    %v6493 = vld [vmem:[%s9 + $0x1c] sm:$0xf]
    %v6494 = vld [vmem:[#allocation13] sm:$0x1]
    %v6496 = vlaneseq
    %v6497 = vshrl.u32 %v6496, 7
    %v6498 = vsub.s32 0, %v6497
    %v6499 = vrot.slane %v6494, %v6498
    %v6509 = vunpack.c.l.b16 %v6486
    %v6510 = vunpack.c.l.b16 %v6487
    %v6511 = vunpack.c.l.b16 %v6488
    %v6512 = vunpack.c.l.b16 %v6489
    %v6513 = vunpack.c.l.b16 %v6490
    %v6514 = vunpack.c.l.b16 %v6491
    %v6515 = vunpack.c.l.b16 %v6492
    %v6516 = vunpack.c.l.b16 %v6493
    %v6517 = vpack.c.b16 %v6510, %v6509
    %v6518 = vpack.c.b16 %v6512, %v6511
    %v6519 = vpack.c.b16 %v6514, %v6513
    %v6520 = vpack.c.b16 %v6516, %v6515
    %vm6525 = vcmask 523264
    %v6527 = vsel %vm6525, %v6466, 0
    %v6530 = vsel %vm6525, %v6467, 0
    %v6533 = vsel %vm6525, %v6468, 0
    %v6536 = vsel %vm6525, %v6469, 0
    %v6539 = vsel %vm6525, %v6470, 0
    %v6542 = vsel %vm6525, %v6471, 0
    %v6545 = vsel %vm6525, %v6472, 0
    %v6548 = vsel %vm6525, %v6473, 0
    %v6551 = vsel %vm6525, %v6474, 0
    %v6554 = vsel %vm6525, %v6475, 0
    %v6557 = vsel %vm6525, %v6476, 0
    %v6560 = vsel %vm6525, %v6477, 0
    %v6563 = vsel %vm6525, %v6478, 0
    %v6566 = vsel %vm6525, %v6479, 0
    %v6569 = vsel %vm6525, %v6480, 0
    %v6572 = vsel %vm6525, %v6481, 0
    %v6575 = vsel %vm6525, %v6482, 0
    %v6578 = vsel %vm6525, %v6483, 0
    %v6581 = vsel %vm6525, %v6484, 0
    %v6584 = vsel %vm6525, %v6485, 0
    %6586 = vmatprep.subr.bf16.mxu0 0
    %6587 = vmatpush1.bf16.msra.mxu0 %v6517
    %6588 = vmatprep.subr.bf16.mxu0 0
    %6589 = vmatpush1.bf16.msra.mxu0 %v6518
    %6590 = vmatprep.subr.bf16.mxu0 0
    %6591 = vmatpush1.bf16.msra.mxu0 %v6519
    %6592 = vmatprep.subr.bf16.mxu0 0
    %6593 = vmatpush1.bf16.msra.mxu0 %v6520
    %6594 = vmatprep.subr.bf16.mxu0 0
    %6595 = vmatpush1.bf16.msra.mxu0 0
    %6596 = vmatprep.subr.bf16.mxu0 0
    %6597 = vmatpush1.bf16.msra.mxu0 0
    %6598 = vmatprep.subr.bf16.mxu0 0
    %6599 = vmatpush1.bf16.msra.mxu0 0
    %6600 = vmatprep.subr.bf16.mxu0 0
    %6601 = vmatpush1.bf16.msra.mxu0 0
    %6602 = vmatprep.subr.bf16.mxu0 0
    %6603 = vmatpush1.bf16.msra.mxu0 0
    %6604 = vmatprep.subr.bf16.mxu0 0
    %6605 = vmatpush1.bf16.msra.mxu0 0
    %6606 = vmatprep.subr.bf16.mxu0 0
    %6607 = vmatpush1.bf16.msra.mxu0 0
    %6608 = vmatprep.subr.bf16.mxu0 0
    %6609 = vmatpush1.bf16.msra.mxu0 0
    %6610 = vmatprep.subr.bf16.mxu0 0
    %6611 = vmatpush1.bf16.msra.mxu0 0
    %6612 = vmatprep.subr.bf16.mxu0 0
    %6613 = vmatpush1.bf16.msra.mxu0 0
    %6614 = vmatprep.subr.bf16.mxu0 0
    %6615 = vmatpush1.bf16.msra.mxu0 0
    %6616 = vmatprep.subr.bf16.mxu0 0
    %6617 = vmatpush1.bf16.msra.mxu0 0
    %6618 = vmatprep.mubr.bf16.mxu0 0
    %6619 = vmatmul.mubr.bf16.gmra.mrb[0].mxu0 %v6527
    %v6620 = vpop.f32.mrb[0].mxu0
    %v6621 = vadd.f32 %v6499, %v6620
    %v6622 = vpop.f32.mrb[0].mxu0
    %v6623 = vpop.f32.mrb[0].mxu0
    %v6624 = vadd.f32 %v6499, %v6623
    %v6625 = vpop.f32.mrb[0].mxu0
    %6626 = vmatprep.mubr.bf16.mxu0 0
    %6627 = vmatmul.mubr.bf16.gmra.mrb[0].mxu0 %v6530
    %v6628 = vpop.f32.mrb[0].mxu0
    %v6629 = vadd.f32 %v6499, %v6628
    %v6630 = vpop.f32.mrb[0].mxu0
    %v6631 = vpop.f32.mrb[0].mxu0
    %v6632 = vadd.f32 %v6499, %v6631
    %v6633 = vpop.f32.mrb[0].mxu0
    %6634 = vmatprep.mubr.bf16.mxu0 0
    %6635 = vmatmul.mubr.bf16.gmra.mrb[0].mxu0 %v6533
    %v6636 = vpop.f32.mrb[0].mxu0
    %v6637 = vadd.f32 %v6499, %v6636
    %v6638 = vpop.f32.mrb[0].mxu0
    %v6639 = vpop.f32.mrb[0].mxu0
    %v6640 = vadd.f32 %v6499, %v6639
    %v6641 = vpop.f32.mrb[0].mxu0
    %6642 = vmatprep.mubr.bf16.mxu0 0
    %6643 = vmatmul.mubr.bf16.gmra.mrb[0].mxu0 %v6536
    %v6644 = vpop.f32.mrb[0].mxu0
    %v6645 = vadd.f32 %v6499, %v6644
    %v6646 = vpop.f32.mrb[0].mxu0
    %v6647 = vpop.f32.mrb[0].mxu0
    %v6648 = vadd.f32 %v6499, %v6647
    %v6649 = vpop.f32.mrb[0].mxu0
    %6650 = vmatprep.mubr.bf16.mxu0 0
    %6651 = vmatmul.mubr.bf16.gmra.mrb[0].mxu0 %v6539
    %v6652 = vpop.f32.mrb[0].mxu0
    %v6653 = vadd.f32 %v6499, %v6652
    %v6654 = vpop.f32.mrb[0].mxu0
    %v6655 = vpop.f32.mrb[0].mxu0
    %v6656 = vadd.f32 %v6499, %v6655
    %v6657 = vpop.f32.mrb[0].mxu0
    %6658 = vmatprep.mubr.bf16.mxu0 0
    %6659 = vmatmul.mubr.bf16.gmra.mrb[0].mxu0 %v6542
    %v6660 = vpop.f32.mrb[0].mxu0
    %v6661 = vadd.f32 %v6499, %v6660
    %v6662 = vpop.f32.mrb[0].mxu0
    %v6663 = vpop.f32.mrb[0].mxu0
    %v6664 = vadd.f32 %v6499, %v6663
    %v6665 = vpop.f32.mrb[0].mxu0
    %6666 = vmatprep.mubr.bf16.mxu0 0
    %6667 = vmatmul.mubr.bf16.gmra.mrb[0].mxu0 %v6545
    %v6668 = vpop.f32.mrb[0].mxu0
    %v6669 = vadd.f32 %v6499, %v6668
    %v6670 = vpop.f32.mrb[0].mxu0
    %v6671 = vpop.f32.mrb[0].mxu0
    %v6672 = vadd.f32 %v6499, %v6671
    %v6673 = vpop.f32.mrb[0].mxu0
    %6674 = vmatprep.mubr.bf16.mxu0 0
    %6675 = vmatmul.mubr.bf16.gmra.mrb[0].mxu0 %v6548
    %v6676 = vpop.f32.mrb[0].mxu0
    %v6677 = vadd.f32 %v6499, %v6676
    %v6678 = vpop.f32.mrb[0].mxu0
    %v6679 = vpop.f32.mrb[0].mxu0
    %v6680 = vadd.f32 %v6499, %v6679
    %v6681 = vpop.f32.mrb[0].mxu0
    %6682 = vmatprep.mubr.bf16.mxu0 0
    %6683 = vmatmul.mubr.bf16.gmra.mrb[0].mxu0 %v6551
    %v6684 = vpop.f32.mrb[0].mxu0
    %v6685 = vadd.f32 %v6499, %v6684
    %v6686 = vpop.f32.mrb[0].mxu0
    %v6687 = vpop.f32.mrb[0].mxu0
    %v6688 = vadd.f32 %v6499, %v6687
    %v6689 = vpop.f32.mrb[0].mxu0
    %6690 = vmatprep.mubr.bf16.mxu0 0
    %6691 = vmatmul.mubr.bf16.gmra.mrb[0].mxu0 %v6554
    %v6692 = vpop.f32.mrb[0].mxu0
    %v6693 = vadd.f32 %v6499, %v6692
    %v6694 = vpop.f32.mrb[0].mxu0
    %v6695 = vpop.f32.mrb[0].mxu0
    %v6696 = vadd.f32 %v6499, %v6695
    %v6697 = vpop.f32.mrb[0].mxu0
    %6698 = vmatprep.mubr.bf16.mxu0 0
    %6699 = vmatmul.mubr.bf16.gmra.mrb[0].mxu0 %v6557
    %v6700 = vpop.f32.mrb[0].mxu0
    %v6701 = vadd.f32 %v6499, %v6700
    %v6702 = vpop.f32.mrb[0].mxu0
    %v6703 = vpop.f32.mrb[0].mxu0
    %v6704 = vadd.f32 %v6499, %v6703
    %v6705 = vpop.f32.mrb[0].mxu0
    %6706 = vmatprep.mubr.bf16.mxu0 0
    %6707 = vmatmul.mubr.bf16.gmra.mrb[0].mxu0 %v6560
    %v6708 = vpop.f32.mrb[0].mxu0
    %v6709 = vadd.f32 %v6499, %v6708
    %v6710 = vpop.f32.mrb[0].mxu0
    %v6711 = vpop.f32.mrb[0].mxu0
    %v6712 = vadd.f32 %v6499, %v6711
    %v6713 = vpop.f32.mrb[0].mxu0
    %6714 = vmatprep.mubr.bf16.mxu0 0
    %6715 = vmatmul.mubr.bf16.gmra.mrb[0].mxu0 %v6563
    %v6716 = vpop.f32.mrb[0].mxu0
    %v6717 = vadd.f32 %v6499, %v6716
    %v6718 = vpop.f32.mrb[0].mxu0
    %v6719 = vpop.f32.mrb[0].mxu0
    %v6720 = vadd.f32 %v6499, %v6719
    %v6721 = vpop.f32.mrb[0].mxu0
    %6722 = vmatprep.mubr.bf16.mxu0 0
    %6723 = vmatmul.mubr.bf16.gmra.mrb[0].mxu0 %v6566
    %v6724 = vpop.f32.mrb[0].mxu0
    %v6725 = vadd.f32 %v6499, %v6724
    %v6726 = vpop.f32.mrb[0].mxu0
    %v6727 = vpop.f32.mrb[0].mxu0
    %v6728 = vadd.f32 %v6499, %v6727
    %v6729 = vpop.f32.mrb[0].mxu0
    %6730 = vmatprep.mubr.bf16.mxu0 0
    %6731 = vmatmul.mubr.bf16.gmra.mrb[0].mxu0 %v6569
    %v6732 = vpop.f32.mrb[0].mxu0
    %v6733 = vadd.f32 %v6499, %v6732
    %v6734 = vpop.f32.mrb[0].mxu0
    %v6735 = vpop.f32.mrb[0].mxu0
    %v6736 = vadd.f32 %v6499, %v6735
    %v6737 = vpop.f32.mrb[0].mxu0
    %6738 = vmatprep.mubr.bf16.mxu0 0
    %6739 = vmatmul.mubr.bf16.gmra.mrb[0].mxu0 %v6572
    %v6740 = vpop.f32.mrb[0].mxu0
    %v6741 = vadd.f32 %v6499, %v6740
    %v6742 = vpop.f32.mrb[0].mxu0
    %v6743 = vpop.f32.mrb[0].mxu0
    %v6744 = vadd.f32 %v6499, %v6743
    %v6745 = vpop.f32.mrb[0].mxu0
    %6746 = vmatprep.mubr.bf16.mxu0 0
    %6747 = vmatmul.mubr.bf16.gmra.mrb[0].mxu0 %v6575
    %v6748 = vpop.f32.mrb[0].mxu0
    %v6749 = vadd.f32 %v6499, %v6748
    %v6750 = vpop.f32.mrb[0].mxu0
    %v6751 = vpop.f32.mrb[0].mxu0
    %v6752 = vadd.f32 %v6499, %v6751
    %v6753 = vpop.f32.mrb[0].mxu0
    %6754 = vmatprep.mubr.bf16.mxu0 0
    %6755 = vmatmul.mubr.bf16.gmra.mrb[0].mxu0 %v6578
    %v6756 = vpop.f32.mrb[0].mxu0
    %v6757 = vadd.f32 %v6499, %v6756
    %v6758 = vpop.f32.mrb[0].mxu0
    %v6759 = vpop.f32.mrb[0].mxu0
    %v6760 = vadd.f32 %v6499, %v6759
    %v6761 = vpop.f32.mrb[0].mxu0
    %6762 = vmatprep.mubr.bf16.mxu0 0
    %6763 = vmatmul.mubr.bf16.gmra.mrb[0].mxu0 %v6581
    %v6764 = vpop.f32.mrb[0].mxu0
    %v6765 = vadd.f32 %v6499, %v6764
    %v6766 = vpop.f32.mrb[0].mxu0
    %v6767 = vpop.f32.mrb[0].mxu0
    %v6768 = vadd.f32 %v6499, %v6767
    %v6769 = vpop.f32.mrb[0].mxu0
    %6770 = vmatprep.mubr.bf16.mxu0 0
    %6771 = vmatmul.mubr.bf16.gmra.mrb[0].mxu0 %v6584
    %v6772 = vpop.f32.mrb[0].mxu0
    %v6773 = vadd.f32 %v6499, %v6772
    %v6774 = vpop.f32.mrb[0].mxu0
    %v6775 = vpop.f32.mrb[0].mxu0
    %v6776 = vadd.f32 %v6499, %v6775
    %v6777 = vpop.f32.mrb[0].mxu0
    %6778 = vdwg.mxu0
    %v6779 = vmax.f32 %v6621, 0.0
    %v6780 = vmax.f32 %v6624, 0.0
    %v6781 = vmax.f32 %v6629, 0.0
    %v6782 = vmax.f32 %v6632, 0.0
    %v6783 = vmax.f32 %v6637, 0.0
    %v6784 = vmax.f32 %v6640, 0.0
    %v6785 = vmax.f32 %v6645, 0.0
    %v6786 = vmax.f32 %v6648, 0.0
    %v6787 = vmax.f32 %v6653, 0.0
    %v6788 = vmax.f32 %v6656, 0.0
    %v6789 = vmax.f32 %v6661, 0.0
    %v6790 = vmax.f32 %v6664, 0.0
    %v6791 = vmax.f32 %v6669, 0.0
    %v6792 = vmax.f32 %v6672, 0.0
    %v6793 = vmax.f32 %v6677, 0.0
    %v6794 = vmax.f32 %v6680, 0.0
    %v6795 = vmax.f32 %v6685, 0.0
    %v6796 = vmax.f32 %v6688, 0.0
    %v6797 = vmax.f32 %v6693, 0.0
    %v6798 = vmax.f32 %v6696, 0.0
    %v6799 = vmax.f32 %v6701, 0.0
    %v6800 = vmax.f32 %v6704, 0.0
    %v6801 = vmax.f32 %v6709, 0.0
    %v6802 = vmax.f32 %v6712, 0.0
    %v6803 = vmax.f32 %v6717, 0.0
    %v6804 = vmax.f32 %v6720, 0.0
    %v6805 = vmax.f32 %v6725, 0.0
    %v6806 = vmax.f32 %v6728, 0.0
    %v6807 = vmax.f32 %v6733, 0.0
    %v6808 = vmax.f32 %v6736, 0.0
    %v6809 = vmax.f32 %v6741, 0.0
    %v6810 = vmax.f32 %v6744, 0.0
    %v6811 = vmax.f32 %v6749, 0.0
    %v6812 = vmax.f32 %v6752, 0.0
    %v6813 = vmax.f32 %v6757, 0.0
    %v6814 = vmax.f32 %v6760, 0.0
    %v6815 = vmax.f32 %v6765, 0.0
    %v6816 = vmax.f32 %v6768, 0.0
    %v6817 = vmax.f32 %v6773, 0.0
    %v6818 = vmax.f32 %v6776, 0.0
    %v6819 = vlaneseq
    %v6820 = vshrl.u32 %v6819, 7
    %v6821 = vadd.s32 %v6820, 8
    %v6822 = vadd.s32 %v6820, 16
    %v6823 = vadd.s32 %v6820, 24
    %v6824 = vadd.s32 %v6820, 32
    %vm6825 = vcmp.lt.s32.totalorder %v6820, 34
    %vm6826 = vcmp.lt.s32.totalorder %v6821, 34
    %vm6827 = vcmp.lt.s32.totalorder %v6822, 34
    %vm6828 = vcmp.lt.s32.totalorder %v6823, 34
    %vm6829 = vcmp.lt.s32.totalorder %v6824, 34
    %v6830 = vsel %vm6825, %v6779, -inf
    %v6831 = vsel %vm6826, %v6780, -inf
    %v6832 = vsel %vm6827, %v6781, -inf
    %v6833 = vsel %vm6828, %v6782, -inf
    %v6834 = vsel %vm6829, %v6783, -inf
    %v6835 = vsel %vm6825, %v6784, -inf
    %v6836 = vsel %vm6826, %v6785, -inf
    %v6837 = vsel %vm6827, %v6786, -inf
    %v6838 = vsel %vm6828, %v6787, -inf
    %v6839 = vsel %vm6829, %v6788, -inf
    %v6840 = vsel %vm6825, %v6789, -inf
    %v6841 = vsel %vm6826, %v6790, -inf
    %v6842 = vsel %vm6827, %v6791, -inf
    %v6843 = vsel %vm6828, %v6792, -inf
    %v6844 = vsel %vm6829, %v6793, -inf
    %v6845 = vsel %vm6825, %v6794, -inf
    %v6846 = vsel %vm6826, %v6795, -inf
    %v6847 = vsel %vm6827, %v6796, -inf
    %v6848 = vsel %vm6828, %v6797, -inf
    %v6849 = vsel %vm6829, %v6798, -inf
    %v6850 = vsel %vm6825, %v6799, -inf
    %v6851 = vsel %vm6826, %v6800, -inf
    %v6852 = vsel %vm6827, %v6801, -inf
    %v6853 = vsel %vm6828, %v6802, -inf
    %v6854 = vsel %vm6829, %v6803, -inf
    %v6855 = vsel %vm6825, %v6804, -inf
    %v6856 = vsel %vm6826, %v6805, -inf
    %v6857 = vsel %vm6827, %v6806, -inf
    %v6858 = vsel %vm6828, %v6807, -inf
    %v6859 = vsel %vm6829, %v6808, -inf
    %v6860 = vsel %vm6825, %v6809, -inf
    %v6861 = vsel %vm6826, %v6810, -inf
    %v6862 = vsel %vm6827, %v6811, -inf
    %v6863 = vsel %vm6828, %v6812, -inf
    %v6864 = vsel %vm6829, %v6813, -inf
    %v6865 = vsel %vm6825, %v6814, -inf
    %v6866 = vsel %vm6826, %v6815, -inf
    %v6867 = vsel %vm6827, %v6816, -inf
    %v6868 = vsel %vm6828, %v6817, -inf
    %v6869 = vsel %vm6829, %v6818, -inf
    %v6870 = vsel %vm3472, %v6830, -inf
    %v6871 = vsel %vm3472, %v6831, -inf
    %v6872 = vmax.f32 %v6870, %v6871
    %v6873 = vsel %vm3472, %v6832, -inf
    %v6874 = vmax.f32 %v6872, %v6873
    %v6875 = vsel %vm3472, %v6833, -inf
    %v6876 = vmax.f32 %v6874, %v6875
    %v6877 = vsel %vm3472, %v6834, -inf
    %v6878 = vmax.f32 %v6876, %v6877
    %v6879 = vrot.slane %v6878, 4
    %v6880 = vmax.f32 %v6878, %v6879
    %v6881 = vrot.slane %v6880, 2
    %v6882 = vmax.f32 %v6880, %v6881
    %v6883 = vrot.slane %v6882, 1
    %v6884 = vmax.f32 %v6882, %v6883
    %v6885 = vsel %vm3472, %v6835, -inf
    %v6886 = vsel %vm3472, %v6836, -inf
    %v6887 = vmax.f32 %v6885, %v6886
    %v6888 = vsel %vm3472, %v6837, -inf
    %v6889 = vmax.f32 %v6887, %v6888
    %v6890 = vsel %vm3472, %v6838, -inf
    %v6891 = vmax.f32 %v6889, %v6890
    %v6892 = vsel %vm3472, %v6839, -inf
    %v6893 = vmax.f32 %v6891, %v6892
    %v6894 = vrot.slane %v6893, 4
    %v6895 = vmax.f32 %v6893, %v6894
    %v6896 = vrot.slane %v6895, 2
    %v6897 = vmax.f32 %v6895, %v6896
    %v6898 = vrot.slane %v6897, 1
    %v6899 = vmax.f32 %v6897, %v6898
    %v6900 = vsel %vm3472, %v6840, -inf
    %v6901 = vsel %vm3472, %v6841, -inf
    %v6902 = vmax.f32 %v6900, %v6901
    %v6903 = vsel %vm3472, %v6842, -inf
    %v6904 = vmax.f32 %v6902, %v6903
    %v6905 = vsel %vm3472, %v6843, -inf
    %v6906 = vmax.f32 %v6904, %v6905
    %v6907 = vsel %vm3472, %v6844, -inf
    %v6908 = vmax.f32 %v6906, %v6907
    %v6909 = vrot.slane %v6908, 4
    %v6910 = vmax.f32 %v6908, %v6909
    %v6911 = vrot.slane %v6910, 2
    %v6912 = vmax.f32 %v6910, %v6911
    %v6913 = vrot.slane %v6912, 1
    %v6914 = vmax.f32 %v6912, %v6913
    %v6915 = vsel %vm3472, %v6845, -inf
    %v6916 = vsel %vm3472, %v6846, -inf
    %v6917 = vmax.f32 %v6915, %v6916
    %v6918 = vsel %vm3472, %v6847, -inf
    %v6919 = vmax.f32 %v6917, %v6918
    %v6920 = vsel %vm3472, %v6848, -inf
    %v6921 = vmax.f32 %v6919, %v6920
    %v6922 = vsel %vm3472, %v6849, -inf
    %v6923 = vmax.f32 %v6921, %v6922
    %v6924 = vrot.slane %v6923, 4
    %v6925 = vmax.f32 %v6923, %v6924
    %v6926 = vrot.slane %v6925, 2
    %v6927 = vmax.f32 %v6925, %v6926
    %v6928 = vrot.slane %v6927, 1
    %v6929 = vmax.f32 %v6927, %v6928
    %v6930 = vsel %vm3472, %v6850, -inf
    %v6931 = vsel %vm3472, %v6851, -inf
    %v6932 = vmax.f32 %v6930, %v6931
    %v6933 = vsel %vm3472, %v6852, -inf
    %v6934 = vmax.f32 %v6932, %v6933
    %v6935 = vsel %vm3472, %v6853, -inf
    %v6936 = vmax.f32 %v6934, %v6935
    %v6937 = vsel %vm3472, %v6854, -inf
    %v6938 = vmax.f32 %v6936, %v6937
    %v6939 = vrot.slane %v6938, 4
    %v6940 = vmax.f32 %v6938, %v6939
    %v6941 = vrot.slane %v6940, 2
    %v6942 = vmax.f32 %v6940, %v6941
    %v6943 = vrot.slane %v6942, 1
    %v6944 = vmax.f32 %v6942, %v6943
    %v6945 = vsel %vm3472, %v6855, -inf
    %v6946 = vsel %vm3472, %v6856, -inf
    %v6947 = vmax.f32 %v6945, %v6946
    %v6948 = vsel %vm3472, %v6857, -inf
    %v6949 = vmax.f32 %v6947, %v6948
    %v6950 = vsel %vm3472, %v6858, -inf
    %v6951 = vmax.f32 %v6949, %v6950
    %v6952 = vsel %vm3472, %v6859, -inf
    %v6953 = vmax.f32 %v6951, %v6952
    %v6954 = vrot.slane %v6953, 4
    %v6955 = vmax.f32 %v6953, %v6954
    %v6956 = vrot.slane %v6955, 2
    %v6957 = vmax.f32 %v6955, %v6956
    %v6958 = vrot.slane %v6957, 1
    %v6959 = vmax.f32 %v6957, %v6958
    %v6960 = vsel %vm3472, %v6860, -inf
    %v6961 = vsel %vm3472, %v6861, -inf
    %v6962 = vmax.f32 %v6960, %v6961
    %v6963 = vsel %vm3472, %v6862, -inf
    %v6964 = vmax.f32 %v6962, %v6963
    %v6965 = vsel %vm3472, %v6863, -inf
    %v6966 = vmax.f32 %v6964, %v6965
    %v6967 = vsel %vm3472, %v6864, -inf
    %v6968 = vmax.f32 %v6966, %v6967
    %v6969 = vrot.slane %v6968, 4
    %v6970 = vmax.f32 %v6968, %v6969
    %v6971 = vrot.slane %v6970, 2
    %v6972 = vmax.f32 %v6970, %v6971
    %v6973 = vrot.slane %v6972, 1
    %v6974 = vmax.f32 %v6972, %v6973
    %v6975 = vsel %vm3472, %v6865, -inf
    %v6976 = vsel %vm3472, %v6866, -inf
    %v6977 = vmax.f32 %v6975, %v6976
    %v6978 = vsel %vm3472, %v6867, -inf
    %v6979 = vmax.f32 %v6977, %v6978
    %v6980 = vsel %vm3472, %v6868, -inf
    %v6981 = vmax.f32 %v6979, %v6980
    %v6982 = vsel %vm3472, %v6869, -inf
    %v6983 = vmax.f32 %v6981, %v6982
    %v6984 = vrot.slane %v6983, 4
    %v6985 = vmax.f32 %v6983, %v6984
    %v6986 = vrot.slane %v6985, 2
    %v6987 = vmax.f32 %v6985, %v6986
    %v6988 = vrot.slane %v6987, 1
    %v6989 = vmax.f32 %v6987, %v6988
    %v6990 = vld [vmem:[#allocation15] sm:$0x1]
    %v6991 = vlaneseq
    %v6992 = vshrl.u32 %v6991, 7
    %v6993 = vsub.s32 0, %v6992
    %v6994 = vrot.slane %v6990, %v6993
    %v6995 = vmul.f32 %v6096, %v6994
    %v6996 = vsel %vm6525, %v6995, 0.0
    %6997 = vadd.xlane.f32.xlu0 %v6996
    %v6998 = vpop.xlane.xlu0 %6997
    %v6999 = vld [vmem:[#allocation15 + $0x1] sm:$0x1]
    %v7000 = vlaneseq
    %v7001 = vshrl.u32 %v7000, 7
    %v7002 = vsub.s32 0, %v7001
    %v7003 = vrot.slane %v6999, %v7002
    %v7004 = vmul.f32 %v6096, %v7003
    %v7005 = vsel %vm6525, %v7004, 0.0
    %7006 = vadd.xlane.f32.xlu0 %v7005
    %v7007 = vpop.xlane.xlu0 %7006
    %vm7008 = vcmask 7168
    %v7009 = vsel %vm7008, %v6998, %v7007
    %v7010 = vld [vmem:[#allocation16] sm:$0x1]
    %v7012 = vlaneseq
    %v7013 = vshrl.u32 %v7012, 7
    %v7014 = vsub.s32 0, %v7013
    %v7015 = vrot.slane %v7010, %v7014
    %v7017 = vadd.f32 %v7009, %v7015
    %vm7018 = vcmask 15360
    %v7019 = vsel %vm7018, %v7017, -inf
    %7020 = vmax.xlane.f32.xlu0 %v7019
    %v7021 = vpop.xlane.xlu0 %7020
    %v7022 = vsub.f32 %v7017, %v7021
    %v7023 = vmul.f32 %v7022, 1.442695
    %v7024 = vpow.pop %v7023
    %v7025 = vsel %vm7018, %v7024, 0.0
    %7026 = vadd.xlane.f32.xlu0 %v7025
    %v7027 = vpop.xlane.xlu0 %7026
    %v7028 = vlog2.pop %v7027
    %v7029 = vmul.f32 %v7028, 0.6931472
    %v7030 = vadd.f32 %v7029, %v7021
    %v7031 = vsub.f32 %v7017, %v7030
    %v7032 = vld [vmem:[#allocation18] sm:$0x1]
    %v7033 = vlaneseq
    %v7034 = vshrl.u32 %v7033, 7
    %v7035 = vsub.s32 0, %v7034
    %v7036 = vrot.slane %v7032, %v7035
    %v7037 = vmul.f32 %v6884, %v7036
    %v7038 = vmul.f32 %v6899, %v7036
    %v7039 = vmul.f32 %v6914, %v7036
    %v7040 = vmul.f32 %v6929, %v7036
    %v7041 = vmul.f32 %v6944, %v7036
    %v7042 = vmul.f32 %v6959, %v7036
    %v7043 = vmul.f32 %v6974, %v7036
    %v7044 = vmul.f32 %v6989, %v7036
    %v7053 = vrot.slane %v7038, 7
    %vm7054 = vcmask 1041409
    %v7055 = vsel %vm7054, %v7053, %v7037
    %v7056 = vrot.slane %v7039, 6
    %vm7057 = vcmask 1042434
    %v7058 = vsel %vm7057, %v7056, %v7055
    %v7059 = vrot.slane %v7040, 5
    %vm7060 = vcmask 1043459
    %v7061 = vsel %vm7060, %v7059, %v7058
    %v7062 = vrot.slane %v7041, 4
    %vm7063 = vcmask 1044484
    %v7064 = vsel %vm7063, %v7062, %v7061
    %v7065 = vrot.slane %v7042, 3
    %vm7066 = vcmask 1045509
    %v7067 = vsel %vm7066, %v7065, %v7064
    %v7068 = vrot.slane %v7043, 2
    %vm7069 = vcmask 1046534
    %v7070 = vsel %vm7069, %v7068, %v7067
    %v7071 = vrot.slane %v7044, 1
    %vm7072 = vcmask 1047559
    %v7073 = vsel %vm7072, %v7071, %v7070
    %v7075 = vsel %vm3472, %v7073, 0.0
    %7076 = vadd.xlane.f32.xlu0 %v7075
    %v7077 = vpop.xlane.xlu0 %7076
    %v7078 = vld [vmem:[#allocation18 + $0x1] sm:$0x1]
    %v7079 = vlaneseq
    %v7080 = vshrl.u32 %v7079, 7
    %v7081 = vsub.s32 0, %v7080
    %v7082 = vrot.slane %v7078, %v7081
    %v7083 = vmul.f32 %v6884, %v7082
    %v7084 = vmul.f32 %v6899, %v7082
    %v7085 = vmul.f32 %v6914, %v7082
    %v7086 = vmul.f32 %v6929, %v7082
    %v7087 = vmul.f32 %v6944, %v7082
    %v7088 = vmul.f32 %v6959, %v7082
    %v7089 = vmul.f32 %v6974, %v7082
    %v7090 = vmul.f32 %v6989, %v7082
    %v7099 = vrot.slane %v7084, 7
    %v7100 = vsel %vm7054, %v7099, %v7083
    %v7101 = vrot.slane %v7085, 6
    %v7102 = vsel %vm7057, %v7101, %v7100
    %v7103 = vrot.slane %v7086, 5
    %v7104 = vsel %vm7060, %v7103, %v7102
    %v7105 = vrot.slane %v7087, 4
    %v7106 = vsel %vm7063, %v7105, %v7104
    %v7107 = vrot.slane %v7088, 3
    %v7108 = vsel %vm7066, %v7107, %v7106
    %v7109 = vrot.slane %v7089, 2
    %v7110 = vsel %vm7069, %v7109, %v7108
    %v7111 = vrot.slane %v7090, 1
    %v7112 = vsel %vm7072, %v7111, %v7110
    %v7114 = vsel %vm3472, %v7112, 0.0
    %7115 = vadd.xlane.f32.xlu0 %v7114
    %v7116 = vpop.xlane.xlu0 %7115
    %v7117 = vsel %vm7008, %v7077, %v7116
    %v7118 = vld [vmem:[#allocation19] sm:$0x1]
    %v7120 = vlaneseq
    %v7121 = vshrl.u32 %v7120, 7
    %v7122 = vsub.s32 0, %v7121
    %v7123 = vrot.slane %v7118, %v7122
    %v7125 = vadd.f32 %v7117, %v7123
    %v7126 = vsel %vm7018, %v7125, -inf
    %7127 = vmax.xlane.f32.xlu0 %v7126
    %v7128 = vpop.xlane.xlu0 %7127
    %v7129 = vsub.f32 %v7125, %v7128
    %v7130 = vmul.f32 %v7129, 1.442695
    %v7131 = vpow.pop %v7130
    %v7132 = vsel %vm7018, %v7131, 0.0
    %7133 = vadd.xlane.f32.xlu0 %v7132
    %v7134 = vpop.xlane.xlu0 %7133
    %v7135 = vlog2.pop %v7134
    %v7136 = vmul.f32 %v7135, 0.6931472
    %v7137 = vadd.f32 %v7136, %v7128
    %v7138 = vsub.f32 %v7125, %v7137
    %v7139 = vadd.f32 %v7031, %v7138
    %v7140 = vmul.f32 %v7139, 0.5
    %7141 = vst.msk [vmem:[%s15] sm:$0xff] %vm7018, %v7140
    // Predicated region
    $region110: #{joined_discriminator_forward.1} parent=1 // pred_check
      _
    $region111: #{joined_discriminator_forward.1} parent=1 // pred_check_branch
      %7143 = sbr.rel (0) target = $region113
    $region112: #{joined_discriminator_forward.1} parent=1 // pred_region
      _
    $region113: #{joined_discriminator_forward.1} parent=1 // pred_fallthru
      _
    // Predicated region
    $region114: #{joined_discriminator_forward.1} parent=1 // pred_check
      _
    $region115: #{joined_discriminator_forward.1} parent=1 // pred_check_branch
      %7145 = sbr.rel (0) target = $region117
    $region116: #{joined_discriminator_forward.1} parent=1 // pred_region
      _
    $region117: #{joined_discriminator_forward.1} parent=1 // pred_fallthru
      _
    %7146 = vsyncpa [#allocation3], 1
    %7147 = vsyncpa [#allocation5], 1
    %7148 = vsyncpa [#allocation8], 1
    %7149 = vsyncpa [#allocation11], 1
    %7150 = vsyncpa [#allocation14], 1
    %7151 = vsyncpa [#allocation17], 1
    %7152 = vsyncpa [#allocation20], 1

</llo_original>
